<compile_context>
chip_gen: v5e
topology: v5e:2x2
jax: 0.10.0
libtpu: 0.0.40
codegen_flags: <defaults>
</compile_context>

<pallas_src>
import jax
import jax.numpy as jnp
from jax import lax
from jax.experimental import pallas as pl
from jax.experimental.pallas import tpu as pltpu

# ---- model dimensions (synthetic: vocab / num_tags chosen small) ------------
VOCAB = 32            # len(vocabulary.get_itos()) -- synthetic
EMB = 100             # embedding dim from the module
H = 256               # LSTM hidden size
NUM_TAGS = 8          # num_tags -- synthetic
E_PAD = 128           # pad 100 -> 128 for lane alignment
NT_PAD = 128          # pad num_tags -> 128 for lane-dense output stores
MXU_DTYPE = jnp.bfloat16   # matmul-operand dtype (f32 accumulate everywhere)


def lstm_seq_kernel(emb_ref, wih_ref, whh_ref, b_ref, wfc_ref, bfc_ref,
                    out_ref, gx_ref, hs_ref):
    """Whole sequence in one invocation.

    Phase 1: batched input projection  gx = relu(emb) @ W_ih + b        (MXU)
    Phase 2: sequential LSTM recurrence (the only truly serial part)
    Phase 3: batched output projection  logits = hs @ W_fc + b_fc        (MXU)
    """
    T, Bp, _ = emb_ref.shape

    # ---- Phase 1: one big matmul over all T*Bp rows (fills MXU rows). -------
    x_all = jnp.maximum(emb_ref[...], 0).reshape(T * Bp, E_PAD)     # ReLU, bf16
    gx = jnp.dot(x_all, wih_ref[...],
                 preferred_element_type=jnp.float32) + b_ref[...]   # (T*Bp, 4H) f32
    gx_ref[...] = gx.reshape(T, Bp, 4 * H)

    # ---- Phase 2: recurrence; per step only h @ W_hh + gx[t]. ---------------
    def step(t, carry):
        h, c = carry
        gates = gx_ref[t] + jnp.dot(h.astype(MXU_DTYPE), whh_ref[...],
                                    preferred_element_type=jnp.float32)
        # PyTorch gate order: input, forget, cell(g), output.
        i_g = jax.nn.sigmoid(gates[:, 0 * H:1 * H])
        f_g = jax.nn.sigmoid(gates[:, 1 * H:2 * H])
        g_g = jnp.tanh(gates[:, 2 * H:3 * H])
        o_g = jax.nn.sigmoid(gates[:, 3 * H:4 * H])
        c_new = f_g * c + i_g * g_g
        h_new = o_g * jnp.tanh(c_new)
        hs_ref[t] = h_new.astype(MXU_DTYPE)
        return h_new, c_new

    h0 = jnp.zeros((Bp, H), jnp.float32)
    c0 = jnp.zeros((Bp, H), jnp.float32)
    # Fully unroll small/static T (LLO scheduler visibility); loop for long T.
    lax.fori_loop(0, T, step, (h0, c0), unroll=(T <= 32))

    # ---- Phase 3: one batched fc over all T*Bp hidden states. ---------------
    hs = hs_ref[...].reshape(T * Bp, H)                              # bf16
    logits = jnp.dot(hs, wfc_ref[...],
                     preferred_element_type=jnp.float32) + bfc_ref[...]
    out_ref[...] = logits.reshape(T, Bp, NT_PAD)


def prepare_params(params):
    """One-time weight prep: pad / transpose / cast so the kernel is MXU-ready."""
    emb_pad = jnp.pad(params["emb"], ((0, 0), (0, E_PAD - EMB)))          # (V, E_PAD)
    w_ih = jnp.pad(params["w_ih"].T, ((0, E_PAD - EMB), (0, 0)))          # (E_PAD, 4H)
    w_hh = params["w_hh"].T                                               # (H, 4H)
    b_g = (params["b_ih"] + params["b_hh"]).reshape(1, 4 * H)             # (1, 4H)
    w_fc = jnp.pad(params["w_fc"].T, ((0, 0), (0, NT_PAD - NUM_TAGS)))    # (H, NT_PAD)
    b_fc = jnp.pad(params["b_fc"], (0, NT_PAD - NUM_TAGS)).reshape(1, NT_PAD)
    return {
        # bf16 table -> halves the sequence-input DMA; ReLU/rounding commute.
        "emb": emb_pad.astype(MXU_DTYPE),
        "w_ih": w_ih.astype(MXU_DTYPE),
        "w_hh": w_hh.astype(MXU_DTYPE),
        "b_g": b_g,                           # f32 (added to f32 accumulators)
        "w_fc": w_fc.astype(MXU_DTYPE),
        "b_fc": b_fc,                         # f32
    }


@jax.jit
def lstm_forward(tokens, prep):
    """tokens: (B, T) int32 -> logits (B, T, NUM_TAGS) float32."""
    B, T = tokens.shape
    Bp = ((B + 7) // 8) * 8          # pad batch to the sublane count

    # Pad batch with token 0; padded rows are computed then discarded.
    tokens_p = jnp.pad(tokens, ((0, Bp - B), (0, 0)))
    # Gather straight from the pre-padded bf16 table in time-major order:
    # (T, Bp, E_PAD) with no extra pad/transpose of the embedded sequence.
    emb_tm = jnp.take(prep["emb"], tokens_p.T, axis=0)

    out = pl.pallas_call(
        lstm_seq_kernel,
        out_shape=jax.ShapeDtypeStruct((T, Bp, NT_PAD), jnp.float32),
        scratch_shapes=[
            pltpu.VMEM((T, Bp, 4 * H), jnp.float32),   # gx: input projections
            pltpu.VMEM((T, Bp, H), MXU_DTYPE),         # hs: hidden states (bf16)
        ],
    )(emb_tm, prep["w_ih"], prep["w_hh"], prep["b_g"], prep["w_fc"], prep["b_fc"])

    # (T, Bp, NT_PAD) -> (B, T, NUM_TAGS)
    return jnp.transpose(out, (1, 0, 2))[:B, :, :NUM_TAGS]


def init_params(key):
    ks = jax.random.split(key, 6)
    bound = 1.0 / jnp.sqrt(H)
    return {
        "emb": jax.random.normal(ks[0], (VOCAB, EMB), jnp.float32),
        "w_ih": jax.random.uniform(ks[1], (4 * H, EMB), jnp.float32, -bound, bound),
        "w_hh": jax.random.uniform(ks[2], (4 * H, H), jnp.float32, -bound, bound),
        "b_ih": jax.random.uniform(ks[3], (4 * H,), jnp.float32, -bound, bound),
        "b_hh": jax.random.uniform(ks[4], (4 * H,), jnp.float32, -bound, bound),
        "w_fc": jax.random.uniform(ks[5], (NUM_TAGS, H), jnp.float32, -bound, bound),
        "b_fc": jnp.zeros((NUM_TAGS,), jnp.float32),
    }


def lstm_forward_ref(tokens, params):
    """Pure-JAX f32 reference (mirrors torch semantics)."""
    emb = jnp.maximum(jnp.take(params["emb"], tokens, axis=0), 0.0)  # (B,T,E)
    B = tokens.shape[0]

    def step(carry, x_t):
        h, c = carry
        gates = x_t @ params["w_ih"].T + h @ params["w_hh"].T \
            + params["b_ih"] + params["b_hh"]
        i_g = jax.nn.sigmoid(gates[:, 0 * H:1 * H])
        f_g = jax.nn.sigmoid(gates[:, 1 * H:2 * H])
        g_g = jnp.tanh(gates[:, 2 * H:3 * H])
        o_g = jax.nn.sigmoid(gates[:, 3 * H:4 * H])
        c = f_g * c + i_g * g_g
        h = o_g * jnp.tanh(c)
        return (h, c), h

    init = (jnp.zeros((B, H)), jnp.zeros((B, H)))
    _, hs = jax.lax.scan(step, init, jnp.transpose(emb, (1, 0, 2)))
    hs = jnp.transpose(hs, (1, 0, 2))                               # (B,T,H)
    return hs @ params["w_fc"].T + params["b_fc"]


if __name__ == "__main__":
    key = jax.random.PRNGKey(0)
    pkey, tkey = jax.random.split(key)
    params = init_params(pkey)
    prep = prepare_params(params)     # one-time weight prep (pad/transpose/bf16)

    B, T = 2, 8
    tokens = jax.random.randint(tkey, (B, T), 0, VOCAB, dtype=jnp.int32)

    out = lstm_forward(tokens, prep)
    out = jax.block_until_ready(out)

    ref = lstm_forward_ref(tokens, params)
    assert out.shape == (B, T, NUM_TAGS), out.shape
    # bf16 MXU operands / bf16 embedding values (f32 accumulate + f32 gate math):
    # expected precision loss ~1e-2; loosened tolerance accordingly.
    err = float(jnp.max(jnp.abs(out - ref)))
    assert jnp.allclose(out, ref, rtol=5e-2, atol=5e-2), err

    print("KERNEL_OK")
</pallas_src>

<mosaic_0001>
module attributes {stable_mosaic.version = 11 : i64} {
  func.func @lstm_seq_kernel(%arg0: memref<8x8x128xbf16, #tpu.memory_space<vmem>>, %arg1: memref<128x1024xbf16, #tpu.memory_space<vmem>>, %arg2: memref<256x1024xbf16, #tpu.memory_space<vmem>>, %arg3: memref<1x1024xf32, #tpu.memory_space<vmem>>, %arg4: memref<256x128xbf16, #tpu.memory_space<vmem>>, %arg5: memref<1x128xf32, #tpu.memory_space<vmem>>, %arg6: memref<8x8x128xf32, #tpu.memory_space<vmem>>, %arg7: memref<8x8x1024xf32, #tpu.memory_space<vmem>>, %arg8: memref<8x8x256xbf16, #tpu.memory_space<vmem>>) attributes {dimension_semantics = [], scalar_prefetch = 0 : i64, scratch_operands = 2 : i64, tpu.core_type = #tpu.core_type<tc>} {
    %c0 = arith.constant 0 : index
    %c0_0 = arith.constant 0 : index
    %c0_1 = arith.constant 0 : index
    %0 = vector.load %arg0[%c0, %c0_0, %c0_1] : memref<8x8x128xbf16, #tpu.memory_space<vmem>>, vector<8x8x128xbf16>
    %cst = arith.constant 0.000000e+00 : bf16
    %1 = vector.broadcast %cst : bf16 to vector<8x8x128xbf16>
    %2 = arith.maximumf %0, %1 : vector<8x8x128xbf16>
    %3 = vector.shape_cast %2 : vector<8x8x128xbf16> to vector<64x128xbf16>
    %c0_2 = arith.constant 0 : index
    %c0_3 = arith.constant 0 : index
    %4 = vector.load %arg1[%c0_2, %c0_3] : memref<128x1024xbf16, #tpu.memory_space<vmem>>, vector<128x1024xbf16>
    %cst_4 = arith.constant dense<0.000000e+00> : vector<64x1024xf32>
    %5 = tpu.matmul %3, %4, %cst_4 {dimension_numbers = #tpu.dot_dimension_numbers<[1], [0], [0], [1], [0, 0, 1, 1], [], []>} : vector<64x128xbf16>, vector<128x1024xbf16>, vector<64x1024xf32> -> vector<64x1024xf32>
    %c0_5 = arith.constant 0 : index
    %c0_6 = arith.constant 0 : index
    %6 = vector.load %arg3[%c0_5, %c0_6] : memref<1x1024xf32, #tpu.memory_space<vmem>>, vector<1x1024xf32>
    %7 = vector.broadcast %6 : vector<1x1024xf32> to vector<64x1024xf32>
    %8 = arith.addf %5, %7 : vector<64x1024xf32>
    %9 = vector.shape_cast %8 : vector<64x1024xf32> to vector<8x8x1024xf32>
    %c0_7 = arith.constant 0 : index
    %c0_8 = arith.constant 0 : index
    %c0_9 = arith.constant 0 : index
    %10 = vector.load %arg7[%c0_7, %c0_8, %c0_9] : memref<8x8x1024xf32, #tpu.memory_space<vmem>>, vector<8x8x1024xf32>
    tpu.vector_store %arg7[%c0_7, %c0_8, %c0_9], %9 {strides = array<i32>} : memref<8x8x1024xf32, #tpu.memory_space<vmem>>, vector<8x8x1024xf32>,
    %cst_10 = arith.constant 0.000000e+00 : f32
    %11 = vector.broadcast %cst_10 : f32 to vector<8x256xf32>
    %cst_11 = arith.constant 0.000000e+00 : f32
    %12 = vector.broadcast %cst_11 : f32 to vector<8x256xf32>
    %c0_i32 = arith.constant 0 : i32
    %13 = arith.index_cast %c0_i32 : i32 to index
    %c0_12 = arith.constant 0 : index
    %c0_13 = arith.constant 0 : index
    %14 = vector.load %arg7[%13, %c0_12, %c0_13] : memref<8x8x1024xf32, #tpu.memory_space<vmem>>, vector<1x8x1024xf32>
    %15 = vector.shape_cast %14 : vector<1x8x1024xf32> to vector<8x1024xf32>
    %16 = arith.truncf %11 : vector<8x256xf32> to vector<8x256xbf16>
    %c0_14 = arith.constant 0 : index
    %c0_15 = arith.constant 0 : index
    %17 = vector.load %arg2[%c0_14, %c0_15] : memref<256x1024xbf16, #tpu.memory_space<vmem>>, vector<256x1024xbf16>
    %cst_16 = arith.constant dense<0.000000e+00> : vector<8x1024xf32>
    %18 = tpu.matmul %16, %17, %cst_16 {dimension_numbers = #tpu.dot_dimension_numbers<[1], [0], [0], [1], [0, 0, 1, 1], [], []>} : vector<8x256xbf16>, vector<256x1024xbf16>, vector<8x1024xf32> -> vector<8x1024xf32>
    %19 = arith.addf %15, %18 : vector<8x1024xf32>
    %20 = vector.extract_strided_slice %19 {offsets = [0, 0], sizes = [8, 256], strides = [1, 1]} : vector<8x1024xf32> to vector<8x256xf32>
    %21 = arith.negf %20 : vector<8x256xf32>
    %22 = math.exp %21 : vector<8x256xf32>
    %cst_17 = arith.constant 1.000000e+00 : f32
    %23 = vector.broadcast %cst_17 : f32 to vector<8x256xf32>
    %24 = arith.addf %23, %22 : vector<8x256xf32>
    %25 = arith.divf %23, %24 : vector<8x256xf32>
    %26 = vector.extract_strided_slice %19 {offsets = [0, 256], sizes = [8, 256], strides = [1, 1]} : vector<8x1024xf32> to vector<8x256xf32>
    %27 = arith.negf %26 : vector<8x256xf32>
    %28 = math.exp %27 : vector<8x256xf32>
    %cst_18 = arith.constant 1.000000e+00 : f32
    %29 = vector.broadcast %cst_18 : f32 to vector<8x256xf32>
    %30 = arith.addf %29, %28 : vector<8x256xf32>
    %31 = arith.divf %29, %30 : vector<8x256xf32>
    %32 = vector.extract_strided_slice %19 {offsets = [0, 512], sizes = [8, 256], strides = [1, 1]} : vector<8x1024xf32> to vector<8x256xf32>
    %33 = math.tanh %32 : vector<8x256xf32>
    %34 = vector.extract_strided_slice %19 {offsets = [0, 768], sizes = [8, 256], strides = [1, 1]} : vector<8x1024xf32> to vector<8x256xf32>
    %35 = arith.negf %34 : vector<8x256xf32>
    %36 = math.exp %35 : vector<8x256xf32>
    %cst_19 = arith.constant 1.000000e+00 : f32
    %37 = vector.broadcast %cst_19 : f32 to vector<8x256xf32>
    %38 = arith.addf %37, %36 : vector<8x256xf32>
    %39 = arith.divf %37, %38 : vector<8x256xf32>
    %40 = arith.mulf %31, %12 : vector<8x256xf32>
    %41 = arith.mulf %25, %33 : vector<8x256xf32>
    %42 = arith.addf %40, %41 : vector<8x256xf32>
    %43 = math.tanh %42 : vector<8x256xf32>
    %44 = arith.mulf %39, %43 : vector<8x256xf32>
    %45 = arith.truncf %44 : vector<8x256xf32> to vector<8x256xbf16>
    %46 = arith.index_cast %c0_i32 : i32 to index
    %c0_20 = arith.constant 0 : index
    %c0_21 = arith.constant 0 : index
    %47 = vector.load %arg8[%46, %c0_20, %c0_21] : memref<8x8x256xbf16, #tpu.memory_space<vmem>>, vector<1x8x256xbf16>
    %48 = vector.shape_cast %47 : vector<1x8x256xbf16> to vector<8x256xbf16>
    %49 = vector.shape_cast %45 : vector<8x256xbf16> to vector<1x8x256xbf16>
    tpu.vector_store %arg8[%46, %c0_20, %c0_21], %49 {strides = array<i32>} : memref<8x8x256xbf16, #tpu.memory_space<vmem>>, vector<1x8x256xbf16>,
    %c1_i32 = arith.constant 1 : i32
    %50 = arith.index_cast %c1_i32 : i32 to index
    %c0_22 = arith.constant 0 : index
    %c0_23 = arith.constant 0 : index
    %51 = vector.load %arg7[%50, %c0_22, %c0_23] : memref<8x8x1024xf32, #tpu.memory_space<vmem>>, vector<1x8x1024xf32>
    %52 = vector.shape_cast %51 : vector<1x8x1024xf32> to vector<8x1024xf32>
    %53 = arith.truncf %44 : vector<8x256xf32> to vector<8x256xbf16>
    %c0_24 = arith.constant 0 : index
    %c0_25 = arith.constant 0 : index
    %54 = vector.load %arg2[%c0_24, %c0_25] : memref<256x1024xbf16, #tpu.memory_space<vmem>>, vector<256x1024xbf16>
    %cst_26 = arith.constant dense<0.000000e+00> : vector<8x1024xf32>
    %55 = tpu.matmul %53, %54, %cst_26 {dimension_numbers = #tpu.dot_dimension_numbers<[1], [0], [0], [1], [0, 0, 1, 1], [], []>} : vector<8x256xbf16>, vector<256x1024xbf16>, vector<8x1024xf32> -> vector<8x1024xf32>
    %56 = arith.addf %52, %55 : vector<8x1024xf32>
    %57 = vector.extract_strided_slice %56 {offsets = [0, 0], sizes = [8, 256], strides = [1, 1]} : vector<8x1024xf32> to vector<8x256xf32>
    %58 = arith.negf %57 : vector<8x256xf32>
    %59 = math.exp %58 : vector<8x256xf32>
    %cst_27 = arith.constant 1.000000e+00 : f32
    %60 = vector.broadcast %cst_27 : f32 to vector<8x256xf32>
    %61 = arith.addf %60, %59 : vector<8x256xf32>
    %62 = arith.divf %60, %61 : vector<8x256xf32>
    %63 = vector.extract_strided_slice %56 {offsets = [0, 256], sizes = [8, 256], strides = [1, 1]} : vector<8x1024xf32> to vector<8x256xf32>
    %64 = arith.negf %63 : vector<8x256xf32>
    %65 = math.exp %64 : vector<8x256xf32>
    %cst_28 = arith.constant 1.000000e+00 : f32
    %66 = vector.broadcast %cst_28 : f32 to vector<8x256xf32>
    %67 = arith.addf %66, %65 : vector<8x256xf32>
    %68 = arith.divf %66, %67 : vector<8x256xf32>
    %69 = vector.extract_strided_slice %56 {offsets = [0, 512], sizes = [8, 256], strides = [1, 1]} : vector<8x1024xf32> to vector<8x256xf32>
    %70 = math.tanh %69 : vector<8x256xf32>
    %71 = vector.extract_strided_slice %56 {offsets = [0, 768], sizes = [8, 256], strides = [1, 1]} : vector<8x1024xf32> to vector<8x256xf32>
    %72 = arith.negf %71 : vector<8x256xf32>
    %73 = math.exp %72 : vector<8x256xf32>
    %cst_29 = arith.constant 1.000000e+00 : f32
    %74 = vector.broadcast %cst_29 : f32 to vector<8x256xf32>
    %75 = arith.addf %74, %73 : vector<8x256xf32>
    %76 = arith.divf %74, %75 : vector<8x256xf32>
    %77 = arith.mulf %68, %42 : vector<8x256xf32>
    %78 = arith.mulf %62, %70 : vector<8x256xf32>
    %79 = arith.addf %77, %78 : vector<8x256xf32>
    %80 = math.tanh %79 : vector<8x256xf32>
    %81 = arith.mulf %76, %80 : vector<8x256xf32>
    %82 = arith.truncf %81 : vector<8x256xf32> to vector<8x256xbf16>
    %83 = arith.index_cast %c1_i32 : i32 to index
    %c0_30 = arith.constant 0 : index
    %c0_31 = arith.constant 0 : index
    %84 = vector.load %arg8[%83, %c0_30, %c0_31] : memref<8x8x256xbf16, #tpu.memory_space<vmem>>, vector<1x8x256xbf16>
    %85 = vector.shape_cast %84 : vector<1x8x256xbf16> to vector<8x256xbf16>
    %86 = vector.shape_cast %82 : vector<8x256xbf16> to vector<1x8x256xbf16>
    tpu.vector_store %arg8[%83, %c0_30, %c0_31], %86 {strides = array<i32>} : memref<8x8x256xbf16, #tpu.memory_space<vmem>>, vector<1x8x256xbf16>,
    %c2_i32 = arith.constant 2 : i32
    %87 = arith.index_cast %c2_i32 : i32 to index
    %c0_32 = arith.constant 0 : index
    %c0_33 = arith.constant 0 : index
    %88 = vector.load %arg7[%87, %c0_32, %c0_33] : memref<8x8x1024xf32, #tpu.memory_space<vmem>>, vector<1x8x1024xf32>
    %89 = vector.shape_cast %88 : vector<1x8x1024xf32> to vector<8x1024xf32>
    %90 = arith.truncf %81 : vector<8x256xf32> to vector<8x256xbf16>
    %c0_34 = arith.constant 0 : index
    %c0_35 = arith.constant 0 : index
    %91 = vector.load %arg2[%c0_34, %c0_35] : memref<256x1024xbf16, #tpu.memory_space<vmem>>, vector<256x1024xbf16>
    %cst_36 = arith.constant dense<0.000000e+00> : vector<8x1024xf32>
    %92 = tpu.matmul %90, %91, %cst_36 {dimension_numbers = #tpu.dot_dimension_numbers<[1], [0], [0], [1], [0, 0, 1, 1], [], []>} : vector<8x256xbf16>, vector<256x1024xbf16>, vector<8x1024xf32> -> vector<8x1024xf32>
    %93 = arith.addf %89, %92 : vector<8x1024xf32>
    %94 = vector.extract_strided_slice %93 {offsets = [0, 0], sizes = [8, 256], strides = [1, 1]} : vector<8x1024xf32> to vector<8x256xf32>
    %95 = arith.negf %94 : vector<8x256xf32>
    %96 = math.exp %95 : vector<8x256xf32>
    %cst_37 = arith.constant 1.000000e+00 : f32
    %97 = vector.broadcast %cst_37 : f32 to vector<8x256xf32>
    %98 = arith.addf %97, %96 : vector<8x256xf32>
    %99 = arith.divf %97, %98 : vector<8x256xf32>
    %100 = vector.extract_strided_slice %93 {offsets = [0, 256], sizes = [8, 256], strides = [1, 1]} : vector<8x1024xf32> to vector<8x256xf32>
    %101 = arith.negf %100 : vector<8x256xf32>
    %102 = math.exp %101 : vector<8x256xf32>
    %cst_38 = arith.constant 1.000000e+00 : f32
    %103 = vector.broadcast %cst_38 : f32 to vector<8x256xf32>
    %104 = arith.addf %103, %102 : vector<8x256xf32>
    %105 = arith.divf %103, %104 : vector<8x256xf32>
    %106 = vector.extract_strided_slice %93 {offsets = [0, 512], sizes = [8, 256], strides = [1, 1]} : vector<8x1024xf32> to vector<8x256xf32>
    %107 = math.tanh %106 : vector<8x256xf32>
    %108 = vector.extract_strided_slice %93 {offsets = [0, 768], sizes = [8, 256], strides = [1, 1]} : vector<8x1024xf32> to vector<8x256xf32>
    %109 = arith.negf %108 : vector<8x256xf32>
    %110 = math.exp %109 : vector<8x256xf32>
    %cst_39 = arith.constant 1.000000e+00 : f32
    %111 = vector.broadcast %cst_39 : f32 to vector<8x256xf32>
    %112 = arith.addf %111, %110 : vector<8x256xf32>
    %113 = arith.divf %111, %112 : vector<8x256xf32>
    %114 = arith.mulf %105, %79 : vector<8x256xf32>
    %115 = arith.mulf %99, %107 : vector<8x256xf32>
    %116 = arith.addf %114, %115 : vector<8x256xf32>
    %117 = math.tanh %116 : vector<8x256xf32>
    %118 = arith.mulf %113, %117 : vector<8x256xf32>
    %119 = arith.truncf %118 : vector<8x256xf32> to vector<8x256xbf16>
    %120 = arith.index_cast %c2_i32 : i32 to index
    %c0_40 = arith.constant 0 : index
    %c0_41 = arith.constant 0 : index
    %121 = vector.load %arg8[%120, %c0_40, %c0_41] : memref<8x8x256xbf16, #tpu.memory_space<vmem>>, vector<1x8x256xbf16>
    %122 = vector.shape_cast %121 : vector<1x8x256xbf16> to vector<8x256xbf16>
    %123 = vector.shape_cast %119 : vector<8x256xbf16> to vector<1x8x256xbf16>
    tpu.vector_store %arg8[%120, %c0_40, %c0_41], %123 {strides = array<i32>} : memref<8x8x256xbf16, #tpu.memory_space<vmem>>, vector<1x8x256xbf16>,
    %c3_i32 = arith.constant 3 : i32
    %124 = arith.index_cast %c3_i32 : i32 to index
    %c0_42 = arith.constant 0 : index
    %c0_43 = arith.constant 0 : index
    %125 = vector.load %arg7[%124, %c0_42, %c0_43] : memref<8x8x1024xf32, #tpu.memory_space<vmem>>, vector<1x8x1024xf32>
    %126 = vector.shape_cast %125 : vector<1x8x1024xf32> to vector<8x1024xf32>
    %127 = arith.truncf %118 : vector<8x256xf32> to vector<8x256xbf16>
    %c0_44 = arith.constant 0 : index
    %c0_45 = arith.constant 0 : index
    %128 = vector.load %arg2[%c0_44, %c0_45] : memref<256x1024xbf16, #tpu.memory_space<vmem>>, vector<256x1024xbf16>
    %cst_46 = arith.constant dense<0.000000e+00> : vector<8x1024xf32>
    %129 = tpu.matmul %127, %128, %cst_46 {dimension_numbers = #tpu.dot_dimension_numbers<[1], [0], [0], [1], [0, 0, 1, 1], [], []>} : vector<8x256xbf16>, vector<256x1024xbf16>, vector<8x1024xf32> -> vector<8x1024xf32>
    %130 = arith.addf %126, %129 : vector<8x1024xf32>
    %131 = vector.extract_strided_slice %130 {offsets = [0, 0], sizes = [8, 256], strides = [1, 1]} : vector<8x1024xf32> to vector<8x256xf32>
    %132 = arith.negf %131 : vector<8x256xf32>
    %133 = math.exp %132 : vector<8x256xf32>
    %cst_47 = arith.constant 1.000000e+00 : f32
    %134 = vector.broadcast %cst_47 : f32 to vector<8x256xf32>
    %135 = arith.addf %134, %133 : vector<8x256xf32>
    %136 = arith.divf %134, %135 : vector<8x256xf32>
    %137 = vector.extract_strided_slice %130 {offsets = [0, 256], sizes = [8, 256], strides = [1, 1]} : vector<8x1024xf32> to vector<8x256xf32>
    %138 = arith.negf %137 : vector<8x256xf32>
    %139 = math.exp %138 : vector<8x256xf32>
    %cst_48 = arith.constant 1.000000e+00 : f32
    %140 = vector.broadcast %cst_48 : f32 to vector<8x256xf32>
    %141 = arith.addf %140, %139 : vector<8x256xf32>
    %142 = arith.divf %140, %141 : vector<8x256xf32>
    %143 = vector.extract_strided_slice %130 {offsets = [0, 512], sizes = [8, 256], strides = [1, 1]} : vector<8x1024xf32> to vector<8x256xf32>
    %144 = math.tanh %143 : vector<8x256xf32>
    %145 = vector.extract_strided_slice %130 {offsets = [0, 768], sizes = [8, 256], strides = [1, 1]} : vector<8x1024xf32> to vector<8x256xf32>
    %146 = arith.negf %145 : vector<8x256xf32>
    %147 = math.exp %146 : vector<8x256xf32>
    %cst_49 = arith.constant 1.000000e+00 : f32
    %148 = vector.broadcast %cst_49 : f32 to vector<8x256xf32>
    %149 = arith.addf %148, %147 : vector<8x256xf32>
    %150 = arith.divf %148, %149 : vector<8x256xf32>
    %151 = arith.mulf %142, %116 : vector<8x256xf32>
    %152 = arith.mulf %136, %144 : vector<8x256xf32>
    %153 = arith.addf %151, %152 : vector<8x256xf32>
    %154 = math.tanh %153 : vector<8x256xf32>
    %155 = arith.mulf %150, %154 : vector<8x256xf32>
    %156 = arith.truncf %155 : vector<8x256xf32> to vector<8x256xbf16>
    %157 = arith.index_cast %c3_i32 : i32 to index
    %c0_50 = arith.constant 0 : index
    %c0_51 = arith.constant 0 : index
    %158 = vector.load %arg8[%157, %c0_50, %c0_51] : memref<8x8x256xbf16, #tpu.memory_space<vmem>>, vector<1x8x256xbf16>
    %159 = vector.shape_cast %158 : vector<1x8x256xbf16> to vector<8x256xbf16>
    %160 = vector.shape_cast %156 : vector<8x256xbf16> to vector<1x8x256xbf16>
    tpu.vector_store %arg8[%157, %c0_50, %c0_51], %160 {strides = array<i32>} : memref<8x8x256xbf16, #tpu.memory_space<vmem>>, vector<1x8x256xbf16>,
    %c4_i32 = arith.constant 4 : i32
    %161 = arith.index_cast %c4_i32 : i32 to index
    %c0_52 = arith.constant 0 : index
    %c0_53 = arith.constant 0 : index
    %162 = vector.load %arg7[%161, %c0_52, %c0_53] : memref<8x8x1024xf32, #tpu.memory_space<vmem>>, vector<1x8x1024xf32>
    %163 = vector.shape_cast %162 : vector<1x8x1024xf32> to vector<8x1024xf32>
    %164 = arith.truncf %155 : vector<8x256xf32> to vector<8x256xbf16>
    %c0_54 = arith.constant 0 : index
    %c0_55 = arith.constant 0 : index
    %165 = vector.load %arg2[%c0_54, %c0_55] : memref<256x1024xbf16, #tpu.memory_space<vmem>>, vector<256x1024xbf16>
    %cst_56 = arith.constant dense<0.000000e+00> : vector<8x1024xf32>
    %166 = tpu.matmul %164, %165, %cst_56 {dimension_numbers = #tpu.dot_dimension_numbers<[1], [0], [0], [1], [0, 0, 1, 1], [], []>} : vector<8x256xbf16>, vector<256x1024xbf16>, vector<8x1024xf32> -> vector<8x1024xf32>
    %167 = arith.addf %163, %166 : vector<8x1024xf32>
    %168 = vector.extract_strided_slice %167 {offsets = [0, 0], sizes = [8, 256], strides = [1, 1]} : vector<8x1024xf32> to vector<8x256xf32>
    %169 = arith.negf %168 : vector<8x256xf32>
    %170 = math.exp %169 : vector<8x256xf32>
    %cst_57 = arith.constant 1.000000e+00 : f32
    %171 = vector.broadcast %cst_57 : f32 to vector<8x256xf32>
    %172 = arith.addf %171, %170 : vector<8x256xf32>
    %173 = arith.divf %171, %172 : vector<8x256xf32>
    %174 = vector.extract_strided_slice %167 {offsets = [0, 256], sizes = [8, 256], strides = [1, 1]} : vector<8x1024xf32> to vector<8x256xf32>
    %175 = arith.negf %174 : vector<8x256xf32>
    %176 = math.exp %175 : vector<8x256xf32>
    %cst_58 = arith.constant 1.000000e+00 : f32
    %177 = vector.broadcast %cst_58 : f32 to vector<8x256xf32>
    %178 = arith.addf %177, %176 : vector<8x256xf32>
    %179 = arith.divf %177, %178 : vector<8x256xf32>
    %180 = vector.extract_strided_slice %167 {offsets = [0, 512], sizes = [8, 256], strides = [1, 1]} : vector<8x1024xf32> to vector<8x256xf32>
    %181 = math.tanh %180 : vector<8x256xf32>
    %182 = vector.extract_strided_slice %167 {offsets = [0, 768], sizes = [8, 256], strides = [1, 1]} : vector<8x1024xf32> to vector<8x256xf32>
    %183 = arith.negf %182 : vector<8x256xf32>
    %184 = math.exp %183 : vector<8x256xf32>
    %cst_59 = arith.constant 1.000000e+00 : f32
    %185 = vector.broadcast %cst_59 : f32 to vector<8x256xf32>
    %186 = arith.addf %185, %184 : vector<8x256xf32>
    %187 = arith.divf %185, %186 : vector<8x256xf32>
    %188 = arith.mulf %179, %153 : vector<8x256xf32>
    %189 = arith.mulf %173, %181 : vector<8x256xf32>
    %190 = arith.addf %188, %189 : vector<8x256xf32>
    %191 = math.tanh %190 : vector<8x256xf32>
    %192 = arith.mulf %187, %191 : vector<8x256xf32>
    %193 = arith.truncf %192 : vector<8x256xf32> to vector<8x256xbf16>
    %194 = arith.index_cast %c4_i32 : i32 to index
    %c0_60 = arith.constant 0 : index
    %c0_61 = arith.constant 0 : index
    %195 = vector.load %arg8[%194, %c0_60, %c0_61] : memref<8x8x256xbf16, #tpu.memory_space<vmem>>, vector<1x8x256xbf16>
    %196 = vector.shape_cast %195 : vector<1x8x256xbf16> to vector<8x256xbf16>
    %197 = vector.shape_cast %193 : vector<8x256xbf16> to vector<1x8x256xbf16>
    tpu.vector_store %arg8[%194, %c0_60, %c0_61], %197 {strides = array<i32>} : memref<8x8x256xbf16, #tpu.memory_space<vmem>>, vector<1x8x256xbf16>,
    %c5_i32 = arith.constant 5 : i32
    %198 = arith.index_cast %c5_i32 : i32 to index
    %c0_62 = arith.constant 0 : index
    %c0_63 = arith.constant 0 : index
    %199 = vector.load %arg7[%198, %c0_62, %c0_63] : memref<8x8x1024xf32, #tpu.memory_space<vmem>>, vector<1x8x1024xf32>
    %200 = vector.shape_cast %199 : vector<1x8x1024xf32> to vector<8x1024xf32>
    %201 = arith.truncf %192 : vector<8x256xf32> to vector<8x256xbf16>
    %c0_64 = arith.constant 0 : index
    %c0_65 = arith.constant 0 : index
    %202 = vector.load %arg2[%c0_64, %c0_65] : memref<256x1024xbf16, #tpu.memory_space<vmem>>, vector<256x1024xbf16>
    %cst_66 = arith.constant dense<0.000000e+00> : vector<8x1024xf32>
    %203 = tpu.matmul %201, %202, %cst_66 {dimension_numbers = #tpu.dot_dimension_numbers<[1], [0], [0], [1], [0, 0, 1, 1], [], []>} : vector<8x256xbf16>, vector<256x1024xbf16>, vector<8x1024xf32> -> vector<8x1024xf32>
    %204 = arith.addf %200, %203 : vector<8x1024xf32>
    %205 = vector.extract_strided_slice %204 {offsets = [0, 0], sizes = [8, 256], strides = [1, 1]} : vector<8x1024xf32> to vector<8x256xf32>
    %206 = arith.negf %205 : vector<8x256xf32>
    %207 = math.exp %206 : vector<8x256xf32>
    %cst_67 = arith.constant 1.000000e+00 : f32
    %208 = vector.broadcast %cst_67 : f32 to vector<8x256xf32>
    %209 = arith.addf %208, %207 : vector<8x256xf32>
    %210 = arith.divf %208, %209 : vector<8x256xf32>
    %211 = vector.extract_strided_slice %204 {offsets = [0, 256], sizes = [8, 256], strides = [1, 1]} : vector<8x1024xf32> to vector<8x256xf32>
    %212 = arith.negf %211 : vector<8x256xf32>
    %213 = math.exp %212 : vector<8x256xf32>
    %cst_68 = arith.constant 1.000000e+00 : f32
    %214 = vector.broadcast %cst_68 : f32 to vector<8x256xf32>
    %215 = arith.addf %214, %213 : vector<8x256xf32>
    %216 = arith.divf %214, %215 : vector<8x256xf32>
    %217 = vector.extract_strided_slice %204 {offsets = [0, 512], sizes = [8, 256], strides = [1, 1]} : vector<8x1024xf32> to vector<8x256xf32>
    %218 = math.tanh %217 : vector<8x256xf32>
    %219 = vector.extract_strided_slice %204 {offsets = [0, 768], sizes = [8, 256], strides = [1, 1]} : vector<8x1024xf32> to vector<8x256xf32>
    %220 = arith.negf %219 : vector<8x256xf32>
    %221 = math.exp %220 : vector<8x256xf32>
    %cst_69 = arith.constant 1.000000e+00 : f32
    %222 = vector.broadcast %cst_69 : f32 to vector<8x256xf32>
    %223 = arith.addf %222, %221 : vector<8x256xf32>
    %224 = arith.divf %222, %223 : vector<8x256xf32>
    %225 = arith.mulf %216, %190 : vector<8x256xf32>
    %226 = arith.mulf %210, %218 : vector<8x256xf32>
    %227 = arith.addf %225, %226 : vector<8x256xf32>
    %228 = math.tanh %227 : vector<8x256xf32>
    %229 = arith.mulf %224, %228 : vector<8x256xf32>
    %230 = arith.truncf %229 : vector<8x256xf32> to vector<8x256xbf16>
    %231 = arith.index_cast %c5_i32 : i32 to index
    %c0_70 = arith.constant 0 : index
    %c0_71 = arith.constant 0 : index
    %232 = vector.load %arg8[%231, %c0_70, %c0_71] : memref<8x8x256xbf16, #tpu.memory_space<vmem>>, vector<1x8x256xbf16>
    %233 = vector.shape_cast %232 : vector<1x8x256xbf16> to vector<8x256xbf16>
    %234 = vector.shape_cast %230 : vector<8x256xbf16> to vector<1x8x256xbf16>
    tpu.vector_store %arg8[%231, %c0_70, %c0_71], %234 {strides = array<i32>} : memref<8x8x256xbf16, #tpu.memory_space<vmem>>, vector<1x8x256xbf16>,
    %c6_i32 = arith.constant 6 : i32
    %235 = arith.index_cast %c6_i32 : i32 to index
    %c0_72 = arith.constant 0 : index
    %c0_73 = arith.constant 0 : index
    %236 = vector.load %arg7[%235, %c0_72, %c0_73] : memref<8x8x1024xf32, #tpu.memory_space<vmem>>, vector<1x8x1024xf32>
    %237 = vector.shape_cast %236 : vector<1x8x1024xf32> to vector<8x1024xf32>
    %238 = arith.truncf %229 : vector<8x256xf32> to vector<8x256xbf16>
    %c0_74 = arith.constant 0 : index
    %c0_75 = arith.constant 0 : index
    %239 = vector.load %arg2[%c0_74, %c0_75] : memref<256x1024xbf16, #tpu.memory_space<vmem>>, vector<256x1024xbf16>
    %cst_76 = arith.constant dense<0.000000e+00> : vector<8x1024xf32>
    %240 = tpu.matmul %238, %239, %cst_76 {dimension_numbers = #tpu.dot_dimension_numbers<[1], [0], [0], [1], [0, 0, 1, 1], [], []>} : vector<8x256xbf16>, vector<256x1024xbf16>, vector<8x1024xf32> -> vector<8x1024xf32>
    %241 = arith.addf %237, %240 : vector<8x1024xf32>
    %242 = vector.extract_strided_slice %241 {offsets = [0, 0], sizes = [8, 256], strides = [1, 1]} : vector<8x1024xf32> to vector<8x256xf32>
    %243 = arith.negf %242 : vector<8x256xf32>
    %244 = math.exp %243 : vector<8x256xf32>
    %cst_77 = arith.constant 1.000000e+00 : f32
    %245 = vector.broadcast %cst_77 : f32 to vector<8x256xf32>
    %246 = arith.addf %245, %244 : vector<8x256xf32>
    %247 = arith.divf %245, %246 : vector<8x256xf32>
    %248 = vector.extract_strided_slice %241 {offsets = [0, 256], sizes = [8, 256], strides = [1, 1]} : vector<8x1024xf32> to vector<8x256xf32>
    %249 = arith.negf %248 : vector<8x256xf32>
    %250 = math.exp %249 : vector<8x256xf32>
    %cst_78 = arith.constant 1.000000e+00 : f32
    %251 = vector.broadcast %cst_78 : f32 to vector<8x256xf32>
    %252 = arith.addf %251, %250 : vector<8x256xf32>
    %253 = arith.divf %251, %252 : vector<8x256xf32>
    %254 = vector.extract_strided_slice %241 {offsets = [0, 512], sizes = [8, 256], strides = [1, 1]} : vector<8x1024xf32> to vector<8x256xf32>
    %255 = math.tanh %254 : vector<8x256xf32>
    %256 = vector.extract_strided_slice %241 {offsets = [0, 768], sizes = [8, 256], strides = [1, 1]} : vector<8x1024xf32> to vector<8x256xf32>
    %257 = arith.negf %256 : vector<8x256xf32>
    %258 = math.exp %257 : vector<8x256xf32>
    %cst_79 = arith.constant 1.000000e+00 : f32
    %259 = vector.broadcast %cst_79 : f32 to vector<8x256xf32>
    %260 = arith.addf %259, %258 : vector<8x256xf32>
    %261 = arith.divf %259, %260 : vector<8x256xf32>
    %262 = arith.mulf %253, %227 : vector<8x256xf32>
    %263 = arith.mulf %247, %255 : vector<8x256xf32>
    %264 = arith.addf %262, %263 : vector<8x256xf32>
    %265 = math.tanh %264 : vector<8x256xf32>
    %266 = arith.mulf %261, %265 : vector<8x256xf32>
    %267 = arith.truncf %266 : vector<8x256xf32> to vector<8x256xbf16>
    %268 = arith.index_cast %c6_i32 : i32 to index
    %c0_80 = arith.constant 0 : index
    %c0_81 = arith.constant 0 : index
    %269 = vector.load %arg8[%268, %c0_80, %c0_81] : memref<8x8x256xbf16, #tpu.memory_space<vmem>>, vector<1x8x256xbf16>
    %270 = vector.shape_cast %269 : vector<1x8x256xbf16> to vector<8x256xbf16>
    %271 = vector.shape_cast %267 : vector<8x256xbf16> to vector<1x8x256xbf16>
    tpu.vector_store %arg8[%268, %c0_80, %c0_81], %271 {strides = array<i32>} : memref<8x8x256xbf16, #tpu.memory_space<vmem>>, vector<1x8x256xbf16>,
    %c7_i32 = arith.constant 7 : i32
    %272 = arith.index_cast %c7_i32 : i32 to index
    %c0_82 = arith.constant 0 : index
    %c0_83 = arith.constant 0 : index
    %273 = vector.load %arg7[%272, %c0_82, %c0_83] : memref<8x8x1024xf32, #tpu.memory_space<vmem>>, vector<1x8x1024xf32>
    %274 = vector.shape_cast %273 : vector<1x8x1024xf32> to vector<8x1024xf32>
    %275 = arith.truncf %266 : vector<8x256xf32> to vector<8x256xbf16>
    %c0_84 = arith.constant 0 : index
    %c0_85 = arith.constant 0 : index
    %276 = vector.load %arg2[%c0_84, %c0_85] : memref<256x1024xbf16, #tpu.memory_space<vmem>>, vector<256x1024xbf16>
    %cst_86 = arith.constant dense<0.000000e+00> : vector<8x1024xf32>
    %277 = tpu.matmul %275, %276, %cst_86 {dimension_numbers = #tpu.dot_dimension_numbers<[1], [0], [0], [1], [0, 0, 1, 1], [], []>} : vector<8x256xbf16>, vector<256x1024xbf16>, vector<8x1024xf32> -> vector<8x1024xf32>
    %278 = arith.addf %274, %277 : vector<8x1024xf32>
    %279 = vector.extract_strided_slice %278 {offsets = [0, 0], sizes = [8, 256], strides = [1, 1]} : vector<8x1024xf32> to vector<8x256xf32>
    %280 = arith.negf %279 : vector<8x256xf32>
    %281 = math.exp %280 : vector<8x256xf32>
    %cst_87 = arith.constant 1.000000e+00 : f32
    %282 = vector.broadcast %cst_87 : f32 to vector<8x256xf32>
    %283 = arith.addf %282, %281 : vector<8x256xf32>
    %284 = arith.divf %282, %283 : vector<8x256xf32>
    %285 = vector.extract_strided_slice %278 {offsets = [0, 256], sizes = [8, 256], strides = [1, 1]} : vector<8x1024xf32> to vector<8x256xf32>
    %286 = arith.negf %285 : vector<8x256xf32>
    %287 = math.exp %286 : vector<8x256xf32>
    %cst_88 = arith.constant 1.000000e+00 : f32
    %288 = vector.broadcast %cst_88 : f32 to vector<8x256xf32>
    %289 = arith.addf %288, %287 : vector<8x256xf32>
    %290 = arith.divf %288, %289 : vector<8x256xf32>
    %291 = vector.extract_strided_slice %278 {offsets = [0, 512], sizes = [8, 256], strides = [1, 1]} : vector<8x1024xf32> to vector<8x256xf32>
    %292 = math.tanh %291 : vector<8x256xf32>
    %293 = vector.extract_strided_slice %278 {offsets = [0, 768], sizes = [8, 256], strides = [1, 1]} : vector<8x1024xf32> to vector<8x256xf32>
    %294 = arith.negf %293 : vector<8x256xf32>
    %295 = math.exp %294 : vector<8x256xf32>
    %cst_89 = arith.constant 1.000000e+00 : f32
    %296 = vector.broadcast %cst_89 : f32 to vector<8x256xf32>
    %297 = arith.addf %296, %295 : vector<8x256xf32>
    %298 = arith.divf %296, %297 : vector<8x256xf32>
    %299 = arith.mulf %290, %264 : vector<8x256xf32>
    %300 = arith.mulf %284, %292 : vector<8x256xf32>
    %301 = arith.addf %299, %300 : vector<8x256xf32>
    %302 = math.tanh %301 : vector<8x256xf32>
    %303 = arith.mulf %298, %302 : vector<8x256xf32>
    %304 = arith.truncf %303 : vector<8x256xf32> to vector<8x256xbf16>
    %305 = arith.index_cast %c7_i32 : i32 to index
    %c0_90 = arith.constant 0 : index
    %c0_91 = arith.constant 0 : index
    %306 = vector.load %arg8[%305, %c0_90, %c0_91] : memref<8x8x256xbf16, #tpu.memory_space<vmem>>, vector<1x8x256xbf16>
    %307 = vector.shape_cast %306 : vector<1x8x256xbf16> to vector<8x256xbf16>
    %308 = vector.shape_cast %304 : vector<8x256xbf16> to vector<1x8x256xbf16>
    tpu.vector_store %arg8[%305, %c0_90, %c0_91], %308 {strides = array<i32>} : memref<8x8x256xbf16, #tpu.memory_space<vmem>>, vector<1x8x256xbf16>,
    %c8_i32 = arith.constant 8 : i32
    %c0_92 = arith.constant 0 : index
    %c0_93 = arith.constant 0 : index
    %c0_94 = arith.constant 0 : index
    %309 = vector.load %arg8[%c0_92, %c0_93, %c0_94] : memref<8x8x256xbf16, #tpu.memory_space<vmem>>, vector<8x8x256xbf16>
    %310 = vector.shape_cast %309 : vector<8x8x256xbf16> to vector<64x256xbf16>
    %c0_95 = arith.constant 0 : index
    %c0_96 = arith.constant 0 : index
    %311 = vector.load %arg4[%c0_95, %c0_96] : memref<256x128xbf16, #tpu.memory_space<vmem>>, vector<256x128xbf16>
    %cst_97 = arith.constant dense<0.000000e+00> : vector<64x128xf32>
    %312 = tpu.matmul %310, %311, %cst_97 {dimension_numbers = #tpu.dot_dimension_numbers<[1], [0], [0], [1], [0, 0, 1, 1], [], []>} : vector<64x256xbf16>, vector<256x128xbf16>, vector<64x128xf32> -> vector<64x128xf32>
    %c0_98 = arith.constant 0 : index
    %c0_99 = arith.constant 0 : index
    %313 = vector.load %arg5[%c0_98, %c0_99] : memref<1x128xf32, #tpu.memory_space<vmem>>, vector<1x128xf32>
    %314 = vector.broadcast %313 : vector<1x128xf32> to vector<64x128xf32>
    %315 = arith.addf %312, %314 : vector<64x128xf32>
    %316 = vector.shape_cast %315 : vector<64x128xf32> to vector<8x8x128xf32>
    %c0_100 = arith.constant 0 : index
    %c0_101 = arith.constant 0 : index
    %c0_102 = arith.constant 0 : index
    %317 = vector.load %arg6[%c0_100, %c0_101, %c0_102] : memref<8x8x128xf32, #tpu.memory_space<vmem>>, vector<8x8x128xf32>
    tpu.vector_store %arg6[%c0_100, %c0_101, %c0_102], %316 {strides = array<i32>} : memref<8x8x128xf32, #tpu.memory_space<vmem>>, vector<8x8x128xf32>,
    return
  }
}

</mosaic_0001>

<llo_original>
// kernel: lstm_forward.1
$region0: #{lstm_forward.1}
  #allocation0 [shape = 'u32[]', space=smem, size = 0x4, offset = 0x4, fixed_abs, tag = 'smem constant byte address 0x4 - core index']
  #allocation1 [shape = 'u32[72,128]{1,0:T(1,128)}', space=vmem, size = 0x9000, scoped, tag = 'internal scratch']
  #allocation2 [shape = 'f32[8,8,1024]{2,1,0:T(8,128)}', space=vmem, size = 0x40000, scoped, tag = 'scratch operand']
  #allocation3 [shape = 'bf16[8,8,256]{2,1,0:T(8,128)(2,1)}', space=vmem, size = 0x8000, scoped, tag = 'scratch operand']
  %s0 = inlined_call_operand.vmem [shape: bf16[8,8,128], index: 0, kind: input, shape index: {}]
  %s1 = inlined_call_operand.hbm [shape: bf16[128,1024], index: 1, kind: input, shape index: {}]
  %s2 = inlined_call_operand.hbm [shape: bf16[256,1024], index: 2, kind: input, shape index: {}]
  %s3 = inlined_call_operand.vmem [shape: f32[1,1024], index: 3, kind: input, shape index: {}]
  %s4 = inlined_call_operand.vmem [shape: bf16[256,128], index: 4, kind: input, shape index: {}]
  %s5 = inlined_call_operand.vmem [shape: f32[1,128], index: 5, kind: input, shape index: {}]
  %s6 = inlined_call_operand.vmem [shape: f32[8,8,128], index: 6, kind: output, shape index: {}]
  %s7 = sld [smem:[#allocation0]]
  $region42: #{lstm_forward.1} parent=0
    _
  %s9 = ssub.s32 1, %s7
  %s10 = scalar_select 0, %s9, %s7
  $region1: #{lstm_forward.1} parent=0
    #allocation4 [shape = 'u8[262144]{0}', space=vmem, size = 0x40000, scoped, tag = 'input window, operand 1, single buffered']
    #allocation5 [shape = 's32[1]{0}', space=sflag, size = 0x4, scoped, tag = 'scoped memory for lstm_forward.1']
    #allocation6 [shape = 'u8[524288]{0}', space=vmem, size = 0x80000, scoped, tag = 'input window, operand 2, single buffered']
    #allocation7 [shape = 's32[1]{0}', space=sflag, size = 0x4, scoped, tag = 'scoped memory for lstm_forward.1']
    %11 = vsyncpa [#allocation5], 0
    %12 = vsyncpa [#allocation7], 0
    // Predicated region
    $region2: #{lstm_forward.1} parent=1 // pred_check
      _
    $region3: #{lstm_forward.1} parent=1 // pred_check_branch
      %14 = sbr.rel (0) target = $region5
    $region4: #{lstm_forward.1} parent=1 // pred_region
      _
    $region5: #{lstm_forward.1} parent=1 // pred_fallthru
      _
    // Predicated region
    $region6: #{lstm_forward.1} parent=1 // pred_check
      _
    $region7: #{lstm_forward.1} parent=1 // pred_check_branch
      %16 = sbr.rel (0) target = $region9
    $region8: #{lstm_forward.1} parent=1 // pred_region
      %18 = vsyncadd [#allocation5], 0
      %s19 = sshll.u32 %s1, 4
      %s20 = int_to_ptr.hbm [resolvable:$true] %s19
      %s21 = sshll.u32 [#allocation4], 4
      %s22 = int_to_ptr.vmem [resolvable:$true] %s21
      %27 = dma.hbm_to_vmem [thread:$0]  %s20, 8192, %s22, [#allocation5], 512, 512, 32
    $region9: #{lstm_forward.1} parent=1 // pred_fallthru
      _
    // Predicated region
    $region10: #{lstm_forward.1} parent=1 // pred_check
      _
    $region11: #{lstm_forward.1} parent=1 // pred_check_branch
      %29 = sbr.rel (0) target = $region13
    $region12: #{lstm_forward.1} parent=1 // pred_region
      %31 = vsyncadd [#allocation7], 0
      %s32 = sshll.u32 %s2, 4
      %s33 = int_to_ptr.hbm [resolvable:$true] %s32
      %s34 = sshll.u32 [#allocation6], 4
      %s35 = int_to_ptr.vmem [resolvable:$true] %s34
      %40 = dma.hbm_to_vmem [thread:$0]  %s33, 16384, %s35, [#allocation7], 512, 512, 32
    $region13: #{lstm_forward.1} parent=1 // pred_fallthru
      _
    // Predicated region
    $region14: #{lstm_forward.1} parent=1 // pred_check
      _
    $region15: #{lstm_forward.1} parent=1 // pred_check_branch
      %42 = sbr.rel (0) target = $region17
    $region16: #{lstm_forward.1} parent=1 // pred_region
      _
    $region17: #{lstm_forward.1} parent=1 // pred_fallthru
      _
    // Predicated region
    $region18: #{lstm_forward.1} parent=1 // pred_check
      _
    $region19: #{lstm_forward.1} parent=1 // pred_check_branch
      %44 = sbr.rel (0) target = $region21
    $region20: #{lstm_forward.1} parent=1 // pred_region
      _
    $region21: #{lstm_forward.1} parent=1 // pred_fallthru
      _
    // Predicated region
    $region22: #{lstm_forward.1} parent=1 // pred_check
      _
    $region23: #{lstm_forward.1} parent=1 // pred_check_branch
      %46 = sbr.rel (0) target = $region25
    $region24: #{lstm_forward.1} parent=1 // pred_region
      _
    $region25: #{lstm_forward.1} parent=1 // pred_fallthru
      _
    // Predicated region
    $region26: #{lstm_forward.1} parent=1 // pred_check
      _
    $region27: #{lstm_forward.1} parent=1 // pred_check_branch
      %48 = sbr.rel (0) target = $region29
    $region28: #{lstm_forward.1} parent=1 // pred_region
      %50 = dma.done [#allocation5], 8192
    $region29: #{lstm_forward.1} parent=1 // pred_fallthru
      _
    // Predicated region
    $region30: #{lstm_forward.1} parent=1 // pred_check
      _
    $region31: #{lstm_forward.1} parent=1 // pred_check_branch
      %52 = sbr.rel (0) target = $region33
    $region32: #{lstm_forward.1} parent=1 // pred_region
      %54 = dma.done [#allocation7], 16384
    $region33: #{lstm_forward.1} parent=1 // pred_fallthru
      _
    %v56 = vld [vmem:[%s0] sm:$0xf]
    %v57 = vld [vmem:[%s0 + $0x4] sm:$0xf]
    %v58 = vld [vmem:[%s0 + $0x8] sm:$0xf]
    %v59 = vld [vmem:[%s0 + $0xc] sm:$0xf]
    %v60 = vld [vmem:[%s0 + $0x10] sm:$0xf]
    %v61 = vld [vmem:[%s0 + $0x14] sm:$0xf]
    %v62 = vld [vmem:[%s0 + $0x18] sm:$0xf]
    %v63 = vld [vmem:[%s0 + $0x1c] sm:$0xf]
    %v64 = vunpack.c.l.bf16 %v56
    %v65 = vunpack.c.l.bf16 %v57
    %v66 = vunpack.c.l.bf16 %v58
    %v67 = vunpack.c.l.bf16 %v59
    %v68 = vunpack.c.l.bf16 %v60
    %v69 = vunpack.c.l.bf16 %v61
    %v70 = vunpack.c.l.bf16 %v62
    %v71 = vunpack.c.l.bf16 %v63
    %v72 = vmax.f32 %v64, 0.0
    %v73 = vmax.f32 %v65, 0.0
    %v74 = vmax.f32 %v66, 0.0
    %v75 = vmax.f32 %v67, 0.0
    %v76 = vmax.f32 %v68, 0.0
    %v77 = vmax.f32 %v69, 0.0
    %v78 = vmax.f32 %v70, 0.0
    %v79 = vmax.f32 %v71, 0.0
    %v80 = vpack.c.bf16 %v72, %v72
    %v81 = vpack.c.bf16 %v73, %v73
    %v82 = vpack.c.bf16 %v74, %v74
    %v83 = vpack.c.bf16 %v75, %v75
    %v84 = vpack.c.bf16 %v76, %v76
    %v85 = vpack.c.bf16 %v77, %v77
    %v86 = vpack.c.bf16 %v78, %v78
    %v87 = vpack.c.bf16 %v79, %v79
    %v88 = vld [vmem:[#allocation4] sm:$0xff]
    %v89 = vld [vmem:[#allocation4 + $0x8] sm:$0xff]
    %v90 = vld [vmem:[#allocation4 + $0x10] sm:$0xff]
    %v91 = vld [vmem:[#allocation4 + $0x18] sm:$0xff]
    %v92 = vld [vmem:[#allocation4 + $0x20] sm:$0xff]
    %v93 = vld [vmem:[#allocation4 + $0x28] sm:$0xff]
    %v94 = vld [vmem:[#allocation4 + $0x30] sm:$0xff]
    %v95 = vld [vmem:[#allocation4 + $0x38] sm:$0xff]
    %v96 = vld [vmem:[#allocation4 + $0x40] sm:$0xff]
    %v97 = vld [vmem:[#allocation4 + $0x48] sm:$0xff]
    %v98 = vld [vmem:[#allocation4 + $0x50] sm:$0xff]
    %v99 = vld [vmem:[#allocation4 + $0x58] sm:$0xff]
    %v100 = vld [vmem:[#allocation4 + $0x60] sm:$0xff]
    %v101 = vld [vmem:[#allocation4 + $0x68] sm:$0xff]
    %v102 = vld [vmem:[#allocation4 + $0x70] sm:$0xff]
    %v103 = vld [vmem:[#allocation4 + $0x78] sm:$0xff]
    %v104 = vld [vmem:[#allocation4 + $0x80] sm:$0xff]
    %v105 = vld [vmem:[#allocation4 + $0x88] sm:$0xff]
    %v106 = vld [vmem:[#allocation4 + $0x90] sm:$0xff]
    %v107 = vld [vmem:[#allocation4 + $0x98] sm:$0xff]
    %v108 = vld [vmem:[#allocation4 + $0xa0] sm:$0xff]
    %v109 = vld [vmem:[#allocation4 + $0xa8] sm:$0xff]
    %v110 = vld [vmem:[#allocation4 + $0xb0] sm:$0xff]
    %v111 = vld [vmem:[#allocation4 + $0xb8] sm:$0xff]
    %v112 = vld [vmem:[#allocation4 + $0xc0] sm:$0xff]
    %v113 = vld [vmem:[#allocation4 + $0xc8] sm:$0xff]
    %v114 = vld [vmem:[#allocation4 + $0xd0] sm:$0xff]
    %v115 = vld [vmem:[#allocation4 + $0xd8] sm:$0xff]
    %v116 = vld [vmem:[#allocation4 + $0xe0] sm:$0xff]
    %v117 = vld [vmem:[#allocation4 + $0xe8] sm:$0xff]
    %v118 = vld [vmem:[#allocation4 + $0xf0] sm:$0xff]
    %v119 = vld [vmem:[#allocation4 + $0xf8] sm:$0xff]
    %v120 = vld [vmem:[#allocation4 + $0x100] sm:$0xff]
    %v121 = vld [vmem:[#allocation4 + $0x108] sm:$0xff]
    %v122 = vld [vmem:[#allocation4 + $0x110] sm:$0xff]
    %v123 = vld [vmem:[#allocation4 + $0x118] sm:$0xff]
    %v124 = vld [vmem:[#allocation4 + $0x120] sm:$0xff]
    %v125 = vld [vmem:[#allocation4 + $0x128] sm:$0xff]
    %v126 = vld [vmem:[#allocation4 + $0x130] sm:$0xff]
    %v127 = vld [vmem:[#allocation4 + $0x138] sm:$0xff]
    %v128 = vld [vmem:[#allocation4 + $0x140] sm:$0xff]
    %v129 = vld [vmem:[#allocation4 + $0x148] sm:$0xff]
    %v130 = vld [vmem:[#allocation4 + $0x150] sm:$0xff]
    %v131 = vld [vmem:[#allocation4 + $0x158] sm:$0xff]
    %v132 = vld [vmem:[#allocation4 + $0x160] sm:$0xff]
    %v133 = vld [vmem:[#allocation4 + $0x168] sm:$0xff]
    %v134 = vld [vmem:[#allocation4 + $0x170] sm:$0xff]
    %v135 = vld [vmem:[#allocation4 + $0x178] sm:$0xff]
    %v136 = vld [vmem:[#allocation4 + $0x180] sm:$0xff]
    %v137 = vld [vmem:[#allocation4 + $0x188] sm:$0xff]
    %v138 = vld [vmem:[#allocation4 + $0x190] sm:$0xff]
    %v139 = vld [vmem:[#allocation4 + $0x198] sm:$0xff]
    %v140 = vld [vmem:[#allocation4 + $0x1a0] sm:$0xff]
    %v141 = vld [vmem:[#allocation4 + $0x1a8] sm:$0xff]
    %v142 = vld [vmem:[#allocation4 + $0x1b0] sm:$0xff]
    %v143 = vld [vmem:[#allocation4 + $0x1b8] sm:$0xff]
    %v144 = vld [vmem:[#allocation4 + $0x1c0] sm:$0xff]
    %v145 = vld [vmem:[#allocation4 + $0x1c8] sm:$0xff]
    %v146 = vld [vmem:[#allocation4 + $0x1d0] sm:$0xff]
    %v147 = vld [vmem:[#allocation4 + $0x1d8] sm:$0xff]
    %v148 = vld [vmem:[#allocation4 + $0x1e0] sm:$0xff]
    %v149 = vld [vmem:[#allocation4 + $0x1e8] sm:$0xff]
    %v150 = vld [vmem:[#allocation4 + $0x1f0] sm:$0xff]
    %v151 = vld [vmem:[#allocation4 + $0x1f8] sm:$0xff]
    %v152 = vld [vmem:[%s3] sm:$0xff]
    %v154 = vperm.slane %v152, 0
    %v155 = vperm.slane %v152, 1
    %v156 = vperm.slane %v152, 2
    %v157 = vperm.slane %v152, 3
    %v158 = vperm.slane %v152, 4
    %v159 = vperm.slane %v152, 5
    %v160 = vperm.slane %v152, 6
    %v161 = vperm.slane %v152, 7
    %v178 = vunpack.c.l.b16 %v80
    %v179 = vunpack.c.l.b16 %v81
    %v180 = vunpack.c.l.b16 %v82
    %v181 = vunpack.c.l.b16 %v83
    %v182 = vunpack.c.l.b16 %v84
    %v183 = vunpack.c.l.b16 %v85
    %v184 = vunpack.c.l.b16 %v86
    %v185 = vunpack.c.l.b16 %v87
    %v186 = vpack.c.b16 %v179, %v178
    %v187 = vpack.c.b16 %v181, %v180
    %v188 = vpack.c.b16 %v183, %v182
    %v189 = vpack.c.b16 %v185, %v184
    %v258 = vunpack.c.l.b16 %v88
    %v259 = vunpack.c.h.b16 %v88
    %v260 = vunpack.c.l.b16 %v89
    %v261 = vunpack.c.h.b16 %v89
    %v262 = vunpack.c.l.b16 %v90
    %v263 = vunpack.c.h.b16 %v90
    %v264 = vunpack.c.l.b16 %v91
    %v265 = vunpack.c.h.b16 %v91
    %v266 = vunpack.c.l.b16 %v92
    %v267 = vunpack.c.h.b16 %v92
    %v268 = vunpack.c.l.b16 %v93
    %v269 = vunpack.c.h.b16 %v93
    %v270 = vunpack.c.l.b16 %v94
    %v271 = vunpack.c.h.b16 %v94
    %v272 = vunpack.c.l.b16 %v95
    %v273 = vunpack.c.h.b16 %v95
    %v274 = vunpack.c.l.b16 %v96
    %v275 = vunpack.c.h.b16 %v96
    %v276 = vunpack.c.l.b16 %v97
    %v277 = vunpack.c.h.b16 %v97
    %v278 = vunpack.c.l.b16 %v98
    %v279 = vunpack.c.h.b16 %v98
    %v280 = vunpack.c.l.b16 %v99
    %v281 = vunpack.c.h.b16 %v99
    %v282 = vunpack.c.l.b16 %v100
    %v283 = vunpack.c.h.b16 %v100
    %v284 = vunpack.c.l.b16 %v101
    %v285 = vunpack.c.h.b16 %v101
    %v286 = vunpack.c.l.b16 %v102
    %v287 = vunpack.c.h.b16 %v102
    %v288 = vunpack.c.l.b16 %v103
    %v289 = vunpack.c.h.b16 %v103
    %v290 = vunpack.c.l.b16 %v104
    %v291 = vunpack.c.h.b16 %v104
    %v292 = vunpack.c.l.b16 %v105
    %v293 = vunpack.c.h.b16 %v105
    %v294 = vunpack.c.l.b16 %v106
    %v295 = vunpack.c.h.b16 %v106
    %v296 = vunpack.c.l.b16 %v107
    %v297 = vunpack.c.h.b16 %v107
    %v298 = vunpack.c.l.b16 %v108
    %v299 = vunpack.c.h.b16 %v108
    %v300 = vunpack.c.l.b16 %v109
    %v301 = vunpack.c.h.b16 %v109
    %v302 = vunpack.c.l.b16 %v110
    %v303 = vunpack.c.h.b16 %v110
    %v304 = vunpack.c.l.b16 %v111
    %v305 = vunpack.c.h.b16 %v111
    %v306 = vunpack.c.l.b16 %v112
    %v307 = vunpack.c.h.b16 %v112
    %v308 = vunpack.c.l.b16 %v113
    %v309 = vunpack.c.h.b16 %v113
    %v310 = vunpack.c.l.b16 %v114
    %v311 = vunpack.c.h.b16 %v114
    %v312 = vunpack.c.l.b16 %v115
    %v313 = vunpack.c.h.b16 %v115
    %v314 = vunpack.c.l.b16 %v116
    %v315 = vunpack.c.h.b16 %v116
    %v316 = vunpack.c.l.b16 %v117
    %v317 = vunpack.c.h.b16 %v117
    %v318 = vunpack.c.l.b16 %v118
    %v319 = vunpack.c.h.b16 %v118
    %v320 = vunpack.c.l.b16 %v119
    %v321 = vunpack.c.h.b16 %v119
    %v322 = vunpack.c.l.b16 %v120
    %v323 = vunpack.c.h.b16 %v120
    %v324 = vunpack.c.l.b16 %v121
    %v325 = vunpack.c.h.b16 %v121
    %v326 = vunpack.c.l.b16 %v122
    %v327 = vunpack.c.h.b16 %v122
    %v328 = vunpack.c.l.b16 %v123
    %v329 = vunpack.c.h.b16 %v123
    %v330 = vunpack.c.l.b16 %v124
    %v331 = vunpack.c.h.b16 %v124
    %v332 = vunpack.c.l.b16 %v125
    %v333 = vunpack.c.h.b16 %v125
    %v334 = vunpack.c.l.b16 %v126
    %v335 = vunpack.c.h.b16 %v126
    %v336 = vunpack.c.l.b16 %v127
    %v337 = vunpack.c.h.b16 %v127
    %v338 = vunpack.c.l.b16 %v128
    %v339 = vunpack.c.h.b16 %v128
    %v340 = vunpack.c.l.b16 %v129
    %v341 = vunpack.c.h.b16 %v129
    %v342 = vunpack.c.l.b16 %v130
    %v343 = vunpack.c.h.b16 %v130
    %v344 = vunpack.c.l.b16 %v131
    %v345 = vunpack.c.h.b16 %v131
    %v346 = vunpack.c.l.b16 %v132
    %v347 = vunpack.c.h.b16 %v132
    %v348 = vunpack.c.l.b16 %v133
    %v349 = vunpack.c.h.b16 %v133
    %v350 = vunpack.c.l.b16 %v134
    %v351 = vunpack.c.h.b16 %v134
    %v352 = vunpack.c.l.b16 %v135
    %v353 = vunpack.c.h.b16 %v135
    %v354 = vunpack.c.l.b16 %v136
    %v355 = vunpack.c.h.b16 %v136
    %v356 = vunpack.c.l.b16 %v137
    %v357 = vunpack.c.h.b16 %v137
    %v358 = vunpack.c.l.b16 %v138
    %v359 = vunpack.c.h.b16 %v138
    %v360 = vunpack.c.l.b16 %v139
    %v361 = vunpack.c.h.b16 %v139
    %v362 = vunpack.c.l.b16 %v140
    %v363 = vunpack.c.h.b16 %v140
    %v364 = vunpack.c.l.b16 %v141
    %v365 = vunpack.c.h.b16 %v141
    %v366 = vunpack.c.l.b16 %v142
    %v367 = vunpack.c.h.b16 %v142
    %v368 = vunpack.c.l.b16 %v143
    %v369 = vunpack.c.h.b16 %v143
    %v370 = vunpack.c.l.b16 %v144
    %v371 = vunpack.c.h.b16 %v144
    %v372 = vunpack.c.l.b16 %v145
    %v373 = vunpack.c.h.b16 %v145
    %v374 = vunpack.c.l.b16 %v146
    %v375 = vunpack.c.h.b16 %v146
    %v376 = vunpack.c.l.b16 %v147
    %v377 = vunpack.c.h.b16 %v147
    %v378 = vunpack.c.l.b16 %v148
    %v379 = vunpack.c.h.b16 %v148
    %v380 = vunpack.c.l.b16 %v149
    %v381 = vunpack.c.h.b16 %v149
    %v382 = vunpack.c.l.b16 %v150
    %v383 = vunpack.c.h.b16 %v150
    %v384 = vunpack.c.l.b16 %v151
    %v385 = vunpack.c.h.b16 %v151
    %v386 = vpack.c.b16 %v266, %v258
    %v387 = vpack.c.b16 %v267, %v259
    %v388 = vpack.c.b16 %v268, %v260
    %v389 = vpack.c.b16 %v269, %v261
    %v390 = vpack.c.b16 %v270, %v262
    %v391 = vpack.c.b16 %v271, %v263
    %v392 = vpack.c.b16 %v272, %v264
    %v393 = vpack.c.b16 %v273, %v265
    %v394 = vpack.c.b16 %v282, %v274
    %v395 = vpack.c.b16 %v283, %v275
    %v396 = vpack.c.b16 %v284, %v276
    %v397 = vpack.c.b16 %v285, %v277
    %v398 = vpack.c.b16 %v286, %v278
    %v399 = vpack.c.b16 %v287, %v279
    %v400 = vpack.c.b16 %v288, %v280
    %v401 = vpack.c.b16 %v289, %v281
    %v402 = vpack.c.b16 %v298, %v290
    %v403 = vpack.c.b16 %v299, %v291
    %v404 = vpack.c.b16 %v300, %v292
    %v405 = vpack.c.b16 %v301, %v293
    %v406 = vpack.c.b16 %v302, %v294
    %v407 = vpack.c.b16 %v303, %v295
    %v408 = vpack.c.b16 %v304, %v296
    %v409 = vpack.c.b16 %v305, %v297
    %v410 = vpack.c.b16 %v314, %v306
    %v411 = vpack.c.b16 %v315, %v307
    %v412 = vpack.c.b16 %v316, %v308
    %v413 = vpack.c.b16 %v317, %v309
    %v414 = vpack.c.b16 %v318, %v310
    %v415 = vpack.c.b16 %v319, %v311
    %v416 = vpack.c.b16 %v320, %v312
    %v417 = vpack.c.b16 %v321, %v313
    %v418 = vpack.c.b16 %v330, %v322
    %v419 = vpack.c.b16 %v331, %v323
    %v420 = vpack.c.b16 %v332, %v324
    %v421 = vpack.c.b16 %v333, %v325
    %v422 = vpack.c.b16 %v334, %v326
    %v423 = vpack.c.b16 %v335, %v327
    %v424 = vpack.c.b16 %v336, %v328
    %v425 = vpack.c.b16 %v337, %v329
    %v426 = vpack.c.b16 %v346, %v338
    %v427 = vpack.c.b16 %v347, %v339
    %v428 = vpack.c.b16 %v348, %v340
    %v429 = vpack.c.b16 %v349, %v341
    %v430 = vpack.c.b16 %v350, %v342
    %v431 = vpack.c.b16 %v351, %v343
    %v432 = vpack.c.b16 %v352, %v344
    %v433 = vpack.c.b16 %v353, %v345
    %v434 = vpack.c.b16 %v362, %v354
    %v435 = vpack.c.b16 %v363, %v355
    %v436 = vpack.c.b16 %v364, %v356
    %v437 = vpack.c.b16 %v365, %v357
    %v438 = vpack.c.b16 %v366, %v358
    %v439 = vpack.c.b16 %v367, %v359
    %v440 = vpack.c.b16 %v368, %v360
    %v441 = vpack.c.b16 %v369, %v361
    %v442 = vpack.c.b16 %v378, %v370
    %v443 = vpack.c.b16 %v379, %v371
    %v444 = vpack.c.b16 %v380, %v372
    %v445 = vpack.c.b16 %v381, %v373
    %v446 = vpack.c.b16 %v382, %v374
    %v447 = vpack.c.b16 %v383, %v375
    %v448 = vpack.c.b16 %v384, %v376
    %v449 = vpack.c.b16 %v385, %v377
    %514 = vmatpush.bf16.msra.mxu0 %v442
    %515 = vmatpush.bf16.msra.mxu0 %v434
    %516 = vmatpush.bf16.msra.mxu0 %v426
    %517 = vmatpush.bf16.msra.mxu0 %v418
    %518 = vmatpush.bf16.msra.mxu0 %v410
    %519 = vmatpush.bf16.msra.mxu0 %v402
    %520 = vmatpush.bf16.msra.mxu0 %v394
    %521 = vmatpush.bf16.msra.mxu0 %v386
    %522 = vmatmul.bf16.gmra.mxu0 %v186
    %v523 = vpop.f32.mrf.mxu0
    %v524 = vadd.f32 %v154, %v523
    %v525 = vpop.f32.mrf.mxu0
    %v526 = vadd.f32 %v154, %v525
    %527 = vmatmul.bf16.gmra.mxu0 %v187
    %v528 = vpop.f32.mrf.mxu0
    %v529 = vadd.f32 %v154, %v528
    %v530 = vpop.f32.mrf.mxu0
    %v531 = vadd.f32 %v154, %v530
    %532 = vmatmul.bf16.gmra.mxu0 %v188
    %v533 = vpop.f32.mrf.mxu0
    %v534 = vadd.f32 %v154, %v533
    %v535 = vpop.f32.mrf.mxu0
    %v536 = vadd.f32 %v154, %v535
    %537 = vmatmul.bf16.gmra.mxu0 %v189
    %v538 = vpop.f32.mrf.mxu0
    %v539 = vadd.f32 %v154, %v538
    %v540 = vpop.f32.mrf.mxu0
    %v541 = vadd.f32 %v154, %v540
    %542 = vdwg.mxu0
    %543 = vmatpush.bf16.msra.mxu0 %v443
    %544 = vmatpush.bf16.msra.mxu0 %v435
    %545 = vmatpush.bf16.msra.mxu0 %v427
    %546 = vmatpush.bf16.msra.mxu0 %v419
    %547 = vmatpush.bf16.msra.mxu0 %v411
    %548 = vmatpush.bf16.msra.mxu0 %v403
    %549 = vmatpush.bf16.msra.mxu0 %v395
    %550 = vmatpush.bf16.msra.mxu0 %v387
    %551 = vmatmul.bf16.gmra.mxu0 %v186
    %v552 = vpop.f32.mrf.mxu0
    %v553 = vadd.f32 %v155, %v552
    %v554 = vpop.f32.mrf.mxu0
    %v555 = vadd.f32 %v155, %v554
    %556 = vmatmul.bf16.gmra.mxu0 %v187
    %v557 = vpop.f32.mrf.mxu0
    %v558 = vadd.f32 %v155, %v557
    %v559 = vpop.f32.mrf.mxu0
    %v560 = vadd.f32 %v155, %v559
    %561 = vmatmul.bf16.gmra.mxu0 %v188
    %v562 = vpop.f32.mrf.mxu0
    %v563 = vadd.f32 %v155, %v562
    %v564 = vpop.f32.mrf.mxu0
    %v565 = vadd.f32 %v155, %v564
    %566 = vmatmul.bf16.gmra.mxu0 %v189
    %v567 = vpop.f32.mrf.mxu0
    %v568 = vadd.f32 %v155, %v567
    %v569 = vpop.f32.mrf.mxu0
    %v570 = vadd.f32 %v155, %v569
    %571 = vdwg.mxu0
    %572 = vmatpush.bf16.msra.mxu0 %v444
    %573 = vmatpush.bf16.msra.mxu0 %v436
    %574 = vmatpush.bf16.msra.mxu0 %v428
    %575 = vmatpush.bf16.msra.mxu0 %v420
    %576 = vmatpush.bf16.msra.mxu0 %v412
    %577 = vmatpush.bf16.msra.mxu0 %v404
    %578 = vmatpush.bf16.msra.mxu0 %v396
    %579 = vmatpush.bf16.msra.mxu0 %v388
    %580 = vmatmul.bf16.gmra.mxu0 %v186
    %v581 = vpop.f32.mrf.mxu0
    %v582 = vadd.f32 %v156, %v581
    %v583 = vpop.f32.mrf.mxu0
    %v584 = vadd.f32 %v156, %v583
    %585 = vmatmul.bf16.gmra.mxu0 %v187
    %v586 = vpop.f32.mrf.mxu0
    %v587 = vadd.f32 %v156, %v586
    %v588 = vpop.f32.mrf.mxu0
    %v589 = vadd.f32 %v156, %v588
    %590 = vmatmul.bf16.gmra.mxu0 %v188
    %v591 = vpop.f32.mrf.mxu0
    %v592 = vadd.f32 %v156, %v591
    %v593 = vpop.f32.mrf.mxu0
    %v594 = vadd.f32 %v156, %v593
    %595 = vmatmul.bf16.gmra.mxu0 %v189
    %v596 = vpop.f32.mrf.mxu0
    %v597 = vadd.f32 %v156, %v596
    %v598 = vpop.f32.mrf.mxu0
    %v599 = vadd.f32 %v156, %v598
    %600 = vdwg.mxu0
    %601 = vmatpush.bf16.msra.mxu0 %v445
    %602 = vmatpush.bf16.msra.mxu0 %v437
    %603 = vmatpush.bf16.msra.mxu0 %v429
    %604 = vmatpush.bf16.msra.mxu0 %v421
    %605 = vmatpush.bf16.msra.mxu0 %v413
    %606 = vmatpush.bf16.msra.mxu0 %v405
    %607 = vmatpush.bf16.msra.mxu0 %v397
    %608 = vmatpush.bf16.msra.mxu0 %v389
    %609 = vmatmul.bf16.gmra.mxu0 %v186
    %v610 = vpop.f32.mrf.mxu0
    %v611 = vadd.f32 %v157, %v610
    %v612 = vpop.f32.mrf.mxu0
    %v613 = vadd.f32 %v157, %v612
    %614 = vmatmul.bf16.gmra.mxu0 %v187
    %v615 = vpop.f32.mrf.mxu0
    %v616 = vadd.f32 %v157, %v615
    %v617 = vpop.f32.mrf.mxu0
    %v618 = vadd.f32 %v157, %v617
    %619 = vmatmul.bf16.gmra.mxu0 %v188
    %v620 = vpop.f32.mrf.mxu0
    %v621 = vadd.f32 %v157, %v620
    %v622 = vpop.f32.mrf.mxu0
    %v623 = vadd.f32 %v157, %v622
    %624 = vmatmul.bf16.gmra.mxu0 %v189
    %v625 = vpop.f32.mrf.mxu0
    %v626 = vadd.f32 %v157, %v625
    %v627 = vpop.f32.mrf.mxu0
    %v628 = vadd.f32 %v157, %v627
    %629 = vdwg.mxu0
    %630 = vmatpush.bf16.msra.mxu0 %v446
    %631 = vmatpush.bf16.msra.mxu0 %v438
    %632 = vmatpush.bf16.msra.mxu0 %v430
    %633 = vmatpush.bf16.msra.mxu0 %v422
    %634 = vmatpush.bf16.msra.mxu0 %v414
    %635 = vmatpush.bf16.msra.mxu0 %v406
    %636 = vmatpush.bf16.msra.mxu0 %v398
    %637 = vmatpush.bf16.msra.mxu0 %v390
    %638 = vmatmul.bf16.gmra.mxu0 %v186
    %v639 = vpop.f32.mrf.mxu0
    %v640 = vadd.f32 %v158, %v639
    %v641 = vpop.f32.mrf.mxu0
    %v642 = vadd.f32 %v158, %v641
    %643 = vmatmul.bf16.gmra.mxu0 %v187
    %v644 = vpop.f32.mrf.mxu0
    %v645 = vadd.f32 %v158, %v644
    %v646 = vpop.f32.mrf.mxu0
    %v647 = vadd.f32 %v158, %v646
    %648 = vmatmul.bf16.gmra.mxu0 %v188
    %v649 = vpop.f32.mrf.mxu0
    %v650 = vadd.f32 %v158, %v649
    %v651 = vpop.f32.mrf.mxu0
    %v652 = vadd.f32 %v158, %v651
    %653 = vmatmul.bf16.gmra.mxu0 %v189
    %v654 = vpop.f32.mrf.mxu0
    %v655 = vadd.f32 %v158, %v654
    %v656 = vpop.f32.mrf.mxu0
    %v657 = vadd.f32 %v158, %v656
    %658 = vdwg.mxu0
    %659 = vmatpush.bf16.msra.mxu0 %v447
    %660 = vmatpush.bf16.msra.mxu0 %v439
    %661 = vmatpush.bf16.msra.mxu0 %v431
    %662 = vmatpush.bf16.msra.mxu0 %v423
    %663 = vmatpush.bf16.msra.mxu0 %v415
    %664 = vmatpush.bf16.msra.mxu0 %v407
    %665 = vmatpush.bf16.msra.mxu0 %v399
    %666 = vmatpush.bf16.msra.mxu0 %v391
    %667 = vmatmul.bf16.gmra.mxu0 %v186
    %v668 = vpop.f32.mrf.mxu0
    %v669 = vadd.f32 %v159, %v668
    %v670 = vpop.f32.mrf.mxu0
    %v671 = vadd.f32 %v159, %v670
    %672 = vmatmul.bf16.gmra.mxu0 %v187
    %v673 = vpop.f32.mrf.mxu0
    %v674 = vadd.f32 %v159, %v673
    %v675 = vpop.f32.mrf.mxu0
    %v676 = vadd.f32 %v159, %v675
    %677 = vmatmul.bf16.gmra.mxu0 %v188
    %v678 = vpop.f32.mrf.mxu0
    %v679 = vadd.f32 %v159, %v678
    %v680 = vpop.f32.mrf.mxu0
    %v681 = vadd.f32 %v159, %v680
    %682 = vmatmul.bf16.gmra.mxu0 %v189
    %v683 = vpop.f32.mrf.mxu0
    %v684 = vadd.f32 %v159, %v683
    %v685 = vpop.f32.mrf.mxu0
    %v686 = vadd.f32 %v159, %v685
    %687 = vdwg.mxu0
    %688 = vmatpush.bf16.msra.mxu0 %v448
    %689 = vmatpush.bf16.msra.mxu0 %v440
    %690 = vmatpush.bf16.msra.mxu0 %v432
    %691 = vmatpush.bf16.msra.mxu0 %v424
    %692 = vmatpush.bf16.msra.mxu0 %v416
    %693 = vmatpush.bf16.msra.mxu0 %v408
    %694 = vmatpush.bf16.msra.mxu0 %v400
    %695 = vmatpush.bf16.msra.mxu0 %v392
    %696 = vmatmul.bf16.gmra.mxu0 %v186
    %v697 = vpop.f32.mrf.mxu0
    %v698 = vadd.f32 %v160, %v697
    %v699 = vpop.f32.mrf.mxu0
    %v700 = vadd.f32 %v160, %v699
    %701 = vmatmul.bf16.gmra.mxu0 %v187
    %v702 = vpop.f32.mrf.mxu0
    %v703 = vadd.f32 %v160, %v702
    %v704 = vpop.f32.mrf.mxu0
    %v705 = vadd.f32 %v160, %v704
    %706 = vmatmul.bf16.gmra.mxu0 %v188
    %v707 = vpop.f32.mrf.mxu0
    %v708 = vadd.f32 %v160, %v707
    %v709 = vpop.f32.mrf.mxu0
    %v710 = vadd.f32 %v160, %v709
    %711 = vmatmul.bf16.gmra.mxu0 %v189
    %v712 = vpop.f32.mrf.mxu0
    %v713 = vadd.f32 %v160, %v712
    %v714 = vpop.f32.mrf.mxu0
    %v715 = vadd.f32 %v160, %v714
    %716 = vdwg.mxu0
    %717 = vmatpush.bf16.msra.mxu0 %v449
    %718 = vmatpush.bf16.msra.mxu0 %v441
    %719 = vmatpush.bf16.msra.mxu0 %v433
    %720 = vmatpush.bf16.msra.mxu0 %v425
    %721 = vmatpush.bf16.msra.mxu0 %v417
    %722 = vmatpush.bf16.msra.mxu0 %v409
    %723 = vmatpush.bf16.msra.mxu0 %v401
    %724 = vmatpush.bf16.msra.mxu0 %v393
    %725 = vmatmul.bf16.gmra.mxu0 %v186
    %v726 = vpop.f32.mrf.mxu0
    %v727 = vadd.f32 %v161, %v726
    %v728 = vpop.f32.mrf.mxu0
    %v729 = vadd.f32 %v161, %v728
    %730 = vmatmul.bf16.gmra.mxu0 %v187
    %v731 = vpop.f32.mrf.mxu0
    %v732 = vadd.f32 %v161, %v731
    %v733 = vpop.f32.mrf.mxu0
    %v734 = vadd.f32 %v161, %v733
    %735 = vmatmul.bf16.gmra.mxu0 %v188
    %v736 = vpop.f32.mrf.mxu0
    %v737 = vadd.f32 %v161, %v736
    %v738 = vpop.f32.mrf.mxu0
    %v739 = vadd.f32 %v161, %v738
    %740 = vmatmul.bf16.gmra.mxu0 %v189
    %v741 = vpop.f32.mrf.mxu0
    %v742 = vadd.f32 %v161, %v741
    %v743 = vpop.f32.mrf.mxu0
    %v744 = vadd.f32 %v161, %v743
    %745 = vdwg.mxu0
    %746 = vst [vmem:[#allocation2] sm:$0xff] %v524
    %747 = vst [vmem:[#allocation2 + $0x8] sm:$0xff] %v553
    %748 = vst [vmem:[#allocation2 + $0x10] sm:$0xff] %v582
    %749 = vst [vmem:[#allocation2 + $0x18] sm:$0xff] %v611
    %750 = vst [vmem:[#allocation2 + $0x20] sm:$0xff] %v640
    %751 = vst [vmem:[#allocation2 + $0x28] sm:$0xff] %v669
    %752 = vst [vmem:[#allocation2 + $0x30] sm:$0xff] %v698
    %753 = vst [vmem:[#allocation2 + $0x38] sm:$0xff] %v727
    %754 = vst [vmem:[#allocation2 + $0x40] sm:$0xff] %v526
    %755 = vst [vmem:[#allocation2 + $0x48] sm:$0xff] %v555
    %756 = vst [vmem:[#allocation2 + $0x50] sm:$0xff] %v584
    %757 = vst [vmem:[#allocation2 + $0x58] sm:$0xff] %v613
    %758 = vst [vmem:[#allocation2 + $0x60] sm:$0xff] %v642
    %759 = vst [vmem:[#allocation2 + $0x68] sm:$0xff] %v671
    %760 = vst [vmem:[#allocation2 + $0x70] sm:$0xff] %v700
    %761 = vst [vmem:[#allocation2 + $0x78] sm:$0xff] %v729
    %762 = vst [vmem:[#allocation2 + $0x80] sm:$0xff] %v529
    %763 = vst [vmem:[#allocation2 + $0x88] sm:$0xff] %v558
    %764 = vst [vmem:[#allocation2 + $0x90] sm:$0xff] %v587
    %765 = vst [vmem:[#allocation2 + $0x98] sm:$0xff] %v616
    %766 = vst [vmem:[#allocation2 + $0xa0] sm:$0xff] %v645
    %767 = vst [vmem:[#allocation2 + $0xa8] sm:$0xff] %v674
    %768 = vst [vmem:[#allocation2 + $0xb0] sm:$0xff] %v703
    %769 = vst [vmem:[#allocation2 + $0xb8] sm:$0xff] %v732
    %770 = vst [vmem:[#allocation2 + $0xc0] sm:$0xff] %v531
    %771 = vst [vmem:[#allocation2 + $0xc8] sm:$0xff] %v560
    %772 = vst [vmem:[#allocation2 + $0xd0] sm:$0xff] %v589
    %773 = vst [vmem:[#allocation2 + $0xd8] sm:$0xff] %v618
    %774 = vst [vmem:[#allocation2 + $0xe0] sm:$0xff] %v647
    %775 = vst [vmem:[#allocation2 + $0xe8] sm:$0xff] %v676
    %776 = vst [vmem:[#allocation2 + $0xf0] sm:$0xff] %v705
    %777 = vst [vmem:[#allocation2 + $0xf8] sm:$0xff] %v734
    %778 = vst [vmem:[#allocation2 + $0x100] sm:$0xff] %v534
    %779 = vst [vmem:[#allocation2 + $0x108] sm:$0xff] %v563
    %780 = vst [vmem:[#allocation2 + $0x110] sm:$0xff] %v592
    %781 = vst [vmem:[#allocation2 + $0x118] sm:$0xff] %v621
    %782 = vst [vmem:[#allocation2 + $0x120] sm:$0xff] %v650
    %783 = vst [vmem:[#allocation2 + $0x128] sm:$0xff] %v679
    %784 = vst [vmem:[#allocation2 + $0x130] sm:$0xff] %v708
    %785 = vst [vmem:[#allocation2 + $0x138] sm:$0xff] %v737
    %786 = vst [vmem:[#allocation2 + $0x140] sm:$0xff] %v536
    %787 = vst [vmem:[#allocation2 + $0x148] sm:$0xff] %v565
    %788 = vst [vmem:[#allocation2 + $0x150] sm:$0xff] %v594
    %789 = vst [vmem:[#allocation2 + $0x158] sm:$0xff] %v623
    %790 = vst [vmem:[#allocation2 + $0x160] sm:$0xff] %v652
    %791 = vst [vmem:[#allocation2 + $0x168] sm:$0xff] %v681
    %792 = vst [vmem:[#allocation2 + $0x170] sm:$0xff] %v710
    %793 = vst [vmem:[#allocation2 + $0x178] sm:$0xff] %v739
    %794 = vst [vmem:[#allocation2 + $0x180] sm:$0xff] %v539
    %795 = vst [vmem:[#allocation2 + $0x188] sm:$0xff] %v568
    %796 = vst [vmem:[#allocation2 + $0x190] sm:$0xff] %v597
    %797 = vst [vmem:[#allocation2 + $0x198] sm:$0xff] %v626
    %798 = vst [vmem:[#allocation2 + $0x1a0] sm:$0xff] %v655
    %799 = vst [vmem:[#allocation2 + $0x1a8] sm:$0xff] %v684
    %800 = vst [vmem:[#allocation2 + $0x1b0] sm:$0xff] %v713
    %801 = vst [vmem:[#allocation2 + $0x1b8] sm:$0xff] %v742
    %802 = vst [vmem:[#allocation2 + $0x1c0] sm:$0xff] %v541
    %803 = vst [vmem:[#allocation2 + $0x1c8] sm:$0xff] %v570
    %804 = vst [vmem:[#allocation2 + $0x1d0] sm:$0xff] %v599
    %805 = vst [vmem:[#allocation2 + $0x1d8] sm:$0xff] %v628
    %806 = vst [vmem:[#allocation2 + $0x1e0] sm:$0xff] %v657
    %807 = vst [vmem:[#allocation2 + $0x1e8] sm:$0xff] %v686
    %808 = vst [vmem:[#allocation2 + $0x1f0] sm:$0xff] %v715
    %809 = vst [vmem:[#allocation2 + $0x1f8] sm:$0xff] %v744
    %v810 = vld [vmem:[#allocation2] sm:$0xff]
    %v811 = vld [vmem:[#allocation2 + $0x8] sm:$0xff]
    %v812 = vld [vmem:[#allocation2 + $0x10] sm:$0xff]
    %v813 = vld [vmem:[#allocation2 + $0x18] sm:$0xff]
    %v814 = vld [vmem:[#allocation2 + $0x20] sm:$0xff]
    %v815 = vld [vmem:[#allocation2 + $0x28] sm:$0xff]
    %v816 = vld [vmem:[#allocation2 + $0x30] sm:$0xff]
    %v817 = vld [vmem:[#allocation2 + $0x38] sm:$0xff]
    %v818 = vld [vmem:[#allocation6] sm:$0xff]
    %v819 = vld [vmem:[#allocation6 + $0x8] sm:$0xff]
    %v820 = vld [vmem:[#allocation6 + $0x10] sm:$0xff]
    %v821 = vld [vmem:[#allocation6 + $0x18] sm:$0xff]
    %v822 = vld [vmem:[#allocation6 + $0x20] sm:$0xff]
    %v823 = vld [vmem:[#allocation6 + $0x28] sm:$0xff]
    %v824 = vld [vmem:[#allocation6 + $0x30] sm:$0xff]
    %v825 = vld [vmem:[#allocation6 + $0x38] sm:$0xff]
    %v826 = vld [vmem:[#allocation6 + $0x40] sm:$0xff]
    %v827 = vld [vmem:[#allocation6 + $0x48] sm:$0xff]
    %v828 = vld [vmem:[#allocation6 + $0x50] sm:$0xff]
    %v829 = vld [vmem:[#allocation6 + $0x58] sm:$0xff]
    %v830 = vld [vmem:[#allocation6 + $0x60] sm:$0xff]
    %v831 = vld [vmem:[#allocation6 + $0x68] sm:$0xff]
    %v832 = vld [vmem:[#allocation6 + $0x70] sm:$0xff]
    %v833 = vld [vmem:[#allocation6 + $0x78] sm:$0xff]
    %v834 = vld [vmem:[#allocation6 + $0x80] sm:$0xff]
    %v835 = vld [vmem:[#allocation6 + $0x88] sm:$0xff]
    %v836 = vld [vmem:[#allocation6 + $0x90] sm:$0xff]
    %v837 = vld [vmem:[#allocation6 + $0x98] sm:$0xff]
    %v838 = vld [vmem:[#allocation6 + $0xa0] sm:$0xff]
    %v839 = vld [vmem:[#allocation6 + $0xa8] sm:$0xff]
    %v840 = vld [vmem:[#allocation6 + $0xb0] sm:$0xff]
    %v841 = vld [vmem:[#allocation6 + $0xb8] sm:$0xff]
    %v842 = vld [vmem:[#allocation6 + $0xc0] sm:$0xff]
    %v843 = vld [vmem:[#allocation6 + $0xc8] sm:$0xff]
    %v844 = vld [vmem:[#allocation6 + $0xd0] sm:$0xff]
    %v845 = vld [vmem:[#allocation6 + $0xd8] sm:$0xff]
    %v846 = vld [vmem:[#allocation6 + $0xe0] sm:$0xff]
    %v847 = vld [vmem:[#allocation6 + $0xe8] sm:$0xff]
    %v848 = vld [vmem:[#allocation6 + $0xf0] sm:$0xff]
    %v849 = vld [vmem:[#allocation6 + $0xf8] sm:$0xff]
    %v850 = vld [vmem:[#allocation6 + $0x100] sm:$0xff]
    %v851 = vld [vmem:[#allocation6 + $0x108] sm:$0xff]
    %v852 = vld [vmem:[#allocation6 + $0x110] sm:$0xff]
    %v853 = vld [vmem:[#allocation6 + $0x118] sm:$0xff]
    %v854 = vld [vmem:[#allocation6 + $0x120] sm:$0xff]
    %v855 = vld [vmem:[#allocation6 + $0x128] sm:$0xff]
    %v856 = vld [vmem:[#allocation6 + $0x130] sm:$0xff]
    %v857 = vld [vmem:[#allocation6 + $0x138] sm:$0xff]
    %v858 = vld [vmem:[#allocation6 + $0x140] sm:$0xff]
    %v859 = vld [vmem:[#allocation6 + $0x148] sm:$0xff]
    %v860 = vld [vmem:[#allocation6 + $0x150] sm:$0xff]
    %v861 = vld [vmem:[#allocation6 + $0x158] sm:$0xff]
    %v862 = vld [vmem:[#allocation6 + $0x160] sm:$0xff]
    %v863 = vld [vmem:[#allocation6 + $0x168] sm:$0xff]
    %v864 = vld [vmem:[#allocation6 + $0x170] sm:$0xff]
    %v865 = vld [vmem:[#allocation6 + $0x178] sm:$0xff]
    %v866 = vld [vmem:[#allocation6 + $0x180] sm:$0xff]
    %v867 = vld [vmem:[#allocation6 + $0x188] sm:$0xff]
    %v868 = vld [vmem:[#allocation6 + $0x190] sm:$0xff]
    %v869 = vld [vmem:[#allocation6 + $0x198] sm:$0xff]
    %v870 = vld [vmem:[#allocation6 + $0x1a0] sm:$0xff]
    %v871 = vld [vmem:[#allocation6 + $0x1a8] sm:$0xff]
    %v872 = vld [vmem:[#allocation6 + $0x1b0] sm:$0xff]
    %v873 = vld [vmem:[#allocation6 + $0x1b8] sm:$0xff]
    %v874 = vld [vmem:[#allocation6 + $0x1c0] sm:$0xff]
    %v875 = vld [vmem:[#allocation6 + $0x1c8] sm:$0xff]
    %v876 = vld [vmem:[#allocation6 + $0x1d0] sm:$0xff]
    %v877 = vld [vmem:[#allocation6 + $0x1d8] sm:$0xff]
    %v878 = vld [vmem:[#allocation6 + $0x1e0] sm:$0xff]
    %v879 = vld [vmem:[#allocation6 + $0x1e8] sm:$0xff]
    %v880 = vld [vmem:[#allocation6 + $0x1f0] sm:$0xff]
    %v881 = vld [vmem:[#allocation6 + $0x1f8] sm:$0xff]
    %v882 = vld [vmem:[#allocation6 + $0x200] sm:$0xff]
    %v883 = vld [vmem:[#allocation6 + $0x208] sm:$0xff]
    %v884 = vld [vmem:[#allocation6 + $0x210] sm:$0xff]
    %v885 = vld [vmem:[#allocation6 + $0x218] sm:$0xff]
    %v886 = vld [vmem:[#allocation6 + $0x220] sm:$0xff]
    %v887 = vld [vmem:[#allocation6 + $0x228] sm:$0xff]
    %v888 = vld [vmem:[#allocation6 + $0x230] sm:$0xff]
    %v889 = vld [vmem:[#allocation6 + $0x238] sm:$0xff]
    %v890 = vld [vmem:[#allocation6 + $0x240] sm:$0xff]
    %v891 = vld [vmem:[#allocation6 + $0x248] sm:$0xff]
    %v892 = vld [vmem:[#allocation6 + $0x250] sm:$0xff]
    %v893 = vld [vmem:[#allocation6 + $0x258] sm:$0xff]
    %v894 = vld [vmem:[#allocation6 + $0x260] sm:$0xff]
    %v895 = vld [vmem:[#allocation6 + $0x268] sm:$0xff]
    %v896 = vld [vmem:[#allocation6 + $0x270] sm:$0xff]
    %v897 = vld [vmem:[#allocation6 + $0x278] sm:$0xff]
    %v898 = vld [vmem:[#allocation6 + $0x280] sm:$0xff]
    %v899 = vld [vmem:[#allocation6 + $0x288] sm:$0xff]
    %v900 = vld [vmem:[#allocation6 + $0x290] sm:$0xff]
    %v901 = vld [vmem:[#allocation6 + $0x298] sm:$0xff]
    %v902 = vld [vmem:[#allocation6 + $0x2a0] sm:$0xff]
    %v903 = vld [vmem:[#allocation6 + $0x2a8] sm:$0xff]
    %v904 = vld [vmem:[#allocation6 + $0x2b0] sm:$0xff]
    %v905 = vld [vmem:[#allocation6 + $0x2b8] sm:$0xff]
    %v906 = vld [vmem:[#allocation6 + $0x2c0] sm:$0xff]
    %v907 = vld [vmem:[#allocation6 + $0x2c8] sm:$0xff]
    %v908 = vld [vmem:[#allocation6 + $0x2d0] sm:$0xff]
    %v909 = vld [vmem:[#allocation6 + $0x2d8] sm:$0xff]
    %v910 = vld [vmem:[#allocation6 + $0x2e0] sm:$0xff]
    %v911 = vld [vmem:[#allocation6 + $0x2e8] sm:$0xff]
    %v912 = vld [vmem:[#allocation6 + $0x2f0] sm:$0xff]
    %v913 = vld [vmem:[#allocation6 + $0x2f8] sm:$0xff]
    %v914 = vld [vmem:[#allocation6 + $0x300] sm:$0xff]
    %v915 = vld [vmem:[#allocation6 + $0x308] sm:$0xff]
    %v916 = vld [vmem:[#allocation6 + $0x310] sm:$0xff]
    %v917 = vld [vmem:[#allocation6 + $0x318] sm:$0xff]
    %v918 = vld [vmem:[#allocation6 + $0x320] sm:$0xff]
    %v919 = vld [vmem:[#allocation6 + $0x328] sm:$0xff]
    %v920 = vld [vmem:[#allocation6 + $0x330] sm:$0xff]
    %v921 = vld [vmem:[#allocation6 + $0x338] sm:$0xff]
    %v922 = vld [vmem:[#allocation6 + $0x340] sm:$0xff]
    %v923 = vld [vmem:[#allocation6 + $0x348] sm:$0xff]
    %v924 = vld [vmem:[#allocation6 + $0x350] sm:$0xff]
    %v925 = vld [vmem:[#allocation6 + $0x358] sm:$0xff]
    %v926 = vld [vmem:[#allocation6 + $0x360] sm:$0xff]
    %v927 = vld [vmem:[#allocation6 + $0x368] sm:$0xff]
    %v928 = vld [vmem:[#allocation6 + $0x370] sm:$0xff]
    %v929 = vld [vmem:[#allocation6 + $0x378] sm:$0xff]
    %v930 = vld [vmem:[#allocation6 + $0x380] sm:$0xff]
    %v931 = vld [vmem:[#allocation6 + $0x388] sm:$0xff]
    %v932 = vld [vmem:[#allocation6 + $0x390] sm:$0xff]
    %v933 = vld [vmem:[#allocation6 + $0x398] sm:$0xff]
    %v934 = vld [vmem:[#allocation6 + $0x3a0] sm:$0xff]
    %v935 = vld [vmem:[#allocation6 + $0x3a8] sm:$0xff]
    %v936 = vld [vmem:[#allocation6 + $0x3b0] sm:$0xff]
    %v937 = vld [vmem:[#allocation6 + $0x3b8] sm:$0xff]
    %v938 = vld [vmem:[#allocation6 + $0x3c0] sm:$0xff]
    %v939 = vld [vmem:[#allocation6 + $0x3c8] sm:$0xff]
    %v940 = vld [vmem:[#allocation6 + $0x3d0] sm:$0xff]
    %v941 = vld [vmem:[#allocation6 + $0x3d8] sm:$0xff]
    %v942 = vld [vmem:[#allocation6 + $0x3e0] sm:$0xff]
    %v943 = vld [vmem:[#allocation6 + $0x3e8] sm:$0xff]
    %v944 = vld [vmem:[#allocation6 + $0x3f0] sm:$0xff]
    %v945 = vld [vmem:[#allocation6 + $0x3f8] sm:$0xff]
    %v1074 = vunpack.c.l.b16 %v818
    %v1075 = vunpack.c.h.b16 %v818
    %v1076 = vunpack.c.l.b16 %v819
    %v1077 = vunpack.c.h.b16 %v819
    %v1078 = vunpack.c.l.b16 %v820
    %v1079 = vunpack.c.h.b16 %v820
    %v1080 = vunpack.c.l.b16 %v821
    %v1081 = vunpack.c.h.b16 %v821
    %v1082 = vunpack.c.l.b16 %v822
    %v1083 = vunpack.c.h.b16 %v822
    %v1084 = vunpack.c.l.b16 %v823
    %v1085 = vunpack.c.h.b16 %v823
    %v1086 = vunpack.c.l.b16 %v824
    %v1087 = vunpack.c.h.b16 %v824
    %v1088 = vunpack.c.l.b16 %v825
    %v1089 = vunpack.c.h.b16 %v825
    %v1090 = vunpack.c.l.b16 %v826
    %v1091 = vunpack.c.h.b16 %v826
    %v1092 = vunpack.c.l.b16 %v827
    %v1093 = vunpack.c.h.b16 %v827
    %v1094 = vunpack.c.l.b16 %v828
    %v1095 = vunpack.c.h.b16 %v828
    %v1096 = vunpack.c.l.b16 %v829
    %v1097 = vunpack.c.h.b16 %v829
    %v1098 = vunpack.c.l.b16 %v830
    %v1099 = vunpack.c.h.b16 %v830
    %v1100 = vunpack.c.l.b16 %v831
    %v1101 = vunpack.c.h.b16 %v831
    %v1102 = vunpack.c.l.b16 %v832
    %v1103 = vunpack.c.h.b16 %v832
    %v1104 = vunpack.c.l.b16 %v833
    %v1105 = vunpack.c.h.b16 %v833
    %v1106 = vunpack.c.l.b16 %v834
    %v1107 = vunpack.c.h.b16 %v834
    %v1108 = vunpack.c.l.b16 %v835
    %v1109 = vunpack.c.h.b16 %v835
    %v1110 = vunpack.c.l.b16 %v836
    %v1111 = vunpack.c.h.b16 %v836
    %v1112 = vunpack.c.l.b16 %v837
    %v1113 = vunpack.c.h.b16 %v837
    %v1114 = vunpack.c.l.b16 %v838
    %v1115 = vunpack.c.h.b16 %v838
    %v1116 = vunpack.c.l.b16 %v839
    %v1117 = vunpack.c.h.b16 %v839
    %v1118 = vunpack.c.l.b16 %v840
    %v1119 = vunpack.c.h.b16 %v840
    %v1120 = vunpack.c.l.b16 %v841
    %v1121 = vunpack.c.h.b16 %v841
    %v1122 = vunpack.c.l.b16 %v842
    %v1123 = vunpack.c.h.b16 %v842
    %v1124 = vunpack.c.l.b16 %v843
    %v1125 = vunpack.c.h.b16 %v843
    %v1126 = vunpack.c.l.b16 %v844
    %v1127 = vunpack.c.h.b16 %v844
    %v1128 = vunpack.c.l.b16 %v845
    %v1129 = vunpack.c.h.b16 %v845
    %v1130 = vunpack.c.l.b16 %v846
    %v1131 = vunpack.c.h.b16 %v846
    %v1132 = vunpack.c.l.b16 %v847
    %v1133 = vunpack.c.h.b16 %v847
    %v1134 = vunpack.c.l.b16 %v848
    %v1135 = vunpack.c.h.b16 %v848
    %v1136 = vunpack.c.l.b16 %v849
    %v1137 = vunpack.c.h.b16 %v849
    %v1138 = vunpack.c.l.b16 %v850
    %v1139 = vunpack.c.h.b16 %v850
    %v1140 = vunpack.c.l.b16 %v851
    %v1141 = vunpack.c.h.b16 %v851
    %v1142 = vunpack.c.l.b16 %v852
    %v1143 = vunpack.c.h.b16 %v852
    %v1144 = vunpack.c.l.b16 %v853
    %v1145 = vunpack.c.h.b16 %v853
    %v1146 = vunpack.c.l.b16 %v854
    %v1147 = vunpack.c.h.b16 %v854
    %v1148 = vunpack.c.l.b16 %v855
    %v1149 = vunpack.c.h.b16 %v855
    %v1150 = vunpack.c.l.b16 %v856
    %v1151 = vunpack.c.h.b16 %v856
    %v1152 = vunpack.c.l.b16 %v857
    %v1153 = vunpack.c.h.b16 %v857
    %v1154 = vunpack.c.l.b16 %v858
    %v1155 = vunpack.c.h.b16 %v858
    %v1156 = vunpack.c.l.b16 %v859
    %v1157 = vunpack.c.h.b16 %v859
    %v1158 = vunpack.c.l.b16 %v860
    %v1159 = vunpack.c.h.b16 %v860
    %v1160 = vunpack.c.l.b16 %v861
    %v1161 = vunpack.c.h.b16 %v861
    %v1162 = vunpack.c.l.b16 %v862
    %v1163 = vunpack.c.h.b16 %v862
    %v1164 = vunpack.c.l.b16 %v863
    %v1165 = vunpack.c.h.b16 %v863
    %v1166 = vunpack.c.l.b16 %v864
    %v1167 = vunpack.c.h.b16 %v864
    %v1168 = vunpack.c.l.b16 %v865
    %v1169 = vunpack.c.h.b16 %v865
    %v1170 = vunpack.c.l.b16 %v866
    %v1171 = vunpack.c.h.b16 %v866
    %v1172 = vunpack.c.l.b16 %v867
    %v1173 = vunpack.c.h.b16 %v867
    %v1174 = vunpack.c.l.b16 %v868
    %v1175 = vunpack.c.h.b16 %v868
    %v1176 = vunpack.c.l.b16 %v869
    %v1177 = vunpack.c.h.b16 %v869
    %v1178 = vunpack.c.l.b16 %v870
    %v1179 = vunpack.c.h.b16 %v870
    %v1180 = vunpack.c.l.b16 %v871
    %v1181 = vunpack.c.h.b16 %v871
    %v1182 = vunpack.c.l.b16 %v872
    %v1183 = vunpack.c.h.b16 %v872
    %v1184 = vunpack.c.l.b16 %v873
    %v1185 = vunpack.c.h.b16 %v873
    %v1186 = vunpack.c.l.b16 %v874
    %v1187 = vunpack.c.h.b16 %v874
    %v1188 = vunpack.c.l.b16 %v875
    %v1189 = vunpack.c.h.b16 %v875
    %v1190 = vunpack.c.l.b16 %v876
    %v1191 = vunpack.c.h.b16 %v876
    %v1192 = vunpack.c.l.b16 %v877
    %v1193 = vunpack.c.h.b16 %v877
    %v1194 = vunpack.c.l.b16 %v878
    %v1195 = vunpack.c.h.b16 %v878
    %v1196 = vunpack.c.l.b16 %v879
    %v1197 = vunpack.c.h.b16 %v879
    %v1198 = vunpack.c.l.b16 %v880
    %v1199 = vunpack.c.h.b16 %v880
    %v1200 = vunpack.c.l.b16 %v881
    %v1201 = vunpack.c.h.b16 %v881
    %v1202 = vunpack.c.l.b16 %v882
    %v1203 = vunpack.c.h.b16 %v882
    %v1204 = vunpack.c.l.b16 %v883
    %v1205 = vunpack.c.h.b16 %v883
    %v1206 = vunpack.c.l.b16 %v884
    %v1207 = vunpack.c.h.b16 %v884
    %v1208 = vunpack.c.l.b16 %v885
    %v1209 = vunpack.c.h.b16 %v885
    %v1210 = vunpack.c.l.b16 %v886
    %v1211 = vunpack.c.h.b16 %v886
    %v1212 = vunpack.c.l.b16 %v887
    %v1213 = vunpack.c.h.b16 %v887
    %v1214 = vunpack.c.l.b16 %v888
    %v1215 = vunpack.c.h.b16 %v888
    %v1216 = vunpack.c.l.b16 %v889
    %v1217 = vunpack.c.h.b16 %v889
    %v1218 = vunpack.c.l.b16 %v890
    %v1219 = vunpack.c.h.b16 %v890
    %v1220 = vunpack.c.l.b16 %v891
    %v1221 = vunpack.c.h.b16 %v891
    %v1222 = vunpack.c.l.b16 %v892
    %v1223 = vunpack.c.h.b16 %v892
    %v1224 = vunpack.c.l.b16 %v893
    %v1225 = vunpack.c.h.b16 %v893
    %v1226 = vunpack.c.l.b16 %v894
    %v1227 = vunpack.c.h.b16 %v894
    %v1228 = vunpack.c.l.b16 %v895
    %v1229 = vunpack.c.h.b16 %v895
    %v1230 = vunpack.c.l.b16 %v896
    %v1231 = vunpack.c.h.b16 %v896
    %v1232 = vunpack.c.l.b16 %v897
    %v1233 = vunpack.c.h.b16 %v897
    %v1234 = vunpack.c.l.b16 %v898
    %v1235 = vunpack.c.h.b16 %v898
    %v1236 = vunpack.c.l.b16 %v899
    %v1237 = vunpack.c.h.b16 %v899
    %v1238 = vunpack.c.l.b16 %v900
    %v1239 = vunpack.c.h.b16 %v900
    %v1240 = vunpack.c.l.b16 %v901
    %v1241 = vunpack.c.h.b16 %v901
    %v1242 = vunpack.c.l.b16 %v902
    %v1243 = vunpack.c.h.b16 %v902
    %v1244 = vunpack.c.l.b16 %v903
    %v1245 = vunpack.c.h.b16 %v903
    %v1246 = vunpack.c.l.b16 %v904
    %v1247 = vunpack.c.h.b16 %v904
    %v1248 = vunpack.c.l.b16 %v905
    %v1249 = vunpack.c.h.b16 %v905
    %v1250 = vunpack.c.l.b16 %v906
    %v1251 = vunpack.c.h.b16 %v906
    %v1252 = vunpack.c.l.b16 %v907
    %v1253 = vunpack.c.h.b16 %v907
    %v1254 = vunpack.c.l.b16 %v908
    %v1255 = vunpack.c.h.b16 %v908
    %v1256 = vunpack.c.l.b16 %v909
    %v1257 = vunpack.c.h.b16 %v909
    %v1258 = vunpack.c.l.b16 %v910
    %v1259 = vunpack.c.h.b16 %v910
    %v1260 = vunpack.c.l.b16 %v911
    %v1261 = vunpack.c.h.b16 %v911
    %v1262 = vunpack.c.l.b16 %v912
    %v1263 = vunpack.c.h.b16 %v912
    %v1264 = vunpack.c.l.b16 %v913
    %v1265 = vunpack.c.h.b16 %v913
    %v1266 = vunpack.c.l.b16 %v914
    %v1267 = vunpack.c.h.b16 %v914
    %v1268 = vunpack.c.l.b16 %v915
    %v1269 = vunpack.c.h.b16 %v915
    %v1270 = vunpack.c.l.b16 %v916
    %v1271 = vunpack.c.h.b16 %v916
    %v1272 = vunpack.c.l.b16 %v917
    %v1273 = vunpack.c.h.b16 %v917
    %v1274 = vunpack.c.l.b16 %v918
    %v1275 = vunpack.c.h.b16 %v918
    %v1276 = vunpack.c.l.b16 %v919
    %v1277 = vunpack.c.h.b16 %v919
    %v1278 = vunpack.c.l.b16 %v920
    %v1279 = vunpack.c.h.b16 %v920
    %v1280 = vunpack.c.l.b16 %v921
    %v1281 = vunpack.c.h.b16 %v921
    %v1282 = vunpack.c.l.b16 %v922
    %v1283 = vunpack.c.h.b16 %v922
    %v1284 = vunpack.c.l.b16 %v923
    %v1285 = vunpack.c.h.b16 %v923
    %v1286 = vunpack.c.l.b16 %v924
    %v1287 = vunpack.c.h.b16 %v924
    %v1288 = vunpack.c.l.b16 %v925
    %v1289 = vunpack.c.h.b16 %v925
    %v1290 = vunpack.c.l.b16 %v926
    %v1291 = vunpack.c.h.b16 %v926
    %v1292 = vunpack.c.l.b16 %v927
    %v1293 = vunpack.c.h.b16 %v927
    %v1294 = vunpack.c.l.b16 %v928
    %v1295 = vunpack.c.h.b16 %v928
    %v1296 = vunpack.c.l.b16 %v929
    %v1297 = vunpack.c.h.b16 %v929
    %v1298 = vunpack.c.l.b16 %v930
    %v1299 = vunpack.c.h.b16 %v930
    %v1300 = vunpack.c.l.b16 %v931
    %v1301 = vunpack.c.h.b16 %v931
    %v1302 = vunpack.c.l.b16 %v932
    %v1303 = vunpack.c.h.b16 %v932
    %v1304 = vunpack.c.l.b16 %v933
    %v1305 = vunpack.c.h.b16 %v933
    %v1306 = vunpack.c.l.b16 %v934
    %v1307 = vunpack.c.h.b16 %v934
    %v1308 = vunpack.c.l.b16 %v935
    %v1309 = vunpack.c.h.b16 %v935
    %v1310 = vunpack.c.l.b16 %v936
    %v1311 = vunpack.c.h.b16 %v936
    %v1312 = vunpack.c.l.b16 %v937
    %v1313 = vunpack.c.h.b16 %v937
    %v1314 = vunpack.c.l.b16 %v938
    %v1315 = vunpack.c.h.b16 %v938
    %v1316 = vunpack.c.l.b16 %v939
    %v1317 = vunpack.c.h.b16 %v939
    %v1318 = vunpack.c.l.b16 %v940
    %v1319 = vunpack.c.h.b16 %v940
    %v1320 = vunpack.c.l.b16 %v941
    %v1321 = vunpack.c.h.b16 %v941
    %v1322 = vunpack.c.l.b16 %v942
    %v1323 = vunpack.c.h.b16 %v942
    %v1324 = vunpack.c.l.b16 %v943
    %v1325 = vunpack.c.h.b16 %v943
    %v1326 = vunpack.c.l.b16 %v944
    %v1327 = vunpack.c.h.b16 %v944
    %v1328 = vunpack.c.l.b16 %v945
    %v1329 = vunpack.c.h.b16 %v945
    %v1330 = vpack.c.b16 %v1082, %v1074
    %v1331 = vpack.c.b16 %v1083, %v1075
    %v1332 = vpack.c.b16 %v1084, %v1076
    %v1333 = vpack.c.b16 %v1085, %v1077
    %v1334 = vpack.c.b16 %v1086, %v1078
    %v1335 = vpack.c.b16 %v1087, %v1079
    %v1336 = vpack.c.b16 %v1088, %v1080
    %v1337 = vpack.c.b16 %v1089, %v1081
    %v1338 = vpack.c.b16 %v1098, %v1090
    %v1339 = vpack.c.b16 %v1099, %v1091
    %v1340 = vpack.c.b16 %v1100, %v1092
    %v1341 = vpack.c.b16 %v1101, %v1093
    %v1342 = vpack.c.b16 %v1102, %v1094
    %v1343 = vpack.c.b16 %v1103, %v1095
    %v1344 = vpack.c.b16 %v1104, %v1096
    %v1345 = vpack.c.b16 %v1105, %v1097
    %v1346 = vpack.c.b16 %v1114, %v1106
    %v1347 = vpack.c.b16 %v1115, %v1107
    %v1348 = vpack.c.b16 %v1116, %v1108
    %v1349 = vpack.c.b16 %v1117, %v1109
    %v1350 = vpack.c.b16 %v1118, %v1110
    %v1351 = vpack.c.b16 %v1119, %v1111
    %v1352 = vpack.c.b16 %v1120, %v1112
    %v1353 = vpack.c.b16 %v1121, %v1113
    %v1354 = vpack.c.b16 %v1130, %v1122
    %v1355 = vpack.c.b16 %v1131, %v1123
    %v1356 = vpack.c.b16 %v1132, %v1124
    %v1357 = vpack.c.b16 %v1133, %v1125
    %v1358 = vpack.c.b16 %v1134, %v1126
    %v1359 = vpack.c.b16 %v1135, %v1127
    %v1360 = vpack.c.b16 %v1136, %v1128
    %v1361 = vpack.c.b16 %v1137, %v1129
    %v1362 = vpack.c.b16 %v1146, %v1138
    %v1363 = vpack.c.b16 %v1147, %v1139
    %v1364 = vpack.c.b16 %v1148, %v1140
    %v1365 = vpack.c.b16 %v1149, %v1141
    %v1366 = vpack.c.b16 %v1150, %v1142
    %v1367 = vpack.c.b16 %v1151, %v1143
    %v1368 = vpack.c.b16 %v1152, %v1144
    %v1369 = vpack.c.b16 %v1153, %v1145
    %v1370 = vpack.c.b16 %v1162, %v1154
    %v1371 = vpack.c.b16 %v1163, %v1155
    %v1372 = vpack.c.b16 %v1164, %v1156
    %v1373 = vpack.c.b16 %v1165, %v1157
    %v1374 = vpack.c.b16 %v1166, %v1158
    %v1375 = vpack.c.b16 %v1167, %v1159
    %v1376 = vpack.c.b16 %v1168, %v1160
    %v1377 = vpack.c.b16 %v1169, %v1161
    %v1378 = vpack.c.b16 %v1178, %v1170
    %v1379 = vpack.c.b16 %v1179, %v1171
    %v1380 = vpack.c.b16 %v1180, %v1172
    %v1381 = vpack.c.b16 %v1181, %v1173
    %v1382 = vpack.c.b16 %v1182, %v1174
    %v1383 = vpack.c.b16 %v1183, %v1175
    %v1384 = vpack.c.b16 %v1184, %v1176
    %v1385 = vpack.c.b16 %v1185, %v1177
    %v1386 = vpack.c.b16 %v1194, %v1186
    %v1387 = vpack.c.b16 %v1195, %v1187
    %v1388 = vpack.c.b16 %v1196, %v1188
    %v1389 = vpack.c.b16 %v1197, %v1189
    %v1390 = vpack.c.b16 %v1198, %v1190
    %v1391 = vpack.c.b16 %v1199, %v1191
    %v1392 = vpack.c.b16 %v1200, %v1192
    %v1393 = vpack.c.b16 %v1201, %v1193
    %v1394 = vpack.c.b16 %v1210, %v1202
    %v1395 = vpack.c.b16 %v1211, %v1203
    %v1396 = vpack.c.b16 %v1212, %v1204
    %v1397 = vpack.c.b16 %v1213, %v1205
    %v1398 = vpack.c.b16 %v1214, %v1206
    %v1399 = vpack.c.b16 %v1215, %v1207
    %v1400 = vpack.c.b16 %v1216, %v1208
    %v1401 = vpack.c.b16 %v1217, %v1209
    %v1402 = vpack.c.b16 %v1226, %v1218
    %v1403 = vpack.c.b16 %v1227, %v1219
    %v1404 = vpack.c.b16 %v1228, %v1220
    %v1405 = vpack.c.b16 %v1229, %v1221
    %v1406 = vpack.c.b16 %v1230, %v1222
    %v1407 = vpack.c.b16 %v1231, %v1223
    %v1408 = vpack.c.b16 %v1232, %v1224
    %v1409 = vpack.c.b16 %v1233, %v1225
    %v1410 = vpack.c.b16 %v1242, %v1234
    %v1411 = vpack.c.b16 %v1243, %v1235
    %v1412 = vpack.c.b16 %v1244, %v1236
    %v1413 = vpack.c.b16 %v1245, %v1237
    %v1414 = vpack.c.b16 %v1246, %v1238
    %v1415 = vpack.c.b16 %v1247, %v1239
    %v1416 = vpack.c.b16 %v1248, %v1240
    %v1417 = vpack.c.b16 %v1249, %v1241
    %v1418 = vpack.c.b16 %v1258, %v1250
    %v1419 = vpack.c.b16 %v1259, %v1251
    %v1420 = vpack.c.b16 %v1260, %v1252
    %v1421 = vpack.c.b16 %v1261, %v1253
    %v1422 = vpack.c.b16 %v1262, %v1254
    %v1423 = vpack.c.b16 %v1263, %v1255
    %v1424 = vpack.c.b16 %v1264, %v1256
    %v1425 = vpack.c.b16 %v1265, %v1257
    %v1426 = vpack.c.b16 %v1274, %v1266
    %v1427 = vpack.c.b16 %v1275, %v1267
    %v1428 = vpack.c.b16 %v1276, %v1268
    %v1429 = vpack.c.b16 %v1277, %v1269
    %v1430 = vpack.c.b16 %v1278, %v1270
    %v1431 = vpack.c.b16 %v1279, %v1271
    %v1432 = vpack.c.b16 %v1280, %v1272
    %v1433 = vpack.c.b16 %v1281, %v1273
    %v1434 = vpack.c.b16 %v1290, %v1282
    %v1435 = vpack.c.b16 %v1291, %v1283
    %v1436 = vpack.c.b16 %v1292, %v1284
    %v1437 = vpack.c.b16 %v1293, %v1285
    %v1438 = vpack.c.b16 %v1294, %v1286
    %v1439 = vpack.c.b16 %v1295, %v1287
    %v1440 = vpack.c.b16 %v1296, %v1288
    %v1441 = vpack.c.b16 %v1297, %v1289
    %v1442 = vpack.c.b16 %v1306, %v1298
    %v1443 = vpack.c.b16 %v1307, %v1299
    %v1444 = vpack.c.b16 %v1308, %v1300
    %v1445 = vpack.c.b16 %v1309, %v1301
    %v1446 = vpack.c.b16 %v1310, %v1302
    %v1447 = vpack.c.b16 %v1311, %v1303
    %v1448 = vpack.c.b16 %v1312, %v1304
    %v1449 = vpack.c.b16 %v1313, %v1305
    %v1450 = vpack.c.b16 %v1322, %v1314
    %v1451 = vpack.c.b16 %v1323, %v1315
    %v1452 = vpack.c.b16 %v1324, %v1316
    %v1453 = vpack.c.b16 %v1325, %v1317
    %v1454 = vpack.c.b16 %v1326, %v1318
    %v1455 = vpack.c.b16 %v1327, %v1319
    %v1456 = vpack.c.b16 %v1328, %v1320
    %v1457 = vpack.c.b16 %v1329, %v1321
    %1586 = vmatpush.bf16.msra.mxu0 %v1386
    %1587 = vmatpush.bf16.msra.mxu0 %v1378
    %1588 = vmatpush.bf16.msra.mxu0 %v1370
    %1589 = vmatpush.bf16.msra.mxu0 %v1362
    %1590 = vmatpush.bf16.msra.mxu0 %v1354
    %1591 = vmatpush.bf16.msra.mxu0 %v1346
    %1592 = vmatpush.bf16.msra.mxu0 %v1338
    %1593 = vmatpush.bf16.msra.mxu0 %v1330
    %1594 = vmatmul.bf16.gmra.mxu0 0
    %v1595 = vpop.f32.mrf.mxu0
    %v1596 = vadd.f32 0.0, %v1595
    %v1597 = vpop.f32.mrf.mxu0
    %1598 = vdwg.mxu0
    %1599 = vmatpush.bf16.msra.mxu0 %v1450
    %1600 = vmatpush.bf16.msra.mxu0 %v1442
    %1601 = vmatpush.bf16.msra.mxu0 %v1434
    %1602 = vmatpush.bf16.msra.mxu0 %v1426
    %1603 = vmatpush.bf16.msra.mxu0 %v1418
    %1604 = vmatpush.bf16.msra.mxu0 %v1410
    %1605 = vmatpush.bf16.msra.mxu0 %v1402
    %1606 = vmatpush.bf16.msra.mxu0 %v1394
    %1607 = vmatmul.bf16.gmra.mxu0 0
    %v1608 = vpop.f32.mrf.mxu0
    %v1609 = vadd.f32 %v1596, %v1608
    %v1610 = vpop.f32.mrf.mxu0
    %1611 = vdwg.mxu0
    %1612 = vmatpush.bf16.msra.mxu0 %v1387
    %1613 = vmatpush.bf16.msra.mxu0 %v1379
    %1614 = vmatpush.bf16.msra.mxu0 %v1371
    %1615 = vmatpush.bf16.msra.mxu0 %v1363
    %1616 = vmatpush.bf16.msra.mxu0 %v1355
    %1617 = vmatpush.bf16.msra.mxu0 %v1347
    %1618 = vmatpush.bf16.msra.mxu0 %v1339
    %1619 = vmatpush.bf16.msra.mxu0 %v1331
    %1620 = vmatmul.bf16.gmra.mxu0 0
    %v1621 = vpop.f32.mrf.mxu0
    %v1622 = vadd.f32 0.0, %v1621
    %v1623 = vpop.f32.mrf.mxu0
    %1624 = vdwg.mxu0
    %1625 = vmatpush.bf16.msra.mxu0 %v1451
    %1626 = vmatpush.bf16.msra.mxu0 %v1443
    %1627 = vmatpush.bf16.msra.mxu0 %v1435
    %1628 = vmatpush.bf16.msra.mxu0 %v1427
    %1629 = vmatpush.bf16.msra.mxu0 %v1419
    %1630 = vmatpush.bf16.msra.mxu0 %v1411
    %1631 = vmatpush.bf16.msra.mxu0 %v1403
    %1632 = vmatpush.bf16.msra.mxu0 %v1395
    %1633 = vmatmul.bf16.gmra.mxu0 0
    %v1634 = vpop.f32.mrf.mxu0
    %v1635 = vadd.f32 %v1622, %v1634
    %v1636 = vpop.f32.mrf.mxu0
    %1637 = vdwg.mxu0
    %1638 = vmatpush.bf16.msra.mxu0 %v1388
    %1639 = vmatpush.bf16.msra.mxu0 %v1380
    %1640 = vmatpush.bf16.msra.mxu0 %v1372
    %1641 = vmatpush.bf16.msra.mxu0 %v1364
    %1642 = vmatpush.bf16.msra.mxu0 %v1356
    %1643 = vmatpush.bf16.msra.mxu0 %v1348
    %1644 = vmatpush.bf16.msra.mxu0 %v1340
    %1645 = vmatpush.bf16.msra.mxu0 %v1332
    %1646 = vmatmul.bf16.gmra.mxu0 0
    %v1647 = vpop.f32.mrf.mxu0
    %v1648 = vadd.f32 0.0, %v1647
    %v1649 = vpop.f32.mrf.mxu0
    %1650 = vdwg.mxu0
    %1651 = vmatpush.bf16.msra.mxu0 %v1452
    %1652 = vmatpush.bf16.msra.mxu0 %v1444
    %1653 = vmatpush.bf16.msra.mxu0 %v1436
    %1654 = vmatpush.bf16.msra.mxu0 %v1428
    %1655 = vmatpush.bf16.msra.mxu0 %v1420
    %1656 = vmatpush.bf16.msra.mxu0 %v1412
    %1657 = vmatpush.bf16.msra.mxu0 %v1404
    %1658 = vmatpush.bf16.msra.mxu0 %v1396
    %1659 = vmatmul.bf16.gmra.mxu0 0
    %v1660 = vpop.f32.mrf.mxu0
    %v1661 = vadd.f32 %v1648, %v1660
    %v1662 = vpop.f32.mrf.mxu0
    %1663 = vdwg.mxu0
    %1664 = vmatpush.bf16.msra.mxu0 %v1389
    %1665 = vmatpush.bf16.msra.mxu0 %v1381
    %1666 = vmatpush.bf16.msra.mxu0 %v1373
    %1667 = vmatpush.bf16.msra.mxu0 %v1365
    %1668 = vmatpush.bf16.msra.mxu0 %v1357
    %1669 = vmatpush.bf16.msra.mxu0 %v1349
    %1670 = vmatpush.bf16.msra.mxu0 %v1341
    %1671 = vmatpush.bf16.msra.mxu0 %v1333
    %1672 = vmatmul.bf16.gmra.mxu0 0
    %v1673 = vpop.f32.mrf.mxu0
    %v1674 = vadd.f32 0.0, %v1673
    %v1675 = vpop.f32.mrf.mxu0
    %1676 = vdwg.mxu0
    %1677 = vmatpush.bf16.msra.mxu0 %v1453
    %1678 = vmatpush.bf16.msra.mxu0 %v1445
    %1679 = vmatpush.bf16.msra.mxu0 %v1437
    %1680 = vmatpush.bf16.msra.mxu0 %v1429
    %1681 = vmatpush.bf16.msra.mxu0 %v1421
    %1682 = vmatpush.bf16.msra.mxu0 %v1413
    %1683 = vmatpush.bf16.msra.mxu0 %v1405
    %1684 = vmatpush.bf16.msra.mxu0 %v1397
    %1685 = vmatmul.bf16.gmra.mxu0 0
    %v1686 = vpop.f32.mrf.mxu0
    %v1687 = vadd.f32 %v1674, %v1686
    %v1688 = vpop.f32.mrf.mxu0
    %1689 = vdwg.mxu0
    %1690 = vmatpush.bf16.msra.mxu0 %v1390
    %1691 = vmatpush.bf16.msra.mxu0 %v1382
    %1692 = vmatpush.bf16.msra.mxu0 %v1374
    %1693 = vmatpush.bf16.msra.mxu0 %v1366
    %1694 = vmatpush.bf16.msra.mxu0 %v1358
    %1695 = vmatpush.bf16.msra.mxu0 %v1350
    %1696 = vmatpush.bf16.msra.mxu0 %v1342
    %1697 = vmatpush.bf16.msra.mxu0 %v1334
    %1698 = vmatmul.bf16.gmra.mxu0 0
    %v1699 = vpop.f32.mrf.mxu0
    %v1700 = vadd.f32 0.0, %v1699
    %v1701 = vpop.f32.mrf.mxu0
    %1702 = vdwg.mxu0
    %1703 = vmatpush.bf16.msra.mxu0 %v1454
    %1704 = vmatpush.bf16.msra.mxu0 %v1446
    %1705 = vmatpush.bf16.msra.mxu0 %v1438
    %1706 = vmatpush.bf16.msra.mxu0 %v1430
    %1707 = vmatpush.bf16.msra.mxu0 %v1422
    %1708 = vmatpush.bf16.msra.mxu0 %v1414
    %1709 = vmatpush.bf16.msra.mxu0 %v1406
    %1710 = vmatpush.bf16.msra.mxu0 %v1398
    %1711 = vmatmul.bf16.gmra.mxu0 0
    %v1712 = vpop.f32.mrf.mxu0
    %v1713 = vadd.f32 %v1700, %v1712
    %v1714 = vpop.f32.mrf.mxu0
    %1715 = vdwg.mxu0
    %1716 = vmatpush.bf16.msra.mxu0 %v1391
    %1717 = vmatpush.bf16.msra.mxu0 %v1383
    %1718 = vmatpush.bf16.msra.mxu0 %v1375
    %1719 = vmatpush.bf16.msra.mxu0 %v1367
    %1720 = vmatpush.bf16.msra.mxu0 %v1359
    %1721 = vmatpush.bf16.msra.mxu0 %v1351
    %1722 = vmatpush.bf16.msra.mxu0 %v1343
    %1723 = vmatpush.bf16.msra.mxu0 %v1335
    %1724 = vmatmul.bf16.gmra.mxu0 0
    %v1725 = vpop.f32.mrf.mxu0
    %v1726 = vadd.f32 0.0, %v1725
    %v1727 = vpop.f32.mrf.mxu0
    %1728 = vdwg.mxu0
    %1729 = vmatpush.bf16.msra.mxu0 %v1455
    %1730 = vmatpush.bf16.msra.mxu0 %v1447
    %1731 = vmatpush.bf16.msra.mxu0 %v1439
    %1732 = vmatpush.bf16.msra.mxu0 %v1431
    %1733 = vmatpush.bf16.msra.mxu0 %v1423
    %1734 = vmatpush.bf16.msra.mxu0 %v1415
    %1735 = vmatpush.bf16.msra.mxu0 %v1407
    %1736 = vmatpush.bf16.msra.mxu0 %v1399
    %1737 = vmatmul.bf16.gmra.mxu0 0
    %v1738 = vpop.f32.mrf.mxu0
    %v1739 = vadd.f32 %v1726, %v1738
    %v1740 = vpop.f32.mrf.mxu0
    %1741 = vdwg.mxu0
    %1742 = vmatpush.bf16.msra.mxu0 %v1392
    %1743 = vmatpush.bf16.msra.mxu0 %v1384
    %1744 = vmatpush.bf16.msra.mxu0 %v1376
    %1745 = vmatpush.bf16.msra.mxu0 %v1368
    %1746 = vmatpush.bf16.msra.mxu0 %v1360
    %1747 = vmatpush.bf16.msra.mxu0 %v1352
    %1748 = vmatpush.bf16.msra.mxu0 %v1344
    %1749 = vmatpush.bf16.msra.mxu0 %v1336
    %1750 = vmatmul.bf16.gmra.mxu0 0
    %v1751 = vpop.f32.mrf.mxu0
    %v1752 = vadd.f32 0.0, %v1751
    %v1753 = vpop.f32.mrf.mxu0
    %1754 = vdwg.mxu0
    %1755 = vmatpush.bf16.msra.mxu0 %v1456
    %1756 = vmatpush.bf16.msra.mxu0 %v1448
    %1757 = vmatpush.bf16.msra.mxu0 %v1440
    %1758 = vmatpush.bf16.msra.mxu0 %v1432
    %1759 = vmatpush.bf16.msra.mxu0 %v1424
    %1760 = vmatpush.bf16.msra.mxu0 %v1416
    %1761 = vmatpush.bf16.msra.mxu0 %v1408
    %1762 = vmatpush.bf16.msra.mxu0 %v1400
    %1763 = vmatmul.bf16.gmra.mxu0 0
    %v1764 = vpop.f32.mrf.mxu0
    %v1765 = vadd.f32 %v1752, %v1764
    %v1766 = vpop.f32.mrf.mxu0
    %1767 = vdwg.mxu0
    %1768 = vmatpush.bf16.msra.mxu0 %v1393
    %1769 = vmatpush.bf16.msra.mxu0 %v1385
    %1770 = vmatpush.bf16.msra.mxu0 %v1377
    %1771 = vmatpush.bf16.msra.mxu0 %v1369
    %1772 = vmatpush.bf16.msra.mxu0 %v1361
    %1773 = vmatpush.bf16.msra.mxu0 %v1353
    %1774 = vmatpush.bf16.msra.mxu0 %v1345
    %1775 = vmatpush.bf16.msra.mxu0 %v1337
    %1776 = vmatmul.bf16.gmra.mxu0 0
    %v1777 = vpop.f32.mrf.mxu0
    %v1778 = vadd.f32 0.0, %v1777
    %v1779 = vpop.f32.mrf.mxu0
    %1780 = vdwg.mxu0
    %1781 = vmatpush.bf16.msra.mxu0 %v1457
    %1782 = vmatpush.bf16.msra.mxu0 %v1449
    %1783 = vmatpush.bf16.msra.mxu0 %v1441
    %1784 = vmatpush.bf16.msra.mxu0 %v1433
    %1785 = vmatpush.bf16.msra.mxu0 %v1425
    %1786 = vmatpush.bf16.msra.mxu0 %v1417
    %1787 = vmatpush.bf16.msra.mxu0 %v1409
    %1788 = vmatpush.bf16.msra.mxu0 %v1401
    %1789 = vmatmul.bf16.gmra.mxu0 0
    %v1790 = vpop.f32.mrf.mxu0
    %v1791 = vadd.f32 %v1778, %v1790
    %v1792 = vpop.f32.mrf.mxu0
    %1793 = vdwg.mxu0
    %v1794 = vadd.f32 %v810, %v1609
    %v1795 = vadd.f32 %v811, %v1635
    %v1796 = vadd.f32 %v812, %v1661
    %v1797 = vadd.f32 %v813, %v1687
    %v1798 = vadd.f32 %v814, %v1713
    %v1799 = vadd.f32 %v815, %v1739
    %v1800 = vadd.f32 %v816, %v1765
    %v1801 = vadd.f32 %v817, %v1791
    %v1802 = vxor.u32 %v1794, 2147483648
    %v1803 = vxor.u32 %v1795, 2147483648
    %v1804 = vmul.f32 %v1802, 1.442695
    %v1805 = vpow.pop %v1804
    %v1806 = vmul.f32 %v1803, 1.442695
    %v1807 = vpow.pop %v1806
    %v1808 = vadd.f32 %v1805, 1.0
    %v1809 = vadd.f32 %v1807, 1.0
    %v1810 = vrcp.pop %v1808
    %v1811 = vmul.f32 %v1808, %v1810
    %v1812 = vsub.f32 1.0, %v1811
    %v1813 = vmul.f32 %v1810, %v1812
    %v1814 = vadd.f32 %v1810, %v1813
    %vm1815 = vweird.f32 %v1808
    %vm1816 = vweird.f32 %v1810
    %vm1817 = vmor %vm1815, %vm1816
    %v1818 = vsel %vm1817, %v1810, %v1814
    %v1819 = vand.u32 2147483647, %v1808
    %vm1820 = vcmp.eq.f32.partialorder %v1819, 8.507059e+37
    %v1821 = vand.u32 %v1808, 2147483648
    %v1822 = vor.u32 1.1754944e-38, %v1821
    %v1823 = vsel %vm1820, %v1822, %v1818
    %v1824 = vmul.f32 1.0, %v1823
    %v1825 = vrcp.pop %v1809
    %v1826 = vmul.f32 %v1809, %v1825
    %v1827 = vsub.f32 1.0, %v1826
    %v1828 = vmul.f32 %v1825, %v1827
    %v1829 = vadd.f32 %v1825, %v1828
    %vm1830 = vweird.f32 %v1809
    %vm1831 = vweird.f32 %v1825
    %vm1832 = vmor %vm1830, %vm1831
    %v1833 = vsel %vm1832, %v1825, %v1829
    %v1834 = vand.u32 2147483647, %v1809
    %vm1835 = vcmp.eq.f32.partialorder %v1834, 8.507059e+37
    %v1836 = vand.u32 %v1809, 2147483648
    %v1837 = vor.u32 1.1754944e-38, %v1836
    %v1838 = vsel %vm1835, %v1837, %v1833
    %v1839 = vmul.f32 1.0, %v1838
    %v1840 = vxor.u32 %v1796, 2147483648
    %v1841 = vxor.u32 %v1797, 2147483648
    %v1842 = vmul.f32 %v1840, 1.442695
    %v1843 = vpow.pop %v1842
    %v1844 = vmul.f32 %v1841, 1.442695
    %v1845 = vpow.pop %v1844
    %v1846 = vadd.f32 %v1843, 1.0
    %v1847 = vadd.f32 %v1845, 1.0
    %v1848 = vrcp.pop %v1846
    %v1849 = vmul.f32 %v1846, %v1848
    %v1850 = vsub.f32 1.0, %v1849
    %v1851 = vmul.f32 %v1848, %v1850
    %v1852 = vadd.f32 %v1848, %v1851
    %vm1853 = vweird.f32 %v1846
    %vm1854 = vweird.f32 %v1848
    %vm1855 = vmor %vm1853, %vm1854
    %v1856 = vsel %vm1855, %v1848, %v1852
    %v1857 = vand.u32 2147483647, %v1846
    %vm1858 = vcmp.eq.f32.partialorder %v1857, 8.507059e+37
    %v1859 = vand.u32 %v1846, 2147483648
    %v1860 = vor.u32 1.1754944e-38, %v1859
    %v1861 = vsel %vm1858, %v1860, %v1856
    %v1862 = vmul.f32 1.0, %v1861
    %v1863 = vrcp.pop %v1847
    %v1864 = vmul.f32 %v1847, %v1863
    %v1865 = vsub.f32 1.0, %v1864
    %v1866 = vmul.f32 %v1863, %v1865
    %v1867 = vadd.f32 %v1863, %v1866
    %vm1868 = vweird.f32 %v1847
    %vm1869 = vweird.f32 %v1863
    %vm1870 = vmor %vm1868, %vm1869
    %v1871 = vsel %vm1870, %v1863, %v1867
    %v1872 = vand.u32 2147483647, %v1847
    %vm1873 = vcmp.eq.f32.partialorder %v1872, 8.507059e+37
    %v1874 = vand.u32 %v1847, 2147483648
    %v1875 = vor.u32 1.1754944e-38, %v1874
    %v1876 = vsel %vm1873, %v1875, %v1871
    %v1877 = vmul.f32 1.0, %v1876
    %v1878 = vtanh.pop %v1798
    %v1879 = vtanh.pop %v1799
    %v1880 = vxor.u32 %v1800, 2147483648
    %v1881 = vxor.u32 %v1801, 2147483648
    %v1882 = vmul.f32 %v1880, 1.442695
    %v1883 = vpow.pop %v1882
    %v1884 = vmul.f32 %v1881, 1.442695
    %v1885 = vpow.pop %v1884
    %v1886 = vadd.f32 %v1883, 1.0
    %v1887 = vadd.f32 %v1885, 1.0
    %v1888 = vrcp.pop %v1886
    %v1889 = vmul.f32 %v1886, %v1888
    %v1890 = vsub.f32 1.0, %v1889
    %v1891 = vmul.f32 %v1888, %v1890
    %v1892 = vadd.f32 %v1888, %v1891
    %vm1893 = vweird.f32 %v1886
    %vm1894 = vweird.f32 %v1888
    %vm1895 = vmor %vm1893, %vm1894
    %v1896 = vsel %vm1895, %v1888, %v1892
    %v1897 = vand.u32 2147483647, %v1886
    %vm1898 = vcmp.eq.f32.partialorder %v1897, 8.507059e+37
    %v1899 = vand.u32 %v1886, 2147483648
    %v1900 = vor.u32 1.1754944e-38, %v1899
    %v1901 = vsel %vm1898, %v1900, %v1896
    %v1902 = vmul.f32 1.0, %v1901
    %v1903 = vrcp.pop %v1887
    %v1904 = vmul.f32 %v1887, %v1903
    %v1905 = vsub.f32 1.0, %v1904
    %v1906 = vmul.f32 %v1903, %v1905
    %v1907 = vadd.f32 %v1903, %v1906
    %vm1908 = vweird.f32 %v1887
    %vm1909 = vweird.f32 %v1903
    %vm1910 = vmor %vm1908, %vm1909
    %v1911 = vsel %vm1910, %v1903, %v1907
    %v1912 = vand.u32 2147483647, %v1887
    %vm1913 = vcmp.eq.f32.partialorder %v1912, 8.507059e+37
    %v1914 = vand.u32 %v1887, 2147483648
    %v1915 = vor.u32 1.1754944e-38, %v1914
    %v1916 = vsel %vm1913, %v1915, %v1911
    %v1917 = vmul.f32 1.0, %v1916
    %v1918 = vmul.f32 %v1862, 0.0
    %v1919 = vmul.f32 %v1877, 0.0
    %v1920 = vmul.f32 %v1824, %v1878
    %v1921 = vmul.f32 %v1839, %v1879
    %v1922 = vadd.f32 %v1918, %v1920
    %v1923 = vadd.f32 %v1919, %v1921
    %v1924 = vtanh.pop %v1922
    %v1925 = vtanh.pop %v1923
    %v1926 = vmul.f32 %v1902, %v1924
    %v1927 = vmul.f32 %v1917, %v1925
    %v1928 = vpack.c.bf16 %v1927, %v1926
    %1929 = vst [vmem:[#allocation3] sm:$0xff] %v1928
    %s1930 = scalar_lea.vmem [#allocation2], 64
    %v1931 = vld [vmem:[%s1930] sm:$0xff]
    %v1932 = vld [vmem:[%s1930 + $0x8] sm:$0xff]
    %v1933 = vld [vmem:[%s1930 + $0x10] sm:$0xff]
    %v1934 = vld [vmem:[%s1930 + $0x18] sm:$0xff]
    %v1935 = vld [vmem:[%s1930 + $0x20] sm:$0xff]
    %v1936 = vld [vmem:[%s1930 + $0x28] sm:$0xff]
    %v1937 = vld [vmem:[%s1930 + $0x30] sm:$0xff]
    %v1938 = vld [vmem:[%s1930 + $0x38] sm:$0xff]
    %v1939 = vld [vmem:[#allocation6] sm:$0xff]
    %v1940 = vld [vmem:[#allocation6 + $0x8] sm:$0xff]
    %v1941 = vld [vmem:[#allocation6 + $0x10] sm:$0xff]
    %v1942 = vld [vmem:[#allocation6 + $0x18] sm:$0xff]
    %v1943 = vld [vmem:[#allocation6 + $0x20] sm:$0xff]
    %v1944 = vld [vmem:[#allocation6 + $0x28] sm:$0xff]
    %v1945 = vld [vmem:[#allocation6 + $0x30] sm:$0xff]
    %v1946 = vld [vmem:[#allocation6 + $0x38] sm:$0xff]
    %v1947 = vld [vmem:[#allocation6 + $0x40] sm:$0xff]
    %v1948 = vld [vmem:[#allocation6 + $0x48] sm:$0xff]
    %v1949 = vld [vmem:[#allocation6 + $0x50] sm:$0xff]
    %v1950 = vld [vmem:[#allocation6 + $0x58] sm:$0xff]
    %v1951 = vld [vmem:[#allocation6 + $0x60] sm:$0xff]
    %v1952 = vld [vmem:[#allocation6 + $0x68] sm:$0xff]
    %v1953 = vld [vmem:[#allocation6 + $0x70] sm:$0xff]
    %v1954 = vld [vmem:[#allocation6 + $0x78] sm:$0xff]
    %v1955 = vld [vmem:[#allocation6 + $0x80] sm:$0xff]
    %v1956 = vld [vmem:[#allocation6 + $0x88] sm:$0xff]
    %v1957 = vld [vmem:[#allocation6 + $0x90] sm:$0xff]
    %v1958 = vld [vmem:[#allocation6 + $0x98] sm:$0xff]
    %v1959 = vld [vmem:[#allocation6 + $0xa0] sm:$0xff]
    %v1960 = vld [vmem:[#allocation6 + $0xa8] sm:$0xff]
    %v1961 = vld [vmem:[#allocation6 + $0xb0] sm:$0xff]
    %v1962 = vld [vmem:[#allocation6 + $0xb8] sm:$0xff]
    %v1963 = vld [vmem:[#allocation6 + $0xc0] sm:$0xff]
    %v1964 = vld [vmem:[#allocation6 + $0xc8] sm:$0xff]
    %v1965 = vld [vmem:[#allocation6 + $0xd0] sm:$0xff]
    %v1966 = vld [vmem:[#allocation6 + $0xd8] sm:$0xff]
    %v1967 = vld [vmem:[#allocation6 + $0xe0] sm:$0xff]
    %v1968 = vld [vmem:[#allocation6 + $0xe8] sm:$0xff]
    %v1969 = vld [vmem:[#allocation6 + $0xf0] sm:$0xff]
    %v1970 = vld [vmem:[#allocation6 + $0xf8] sm:$0xff]
    %v1971 = vld [vmem:[#allocation6 + $0x100] sm:$0xff]
    %v1972 = vld [vmem:[#allocation6 + $0x108] sm:$0xff]
    %v1973 = vld [vmem:[#allocation6 + $0x110] sm:$0xff]
    %v1974 = vld [vmem:[#allocation6 + $0x118] sm:$0xff]
    %v1975 = vld [vmem:[#allocation6 + $0x120] sm:$0xff]
    %v1976 = vld [vmem:[#allocation6 + $0x128] sm:$0xff]
    %v1977 = vld [vmem:[#allocation6 + $0x130] sm:$0xff]
    %v1978 = vld [vmem:[#allocation6 + $0x138] sm:$0xff]
    %v1979 = vld [vmem:[#allocation6 + $0x140] sm:$0xff]
    %v1980 = vld [vmem:[#allocation6 + $0x148] sm:$0xff]
    %v1981 = vld [vmem:[#allocation6 + $0x150] sm:$0xff]
    %v1982 = vld [vmem:[#allocation6 + $0x158] sm:$0xff]
    %v1983 = vld [vmem:[#allocation6 + $0x160] sm:$0xff]
    %v1984 = vld [vmem:[#allocation6 + $0x168] sm:$0xff]
    %v1985 = vld [vmem:[#allocation6 + $0x170] sm:$0xff]
    %v1986 = vld [vmem:[#allocation6 + $0x178] sm:$0xff]
    %v1987 = vld [vmem:[#allocation6 + $0x180] sm:$0xff]
    %v1988 = vld [vmem:[#allocation6 + $0x188] sm:$0xff]
    %v1989 = vld [vmem:[#allocation6 + $0x190] sm:$0xff]
    %v1990 = vld [vmem:[#allocation6 + $0x198] sm:$0xff]
    %v1991 = vld [vmem:[#allocation6 + $0x1a0] sm:$0xff]
    %v1992 = vld [vmem:[#allocation6 + $0x1a8] sm:$0xff]
    %v1993 = vld [vmem:[#allocation6 + $0x1b0] sm:$0xff]
    %v1994 = vld [vmem:[#allocation6 + $0x1b8] sm:$0xff]
    %v1995 = vld [vmem:[#allocation6 + $0x1c0] sm:$0xff]
    %v1996 = vld [vmem:[#allocation6 + $0x1c8] sm:$0xff]
    %v1997 = vld [vmem:[#allocation6 + $0x1d0] sm:$0xff]
    %v1998 = vld [vmem:[#allocation6 + $0x1d8] sm:$0xff]
    %v1999 = vld [vmem:[#allocation6 + $0x1e0] sm:$0xff]
    %v2000 = vld [vmem:[#allocation6 + $0x1e8] sm:$0xff]
    %v2001 = vld [vmem:[#allocation6 + $0x1f0] sm:$0xff]
    %v2002 = vld [vmem:[#allocation6 + $0x1f8] sm:$0xff]
    %v2003 = vld [vmem:[#allocation6 + $0x200] sm:$0xff]
    %v2004 = vld [vmem:[#allocation6 + $0x208] sm:$0xff]
    %v2005 = vld [vmem:[#allocation6 + $0x210] sm:$0xff]
    %v2006 = vld [vmem:[#allocation6 + $0x218] sm:$0xff]
    %v2007 = vld [vmem:[#allocation6 + $0x220] sm:$0xff]
    %v2008 = vld [vmem:[#allocation6 + $0x228] sm:$0xff]
    %v2009 = vld [vmem:[#allocation6 + $0x230] sm:$0xff]
    %v2010 = vld [vmem:[#allocation6 + $0x238] sm:$0xff]
    %v2011 = vld [vmem:[#allocation6 + $0x240] sm:$0xff]
    %v2012 = vld [vmem:[#allocation6 + $0x248] sm:$0xff]
    %v2013 = vld [vmem:[#allocation6 + $0x250] sm:$0xff]
    %v2014 = vld [vmem:[#allocation6 + $0x258] sm:$0xff]
    %v2015 = vld [vmem:[#allocation6 + $0x260] sm:$0xff]
    %v2016 = vld [vmem:[#allocation6 + $0x268] sm:$0xff]
    %v2017 = vld [vmem:[#allocation6 + $0x270] sm:$0xff]
    %v2018 = vld [vmem:[#allocation6 + $0x278] sm:$0xff]
    %v2019 = vld [vmem:[#allocation6 + $0x280] sm:$0xff]
    %v2020 = vld [vmem:[#allocation6 + $0x288] sm:$0xff]
    %v2021 = vld [vmem:[#allocation6 + $0x290] sm:$0xff]
    %v2022 = vld [vmem:[#allocation6 + $0x298] sm:$0xff]
    %v2023 = vld [vmem:[#allocation6 + $0x2a0] sm:$0xff]
    %v2024 = vld [vmem:[#allocation6 + $0x2a8] sm:$0xff]
    %v2025 = vld [vmem:[#allocation6 + $0x2b0] sm:$0xff]
    %v2026 = vld [vmem:[#allocation6 + $0x2b8] sm:$0xff]
    %v2027 = vld [vmem:[#allocation6 + $0x2c0] sm:$0xff]
    %v2028 = vld [vmem:[#allocation6 + $0x2c8] sm:$0xff]
    %v2029 = vld [vmem:[#allocation6 + $0x2d0] sm:$0xff]
    %v2030 = vld [vmem:[#allocation6 + $0x2d8] sm:$0xff]
    %v2031 = vld [vmem:[#allocation6 + $0x2e0] sm:$0xff]
    %v2032 = vld [vmem:[#allocation6 + $0x2e8] sm:$0xff]
    %v2033 = vld [vmem:[#allocation6 + $0x2f0] sm:$0xff]
    %v2034 = vld [vmem:[#allocation6 + $0x2f8] sm:$0xff]
    %v2035 = vld [vmem:[#allocation6 + $0x300] sm:$0xff]
    %v2036 = vld [vmem:[#allocation6 + $0x308] sm:$0xff]
    %v2037 = vld [vmem:[#allocation6 + $0x310] sm:$0xff]
    %v2038 = vld [vmem:[#allocation6 + $0x318] sm:$0xff]
    %v2039 = vld [vmem:[#allocation6 + $0x320] sm:$0xff]
    %v2040 = vld [vmem:[#allocation6 + $0x328] sm:$0xff]
    %v2041 = vld [vmem:[#allocation6 + $0x330] sm:$0xff]
    %v2042 = vld [vmem:[#allocation6 + $0x338] sm:$0xff]
    %v2043 = vld [vmem:[#allocation6 + $0x340] sm:$0xff]
    %v2044 = vld [vmem:[#allocation6 + $0x348] sm:$0xff]
    %v2045 = vld [vmem:[#allocation6 + $0x350] sm:$0xff]
    %v2046 = vld [vmem:[#allocation6 + $0x358] sm:$0xff]
    %v2047 = vld [vmem:[#allocation6 + $0x360] sm:$0xff]
    %v2048 = vld [vmem:[#allocation6 + $0x368] sm:$0xff]
    %v2049 = vld [vmem:[#allocation6 + $0x370] sm:$0xff]
    %v2050 = vld [vmem:[#allocation6 + $0x378] sm:$0xff]
    %v2051 = vld [vmem:[#allocation6 + $0x380] sm:$0xff]
    %v2052 = vld [vmem:[#allocation6 + $0x388] sm:$0xff]
    %v2053 = vld [vmem:[#allocation6 + $0x390] sm:$0xff]
    %v2054 = vld [vmem:[#allocation6 + $0x398] sm:$0xff]
    %v2055 = vld [vmem:[#allocation6 + $0x3a0] sm:$0xff]
    %v2056 = vld [vmem:[#allocation6 + $0x3a8] sm:$0xff]
    %v2057 = vld [vmem:[#allocation6 + $0x3b0] sm:$0xff]
    %v2058 = vld [vmem:[#allocation6 + $0x3b8] sm:$0xff]
    %v2059 = vld [vmem:[#allocation6 + $0x3c0] sm:$0xff]
    %v2060 = vld [vmem:[#allocation6 + $0x3c8] sm:$0xff]
    %v2061 = vld [vmem:[#allocation6 + $0x3d0] sm:$0xff]
    %v2062 = vld [vmem:[#allocation6 + $0x3d8] sm:$0xff]
    %v2063 = vld [vmem:[#allocation6 + $0x3e0] sm:$0xff]
    %v2064 = vld [vmem:[#allocation6 + $0x3e8] sm:$0xff]
    %v2065 = vld [vmem:[#allocation6 + $0x3f0] sm:$0xff]
    %v2066 = vld [vmem:[#allocation6 + $0x3f8] sm:$0xff]
    %v2068 = vunpack.c.l.b16 %v1928
    %v2069 = vunpack.c.h.b16 %v1928
    %v2070 = vpack.c.b16 %v2068, %v2068
    %v2071 = vpack.c.b16 %v2069, %v2069
    %v2202 = vunpack.c.l.b16 %v1939
    %v2203 = vunpack.c.h.b16 %v1939
    %v2204 = vunpack.c.l.b16 %v1940
    %v2205 = vunpack.c.h.b16 %v1940
    %v2206 = vunpack.c.l.b16 %v1941
    %v2207 = vunpack.c.h.b16 %v1941
    %v2208 = vunpack.c.l.b16 %v1942
    %v2209 = vunpack.c.h.b16 %v1942
    %v2210 = vunpack.c.l.b16 %v1943
    %v2211 = vunpack.c.h.b16 %v1943
    %v2212 = vunpack.c.l.b16 %v1944
    %v2213 = vunpack.c.h.b16 %v1944
    %v2214 = vunpack.c.l.b16 %v1945
    %v2215 = vunpack.c.h.b16 %v1945
    %v2216 = vunpack.c.l.b16 %v1946
    %v2217 = vunpack.c.h.b16 %v1946
    %v2218 = vunpack.c.l.b16 %v1947
    %v2219 = vunpack.c.h.b16 %v1947
    %v2220 = vunpack.c.l.b16 %v1948
    %v2221 = vunpack.c.h.b16 %v1948
    %v2222 = vunpack.c.l.b16 %v1949
    %v2223 = vunpack.c.h.b16 %v1949
    %v2224 = vunpack.c.l.b16 %v1950
    %v2225 = vunpack.c.h.b16 %v1950
    %v2226 = vunpack.c.l.b16 %v1951
    %v2227 = vunpack.c.h.b16 %v1951
    %v2228 = vunpack.c.l.b16 %v1952
    %v2229 = vunpack.c.h.b16 %v1952
    %v2230 = vunpack.c.l.b16 %v1953
    %v2231 = vunpack.c.h.b16 %v1953
    %v2232 = vunpack.c.l.b16 %v1954
    %v2233 = vunpack.c.h.b16 %v1954
    %v2234 = vunpack.c.l.b16 %v1955
    %v2235 = vunpack.c.h.b16 %v1955
    %v2236 = vunpack.c.l.b16 %v1956
    %v2237 = vunpack.c.h.b16 %v1956
    %v2238 = vunpack.c.l.b16 %v1957
    %v2239 = vunpack.c.h.b16 %v1957
    %v2240 = vunpack.c.l.b16 %v1958
    %v2241 = vunpack.c.h.b16 %v1958
    %v2242 = vunpack.c.l.b16 %v1959
    %v2243 = vunpack.c.h.b16 %v1959
    %v2244 = vunpack.c.l.b16 %v1960
    %v2245 = vunpack.c.h.b16 %v1960
    %v2246 = vunpack.c.l.b16 %v1961
    %v2247 = vunpack.c.h.b16 %v1961
    %v2248 = vunpack.c.l.b16 %v1962
    %v2249 = vunpack.c.h.b16 %v1962
    %v2250 = vunpack.c.l.b16 %v1963
    %v2251 = vunpack.c.h.b16 %v1963
    %v2252 = vunpack.c.l.b16 %v1964
    %v2253 = vunpack.c.h.b16 %v1964
    %v2254 = vunpack.c.l.b16 %v1965
    %v2255 = vunpack.c.h.b16 %v1965
    %v2256 = vunpack.c.l.b16 %v1966
    %v2257 = vunpack.c.h.b16 %v1966
    %v2258 = vunpack.c.l.b16 %v1967
    %v2259 = vunpack.c.h.b16 %v1967
    %v2260 = vunpack.c.l.b16 %v1968
    %v2261 = vunpack.c.h.b16 %v1968
    %v2262 = vunpack.c.l.b16 %v1969
    %v2263 = vunpack.c.h.b16 %v1969
    %v2264 = vunpack.c.l.b16 %v1970
    %v2265 = vunpack.c.h.b16 %v1970
    %v2266 = vunpack.c.l.b16 %v1971
    %v2267 = vunpack.c.h.b16 %v1971
    %v2268 = vunpack.c.l.b16 %v1972
    %v2269 = vunpack.c.h.b16 %v1972
    %v2270 = vunpack.c.l.b16 %v1973
    %v2271 = vunpack.c.h.b16 %v1973
    %v2272 = vunpack.c.l.b16 %v1974
    %v2273 = vunpack.c.h.b16 %v1974
    %v2274 = vunpack.c.l.b16 %v1975
    %v2275 = vunpack.c.h.b16 %v1975
    %v2276 = vunpack.c.l.b16 %v1976
    %v2277 = vunpack.c.h.b16 %v1976
    %v2278 = vunpack.c.l.b16 %v1977
    %v2279 = vunpack.c.h.b16 %v1977
    %v2280 = vunpack.c.l.b16 %v1978
    %v2281 = vunpack.c.h.b16 %v1978
    %v2282 = vunpack.c.l.b16 %v1979
    %v2283 = vunpack.c.h.b16 %v1979
    %v2284 = vunpack.c.l.b16 %v1980
    %v2285 = vunpack.c.h.b16 %v1980
    %v2286 = vunpack.c.l.b16 %v1981
    %v2287 = vunpack.c.h.b16 %v1981
    %v2288 = vunpack.c.l.b16 %v1982
    %v2289 = vunpack.c.h.b16 %v1982
    %v2290 = vunpack.c.l.b16 %v1983
    %v2291 = vunpack.c.h.b16 %v1983
    %v2292 = vunpack.c.l.b16 %v1984
    %v2293 = vunpack.c.h.b16 %v1984
    %v2294 = vunpack.c.l.b16 %v1985
    %v2295 = vunpack.c.h.b16 %v1985
    %v2296 = vunpack.c.l.b16 %v1986
    %v2297 = vunpack.c.h.b16 %v1986
    %v2298 = vunpack.c.l.b16 %v1987
    %v2299 = vunpack.c.h.b16 %v1987
    %v2300 = vunpack.c.l.b16 %v1988
    %v2301 = vunpack.c.h.b16 %v1988
    %v2302 = vunpack.c.l.b16 %v1989
    %v2303 = vunpack.c.h.b16 %v1989
    %v2304 = vunpack.c.l.b16 %v1990
    %v2305 = vunpack.c.h.b16 %v1990
    %v2306 = vunpack.c.l.b16 %v1991
    %v2307 = vunpack.c.h.b16 %v1991
    %v2308 = vunpack.c.l.b16 %v1992
    %v2309 = vunpack.c.h.b16 %v1992
    %v2310 = vunpack.c.l.b16 %v1993
    %v2311 = vunpack.c.h.b16 %v1993
    %v2312 = vunpack.c.l.b16 %v1994
    %v2313 = vunpack.c.h.b16 %v1994
    %v2314 = vunpack.c.l.b16 %v1995
    %v2315 = vunpack.c.h.b16 %v1995
    %v2316 = vunpack.c.l.b16 %v1996
    %v2317 = vunpack.c.h.b16 %v1996
    %v2318 = vunpack.c.l.b16 %v1997
    %v2319 = vunpack.c.h.b16 %v1997
    %v2320 = vunpack.c.l.b16 %v1998
    %v2321 = vunpack.c.h.b16 %v1998
    %v2322 = vunpack.c.l.b16 %v1999
    %v2323 = vunpack.c.h.b16 %v1999
    %v2324 = vunpack.c.l.b16 %v2000
    %v2325 = vunpack.c.h.b16 %v2000
    %v2326 = vunpack.c.l.b16 %v2001
    %v2327 = vunpack.c.h.b16 %v2001
    %v2328 = vunpack.c.l.b16 %v2002
    %v2329 = vunpack.c.h.b16 %v2002
    %v2330 = vunpack.c.l.b16 %v2003
    %v2331 = vunpack.c.h.b16 %v2003
    %v2332 = vunpack.c.l.b16 %v2004
    %v2333 = vunpack.c.h.b16 %v2004
    %v2334 = vunpack.c.l.b16 %v2005
    %v2335 = vunpack.c.h.b16 %v2005
    %v2336 = vunpack.c.l.b16 %v2006
    %v2337 = vunpack.c.h.b16 %v2006
    %v2338 = vunpack.c.l.b16 %v2007
    %v2339 = vunpack.c.h.b16 %v2007
    %v2340 = vunpack.c.l.b16 %v2008
    %v2341 = vunpack.c.h.b16 %v2008
    %v2342 = vunpack.c.l.b16 %v2009
    %v2343 = vunpack.c.h.b16 %v2009
    %v2344 = vunpack.c.l.b16 %v2010
    %v2345 = vunpack.c.h.b16 %v2010
    %v2346 = vunpack.c.l.b16 %v2011
    %v2347 = vunpack.c.h.b16 %v2011
    %v2348 = vunpack.c.l.b16 %v2012
    %v2349 = vunpack.c.h.b16 %v2012
    %v2350 = vunpack.c.l.b16 %v2013
    %v2351 = vunpack.c.h.b16 %v2013
    %v2352 = vunpack.c.l.b16 %v2014
    %v2353 = vunpack.c.h.b16 %v2014
    %v2354 = vunpack.c.l.b16 %v2015
    %v2355 = vunpack.c.h.b16 %v2015
    %v2356 = vunpack.c.l.b16 %v2016
    %v2357 = vunpack.c.h.b16 %v2016
    %v2358 = vunpack.c.l.b16 %v2017
    %v2359 = vunpack.c.h.b16 %v2017
    %v2360 = vunpack.c.l.b16 %v2018
    %v2361 = vunpack.c.h.b16 %v2018
    %v2362 = vunpack.c.l.b16 %v2019
    %v2363 = vunpack.c.h.b16 %v2019
    %v2364 = vunpack.c.l.b16 %v2020
    %v2365 = vunpack.c.h.b16 %v2020
    %v2366 = vunpack.c.l.b16 %v2021
    %v2367 = vunpack.c.h.b16 %v2021
    %v2368 = vunpack.c.l.b16 %v2022
    %v2369 = vunpack.c.h.b16 %v2022
    %v2370 = vunpack.c.l.b16 %v2023
    %v2371 = vunpack.c.h.b16 %v2023
    %v2372 = vunpack.c.l.b16 %v2024
    %v2373 = vunpack.c.h.b16 %v2024
    %v2374 = vunpack.c.l.b16 %v2025
    %v2375 = vunpack.c.h.b16 %v2025
    %v2376 = vunpack.c.l.b16 %v2026
    %v2377 = vunpack.c.h.b16 %v2026
    %v2378 = vunpack.c.l.b16 %v2027
    %v2379 = vunpack.c.h.b16 %v2027
    %v2380 = vunpack.c.l.b16 %v2028
    %v2381 = vunpack.c.h.b16 %v2028
    %v2382 = vunpack.c.l.b16 %v2029
    %v2383 = vunpack.c.h.b16 %v2029
    %v2384 = vunpack.c.l.b16 %v2030
    %v2385 = vunpack.c.h.b16 %v2030
    %v2386 = vunpack.c.l.b16 %v2031
    %v2387 = vunpack.c.h.b16 %v2031
    %v2388 = vunpack.c.l.b16 %v2032
    %v2389 = vunpack.c.h.b16 %v2032
    %v2390 = vunpack.c.l.b16 %v2033
    %v2391 = vunpack.c.h.b16 %v2033
    %v2392 = vunpack.c.l.b16 %v2034
    %v2393 = vunpack.c.h.b16 %v2034
    %v2394 = vunpack.c.l.b16 %v2035
    %v2395 = vunpack.c.h.b16 %v2035
    %v2396 = vunpack.c.l.b16 %v2036
    %v2397 = vunpack.c.h.b16 %v2036
    %v2398 = vunpack.c.l.b16 %v2037
    %v2399 = vunpack.c.h.b16 %v2037
    %v2400 = vunpack.c.l.b16 %v2038
    %v2401 = vunpack.c.h.b16 %v2038
    %v2402 = vunpack.c.l.b16 %v2039
    %v2403 = vunpack.c.h.b16 %v2039
    %v2404 = vunpack.c.l.b16 %v2040
    %v2405 = vunpack.c.h.b16 %v2040
    %v2406 = vunpack.c.l.b16 %v2041
    %v2407 = vunpack.c.h.b16 %v2041
    %v2408 = vunpack.c.l.b16 %v2042
    %v2409 = vunpack.c.h.b16 %v2042
    %v2410 = vunpack.c.l.b16 %v2043
    %v2411 = vunpack.c.h.b16 %v2043
    %v2412 = vunpack.c.l.b16 %v2044
    %v2413 = vunpack.c.h.b16 %v2044
    %v2414 = vunpack.c.l.b16 %v2045
    %v2415 = vunpack.c.h.b16 %v2045
    %v2416 = vunpack.c.l.b16 %v2046
    %v2417 = vunpack.c.h.b16 %v2046
    %v2418 = vunpack.c.l.b16 %v2047
    %v2419 = vunpack.c.h.b16 %v2047
    %v2420 = vunpack.c.l.b16 %v2048
    %v2421 = vunpack.c.h.b16 %v2048
    %v2422 = vunpack.c.l.b16 %v2049
    %v2423 = vunpack.c.h.b16 %v2049
    %v2424 = vunpack.c.l.b16 %v2050
    %v2425 = vunpack.c.h.b16 %v2050
    %v2426 = vunpack.c.l.b16 %v2051
    %v2427 = vunpack.c.h.b16 %v2051
    %v2428 = vunpack.c.l.b16 %v2052
    %v2429 = vunpack.c.h.b16 %v2052
    %v2430 = vunpack.c.l.b16 %v2053
    %v2431 = vunpack.c.h.b16 %v2053
    %v2432 = vunpack.c.l.b16 %v2054
    %v2433 = vunpack.c.h.b16 %v2054
    %v2434 = vunpack.c.l.b16 %v2055
    %v2435 = vunpack.c.h.b16 %v2055
    %v2436 = vunpack.c.l.b16 %v2056
    %v2437 = vunpack.c.h.b16 %v2056
    %v2438 = vunpack.c.l.b16 %v2057
    %v2439 = vunpack.c.h.b16 %v2057
    %v2440 = vunpack.c.l.b16 %v2058
    %v2441 = vunpack.c.h.b16 %v2058
    %v2442 = vunpack.c.l.b16 %v2059
    %v2443 = vunpack.c.h.b16 %v2059
    %v2444 = vunpack.c.l.b16 %v2060
    %v2445 = vunpack.c.h.b16 %v2060
    %v2446 = vunpack.c.l.b16 %v2061
    %v2447 = vunpack.c.h.b16 %v2061
    %v2448 = vunpack.c.l.b16 %v2062
    %v2449 = vunpack.c.h.b16 %v2062
    %v2450 = vunpack.c.l.b16 %v2063
    %v2451 = vunpack.c.h.b16 %v2063
    %v2452 = vunpack.c.l.b16 %v2064
    %v2453 = vunpack.c.h.b16 %v2064
    %v2454 = vunpack.c.l.b16 %v2065
    %v2455 = vunpack.c.h.b16 %v2065
    %v2456 = vunpack.c.l.b16 %v2066
    %v2457 = vunpack.c.h.b16 %v2066
    %v2458 = vpack.c.b16 %v2210, %v2202
    %v2459 = vpack.c.b16 %v2211, %v2203
    %v2460 = vpack.c.b16 %v2212, %v2204
    %v2461 = vpack.c.b16 %v2213, %v2205
    %v2462 = vpack.c.b16 %v2214, %v2206
    %v2463 = vpack.c.b16 %v2215, %v2207
    %v2464 = vpack.c.b16 %v2216, %v2208
    %v2465 = vpack.c.b16 %v2217, %v2209
    %v2466 = vpack.c.b16 %v2226, %v2218
    %v2467 = vpack.c.b16 %v2227, %v2219
    %v2468 = vpack.c.b16 %v2228, %v2220
    %v2469 = vpack.c.b16 %v2229, %v2221
    %v2470 = vpack.c.b16 %v2230, %v2222
    %v2471 = vpack.c.b16 %v2231, %v2223
    %v2472 = vpack.c.b16 %v2232, %v2224
    %v2473 = vpack.c.b16 %v2233, %v2225
    %v2474 = vpack.c.b16 %v2242, %v2234
    %v2475 = vpack.c.b16 %v2243, %v2235
    %v2476 = vpack.c.b16 %v2244, %v2236
    %v2477 = vpack.c.b16 %v2245, %v2237
    %v2478 = vpack.c.b16 %v2246, %v2238
    %v2479 = vpack.c.b16 %v2247, %v2239
    %v2480 = vpack.c.b16 %v2248, %v2240
    %v2481 = vpack.c.b16 %v2249, %v2241
    %v2482 = vpack.c.b16 %v2258, %v2250
    %v2483 = vpack.c.b16 %v2259, %v2251
    %v2484 = vpack.c.b16 %v2260, %v2252
    %v2485 = vpack.c.b16 %v2261, %v2253
    %v2486 = vpack.c.b16 %v2262, %v2254
    %v2487 = vpack.c.b16 %v2263, %v2255
    %v2488 = vpack.c.b16 %v2264, %v2256
    %v2489 = vpack.c.b16 %v2265, %v2257
    %v2490 = vpack.c.b16 %v2274, %v2266
    %v2491 = vpack.c.b16 %v2275, %v2267
    %v2492 = vpack.c.b16 %v2276, %v2268
    %v2493 = vpack.c.b16 %v2277, %v2269
    %v2494 = vpack.c.b16 %v2278, %v2270
    %v2495 = vpack.c.b16 %v2279, %v2271
    %v2496 = vpack.c.b16 %v2280, %v2272
    %v2497 = vpack.c.b16 %v2281, %v2273
    %v2498 = vpack.c.b16 %v2290, %v2282
    %v2499 = vpack.c.b16 %v2291, %v2283
    %v2500 = vpack.c.b16 %v2292, %v2284
    %v2501 = vpack.c.b16 %v2293, %v2285
    %v2502 = vpack.c.b16 %v2294, %v2286
    %v2503 = vpack.c.b16 %v2295, %v2287
    %v2504 = vpack.c.b16 %v2296, %v2288
    %v2505 = vpack.c.b16 %v2297, %v2289
    %v2506 = vpack.c.b16 %v2306, %v2298
    %v2507 = vpack.c.b16 %v2307, %v2299
    %v2508 = vpack.c.b16 %v2308, %v2300
    %v2509 = vpack.c.b16 %v2309, %v2301
    %v2510 = vpack.c.b16 %v2310, %v2302
    %v2511 = vpack.c.b16 %v2311, %v2303
    %v2512 = vpack.c.b16 %v2312, %v2304
    %v2513 = vpack.c.b16 %v2313, %v2305
    %v2514 = vpack.c.b16 %v2322, %v2314
    %v2515 = vpack.c.b16 %v2323, %v2315
    %v2516 = vpack.c.b16 %v2324, %v2316
    %v2517 = vpack.c.b16 %v2325, %v2317
    %v2518 = vpack.c.b16 %v2326, %v2318
    %v2519 = vpack.c.b16 %v2327, %v2319
    %v2520 = vpack.c.b16 %v2328, %v2320
    %v2521 = vpack.c.b16 %v2329, %v2321
    %v2522 = vpack.c.b16 %v2338, %v2330
    %v2523 = vpack.c.b16 %v2339, %v2331
    %v2524 = vpack.c.b16 %v2340, %v2332
    %v2525 = vpack.c.b16 %v2341, %v2333
    %v2526 = vpack.c.b16 %v2342, %v2334
    %v2527 = vpack.c.b16 %v2343, %v2335
    %v2528 = vpack.c.b16 %v2344, %v2336
    %v2529 = vpack.c.b16 %v2345, %v2337
    %v2530 = vpack.c.b16 %v2354, %v2346
    %v2531 = vpack.c.b16 %v2355, %v2347
    %v2532 = vpack.c.b16 %v2356, %v2348
    %v2533 = vpack.c.b16 %v2357, %v2349
    %v2534 = vpack.c.b16 %v2358, %v2350
    %v2535 = vpack.c.b16 %v2359, %v2351
    %v2536 = vpack.c.b16 %v2360, %v2352
    %v2537 = vpack.c.b16 %v2361, %v2353
    %v2538 = vpack.c.b16 %v2370, %v2362
    %v2539 = vpack.c.b16 %v2371, %v2363
    %v2540 = vpack.c.b16 %v2372, %v2364
    %v2541 = vpack.c.b16 %v2373, %v2365
    %v2542 = vpack.c.b16 %v2374, %v2366
    %v2543 = vpack.c.b16 %v2375, %v2367
    %v2544 = vpack.c.b16 %v2376, %v2368
    %v2545 = vpack.c.b16 %v2377, %v2369
    %v2546 = vpack.c.b16 %v2386, %v2378
    %v2547 = vpack.c.b16 %v2387, %v2379
    %v2548 = vpack.c.b16 %v2388, %v2380
    %v2549 = vpack.c.b16 %v2389, %v2381
    %v2550 = vpack.c.b16 %v2390, %v2382
    %v2551 = vpack.c.b16 %v2391, %v2383
    %v2552 = vpack.c.b16 %v2392, %v2384
    %v2553 = vpack.c.b16 %v2393, %v2385
    %v2554 = vpack.c.b16 %v2402, %v2394
    %v2555 = vpack.c.b16 %v2403, %v2395
    %v2556 = vpack.c.b16 %v2404, %v2396
    %v2557 = vpack.c.b16 %v2405, %v2397
    %v2558 = vpack.c.b16 %v2406, %v2398
    %v2559 = vpack.c.b16 %v2407, %v2399
    %v2560 = vpack.c.b16 %v2408, %v2400
    %v2561 = vpack.c.b16 %v2409, %v2401
    %v2562 = vpack.c.b16 %v2418, %v2410
    %v2563 = vpack.c.b16 %v2419, %v2411
    %v2564 = vpack.c.b16 %v2420, %v2412
    %v2565 = vpack.c.b16 %v2421, %v2413
    %v2566 = vpack.c.b16 %v2422, %v2414
    %v2567 = vpack.c.b16 %v2423, %v2415
    %v2568 = vpack.c.b16 %v2424, %v2416
    %v2569 = vpack.c.b16 %v2425, %v2417
    %v2570 = vpack.c.b16 %v2434, %v2426
    %v2571 = vpack.c.b16 %v2435, %v2427
    %v2572 = vpack.c.b16 %v2436, %v2428
    %v2573 = vpack.c.b16 %v2437, %v2429
    %v2574 = vpack.c.b16 %v2438, %v2430
    %v2575 = vpack.c.b16 %v2439, %v2431
    %v2576 = vpack.c.b16 %v2440, %v2432
    %v2577 = vpack.c.b16 %v2441, %v2433
    %v2578 = vpack.c.b16 %v2450, %v2442
    %v2579 = vpack.c.b16 %v2451, %v2443
    %v2580 = vpack.c.b16 %v2452, %v2444
    %v2581 = vpack.c.b16 %v2453, %v2445
    %v2582 = vpack.c.b16 %v2454, %v2446
    %v2583 = vpack.c.b16 %v2455, %v2447
    %v2584 = vpack.c.b16 %v2456, %v2448
    %v2585 = vpack.c.b16 %v2457, %v2449
    %2714 = vmatpush.bf16.msra.mxu0 %v2514
    %2715 = vmatpush.bf16.msra.mxu0 %v2506
    %2716 = vmatpush.bf16.msra.mxu0 %v2498
    %2717 = vmatpush.bf16.msra.mxu0 %v2490
    %2718 = vmatpush.bf16.msra.mxu0 %v2482
    %2719 = vmatpush.bf16.msra.mxu0 %v2474
    %2720 = vmatpush.bf16.msra.mxu0 %v2466
    %2721 = vmatpush.bf16.msra.mxu0 %v2458
    %2722 = vmatmul.bf16.gmra.mxu0 %v2070
    %v2723 = vpop.f32.mrf.mxu0
    %v2724 = vadd.f32 0.0, %v2723
    %v2725 = vpop.f32.mrf.mxu0
    %2726 = vdwg.mxu0
    %2727 = vmatpush.bf16.msra.mxu0 %v2578
    %2728 = vmatpush.bf16.msra.mxu0 %v2570
    %2729 = vmatpush.bf16.msra.mxu0 %v2562
    %2730 = vmatpush.bf16.msra.mxu0 %v2554
    %2731 = vmatpush.bf16.msra.mxu0 %v2546
    %2732 = vmatpush.bf16.msra.mxu0 %v2538
    %2733 = vmatpush.bf16.msra.mxu0 %v2530
    %2734 = vmatpush.bf16.msra.mxu0 %v2522
    %2735 = vmatmul.bf16.gmra.mxu0 %v2071
    %v2736 = vpop.f32.mrf.mxu0
    %v2737 = vadd.f32 %v2724, %v2736
    %v2738 = vpop.f32.mrf.mxu0
    %2739 = vdwg.mxu0
    %2740 = vmatpush.bf16.msra.mxu0 %v2515
    %2741 = vmatpush.bf16.msra.mxu0 %v2507
    %2742 = vmatpush.bf16.msra.mxu0 %v2499
    %2743 = vmatpush.bf16.msra.mxu0 %v2491
    %2744 = vmatpush.bf16.msra.mxu0 %v2483
    %2745 = vmatpush.bf16.msra.mxu0 %v2475
    %2746 = vmatpush.bf16.msra.mxu0 %v2467
    %2747 = vmatpush.bf16.msra.mxu0 %v2459
    %2748 = vmatmul.bf16.gmra.mxu0 %v2070
    %v2749 = vpop.f32.mrf.mxu0
    %v2750 = vadd.f32 0.0, %v2749
    %v2751 = vpop.f32.mrf.mxu0
    %2752 = vdwg.mxu0
    %2753 = vmatpush.bf16.msra.mxu0 %v2579
    %2754 = vmatpush.bf16.msra.mxu0 %v2571
    %2755 = vmatpush.bf16.msra.mxu0 %v2563
    %2756 = vmatpush.bf16.msra.mxu0 %v2555
    %2757 = vmatpush.bf16.msra.mxu0 %v2547
    %2758 = vmatpush.bf16.msra.mxu0 %v2539
    %2759 = vmatpush.bf16.msra.mxu0 %v2531
    %2760 = vmatpush.bf16.msra.mxu0 %v2523
    %2761 = vmatmul.bf16.gmra.mxu0 %v2071
    %v2762 = vpop.f32.mrf.mxu0
    %v2763 = vadd.f32 %v2750, %v2762
    %v2764 = vpop.f32.mrf.mxu0
    %2765 = vdwg.mxu0
    %2766 = vmatpush.bf16.msra.mxu0 %v2516
    %2767 = vmatpush.bf16.msra.mxu0 %v2508
    %2768 = vmatpush.bf16.msra.mxu0 %v2500
    %2769 = vmatpush.bf16.msra.mxu0 %v2492
    %2770 = vmatpush.bf16.msra.mxu0 %v2484
    %2771 = vmatpush.bf16.msra.mxu0 %v2476
    %2772 = vmatpush.bf16.msra.mxu0 %v2468
    %2773 = vmatpush.bf16.msra.mxu0 %v2460
    %2774 = vmatmul.bf16.gmra.mxu0 %v2070
    %v2775 = vpop.f32.mrf.mxu0
    %v2776 = vadd.f32 0.0, %v2775
    %v2777 = vpop.f32.mrf.mxu0
    %2778 = vdwg.mxu0
    %2779 = vmatpush.bf16.msra.mxu0 %v2580
    %2780 = vmatpush.bf16.msra.mxu0 %v2572
    %2781 = vmatpush.bf16.msra.mxu0 %v2564
    %2782 = vmatpush.bf16.msra.mxu0 %v2556
    %2783 = vmatpush.bf16.msra.mxu0 %v2548
    %2784 = vmatpush.bf16.msra.mxu0 %v2540
    %2785 = vmatpush.bf16.msra.mxu0 %v2532
    %2786 = vmatpush.bf16.msra.mxu0 %v2524
    %2787 = vmatmul.bf16.gmra.mxu0 %v2071
    %v2788 = vpop.f32.mrf.mxu0
    %v2789 = vadd.f32 %v2776, %v2788
    %v2790 = vpop.f32.mrf.mxu0
    %2791 = vdwg.mxu0
    %2792 = vmatpush.bf16.msra.mxu0 %v2517
    %2793 = vmatpush.bf16.msra.mxu0 %v2509
    %2794 = vmatpush.bf16.msra.mxu0 %v2501
    %2795 = vmatpush.bf16.msra.mxu0 %v2493
    %2796 = vmatpush.bf16.msra.mxu0 %v2485
    %2797 = vmatpush.bf16.msra.mxu0 %v2477
    %2798 = vmatpush.bf16.msra.mxu0 %v2469
    %2799 = vmatpush.bf16.msra.mxu0 %v2461
    %2800 = vmatmul.bf16.gmra.mxu0 %v2070
    %v2801 = vpop.f32.mrf.mxu0
    %v2802 = vadd.f32 0.0, %v2801
    %v2803 = vpop.f32.mrf.mxu0
    %2804 = vdwg.mxu0
    %2805 = vmatpush.bf16.msra.mxu0 %v2581
    %2806 = vmatpush.bf16.msra.mxu0 %v2573
    %2807 = vmatpush.bf16.msra.mxu0 %v2565
    %2808 = vmatpush.bf16.msra.mxu0 %v2557
    %2809 = vmatpush.bf16.msra.mxu0 %v2549
    %2810 = vmatpush.bf16.msra.mxu0 %v2541
    %2811 = vmatpush.bf16.msra.mxu0 %v2533
    %2812 = vmatpush.bf16.msra.mxu0 %v2525
    %2813 = vmatmul.bf16.gmra.mxu0 %v2071
    %v2814 = vpop.f32.mrf.mxu0
    %v2815 = vadd.f32 %v2802, %v2814
    %v2816 = vpop.f32.mrf.mxu0
    %2817 = vdwg.mxu0
    %2818 = vmatpush.bf16.msra.mxu0 %v2518
    %2819 = vmatpush.bf16.msra.mxu0 %v2510
    %2820 = vmatpush.bf16.msra.mxu0 %v2502
    %2821 = vmatpush.bf16.msra.mxu0 %v2494
    %2822 = vmatpush.bf16.msra.mxu0 %v2486
    %2823 = vmatpush.bf16.msra.mxu0 %v2478
    %2824 = vmatpush.bf16.msra.mxu0 %v2470
    %2825 = vmatpush.bf16.msra.mxu0 %v2462
    %2826 = vmatmul.bf16.gmra.mxu0 %v2070
    %v2827 = vpop.f32.mrf.mxu0
    %v2828 = vadd.f32 0.0, %v2827
    %v2829 = vpop.f32.mrf.mxu0
    %2830 = vdwg.mxu0
    %2831 = vmatpush.bf16.msra.mxu0 %v2582
    %2832 = vmatpush.bf16.msra.mxu0 %v2574
    %2833 = vmatpush.bf16.msra.mxu0 %v2566
    %2834 = vmatpush.bf16.msra.mxu0 %v2558
    %2835 = vmatpush.bf16.msra.mxu0 %v2550
    %2836 = vmatpush.bf16.msra.mxu0 %v2542
    %2837 = vmatpush.bf16.msra.mxu0 %v2534
    %2838 = vmatpush.bf16.msra.mxu0 %v2526
    %2839 = vmatmul.bf16.gmra.mxu0 %v2071
    %v2840 = vpop.f32.mrf.mxu0
    %v2841 = vadd.f32 %v2828, %v2840
    %v2842 = vpop.f32.mrf.mxu0
    %2843 = vdwg.mxu0
    %2844 = vmatpush.bf16.msra.mxu0 %v2519
    %2845 = vmatpush.bf16.msra.mxu0 %v2511
    %2846 = vmatpush.bf16.msra.mxu0 %v2503
    %2847 = vmatpush.bf16.msra.mxu0 %v2495
    %2848 = vmatpush.bf16.msra.mxu0 %v2487
    %2849 = vmatpush.bf16.msra.mxu0 %v2479
    %2850 = vmatpush.bf16.msra.mxu0 %v2471
    %2851 = vmatpush.bf16.msra.mxu0 %v2463
    %2852 = vmatmul.bf16.gmra.mxu0 %v2070
    %v2853 = vpop.f32.mrf.mxu0
    %v2854 = vadd.f32 0.0, %v2853
    %v2855 = vpop.f32.mrf.mxu0
    %2856 = vdwg.mxu0
    %2857 = vmatpush.bf16.msra.mxu0 %v2583
    %2858 = vmatpush.bf16.msra.mxu0 %v2575
    %2859 = vmatpush.bf16.msra.mxu0 %v2567
    %2860 = vmatpush.bf16.msra.mxu0 %v2559
    %2861 = vmatpush.bf16.msra.mxu0 %v2551
    %2862 = vmatpush.bf16.msra.mxu0 %v2543
    %2863 = vmatpush.bf16.msra.mxu0 %v2535
    %2864 = vmatpush.bf16.msra.mxu0 %v2527
    %2865 = vmatmul.bf16.gmra.mxu0 %v2071
    %v2866 = vpop.f32.mrf.mxu0
    %v2867 = vadd.f32 %v2854, %v2866
    %v2868 = vpop.f32.mrf.mxu0
    %2869 = vdwg.mxu0
    %2870 = vmatpush.bf16.msra.mxu0 %v2520
    %2871 = vmatpush.bf16.msra.mxu0 %v2512
    %2872 = vmatpush.bf16.msra.mxu0 %v2504
    %2873 = vmatpush.bf16.msra.mxu0 %v2496
    %2874 = vmatpush.bf16.msra.mxu0 %v2488
    %2875 = vmatpush.bf16.msra.mxu0 %v2480
    %2876 = vmatpush.bf16.msra.mxu0 %v2472
    %2877 = vmatpush.bf16.msra.mxu0 %v2464
    %2878 = vmatmul.bf16.gmra.mxu0 %v2070
    %v2879 = vpop.f32.mrf.mxu0
    %v2880 = vadd.f32 0.0, %v2879
    %v2881 = vpop.f32.mrf.mxu0
    %2882 = vdwg.mxu0
    %2883 = vmatpush.bf16.msra.mxu0 %v2584
    %2884 = vmatpush.bf16.msra.mxu0 %v2576
    %2885 = vmatpush.bf16.msra.mxu0 %v2568
    %2886 = vmatpush.bf16.msra.mxu0 %v2560
    %2887 = vmatpush.bf16.msra.mxu0 %v2552
    %2888 = vmatpush.bf16.msra.mxu0 %v2544
    %2889 = vmatpush.bf16.msra.mxu0 %v2536
    %2890 = vmatpush.bf16.msra.mxu0 %v2528
    %2891 = vmatmul.bf16.gmra.mxu0 %v2071
    %v2892 = vpop.f32.mrf.mxu0
    %v2893 = vadd.f32 %v2880, %v2892
    %v2894 = vpop.f32.mrf.mxu0
    %2895 = vdwg.mxu0
    %2896 = vmatpush.bf16.msra.mxu0 %v2521
    %2897 = vmatpush.bf16.msra.mxu0 %v2513
    %2898 = vmatpush.bf16.msra.mxu0 %v2505
    %2899 = vmatpush.bf16.msra.mxu0 %v2497
    %2900 = vmatpush.bf16.msra.mxu0 %v2489
    %2901 = vmatpush.bf16.msra.mxu0 %v2481
    %2902 = vmatpush.bf16.msra.mxu0 %v2473
    %2903 = vmatpush.bf16.msra.mxu0 %v2465
    %2904 = vmatmul.bf16.gmra.mxu0 %v2070
    %v2905 = vpop.f32.mrf.mxu0
    %v2906 = vadd.f32 0.0, %v2905
    %v2907 = vpop.f32.mrf.mxu0
    %2908 = vdwg.mxu0
    %2909 = vmatpush.bf16.msra.mxu0 %v2585
    %2910 = vmatpush.bf16.msra.mxu0 %v2577
    %2911 = vmatpush.bf16.msra.mxu0 %v2569
    %2912 = vmatpush.bf16.msra.mxu0 %v2561
    %2913 = vmatpush.bf16.msra.mxu0 %v2553
    %2914 = vmatpush.bf16.msra.mxu0 %v2545
    %2915 = vmatpush.bf16.msra.mxu0 %v2537
    %2916 = vmatpush.bf16.msra.mxu0 %v2529
    %2917 = vmatmul.bf16.gmra.mxu0 %v2071
    %v2918 = vpop.f32.mrf.mxu0
    %v2919 = vadd.f32 %v2906, %v2918
    %v2920 = vpop.f32.mrf.mxu0
    %2921 = vdwg.mxu0
    %v2922 = vadd.f32 %v1931, %v2737
    %v2923 = vadd.f32 %v1932, %v2763
    %v2924 = vadd.f32 %v1933, %v2789
    %v2925 = vadd.f32 %v1934, %v2815
    %v2926 = vadd.f32 %v1935, %v2841
    %v2927 = vadd.f32 %v1936, %v2867
    %v2928 = vadd.f32 %v1937, %v2893
    %v2929 = vadd.f32 %v1938, %v2919
    %v2930 = vxor.u32 %v2922, 2147483648
    %v2931 = vxor.u32 %v2923, 2147483648
    %v2932 = vmul.f32 %v2930, 1.442695
    %v2933 = vpow.pop %v2932
    %v2934 = vmul.f32 %v2931, 1.442695
    %v2935 = vpow.pop %v2934
    %v2936 = vadd.f32 %v2933, 1.0
    %v2937 = vadd.f32 %v2935, 1.0
    %v2938 = vrcp.pop %v2936
    %v2939 = vmul.f32 %v2936, %v2938
    %v2940 = vsub.f32 1.0, %v2939
    %v2941 = vmul.f32 %v2938, %v2940
    %v2942 = vadd.f32 %v2938, %v2941
    %vm2943 = vweird.f32 %v2936
    %vm2944 = vweird.f32 %v2938
    %vm2945 = vmor %vm2943, %vm2944
    %v2946 = vsel %vm2945, %v2938, %v2942
    %v2947 = vand.u32 2147483647, %v2936
    %vm2948 = vcmp.eq.f32.partialorder %v2947, 8.507059e+37
    %v2949 = vand.u32 %v2936, 2147483648
    %v2950 = vor.u32 1.1754944e-38, %v2949
    %v2951 = vsel %vm2948, %v2950, %v2946
    %v2952 = vmul.f32 1.0, %v2951
    %v2953 = vrcp.pop %v2937
    %v2954 = vmul.f32 %v2937, %v2953
    %v2955 = vsub.f32 1.0, %v2954
    %v2956 = vmul.f32 %v2953, %v2955
    %v2957 = vadd.f32 %v2953, %v2956
    %vm2958 = vweird.f32 %v2937
    %vm2959 = vweird.f32 %v2953
    %vm2960 = vmor %vm2958, %vm2959
    %v2961 = vsel %vm2960, %v2953, %v2957
    %v2962 = vand.u32 2147483647, %v2937
    %vm2963 = vcmp.eq.f32.partialorder %v2962, 8.507059e+37
    %v2964 = vand.u32 %v2937, 2147483648
    %v2965 = vor.u32 1.1754944e-38, %v2964
    %v2966 = vsel %vm2963, %v2965, %v2961
    %v2967 = vmul.f32 1.0, %v2966
    %v2968 = vxor.u32 %v2924, 2147483648
    %v2969 = vxor.u32 %v2925, 2147483648
    %v2970 = vmul.f32 %v2968, 1.442695
    %v2971 = vpow.pop %v2970
    %v2972 = vmul.f32 %v2969, 1.442695
    %v2973 = vpow.pop %v2972
    %v2974 = vadd.f32 %v2971, 1.0
    %v2975 = vadd.f32 %v2973, 1.0
    %v2976 = vrcp.pop %v2974
    %v2977 = vmul.f32 %v2974, %v2976
    %v2978 = vsub.f32 1.0, %v2977
    %v2979 = vmul.f32 %v2976, %v2978
    %v2980 = vadd.f32 %v2976, %v2979
    %vm2981 = vweird.f32 %v2974
    %vm2982 = vweird.f32 %v2976
    %vm2983 = vmor %vm2981, %vm2982
    %v2984 = vsel %vm2983, %v2976, %v2980
    %v2985 = vand.u32 2147483647, %v2974
    %vm2986 = vcmp.eq.f32.partialorder %v2985, 8.507059e+37
    %v2987 = vand.u32 %v2974, 2147483648
    %v2988 = vor.u32 1.1754944e-38, %v2987
    %v2989 = vsel %vm2986, %v2988, %v2984
    %v2990 = vmul.f32 1.0, %v2989
    %v2991 = vrcp.pop %v2975
    %v2992 = vmul.f32 %v2975, %v2991
    %v2993 = vsub.f32 1.0, %v2992
    %v2994 = vmul.f32 %v2991, %v2993
    %v2995 = vadd.f32 %v2991, %v2994
    %vm2996 = vweird.f32 %v2975
    %vm2997 = vweird.f32 %v2991
    %vm2998 = vmor %vm2996, %vm2997
    %v2999 = vsel %vm2998, %v2991, %v2995
    %v3000 = vand.u32 2147483647, %v2975
    %vm3001 = vcmp.eq.f32.partialorder %v3000, 8.507059e+37
    %v3002 = vand.u32 %v2975, 2147483648
    %v3003 = vor.u32 1.1754944e-38, %v3002
    %v3004 = vsel %vm3001, %v3003, %v2999
    %v3005 = vmul.f32 1.0, %v3004
    %v3006 = vtanh.pop %v2926
    %v3007 = vtanh.pop %v2927
    %v3008 = vxor.u32 %v2928, 2147483648
    %v3009 = vxor.u32 %v2929, 2147483648
    %v3010 = vmul.f32 %v3008, 1.442695
    %v3011 = vpow.pop %v3010
    %v3012 = vmul.f32 %v3009, 1.442695
    %v3013 = vpow.pop %v3012
    %v3014 = vadd.f32 %v3011, 1.0
    %v3015 = vadd.f32 %v3013, 1.0
    %v3016 = vrcp.pop %v3014
    %v3017 = vmul.f32 %v3014, %v3016
    %v3018 = vsub.f32 1.0, %v3017
    %v3019 = vmul.f32 %v3016, %v3018
    %v3020 = vadd.f32 %v3016, %v3019
    %vm3021 = vweird.f32 %v3014
    %vm3022 = vweird.f32 %v3016
    %vm3023 = vmor %vm3021, %vm3022
    %v3024 = vsel %vm3023, %v3016, %v3020
    %v3025 = vand.u32 2147483647, %v3014
    %vm3026 = vcmp.eq.f32.partialorder %v3025, 8.507059e+37
    %v3027 = vand.u32 %v3014, 2147483648
    %v3028 = vor.u32 1.1754944e-38, %v3027
    %v3029 = vsel %vm3026, %v3028, %v3024
    %v3030 = vmul.f32 1.0, %v3029
    %v3031 = vrcp.pop %v3015
    %v3032 = vmul.f32 %v3015, %v3031
    %v3033 = vsub.f32 1.0, %v3032
    %v3034 = vmul.f32 %v3031, %v3033
    %v3035 = vadd.f32 %v3031, %v3034
    %vm3036 = vweird.f32 %v3015
    %vm3037 = vweird.f32 %v3031
    %vm3038 = vmor %vm3036, %vm3037
    %v3039 = vsel %vm3038, %v3031, %v3035
    %v3040 = vand.u32 2147483647, %v3015
    %vm3041 = vcmp.eq.f32.partialorder %v3040, 8.507059e+37
    %v3042 = vand.u32 %v3015, 2147483648
    %v3043 = vor.u32 1.1754944e-38, %v3042
    %v3044 = vsel %vm3041, %v3043, %v3039
    %v3045 = vmul.f32 1.0, %v3044
    %v3046 = vmul.f32 %v2990, %v1922
    %v3047 = vmul.f32 %v3005, %v1923
    %v3048 = vmul.f32 %v2952, %v3006
    %v3049 = vmul.f32 %v2967, %v3007
    %v3050 = vadd.f32 %v3046, %v3048
    %v3051 = vadd.f32 %v3047, %v3049
    %v3052 = vtanh.pop %v3050
    %v3053 = vtanh.pop %v3051
    %v3054 = vmul.f32 %v3030, %v3052
    %v3055 = vmul.f32 %v3045, %v3053
    %v3056 = vpack.c.bf16 %v3055, %v3054
    %s3057 = scalar_lea.vmem [#allocation3], 8
    %3058 = vst [vmem:[%s3057] sm:$0xff] %v3056
    %s3059 = scalar_lea.vmem [#allocation2], 128
    %v3060 = vld [vmem:[%s3059] sm:$0xff]
    %v3061 = vld [vmem:[%s3059 + $0x8] sm:$0xff]
    %v3062 = vld [vmem:[%s3059 + $0x10] sm:$0xff]
    %v3063 = vld [vmem:[%s3059 + $0x18] sm:$0xff]
    %v3064 = vld [vmem:[%s3059 + $0x20] sm:$0xff]
    %v3065 = vld [vmem:[%s3059 + $0x28] sm:$0xff]
    %v3066 = vld [vmem:[%s3059 + $0x30] sm:$0xff]
    %v3067 = vld [vmem:[%s3059 + $0x38] sm:$0xff]
    %v3068 = vld [vmem:[#allocation6] sm:$0xff]
    %v3069 = vld [vmem:[#allocation6 + $0x8] sm:$0xff]
    %v3070 = vld [vmem:[#allocation6 + $0x10] sm:$0xff]
    %v3071 = vld [vmem:[#allocation6 + $0x18] sm:$0xff]
    %v3072 = vld [vmem:[#allocation6 + $0x20] sm:$0xff]
    %v3073 = vld [vmem:[#allocation6 + $0x28] sm:$0xff]
    %v3074 = vld [vmem:[#allocation6 + $0x30] sm:$0xff]
    %v3075 = vld [vmem:[#allocation6 + $0x38] sm:$0xff]
    %v3076 = vld [vmem:[#allocation6 + $0x40] sm:$0xff]
    %v3077 = vld [vmem:[#allocation6 + $0x48] sm:$0xff]
    %v3078 = vld [vmem:[#allocation6 + $0x50] sm:$0xff]
    %v3079 = vld [vmem:[#allocation6 + $0x58] sm:$0xff]
    %v3080 = vld [vmem:[#allocation6 + $0x60] sm:$0xff]
    %v3081 = vld [vmem:[#allocation6 + $0x68] sm:$0xff]
    %v3082 = vld [vmem:[#allocation6 + $0x70] sm:$0xff]
    %v3083 = vld [vmem:[#allocation6 + $0x78] sm:$0xff]
    %v3084 = vld [vmem:[#allocation6 + $0x80] sm:$0xff]
    %v3085 = vld [vmem:[#allocation6 + $0x88] sm:$0xff]
    %v3086 = vld [vmem:[#allocation6 + $0x90] sm:$0xff]
    %v3087 = vld [vmem:[#allocation6 + $0x98] sm:$0xff]
    %v3088 = vld [vmem:[#allocation6 + $0xa0] sm:$0xff]
    %v3089 = vld [vmem:[#allocation6 + $0xa8] sm:$0xff]
    %v3090 = vld [vmem:[#allocation6 + $0xb0] sm:$0xff]
    %v3091 = vld [vmem:[#allocation6 + $0xb8] sm:$0xff]
    %v3092 = vld [vmem:[#allocation6 + $0xc0] sm:$0xff]
    %v3093 = vld [vmem:[#allocation6 + $0xc8] sm:$0xff]
    %v3094 = vld [vmem:[#allocation6 + $0xd0] sm:$0xff]
    %v3095 = vld [vmem:[#allocation6 + $0xd8] sm:$0xff]
    %v3096 = vld [vmem:[#allocation6 + $0xe0] sm:$0xff]
    %v3097 = vld [vmem:[#allocation6 + $0xe8] sm:$0xff]
    %v3098 = vld [vmem:[#allocation6 + $0xf0] sm:$0xff]
    %v3099 = vld [vmem:[#allocation6 + $0xf8] sm:$0xff]
    %v3100 = vld [vmem:[#allocation6 + $0x100] sm:$0xff]
    %v3101 = vld [vmem:[#allocation6 + $0x108] sm:$0xff]
    %v3102 = vld [vmem:[#allocation6 + $0x110] sm:$0xff]
    %v3103 = vld [vmem:[#allocation6 + $0x118] sm:$0xff]
    %v3104 = vld [vmem:[#allocation6 + $0x120] sm:$0xff]
    %v3105 = vld [vmem:[#allocation6 + $0x128] sm:$0xff]
    %v3106 = vld [vmem:[#allocation6 + $0x130] sm:$0xff]
    %v3107 = vld [vmem:[#allocation6 + $0x138] sm:$0xff]
    %v3108 = vld [vmem:[#allocation6 + $0x140] sm:$0xff]
    %v3109 = vld [vmem:[#allocation6 + $0x148] sm:$0xff]
    %v3110 = vld [vmem:[#allocation6 + $0x150] sm:$0xff]
    %v3111 = vld [vmem:[#allocation6 + $0x158] sm:$0xff]
    %v3112 = vld [vmem:[#allocation6 + $0x160] sm:$0xff]
    %v3113 = vld [vmem:[#allocation6 + $0x168] sm:$0xff]
    %v3114 = vld [vmem:[#allocation6 + $0x170] sm:$0xff]
    %v3115 = vld [vmem:[#allocation6 + $0x178] sm:$0xff]
    %v3116 = vld [vmem:[#allocation6 + $0x180] sm:$0xff]
    %v3117 = vld [vmem:[#allocation6 + $0x188] sm:$0xff]
    %v3118 = vld [vmem:[#allocation6 + $0x190] sm:$0xff]
    %v3119 = vld [vmem:[#allocation6 + $0x198] sm:$0xff]
    %v3120 = vld [vmem:[#allocation6 + $0x1a0] sm:$0xff]
    %v3121 = vld [vmem:[#allocation6 + $0x1a8] sm:$0xff]
    %v3122 = vld [vmem:[#allocation6 + $0x1b0] sm:$0xff]
    %v3123 = vld [vmem:[#allocation6 + $0x1b8] sm:$0xff]
    %v3124 = vld [vmem:[#allocation6 + $0x1c0] sm:$0xff]
    %v3125 = vld [vmem:[#allocation6 + $0x1c8] sm:$0xff]
    %v3126 = vld [vmem:[#allocation6 + $0x1d0] sm:$0xff]
    %v3127 = vld [vmem:[#allocation6 + $0x1d8] sm:$0xff]
    %v3128 = vld [vmem:[#allocation6 + $0x1e0] sm:$0xff]
    %v3129 = vld [vmem:[#allocation6 + $0x1e8] sm:$0xff]
    %v3130 = vld [vmem:[#allocation6 + $0x1f0] sm:$0xff]
    %v3131 = vld [vmem:[#allocation6 + $0x1f8] sm:$0xff]
    %v3132 = vld [vmem:[#allocation6 + $0x200] sm:$0xff]
    %v3133 = vld [vmem:[#allocation6 + $0x208] sm:$0xff]
    %v3134 = vld [vmem:[#allocation6 + $0x210] sm:$0xff]
    %v3135 = vld [vmem:[#allocation6 + $0x218] sm:$0xff]
    %v3136 = vld [vmem:[#allocation6 + $0x220] sm:$0xff]
    %v3137 = vld [vmem:[#allocation6 + $0x228] sm:$0xff]
    %v3138 = vld [vmem:[#allocation6 + $0x230] sm:$0xff]
    %v3139 = vld [vmem:[#allocation6 + $0x238] sm:$0xff]
    %v3140 = vld [vmem:[#allocation6 + $0x240] sm:$0xff]
    %v3141 = vld [vmem:[#allocation6 + $0x248] sm:$0xff]
    %v3142 = vld [vmem:[#allocation6 + $0x250] sm:$0xff]
    %v3143 = vld [vmem:[#allocation6 + $0x258] sm:$0xff]
    %v3144 = vld [vmem:[#allocation6 + $0x260] sm:$0xff]
    %v3145 = vld [vmem:[#allocation6 + $0x268] sm:$0xff]
    %v3146 = vld [vmem:[#allocation6 + $0x270] sm:$0xff]
    %v3147 = vld [vmem:[#allocation6 + $0x278] sm:$0xff]
    %v3148 = vld [vmem:[#allocation6 + $0x280] sm:$0xff]
    %v3149 = vld [vmem:[#allocation6 + $0x288] sm:$0xff]
    %v3150 = vld [vmem:[#allocation6 + $0x290] sm:$0xff]
    %v3151 = vld [vmem:[#allocation6 + $0x298] sm:$0xff]
    %v3152 = vld [vmem:[#allocation6 + $0x2a0] sm:$0xff]
    %v3153 = vld [vmem:[#allocation6 + $0x2a8] sm:$0xff]
    %v3154 = vld [vmem:[#allocation6 + $0x2b0] sm:$0xff]
    %v3155 = vld [vmem:[#allocation6 + $0x2b8] sm:$0xff]
    %v3156 = vld [vmem:[#allocation6 + $0x2c0] sm:$0xff]
    %v3157 = vld [vmem:[#allocation6 + $0x2c8] sm:$0xff]
    %v3158 = vld [vmem:[#allocation6 + $0x2d0] sm:$0xff]
    %v3159 = vld [vmem:[#allocation6 + $0x2d8] sm:$0xff]
    %v3160 = vld [vmem:[#allocation6 + $0x2e0] sm:$0xff]
    %v3161 = vld [vmem:[#allocation6 + $0x2e8] sm:$0xff]
    %v3162 = vld [vmem:[#allocation6 + $0x2f0] sm:$0xff]
    %v3163 = vld [vmem:[#allocation6 + $0x2f8] sm:$0xff]
    %v3164 = vld [vmem:[#allocation6 + $0x300] sm:$0xff]
    %v3165 = vld [vmem:[#allocation6 + $0x308] sm:$0xff]
    %v3166 = vld [vmem:[#allocation6 + $0x310] sm:$0xff]
    %v3167 = vld [vmem:[#allocation6 + $0x318] sm:$0xff]
    %v3168 = vld [vmem:[#allocation6 + $0x320] sm:$0xff]
    %v3169 = vld [vmem:[#allocation6 + $0x328] sm:$0xff]
    %v3170 = vld [vmem:[#allocation6 + $0x330] sm:$0xff]
    %v3171 = vld [vmem:[#allocation6 + $0x338] sm:$0xff]
    %v3172 = vld [vmem:[#allocation6 + $0x340] sm:$0xff]
    %v3173 = vld [vmem:[#allocation6 + $0x348] sm:$0xff]
    %v3174 = vld [vmem:[#allocation6 + $0x350] sm:$0xff]
    %v3175 = vld [vmem:[#allocation6 + $0x358] sm:$0xff]
    %v3176 = vld [vmem:[#allocation6 + $0x360] sm:$0xff]
    %v3177 = vld [vmem:[#allocation6 + $0x368] sm:$0xff]
    %v3178 = vld [vmem:[#allocation6 + $0x370] sm:$0xff]
    %v3179 = vld [vmem:[#allocation6 + $0x378] sm:$0xff]
    %v3180 = vld [vmem:[#allocation6 + $0x380] sm:$0xff]
    %v3181 = vld [vmem:[#allocation6 + $0x388] sm:$0xff]
    %v3182 = vld [vmem:[#allocation6 + $0x390] sm:$0xff]
    %v3183 = vld [vmem:[#allocation6 + $0x398] sm:$0xff]
    %v3184 = vld [vmem:[#allocation6 + $0x3a0] sm:$0xff]
    %v3185 = vld [vmem:[#allocation6 + $0x3a8] sm:$0xff]
    %v3186 = vld [vmem:[#allocation6 + $0x3b0] sm:$0xff]
    %v3187 = vld [vmem:[#allocation6 + $0x3b8] sm:$0xff]
    %v3188 = vld [vmem:[#allocation6 + $0x3c0] sm:$0xff]
    %v3189 = vld [vmem:[#allocation6 + $0x3c8] sm:$0xff]
    %v3190 = vld [vmem:[#allocation6 + $0x3d0] sm:$0xff]
    %v3191 = vld [vmem:[#allocation6 + $0x3d8] sm:$0xff]
    %v3192 = vld [vmem:[#allocation6 + $0x3e0] sm:$0xff]
    %v3193 = vld [vmem:[#allocation6 + $0x3e8] sm:$0xff]
    %v3194 = vld [vmem:[#allocation6 + $0x3f0] sm:$0xff]
    %v3195 = vld [vmem:[#allocation6 + $0x3f8] sm:$0xff]
    %v3197 = vunpack.c.l.b16 %v3056
    %v3198 = vunpack.c.h.b16 %v3056
    %v3199 = vpack.c.b16 %v3197, %v3197
    %v3200 = vpack.c.b16 %v3198, %v3198
    %v3331 = vunpack.c.l.b16 %v3068
    %v3332 = vunpack.c.h.b16 %v3068
    %v3333 = vunpack.c.l.b16 %v3069
    %v3334 = vunpack.c.h.b16 %v3069
    %v3335 = vunpack.c.l.b16 %v3070
    %v3336 = vunpack.c.h.b16 %v3070
    %v3337 = vunpack.c.l.b16 %v3071
    %v3338 = vunpack.c.h.b16 %v3071
    %v3339 = vunpack.c.l.b16 %v3072
    %v3340 = vunpack.c.h.b16 %v3072
    %v3341 = vunpack.c.l.b16 %v3073
    %v3342 = vunpack.c.h.b16 %v3073
    %v3343 = vunpack.c.l.b16 %v3074
    %v3344 = vunpack.c.h.b16 %v3074
    %v3345 = vunpack.c.l.b16 %v3075
    %v3346 = vunpack.c.h.b16 %v3075
    %v3347 = vunpack.c.l.b16 %v3076
    %v3348 = vunpack.c.h.b16 %v3076
    %v3349 = vunpack.c.l.b16 %v3077
    %v3350 = vunpack.c.h.b16 %v3077
    %v3351 = vunpack.c.l.b16 %v3078
    %v3352 = vunpack.c.h.b16 %v3078
    %v3353 = vunpack.c.l.b16 %v3079
    %v3354 = vunpack.c.h.b16 %v3079
    %v3355 = vunpack.c.l.b16 %v3080
    %v3356 = vunpack.c.h.b16 %v3080
    %v3357 = vunpack.c.l.b16 %v3081
    %v3358 = vunpack.c.h.b16 %v3081
    %v3359 = vunpack.c.l.b16 %v3082
    %v3360 = vunpack.c.h.b16 %v3082
    %v3361 = vunpack.c.l.b16 %v3083
    %v3362 = vunpack.c.h.b16 %v3083
    %v3363 = vunpack.c.l.b16 %v3084
    %v3364 = vunpack.c.h.b16 %v3084
    %v3365 = vunpack.c.l.b16 %v3085
    %v3366 = vunpack.c.h.b16 %v3085
    %v3367 = vunpack.c.l.b16 %v3086
    %v3368 = vunpack.c.h.b16 %v3086
    %v3369 = vunpack.c.l.b16 %v3087
    %v3370 = vunpack.c.h.b16 %v3087
    %v3371 = vunpack.c.l.b16 %v3088
    %v3372 = vunpack.c.h.b16 %v3088
    %v3373 = vunpack.c.l.b16 %v3089
    %v3374 = vunpack.c.h.b16 %v3089
    %v3375 = vunpack.c.l.b16 %v3090
    %v3376 = vunpack.c.h.b16 %v3090
    %v3377 = vunpack.c.l.b16 %v3091
    %v3378 = vunpack.c.h.b16 %v3091
    %v3379 = vunpack.c.l.b16 %v3092
    %v3380 = vunpack.c.h.b16 %v3092
    %v3381 = vunpack.c.l.b16 %v3093
    %v3382 = vunpack.c.h.b16 %v3093
    %v3383 = vunpack.c.l.b16 %v3094
    %v3384 = vunpack.c.h.b16 %v3094
    %v3385 = vunpack.c.l.b16 %v3095
    %v3386 = vunpack.c.h.b16 %v3095
    %v3387 = vunpack.c.l.b16 %v3096
    %v3388 = vunpack.c.h.b16 %v3096
    %v3389 = vunpack.c.l.b16 %v3097
    %v3390 = vunpack.c.h.b16 %v3097
    %v3391 = vunpack.c.l.b16 %v3098
    %v3392 = vunpack.c.h.b16 %v3098
    %v3393 = vunpack.c.l.b16 %v3099
    %v3394 = vunpack.c.h.b16 %v3099
    %v3395 = vunpack.c.l.b16 %v3100
    %v3396 = vunpack.c.h.b16 %v3100
    %v3397 = vunpack.c.l.b16 %v3101
    %v3398 = vunpack.c.h.b16 %v3101
    %v3399 = vunpack.c.l.b16 %v3102
    %v3400 = vunpack.c.h.b16 %v3102
    %v3401 = vunpack.c.l.b16 %v3103
    %v3402 = vunpack.c.h.b16 %v3103
    %v3403 = vunpack.c.l.b16 %v3104
    %v3404 = vunpack.c.h.b16 %v3104
    %v3405 = vunpack.c.l.b16 %v3105
    %v3406 = vunpack.c.h.b16 %v3105
    %v3407 = vunpack.c.l.b16 %v3106
    %v3408 = vunpack.c.h.b16 %v3106
    %v3409 = vunpack.c.l.b16 %v3107
    %v3410 = vunpack.c.h.b16 %v3107
    %v3411 = vunpack.c.l.b16 %v3108
    %v3412 = vunpack.c.h.b16 %v3108
    %v3413 = vunpack.c.l.b16 %v3109
    %v3414 = vunpack.c.h.b16 %v3109
    %v3415 = vunpack.c.l.b16 %v3110
    %v3416 = vunpack.c.h.b16 %v3110
    %v3417 = vunpack.c.l.b16 %v3111
    %v3418 = vunpack.c.h.b16 %v3111
    %v3419 = vunpack.c.l.b16 %v3112
    %v3420 = vunpack.c.h.b16 %v3112
    %v3421 = vunpack.c.l.b16 %v3113
    %v3422 = vunpack.c.h.b16 %v3113
    %v3423 = vunpack.c.l.b16 %v3114
    %v3424 = vunpack.c.h.b16 %v3114
    %v3425 = vunpack.c.l.b16 %v3115
    %v3426 = vunpack.c.h.b16 %v3115
    %v3427 = vunpack.c.l.b16 %v3116
    %v3428 = vunpack.c.h.b16 %v3116
    %v3429 = vunpack.c.l.b16 %v3117
    %v3430 = vunpack.c.h.b16 %v3117
    %v3431 = vunpack.c.l.b16 %v3118
    %v3432 = vunpack.c.h.b16 %v3118
    %v3433 = vunpack.c.l.b16 %v3119
    %v3434 = vunpack.c.h.b16 %v3119
    %v3435 = vunpack.c.l.b16 %v3120
    %v3436 = vunpack.c.h.b16 %v3120
    %v3437 = vunpack.c.l.b16 %v3121
    %v3438 = vunpack.c.h.b16 %v3121
    %v3439 = vunpack.c.l.b16 %v3122
    %v3440 = vunpack.c.h.b16 %v3122
    %v3441 = vunpack.c.l.b16 %v3123
    %v3442 = vunpack.c.h.b16 %v3123
    %v3443 = vunpack.c.l.b16 %v3124
    %v3444 = vunpack.c.h.b16 %v3124
    %v3445 = vunpack.c.l.b16 %v3125
    %v3446 = vunpack.c.h.b16 %v3125
    %v3447 = vunpack.c.l.b16 %v3126
    %v3448 = vunpack.c.h.b16 %v3126
    %v3449 = vunpack.c.l.b16 %v3127
    %v3450 = vunpack.c.h.b16 %v3127
    %v3451 = vunpack.c.l.b16 %v3128
    %v3452 = vunpack.c.h.b16 %v3128
    %v3453 = vunpack.c.l.b16 %v3129
    %v3454 = vunpack.c.h.b16 %v3129
    %v3455 = vunpack.c.l.b16 %v3130
    %v3456 = vunpack.c.h.b16 %v3130
    %v3457 = vunpack.c.l.b16 %v3131
    %v3458 = vunpack.c.h.b16 %v3131
    %v3459 = vunpack.c.l.b16 %v3132
    %v3460 = vunpack.c.h.b16 %v3132
    %v3461 = vunpack.c.l.b16 %v3133
    %v3462 = vunpack.c.h.b16 %v3133
    %v3463 = vunpack.c.l.b16 %v3134
    %v3464 = vunpack.c.h.b16 %v3134
    %v3465 = vunpack.c.l.b16 %v3135
    %v3466 = vunpack.c.h.b16 %v3135
    %v3467 = vunpack.c.l.b16 %v3136
    %v3468 = vunpack.c.h.b16 %v3136
    %v3469 = vunpack.c.l.b16 %v3137
    %v3470 = vunpack.c.h.b16 %v3137
    %v3471 = vunpack.c.l.b16 %v3138
    %v3472 = vunpack.c.h.b16 %v3138
    %v3473 = vunpack.c.l.b16 %v3139
    %v3474 = vunpack.c.h.b16 %v3139
    %v3475 = vunpack.c.l.b16 %v3140
    %v3476 = vunpack.c.h.b16 %v3140
    %v3477 = vunpack.c.l.b16 %v3141
    %v3478 = vunpack.c.h.b16 %v3141
    %v3479 = vunpack.c.l.b16 %v3142
    %v3480 = vunpack.c.h.b16 %v3142
    %v3481 = vunpack.c.l.b16 %v3143
    %v3482 = vunpack.c.h.b16 %v3143
    %v3483 = vunpack.c.l.b16 %v3144
    %v3484 = vunpack.c.h.b16 %v3144
    %v3485 = vunpack.c.l.b16 %v3145
    %v3486 = vunpack.c.h.b16 %v3145
    %v3487 = vunpack.c.l.b16 %v3146
    %v3488 = vunpack.c.h.b16 %v3146
    %v3489 = vunpack.c.l.b16 %v3147
    %v3490 = vunpack.c.h.b16 %v3147
    %v3491 = vunpack.c.l.b16 %v3148
    %v3492 = vunpack.c.h.b16 %v3148
    %v3493 = vunpack.c.l.b16 %v3149
    %v3494 = vunpack.c.h.b16 %v3149
    %v3495 = vunpack.c.l.b16 %v3150
    %v3496 = vunpack.c.h.b16 %v3150
    %v3497 = vunpack.c.l.b16 %v3151
    %v3498 = vunpack.c.h.b16 %v3151
    %v3499 = vunpack.c.l.b16 %v3152
    %v3500 = vunpack.c.h.b16 %v3152
    %v3501 = vunpack.c.l.b16 %v3153
    %v3502 = vunpack.c.h.b16 %v3153
    %v3503 = vunpack.c.l.b16 %v3154
    %v3504 = vunpack.c.h.b16 %v3154
    %v3505 = vunpack.c.l.b16 %v3155
    %v3506 = vunpack.c.h.b16 %v3155
    %v3507 = vunpack.c.l.b16 %v3156
    %v3508 = vunpack.c.h.b16 %v3156
    %v3509 = vunpack.c.l.b16 %v3157
    %v3510 = vunpack.c.h.b16 %v3157
    %v3511 = vunpack.c.l.b16 %v3158
    %v3512 = vunpack.c.h.b16 %v3158
    %v3513 = vunpack.c.l.b16 %v3159
    %v3514 = vunpack.c.h.b16 %v3159
    %v3515 = vunpack.c.l.b16 %v3160
    %v3516 = vunpack.c.h.b16 %v3160
    %v3517 = vunpack.c.l.b16 %v3161
    %v3518 = vunpack.c.h.b16 %v3161
    %v3519 = vunpack.c.l.b16 %v3162
    %v3520 = vunpack.c.h.b16 %v3162
    %v3521 = vunpack.c.l.b16 %v3163
    %v3522 = vunpack.c.h.b16 %v3163
    %v3523 = vunpack.c.l.b16 %v3164
    %v3524 = vunpack.c.h.b16 %v3164
    %v3525 = vunpack.c.l.b16 %v3165
    %v3526 = vunpack.c.h.b16 %v3165
    %v3527 = vunpack.c.l.b16 %v3166
    %v3528 = vunpack.c.h.b16 %v3166
    %v3529 = vunpack.c.l.b16 %v3167
    %v3530 = vunpack.c.h.b16 %v3167
    %v3531 = vunpack.c.l.b16 %v3168
    %v3532 = vunpack.c.h.b16 %v3168
    %v3533 = vunpack.c.l.b16 %v3169
    %v3534 = vunpack.c.h.b16 %v3169
    %v3535 = vunpack.c.l.b16 %v3170
    %v3536 = vunpack.c.h.b16 %v3170
    %v3537 = vunpack.c.l.b16 %v3171
    %v3538 = vunpack.c.h.b16 %v3171
    %v3539 = vunpack.c.l.b16 %v3172
    %v3540 = vunpack.c.h.b16 %v3172
    %v3541 = vunpack.c.l.b16 %v3173
    %v3542 = vunpack.c.h.b16 %v3173
    %v3543 = vunpack.c.l.b16 %v3174
    %v3544 = vunpack.c.h.b16 %v3174
    %v3545 = vunpack.c.l.b16 %v3175
    %v3546 = vunpack.c.h.b16 %v3175
    %v3547 = vunpack.c.l.b16 %v3176
    %v3548 = vunpack.c.h.b16 %v3176
    %v3549 = vunpack.c.l.b16 %v3177
    %v3550 = vunpack.c.h.b16 %v3177
    %v3551 = vunpack.c.l.b16 %v3178
    %v3552 = vunpack.c.h.b16 %v3178
    %v3553 = vunpack.c.l.b16 %v3179
    %v3554 = vunpack.c.h.b16 %v3179
    %v3555 = vunpack.c.l.b16 %v3180
    %v3556 = vunpack.c.h.b16 %v3180
    %v3557 = vunpack.c.l.b16 %v3181
    %v3558 = vunpack.c.h.b16 %v3181
    %v3559 = vunpack.c.l.b16 %v3182
    %v3560 = vunpack.c.h.b16 %v3182
    %v3561 = vunpack.c.l.b16 %v3183
    %v3562 = vunpack.c.h.b16 %v3183
    %v3563 = vunpack.c.l.b16 %v3184
    %v3564 = vunpack.c.h.b16 %v3184
    %v3565 = vunpack.c.l.b16 %v3185
    %v3566 = vunpack.c.h.b16 %v3185
    %v3567 = vunpack.c.l.b16 %v3186
    %v3568 = vunpack.c.h.b16 %v3186
    %v3569 = vunpack.c.l.b16 %v3187
    %v3570 = vunpack.c.h.b16 %v3187
    %v3571 = vunpack.c.l.b16 %v3188
    %v3572 = vunpack.c.h.b16 %v3188
    %v3573 = vunpack.c.l.b16 %v3189
    %v3574 = vunpack.c.h.b16 %v3189
    %v3575 = vunpack.c.l.b16 %v3190
    %v3576 = vunpack.c.h.b16 %v3190
    %v3577 = vunpack.c.l.b16 %v3191
    %v3578 = vunpack.c.h.b16 %v3191
    %v3579 = vunpack.c.l.b16 %v3192
    %v3580 = vunpack.c.h.b16 %v3192
    %v3581 = vunpack.c.l.b16 %v3193
    %v3582 = vunpack.c.h.b16 %v3193
    %v3583 = vunpack.c.l.b16 %v3194
    %v3584 = vunpack.c.h.b16 %v3194
    %v3585 = vunpack.c.l.b16 %v3195
    %v3586 = vunpack.c.h.b16 %v3195
    %v3587 = vpack.c.b16 %v3339, %v3331
    %v3588 = vpack.c.b16 %v3340, %v3332
    %v3589 = vpack.c.b16 %v3341, %v3333
    %v3590 = vpack.c.b16 %v3342, %v3334
    %v3591 = vpack.c.b16 %v3343, %v3335
    %v3592 = vpack.c.b16 %v3344, %v3336
    %v3593 = vpack.c.b16 %v3345, %v3337
    %v3594 = vpack.c.b16 %v3346, %v3338
    %v3595 = vpack.c.b16 %v3355, %v3347
    %v3596 = vpack.c.b16 %v3356, %v3348
    %v3597 = vpack.c.b16 %v3357, %v3349
    %v3598 = vpack.c.b16 %v3358, %v3350
    %v3599 = vpack.c.b16 %v3359, %v3351
    %v3600 = vpack.c.b16 %v3360, %v3352
    %v3601 = vpack.c.b16 %v3361, %v3353
    %v3602 = vpack.c.b16 %v3362, %v3354
    %v3603 = vpack.c.b16 %v3371, %v3363
    %v3604 = vpack.c.b16 %v3372, %v3364
    %v3605 = vpack.c.b16 %v3373, %v3365
    %v3606 = vpack.c.b16 %v3374, %v3366
    %v3607 = vpack.c.b16 %v3375, %v3367
    %v3608 = vpack.c.b16 %v3376, %v3368
    %v3609 = vpack.c.b16 %v3377, %v3369
    %v3610 = vpack.c.b16 %v3378, %v3370
    %v3611 = vpack.c.b16 %v3387, %v3379
    %v3612 = vpack.c.b16 %v3388, %v3380
    %v3613 = vpack.c.b16 %v3389, %v3381
    %v3614 = vpack.c.b16 %v3390, %v3382
    %v3615 = vpack.c.b16 %v3391, %v3383
    %v3616 = vpack.c.b16 %v3392, %v3384
    %v3617 = vpack.c.b16 %v3393, %v3385
    %v3618 = vpack.c.b16 %v3394, %v3386
    %v3619 = vpack.c.b16 %v3403, %v3395
    %v3620 = vpack.c.b16 %v3404, %v3396
    %v3621 = vpack.c.b16 %v3405, %v3397
    %v3622 = vpack.c.b16 %v3406, %v3398
    %v3623 = vpack.c.b16 %v3407, %v3399
    %v3624 = vpack.c.b16 %v3408, %v3400
    %v3625 = vpack.c.b16 %v3409, %v3401
    %v3626 = vpack.c.b16 %v3410, %v3402
    %v3627 = vpack.c.b16 %v3419, %v3411
    %v3628 = vpack.c.b16 %v3420, %v3412
    %v3629 = vpack.c.b16 %v3421, %v3413
    %v3630 = vpack.c.b16 %v3422, %v3414
    %v3631 = vpack.c.b16 %v3423, %v3415
    %v3632 = vpack.c.b16 %v3424, %v3416
    %v3633 = vpack.c.b16 %v3425, %v3417
    %v3634 = vpack.c.b16 %v3426, %v3418
    %v3635 = vpack.c.b16 %v3435, %v3427
    %v3636 = vpack.c.b16 %v3436, %v3428
    %v3637 = vpack.c.b16 %v3437, %v3429
    %v3638 = vpack.c.b16 %v3438, %v3430
    %v3639 = vpack.c.b16 %v3439, %v3431
    %v3640 = vpack.c.b16 %v3440, %v3432
    %v3641 = vpack.c.b16 %v3441, %v3433
    %v3642 = vpack.c.b16 %v3442, %v3434
    %v3643 = vpack.c.b16 %v3451, %v3443
    %v3644 = vpack.c.b16 %v3452, %v3444
    %v3645 = vpack.c.b16 %v3453, %v3445
    %v3646 = vpack.c.b16 %v3454, %v3446
    %v3647 = vpack.c.b16 %v3455, %v3447
    %v3648 = vpack.c.b16 %v3456, %v3448
    %v3649 = vpack.c.b16 %v3457, %v3449
    %v3650 = vpack.c.b16 %v3458, %v3450
    %v3651 = vpack.c.b16 %v3467, %v3459
    %v3652 = vpack.c.b16 %v3468, %v3460
    %v3653 = vpack.c.b16 %v3469, %v3461
    %v3654 = vpack.c.b16 %v3470, %v3462
    %v3655 = vpack.c.b16 %v3471, %v3463
    %v3656 = vpack.c.b16 %v3472, %v3464
    %v3657 = vpack.c.b16 %v3473, %v3465
    %v3658 = vpack.c.b16 %v3474, %v3466
    %v3659 = vpack.c.b16 %v3483, %v3475
    %v3660 = vpack.c.b16 %v3484, %v3476
    %v3661 = vpack.c.b16 %v3485, %v3477
    %v3662 = vpack.c.b16 %v3486, %v3478
    %v3663 = vpack.c.b16 %v3487, %v3479
    %v3664 = vpack.c.b16 %v3488, %v3480
    %v3665 = vpack.c.b16 %v3489, %v3481
    %v3666 = vpack.c.b16 %v3490, %v3482
    %v3667 = vpack.c.b16 %v3499, %v3491
    %v3668 = vpack.c.b16 %v3500, %v3492
    %v3669 = vpack.c.b16 %v3501, %v3493
    %v3670 = vpack.c.b16 %v3502, %v3494
    %v3671 = vpack.c.b16 %v3503, %v3495
    %v3672 = vpack.c.b16 %v3504, %v3496
    %v3673 = vpack.c.b16 %v3505, %v3497
    %v3674 = vpack.c.b16 %v3506, %v3498
    %v3675 = vpack.c.b16 %v3515, %v3507
    %v3676 = vpack.c.b16 %v3516, %v3508
    %v3677 = vpack.c.b16 %v3517, %v3509
    %v3678 = vpack.c.b16 %v3518, %v3510
    %v3679 = vpack.c.b16 %v3519, %v3511
    %v3680 = vpack.c.b16 %v3520, %v3512
    %v3681 = vpack.c.b16 %v3521, %v3513
    %v3682 = vpack.c.b16 %v3522, %v3514
    %v3683 = vpack.c.b16 %v3531, %v3523
    %v3684 = vpack.c.b16 %v3532, %v3524
    %v3685 = vpack.c.b16 %v3533, %v3525
    %v3686 = vpack.c.b16 %v3534, %v3526
    %v3687 = vpack.c.b16 %v3535, %v3527
    %v3688 = vpack.c.b16 %v3536, %v3528
    %v3689 = vpack.c.b16 %v3537, %v3529
    %v3690 = vpack.c.b16 %v3538, %v3530
    %v3691 = vpack.c.b16 %v3547, %v3539
    %v3692 = vpack.c.b16 %v3548, %v3540
    %v3693 = vpack.c.b16 %v3549, %v3541
    %v3694 = vpack.c.b16 %v3550, %v3542
    %v3695 = vpack.c.b16 %v3551, %v3543
    %v3696 = vpack.c.b16 %v3552, %v3544
    %v3697 = vpack.c.b16 %v3553, %v3545
    %v3698 = vpack.c.b16 %v3554, %v3546
    %v3699 = vpack.c.b16 %v3563, %v3555
    %v3700 = vpack.c.b16 %v3564, %v3556
    %v3701 = vpack.c.b16 %v3565, %v3557
    %v3702 = vpack.c.b16 %v3566, %v3558
    %v3703 = vpack.c.b16 %v3567, %v3559
    %v3704 = vpack.c.b16 %v3568, %v3560
    %v3705 = vpack.c.b16 %v3569, %v3561
    %v3706 = vpack.c.b16 %v3570, %v3562
    %v3707 = vpack.c.b16 %v3579, %v3571
    %v3708 = vpack.c.b16 %v3580, %v3572
    %v3709 = vpack.c.b16 %v3581, %v3573
    %v3710 = vpack.c.b16 %v3582, %v3574
    %v3711 = vpack.c.b16 %v3583, %v3575
    %v3712 = vpack.c.b16 %v3584, %v3576
    %v3713 = vpack.c.b16 %v3585, %v3577
    %v3714 = vpack.c.b16 %v3586, %v3578
    %3843 = vmatpush.bf16.msra.mxu0 %v3643
    %3844 = vmatpush.bf16.msra.mxu0 %v3635
    %3845 = vmatpush.bf16.msra.mxu0 %v3627
    %3846 = vmatpush.bf16.msra.mxu0 %v3619
    %3847 = vmatpush.bf16.msra.mxu0 %v3611
    %3848 = vmatpush.bf16.msra.mxu0 %v3603
    %3849 = vmatpush.bf16.msra.mxu0 %v3595
    %3850 = vmatpush.bf16.msra.mxu0 %v3587
    %3851 = vmatmul.bf16.gmra.mxu0 %v3199
    %v3852 = vpop.f32.mrf.mxu0
    %v3853 = vadd.f32 0.0, %v3852
    %v3854 = vpop.f32.mrf.mxu0
    %3855 = vdwg.mxu0
    %3856 = vmatpush.bf16.msra.mxu0 %v3707
    %3857 = vmatpush.bf16.msra.mxu0 %v3699
    %3858 = vmatpush.bf16.msra.mxu0 %v3691
    %3859 = vmatpush.bf16.msra.mxu0 %v3683
    %3860 = vmatpush.bf16.msra.mxu0 %v3675
    %3861 = vmatpush.bf16.msra.mxu0 %v3667
    %3862 = vmatpush.bf16.msra.mxu0 %v3659
    %3863 = vmatpush.bf16.msra.mxu0 %v3651
    %3864 = vmatmul.bf16.gmra.mxu0 %v3200
    %v3865 = vpop.f32.mrf.mxu0
    %v3866 = vadd.f32 %v3853, %v3865
    %v3867 = vpop.f32.mrf.mxu0
    %3868 = vdwg.mxu0
    %3869 = vmatpush.bf16.msra.mxu0 %v3644
    %3870 = vmatpush.bf16.msra.mxu0 %v3636
    %3871 = vmatpush.bf16.msra.mxu0 %v3628
    %3872 = vmatpush.bf16.msra.mxu0 %v3620
    %3873 = vmatpush.bf16.msra.mxu0 %v3612
    %3874 = vmatpush.bf16.msra.mxu0 %v3604
    %3875 = vmatpush.bf16.msra.mxu0 %v3596
    %3876 = vmatpush.bf16.msra.mxu0 %v3588
    %3877 = vmatmul.bf16.gmra.mxu0 %v3199
    %v3878 = vpop.f32.mrf.mxu0
    %v3879 = vadd.f32 0.0, %v3878
    %v3880 = vpop.f32.mrf.mxu0
    %3881 = vdwg.mxu0
    %3882 = vmatpush.bf16.msra.mxu0 %v3708
    %3883 = vmatpush.bf16.msra.mxu0 %v3700
    %3884 = vmatpush.bf16.msra.mxu0 %v3692
    %3885 = vmatpush.bf16.msra.mxu0 %v3684
    %3886 = vmatpush.bf16.msra.mxu0 %v3676
    %3887 = vmatpush.bf16.msra.mxu0 %v3668
    %3888 = vmatpush.bf16.msra.mxu0 %v3660
    %3889 = vmatpush.bf16.msra.mxu0 %v3652
    %3890 = vmatmul.bf16.gmra.mxu0 %v3200
    %v3891 = vpop.f32.mrf.mxu0
    %v3892 = vadd.f32 %v3879, %v3891
    %v3893 = vpop.f32.mrf.mxu0
    %3894 = vdwg.mxu0
    %3895 = vmatpush.bf16.msra.mxu0 %v3645
    %3896 = vmatpush.bf16.msra.mxu0 %v3637
    %3897 = vmatpush.bf16.msra.mxu0 %v3629
    %3898 = vmatpush.bf16.msra.mxu0 %v3621
    %3899 = vmatpush.bf16.msra.mxu0 %v3613
    %3900 = vmatpush.bf16.msra.mxu0 %v3605
    %3901 = vmatpush.bf16.msra.mxu0 %v3597
    %3902 = vmatpush.bf16.msra.mxu0 %v3589
    %3903 = vmatmul.bf16.gmra.mxu0 %v3199
    %v3904 = vpop.f32.mrf.mxu0
    %v3905 = vadd.f32 0.0, %v3904
    %v3906 = vpop.f32.mrf.mxu0
    %3907 = vdwg.mxu0
    %3908 = vmatpush.bf16.msra.mxu0 %v3709
    %3909 = vmatpush.bf16.msra.mxu0 %v3701
    %3910 = vmatpush.bf16.msra.mxu0 %v3693
    %3911 = vmatpush.bf16.msra.mxu0 %v3685
    %3912 = vmatpush.bf16.msra.mxu0 %v3677
    %3913 = vmatpush.bf16.msra.mxu0 %v3669
    %3914 = vmatpush.bf16.msra.mxu0 %v3661
    %3915 = vmatpush.bf16.msra.mxu0 %v3653
    %3916 = vmatmul.bf16.gmra.mxu0 %v3200
    %v3917 = vpop.f32.mrf.mxu0
    %v3918 = vadd.f32 %v3905, %v3917
    %v3919 = vpop.f32.mrf.mxu0
    %3920 = vdwg.mxu0
    %3921 = vmatpush.bf16.msra.mxu0 %v3646
    %3922 = vmatpush.bf16.msra.mxu0 %v3638
    %3923 = vmatpush.bf16.msra.mxu0 %v3630
    %3924 = vmatpush.bf16.msra.mxu0 %v3622
    %3925 = vmatpush.bf16.msra.mxu0 %v3614
    %3926 = vmatpush.bf16.msra.mxu0 %v3606
    %3927 = vmatpush.bf16.msra.mxu0 %v3598
    %3928 = vmatpush.bf16.msra.mxu0 %v3590
    %3929 = vmatmul.bf16.gmra.mxu0 %v3199
    %v3930 = vpop.f32.mrf.mxu0
    %v3931 = vadd.f32 0.0, %v3930
    %v3932 = vpop.f32.mrf.mxu0
    %3933 = vdwg.mxu0
    %3934 = vmatpush.bf16.msra.mxu0 %v3710
    %3935 = vmatpush.bf16.msra.mxu0 %v3702
    %3936 = vmatpush.bf16.msra.mxu0 %v3694
    %3937 = vmatpush.bf16.msra.mxu0 %v3686
    %3938 = vmatpush.bf16.msra.mxu0 %v3678
    %3939 = vmatpush.bf16.msra.mxu0 %v3670
    %3940 = vmatpush.bf16.msra.mxu0 %v3662
    %3941 = vmatpush.bf16.msra.mxu0 %v3654
    %3942 = vmatmul.bf16.gmra.mxu0 %v3200
    %v3943 = vpop.f32.mrf.mxu0
    %v3944 = vadd.f32 %v3931, %v3943
    %v3945 = vpop.f32.mrf.mxu0
    %3946 = vdwg.mxu0
    %3947 = vmatpush.bf16.msra.mxu0 %v3647
    %3948 = vmatpush.bf16.msra.mxu0 %v3639
    %3949 = vmatpush.bf16.msra.mxu0 %v3631
    %3950 = vmatpush.bf16.msra.mxu0 %v3623
    %3951 = vmatpush.bf16.msra.mxu0 %v3615
    %3952 = vmatpush.bf16.msra.mxu0 %v3607
    %3953 = vmatpush.bf16.msra.mxu0 %v3599
    %3954 = vmatpush.bf16.msra.mxu0 %v3591
    %3955 = vmatmul.bf16.gmra.mxu0 %v3199
    %v3956 = vpop.f32.mrf.mxu0
    %v3957 = vadd.f32 0.0, %v3956
    %v3958 = vpop.f32.mrf.mxu0
    %3959 = vdwg.mxu0
    %3960 = vmatpush.bf16.msra.mxu0 %v3711
    %3961 = vmatpush.bf16.msra.mxu0 %v3703
    %3962 = vmatpush.bf16.msra.mxu0 %v3695
    %3963 = vmatpush.bf16.msra.mxu0 %v3687
    %3964 = vmatpush.bf16.msra.mxu0 %v3679
    %3965 = vmatpush.bf16.msra.mxu0 %v3671
    %3966 = vmatpush.bf16.msra.mxu0 %v3663
    %3967 = vmatpush.bf16.msra.mxu0 %v3655
    %3968 = vmatmul.bf16.gmra.mxu0 %v3200
    %v3969 = vpop.f32.mrf.mxu0
    %v3970 = vadd.f32 %v3957, %v3969
    %v3971 = vpop.f32.mrf.mxu0
    %3972 = vdwg.mxu0
    %3973 = vmatpush.bf16.msra.mxu0 %v3648
    %3974 = vmatpush.bf16.msra.mxu0 %v3640
    %3975 = vmatpush.bf16.msra.mxu0 %v3632
    %3976 = vmatpush.bf16.msra.mxu0 %v3624
    %3977 = vmatpush.bf16.msra.mxu0 %v3616
    %3978 = vmatpush.bf16.msra.mxu0 %v3608
    %3979 = vmatpush.bf16.msra.mxu0 %v3600
    %3980 = vmatpush.bf16.msra.mxu0 %v3592
    %3981 = vmatmul.bf16.gmra.mxu0 %v3199
    %v3982 = vpop.f32.mrf.mxu0
    %v3983 = vadd.f32 0.0, %v3982
    %v3984 = vpop.f32.mrf.mxu0
    %3985 = vdwg.mxu0
    %3986 = vmatpush.bf16.msra.mxu0 %v3712
    %3987 = vmatpush.bf16.msra.mxu0 %v3704
    %3988 = vmatpush.bf16.msra.mxu0 %v3696
    %3989 = vmatpush.bf16.msra.mxu0 %v3688
    %3990 = vmatpush.bf16.msra.mxu0 %v3680
    %3991 = vmatpush.bf16.msra.mxu0 %v3672
    %3992 = vmatpush.bf16.msra.mxu0 %v3664
    %3993 = vmatpush.bf16.msra.mxu0 %v3656
    %3994 = vmatmul.bf16.gmra.mxu0 %v3200
    %v3995 = vpop.f32.mrf.mxu0
    %v3996 = vadd.f32 %v3983, %v3995
    %v3997 = vpop.f32.mrf.mxu0
    %3998 = vdwg.mxu0
    %3999 = vmatpush.bf16.msra.mxu0 %v3649
    %4000 = vmatpush.bf16.msra.mxu0 %v3641
    %4001 = vmatpush.bf16.msra.mxu0 %v3633
    %4002 = vmatpush.bf16.msra.mxu0 %v3625
    %4003 = vmatpush.bf16.msra.mxu0 %v3617
    %4004 = vmatpush.bf16.msra.mxu0 %v3609
    %4005 = vmatpush.bf16.msra.mxu0 %v3601
    %4006 = vmatpush.bf16.msra.mxu0 %v3593
    %4007 = vmatmul.bf16.gmra.mxu0 %v3199
    %v4008 = vpop.f32.mrf.mxu0
    %v4009 = vadd.f32 0.0, %v4008
    %v4010 = vpop.f32.mrf.mxu0
    %4011 = vdwg.mxu0
    %4012 = vmatpush.bf16.msra.mxu0 %v3713
    %4013 = vmatpush.bf16.msra.mxu0 %v3705
    %4014 = vmatpush.bf16.msra.mxu0 %v3697
    %4015 = vmatpush.bf16.msra.mxu0 %v3689
    %4016 = vmatpush.bf16.msra.mxu0 %v3681
    %4017 = vmatpush.bf16.msra.mxu0 %v3673
    %4018 = vmatpush.bf16.msra.mxu0 %v3665
    %4019 = vmatpush.bf16.msra.mxu0 %v3657
    %4020 = vmatmul.bf16.gmra.mxu0 %v3200
    %v4021 = vpop.f32.mrf.mxu0
    %v4022 = vadd.f32 %v4009, %v4021
    %v4023 = vpop.f32.mrf.mxu0
    %4024 = vdwg.mxu0
    %4025 = vmatpush.bf16.msra.mxu0 %v3650
    %4026 = vmatpush.bf16.msra.mxu0 %v3642
    %4027 = vmatpush.bf16.msra.mxu0 %v3634
    %4028 = vmatpush.bf16.msra.mxu0 %v3626
    %4029 = vmatpush.bf16.msra.mxu0 %v3618
    %4030 = vmatpush.bf16.msra.mxu0 %v3610
    %4031 = vmatpush.bf16.msra.mxu0 %v3602
    %4032 = vmatpush.bf16.msra.mxu0 %v3594
    %4033 = vmatmul.bf16.gmra.mxu0 %v3199
    %v4034 = vpop.f32.mrf.mxu0
    %v4035 = vadd.f32 0.0, %v4034
    %v4036 = vpop.f32.mrf.mxu0
    %4037 = vdwg.mxu0
    %4038 = vmatpush.bf16.msra.mxu0 %v3714
    %4039 = vmatpush.bf16.msra.mxu0 %v3706
    %4040 = vmatpush.bf16.msra.mxu0 %v3698
    %4041 = vmatpush.bf16.msra.mxu0 %v3690
    %4042 = vmatpush.bf16.msra.mxu0 %v3682
    %4043 = vmatpush.bf16.msra.mxu0 %v3674
    %4044 = vmatpush.bf16.msra.mxu0 %v3666
    %4045 = vmatpush.bf16.msra.mxu0 %v3658
    %4046 = vmatmul.bf16.gmra.mxu0 %v3200
    %v4047 = vpop.f32.mrf.mxu0
    %v4048 = vadd.f32 %v4035, %v4047
    %v4049 = vpop.f32.mrf.mxu0
    %4050 = vdwg.mxu0
    %v4051 = vadd.f32 %v3060, %v3866
    %v4052 = vadd.f32 %v3061, %v3892
    %v4053 = vadd.f32 %v3062, %v3918
    %v4054 = vadd.f32 %v3063, %v3944
    %v4055 = vadd.f32 %v3064, %v3970
    %v4056 = vadd.f32 %v3065, %v3996
    %v4057 = vadd.f32 %v3066, %v4022
    %v4058 = vadd.f32 %v3067, %v4048
    %v4059 = vxor.u32 %v4051, 2147483648
    %v4060 = vxor.u32 %v4052, 2147483648
    %v4061 = vmul.f32 %v4059, 1.442695
    %v4062 = vpow.pop %v4061
    %v4063 = vmul.f32 %v4060, 1.442695
    %v4064 = vpow.pop %v4063
    %v4065 = vadd.f32 %v4062, 1.0
    %v4066 = vadd.f32 %v4064, 1.0
    %v4067 = vrcp.pop %v4065
    %v4068 = vmul.f32 %v4065, %v4067
    %v4069 = vsub.f32 1.0, %v4068
    %v4070 = vmul.f32 %v4067, %v4069
    %v4071 = vadd.f32 %v4067, %v4070
    %vm4072 = vweird.f32 %v4065
    %vm4073 = vweird.f32 %v4067
    %vm4074 = vmor %vm4072, %vm4073
    %v4075 = vsel %vm4074, %v4067, %v4071
    %v4076 = vand.u32 2147483647, %v4065
    %vm4077 = vcmp.eq.f32.partialorder %v4076, 8.507059e+37
    %v4078 = vand.u32 %v4065, 2147483648
    %v4079 = vor.u32 1.1754944e-38, %v4078
    %v4080 = vsel %vm4077, %v4079, %v4075
    %v4081 = vmul.f32 1.0, %v4080
    %v4082 = vrcp.pop %v4066
    %v4083 = vmul.f32 %v4066, %v4082
    %v4084 = vsub.f32 1.0, %v4083
    %v4085 = vmul.f32 %v4082, %v4084
    %v4086 = vadd.f32 %v4082, %v4085
    %vm4087 = vweird.f32 %v4066
    %vm4088 = vweird.f32 %v4082
    %vm4089 = vmor %vm4087, %vm4088
    %v4090 = vsel %vm4089, %v4082, %v4086
    %v4091 = vand.u32 2147483647, %v4066
    %vm4092 = vcmp.eq.f32.partialorder %v4091, 8.507059e+37
    %v4093 = vand.u32 %v4066, 2147483648
    %v4094 = vor.u32 1.1754944e-38, %v4093
    %v4095 = vsel %vm4092, %v4094, %v4090
    %v4096 = vmul.f32 1.0, %v4095
    %v4097 = vxor.u32 %v4053, 2147483648
    %v4098 = vxor.u32 %v4054, 2147483648
    %v4099 = vmul.f32 %v4097, 1.442695
    %v4100 = vpow.pop %v4099
    %v4101 = vmul.f32 %v4098, 1.442695
    %v4102 = vpow.pop %v4101
    %v4103 = vadd.f32 %v4100, 1.0
    %v4104 = vadd.f32 %v4102, 1.0
    %v4105 = vrcp.pop %v4103
    %v4106 = vmul.f32 %v4103, %v4105
    %v4107 = vsub.f32 1.0, %v4106
    %v4108 = vmul.f32 %v4105, %v4107
    %v4109 = vadd.f32 %v4105, %v4108
    %vm4110 = vweird.f32 %v4103
    %vm4111 = vweird.f32 %v4105
    %vm4112 = vmor %vm4110, %vm4111
    %v4113 = vsel %vm4112, %v4105, %v4109
    %v4114 = vand.u32 2147483647, %v4103
    %vm4115 = vcmp.eq.f32.partialorder %v4114, 8.507059e+37
    %v4116 = vand.u32 %v4103, 2147483648
    %v4117 = vor.u32 1.1754944e-38, %v4116
    %v4118 = vsel %vm4115, %v4117, %v4113
    %v4119 = vmul.f32 1.0, %v4118
    %v4120 = vrcp.pop %v4104
    %v4121 = vmul.f32 %v4104, %v4120
    %v4122 = vsub.f32 1.0, %v4121
    %v4123 = vmul.f32 %v4120, %v4122
    %v4124 = vadd.f32 %v4120, %v4123
    %vm4125 = vweird.f32 %v4104
    %vm4126 = vweird.f32 %v4120
    %vm4127 = vmor %vm4125, %vm4126
    %v4128 = vsel %vm4127, %v4120, %v4124
    %v4129 = vand.u32 2147483647, %v4104
    %vm4130 = vcmp.eq.f32.partialorder %v4129, 8.507059e+37
    %v4131 = vand.u32 %v4104, 2147483648
    %v4132 = vor.u32 1.1754944e-38, %v4131
    %v4133 = vsel %vm4130, %v4132, %v4128
    %v4134 = vmul.f32 1.0, %v4133
    %v4135 = vtanh.pop %v4055
    %v4136 = vtanh.pop %v4056
    %v4137 = vxor.u32 %v4057, 2147483648
    %v4138 = vxor.u32 %v4058, 2147483648
    %v4139 = vmul.f32 %v4137, 1.442695
    %v4140 = vpow.pop %v4139
    %v4141 = vmul.f32 %v4138, 1.442695
    %v4142 = vpow.pop %v4141
    %v4143 = vadd.f32 %v4140, 1.0
    %v4144 = vadd.f32 %v4142, 1.0
    %v4145 = vrcp.pop %v4143
    %v4146 = vmul.f32 %v4143, %v4145
    %v4147 = vsub.f32 1.0, %v4146
    %v4148 = vmul.f32 %v4145, %v4147
    %v4149 = vadd.f32 %v4145, %v4148
    %vm4150 = vweird.f32 %v4143
    %vm4151 = vweird.f32 %v4145
    %vm4152 = vmor %vm4150, %vm4151
    %v4153 = vsel %vm4152, %v4145, %v4149
    %v4154 = vand.u32 2147483647, %v4143
    %vm4155 = vcmp.eq.f32.partialorder %v4154, 8.507059e+37
    %v4156 = vand.u32 %v4143, 2147483648
    %v4157 = vor.u32 1.1754944e-38, %v4156
    %v4158 = vsel %vm4155, %v4157, %v4153
    %v4159 = vmul.f32 1.0, %v4158
    %v4160 = vrcp.pop %v4144
    %v4161 = vmul.f32 %v4144, %v4160
    %v4162 = vsub.f32 1.0, %v4161
    %v4163 = vmul.f32 %v4160, %v4162
    %v4164 = vadd.f32 %v4160, %v4163
    %vm4165 = vweird.f32 %v4144
    %vm4166 = vweird.f32 %v4160
    %vm4167 = vmor %vm4165, %vm4166
    %v4168 = vsel %vm4167, %v4160, %v4164
    %v4169 = vand.u32 2147483647, %v4144
    %vm4170 = vcmp.eq.f32.partialorder %v4169, 8.507059e+37
    %v4171 = vand.u32 %v4144, 2147483648
    %v4172 = vor.u32 1.1754944e-38, %v4171
    %v4173 = vsel %vm4170, %v4172, %v4168
    %v4174 = vmul.f32 1.0, %v4173
    %v4175 = vmul.f32 %v4119, %v3050
    %v4176 = vmul.f32 %v4134, %v3051
    %v4177 = vmul.f32 %v4081, %v4135
    %v4178 = vmul.f32 %v4096, %v4136
    %v4179 = vadd.f32 %v4175, %v4177
    %v4180 = vadd.f32 %v4176, %v4178
    %v4181 = vtanh.pop %v4179
    %v4182 = vtanh.pop %v4180
    %v4183 = vmul.f32 %v4159, %v4181
    %v4184 = vmul.f32 %v4174, %v4182
    %v4185 = vpack.c.bf16 %v4184, %v4183
    %s4186 = scalar_lea.vmem [#allocation3], 16
    %4187 = vst [vmem:[%s4186] sm:$0xff] %v4185
    %s4188 = scalar_lea.vmem [#allocation2], 192
    %v4189 = vld [vmem:[%s4188] sm:$0xff]
    %v4190 = vld [vmem:[%s4188 + $0x8] sm:$0xff]
    %v4191 = vld [vmem:[%s4188 + $0x10] sm:$0xff]
    %v4192 = vld [vmem:[%s4188 + $0x18] sm:$0xff]
    %v4193 = vld [vmem:[%s4188 + $0x20] sm:$0xff]
    %v4194 = vld [vmem:[%s4188 + $0x28] sm:$0xff]
    %v4195 = vld [vmem:[%s4188 + $0x30] sm:$0xff]
    %v4196 = vld [vmem:[%s4188 + $0x38] sm:$0xff]
    %v4197 = vld [vmem:[#allocation6] sm:$0xff]
    %v4198 = vld [vmem:[#allocation6 + $0x8] sm:$0xff]
    %v4199 = vld [vmem:[#allocation6 + $0x10] sm:$0xff]
    %v4200 = vld [vmem:[#allocation6 + $0x18] sm:$0xff]
    %v4201 = vld [vmem:[#allocation6 + $0x20] sm:$0xff]
    %v4202 = vld [vmem:[#allocation6 + $0x28] sm:$0xff]
    %v4203 = vld [vmem:[#allocation6 + $0x30] sm:$0xff]
    %v4204 = vld [vmem:[#allocation6 + $0x38] sm:$0xff]
    %v4205 = vld [vmem:[#allocation6 + $0x40] sm:$0xff]
    %v4206 = vld [vmem:[#allocation6 + $0x48] sm:$0xff]
    %v4207 = vld [vmem:[#allocation6 + $0x50] sm:$0xff]
    %v4208 = vld [vmem:[#allocation6 + $0x58] sm:$0xff]
    %v4209 = vld [vmem:[#allocation6 + $0x60] sm:$0xff]
    %v4210 = vld [vmem:[#allocation6 + $0x68] sm:$0xff]
    %v4211 = vld [vmem:[#allocation6 + $0x70] sm:$0xff]
    %v4212 = vld [vmem:[#allocation6 + $0x78] sm:$0xff]
    %v4213 = vld [vmem:[#allocation6 + $0x80] sm:$0xff]
    %v4214 = vld [vmem:[#allocation6 + $0x88] sm:$0xff]
    %v4215 = vld [vmem:[#allocation6 + $0x90] sm:$0xff]
    %v4216 = vld [vmem:[#allocation6 + $0x98] sm:$0xff]
    %v4217 = vld [vmem:[#allocation6 + $0xa0] sm:$0xff]
    %v4218 = vld [vmem:[#allocation6 + $0xa8] sm:$0xff]
    %v4219 = vld [vmem:[#allocation6 + $0xb0] sm:$0xff]
    %v4220 = vld [vmem:[#allocation6 + $0xb8] sm:$0xff]
    %v4221 = vld [vmem:[#allocation6 + $0xc0] sm:$0xff]
    %v4222 = vld [vmem:[#allocation6 + $0xc8] sm:$0xff]
    %v4223 = vld [vmem:[#allocation6 + $0xd0] sm:$0xff]
    %v4224 = vld [vmem:[#allocation6 + $0xd8] sm:$0xff]
    %v4225 = vld [vmem:[#allocation6 + $0xe0] sm:$0xff]
    %v4226 = vld [vmem:[#allocation6 + $0xe8] sm:$0xff]
    %v4227 = vld [vmem:[#allocation6 + $0xf0] sm:$0xff]
    %v4228 = vld [vmem:[#allocation6 + $0xf8] sm:$0xff]
    %v4229 = vld [vmem:[#allocation6 + $0x100] sm:$0xff]
    %v4230 = vld [vmem:[#allocation6 + $0x108] sm:$0xff]
    %v4231 = vld [vmem:[#allocation6 + $0x110] sm:$0xff]
    %v4232 = vld [vmem:[#allocation6 + $0x118] sm:$0xff]
    %v4233 = vld [vmem:[#allocation6 + $0x120] sm:$0xff]
    %v4234 = vld [vmem:[#allocation6 + $0x128] sm:$0xff]
    %v4235 = vld [vmem:[#allocation6 + $0x130] sm:$0xff]
    %v4236 = vld [vmem:[#allocation6 + $0x138] sm:$0xff]
    %v4237 = vld [vmem:[#allocation6 + $0x140] sm:$0xff]
    %v4238 = vld [vmem:[#allocation6 + $0x148] sm:$0xff]
    %v4239 = vld [vmem:[#allocation6 + $0x150] sm:$0xff]
    %v4240 = vld [vmem:[#allocation6 + $0x158] sm:$0xff]
    %v4241 = vld [vmem:[#allocation6 + $0x160] sm:$0xff]
    %v4242 = vld [vmem:[#allocation6 + $0x168] sm:$0xff]
    %v4243 = vld [vmem:[#allocation6 + $0x170] sm:$0xff]
    %v4244 = vld [vmem:[#allocation6 + $0x178] sm:$0xff]
    %v4245 = vld [vmem:[#allocation6 + $0x180] sm:$0xff]
    %v4246 = vld [vmem:[#allocation6 + $0x188] sm:$0xff]
    %v4247 = vld [vmem:[#allocation6 + $0x190] sm:$0xff]
    %v4248 = vld [vmem:[#allocation6 + $0x198] sm:$0xff]
    %v4249 = vld [vmem:[#allocation6 + $0x1a0] sm:$0xff]
    %v4250 = vld [vmem:[#allocation6 + $0x1a8] sm:$0xff]
    %v4251 = vld [vmem:[#allocation6 + $0x1b0] sm:$0xff]
    %v4252 = vld [vmem:[#allocation6 + $0x1b8] sm:$0xff]
    %v4253 = vld [vmem:[#allocation6 + $0x1c0] sm:$0xff]
    %v4254 = vld [vmem:[#allocation6 + $0x1c8] sm:$0xff]
    %v4255 = vld [vmem:[#allocation6 + $0x1d0] sm:$0xff]
    %v4256 = vld [vmem:[#allocation6 + $0x1d8] sm:$0xff]
    %v4257 = vld [vmem:[#allocation6 + $0x1e0] sm:$0xff]
    %v4258 = vld [vmem:[#allocation6 + $0x1e8] sm:$0xff]
    %v4259 = vld [vmem:[#allocation6 + $0x1f0] sm:$0xff]
    %v4260 = vld [vmem:[#allocation6 + $0x1f8] sm:$0xff]
    %v4261 = vld [vmem:[#allocation6 + $0x200] sm:$0xff]
    %v4262 = vld [vmem:[#allocation6 + $0x208] sm:$0xff]
    %v4263 = vld [vmem:[#allocation6 + $0x210] sm:$0xff]
    %v4264 = vld [vmem:[#allocation6 + $0x218] sm:$0xff]
    %v4265 = vld [vmem:[#allocation6 + $0x220] sm:$0xff]
    %v4266 = vld [vmem:[#allocation6 + $0x228] sm:$0xff]
    %v4267 = vld [vmem:[#allocation6 + $0x230] sm:$0xff]
    %v4268 = vld [vmem:[#allocation6 + $0x238] sm:$0xff]
    %v4269 = vld [vmem:[#allocation6 + $0x240] sm:$0xff]
    %v4270 = vld [vmem:[#allocation6 + $0x248] sm:$0xff]
    %v4271 = vld [vmem:[#allocation6 + $0x250] sm:$0xff]
    %v4272 = vld [vmem:[#allocation6 + $0x258] sm:$0xff]
    %v4273 = vld [vmem:[#allocation6 + $0x260] sm:$0xff]
    %v4274 = vld [vmem:[#allocation6 + $0x268] sm:$0xff]
    %v4275 = vld [vmem:[#allocation6 + $0x270] sm:$0xff]
    %v4276 = vld [vmem:[#allocation6 + $0x278] sm:$0xff]
    %v4277 = vld [vmem:[#allocation6 + $0x280] sm:$0xff]
    %v4278 = vld [vmem:[#allocation6 + $0x288] sm:$0xff]
    %v4279 = vld [vmem:[#allocation6 + $0x290] sm:$0xff]
    %v4280 = vld [vmem:[#allocation6 + $0x298] sm:$0xff]
    %v4281 = vld [vmem:[#allocation6 + $0x2a0] sm:$0xff]
    %v4282 = vld [vmem:[#allocation6 + $0x2a8] sm:$0xff]
    %v4283 = vld [vmem:[#allocation6 + $0x2b0] sm:$0xff]
    %v4284 = vld [vmem:[#allocation6 + $0x2b8] sm:$0xff]
    %v4285 = vld [vmem:[#allocation6 + $0x2c0] sm:$0xff]
    %v4286 = vld [vmem:[#allocation6 + $0x2c8] sm:$0xff]
    %v4287 = vld [vmem:[#allocation6 + $0x2d0] sm:$0xff]
    %v4288 = vld [vmem:[#allocation6 + $0x2d8] sm:$0xff]
    %v4289 = vld [vmem:[#allocation6 + $0x2e0] sm:$0xff]
    %v4290 = vld [vmem:[#allocation6 + $0x2e8] sm:$0xff]
    %v4291 = vld [vmem:[#allocation6 + $0x2f0] sm:$0xff]
    %v4292 = vld [vmem:[#allocation6 + $0x2f8] sm:$0xff]
    %v4293 = vld [vmem:[#allocation6 + $0x300] sm:$0xff]
    %v4294 = vld [vmem:[#allocation6 + $0x308] sm:$0xff]
    %v4295 = vld [vmem:[#allocation6 + $0x310] sm:$0xff]
    %v4296 = vld [vmem:[#allocation6 + $0x318] sm:$0xff]
    %v4297 = vld [vmem:[#allocation6 + $0x320] sm:$0xff]
    %v4298 = vld [vmem:[#allocation6 + $0x328] sm:$0xff]
    %v4299 = vld [vmem:[#allocation6 + $0x330] sm:$0xff]
    %v4300 = vld [vmem:[#allocation6 + $0x338] sm:$0xff]
    %v4301 = vld [vmem:[#allocation6 + $0x340] sm:$0xff]
    %v4302 = vld [vmem:[#allocation6 + $0x348] sm:$0xff]
    %v4303 = vld [vmem:[#allocation6 + $0x350] sm:$0xff]
    %v4304 = vld [vmem:[#allocation6 + $0x358] sm:$0xff]
    %v4305 = vld [vmem:[#allocation6 + $0x360] sm:$0xff]
    %v4306 = vld [vmem:[#allocation6 + $0x368] sm:$0xff]
    %v4307 = vld [vmem:[#allocation6 + $0x370] sm:$0xff]
    %v4308 = vld [vmem:[#allocation6 + $0x378] sm:$0xff]
    %v4309 = vld [vmem:[#allocation6 + $0x380] sm:$0xff]
    %v4310 = vld [vmem:[#allocation6 + $0x388] sm:$0xff]
    %v4311 = vld [vmem:[#allocation6 + $0x390] sm:$0xff]
    %v4312 = vld [vmem:[#allocation6 + $0x398] sm:$0xff]
    %v4313 = vld [vmem:[#allocation6 + $0x3a0] sm:$0xff]
    %v4314 = vld [vmem:[#allocation6 + $0x3a8] sm:$0xff]
    %v4315 = vld [vmem:[#allocation6 + $0x3b0] sm:$0xff]
    %v4316 = vld [vmem:[#allocation6 + $0x3b8] sm:$0xff]
    %v4317 = vld [vmem:[#allocation6 + $0x3c0] sm:$0xff]
    %v4318 = vld [vmem:[#allocation6 + $0x3c8] sm:$0xff]
    %v4319 = vld [vmem:[#allocation6 + $0x3d0] sm:$0xff]
    %v4320 = vld [vmem:[#allocation6 + $0x3d8] sm:$0xff]
    %v4321 = vld [vmem:[#allocation6 + $0x3e0] sm:$0xff]
    %v4322 = vld [vmem:[#allocation6 + $0x3e8] sm:$0xff]
    %v4323 = vld [vmem:[#allocation6 + $0x3f0] sm:$0xff]
    %v4324 = vld [vmem:[#allocation6 + $0x3f8] sm:$0xff]
    %v4326 = vunpack.c.l.b16 %v4185
    %v4327 = vunpack.c.h.b16 %v4185
    %v4328 = vpack.c.b16 %v4326, %v4326
    %v4329 = vpack.c.b16 %v4327, %v4327
    %v4460 = vunpack.c.l.b16 %v4197
    %v4461 = vunpack.c.h.b16 %v4197
    %v4462 = vunpack.c.l.b16 %v4198
    %v4463 = vunpack.c.h.b16 %v4198
    %v4464 = vunpack.c.l.b16 %v4199
    %v4465 = vunpack.c.h.b16 %v4199
    %v4466 = vunpack.c.l.b16 %v4200
    %v4467 = vunpack.c.h.b16 %v4200
    %v4468 = vunpack.c.l.b16 %v4201
    %v4469 = vunpack.c.h.b16 %v4201
    %v4470 = vunpack.c.l.b16 %v4202
    %v4471 = vunpack.c.h.b16 %v4202
    %v4472 = vunpack.c.l.b16 %v4203
    %v4473 = vunpack.c.h.b16 %v4203
    %v4474 = vunpack.c.l.b16 %v4204
    %v4475 = vunpack.c.h.b16 %v4204
    %v4476 = vunpack.c.l.b16 %v4205
    %v4477 = vunpack.c.h.b16 %v4205
    %v4478 = vunpack.c.l.b16 %v4206
    %v4479 = vunpack.c.h.b16 %v4206
    %v4480 = vunpack.c.l.b16 %v4207
    %v4481 = vunpack.c.h.b16 %v4207
    %v4482 = vunpack.c.l.b16 %v4208
    %v4483 = vunpack.c.h.b16 %v4208
    %v4484 = vunpack.c.l.b16 %v4209
    %v4485 = vunpack.c.h.b16 %v4209
    %v4486 = vunpack.c.l.b16 %v4210
    %v4487 = vunpack.c.h.b16 %v4210
    %v4488 = vunpack.c.l.b16 %v4211
    %v4489 = vunpack.c.h.b16 %v4211
    %v4490 = vunpack.c.l.b16 %v4212
    %v4491 = vunpack.c.h.b16 %v4212
    %v4492 = vunpack.c.l.b16 %v4213
    %v4493 = vunpack.c.h.b16 %v4213
    %v4494 = vunpack.c.l.b16 %v4214
    %v4495 = vunpack.c.h.b16 %v4214
    %v4496 = vunpack.c.l.b16 %v4215
    %v4497 = vunpack.c.h.b16 %v4215
    %v4498 = vunpack.c.l.b16 %v4216
    %v4499 = vunpack.c.h.b16 %v4216
    %v4500 = vunpack.c.l.b16 %v4217
    %v4501 = vunpack.c.h.b16 %v4217
    %v4502 = vunpack.c.l.b16 %v4218
    %v4503 = vunpack.c.h.b16 %v4218
    %v4504 = vunpack.c.l.b16 %v4219
    %v4505 = vunpack.c.h.b16 %v4219
    %v4506 = vunpack.c.l.b16 %v4220
    %v4507 = vunpack.c.h.b16 %v4220
    %v4508 = vunpack.c.l.b16 %v4221
    %v4509 = vunpack.c.h.b16 %v4221
    %v4510 = vunpack.c.l.b16 %v4222
    %v4511 = vunpack.c.h.b16 %v4222
    %v4512 = vunpack.c.l.b16 %v4223
    %v4513 = vunpack.c.h.b16 %v4223
    %v4514 = vunpack.c.l.b16 %v4224
    %v4515 = vunpack.c.h.b16 %v4224
    %v4516 = vunpack.c.l.b16 %v4225
    %v4517 = vunpack.c.h.b16 %v4225
    %v4518 = vunpack.c.l.b16 %v4226
    %v4519 = vunpack.c.h.b16 %v4226
    %v4520 = vunpack.c.l.b16 %v4227
    %v4521 = vunpack.c.h.b16 %v4227
    %v4522 = vunpack.c.l.b16 %v4228
    %v4523 = vunpack.c.h.b16 %v4228
    %v4524 = vunpack.c.l.b16 %v4229
    %v4525 = vunpack.c.h.b16 %v4229
    %v4526 = vunpack.c.l.b16 %v4230
    %v4527 = vunpack.c.h.b16 %v4230
    %v4528 = vunpack.c.l.b16 %v4231
    %v4529 = vunpack.c.h.b16 %v4231
    %v4530 = vunpack.c.l.b16 %v4232
    %v4531 = vunpack.c.h.b16 %v4232
    %v4532 = vunpack.c.l.b16 %v4233
    %v4533 = vunpack.c.h.b16 %v4233
    %v4534 = vunpack.c.l.b16 %v4234
    %v4535 = vunpack.c.h.b16 %v4234
    %v4536 = vunpack.c.l.b16 %v4235
    %v4537 = vunpack.c.h.b16 %v4235
    %v4538 = vunpack.c.l.b16 %v4236
    %v4539 = vunpack.c.h.b16 %v4236
    %v4540 = vunpack.c.l.b16 %v4237
    %v4541 = vunpack.c.h.b16 %v4237
    %v4542 = vunpack.c.l.b16 %v4238
    %v4543 = vunpack.c.h.b16 %v4238
    %v4544 = vunpack.c.l.b16 %v4239
    %v4545 = vunpack.c.h.b16 %v4239
    %v4546 = vunpack.c.l.b16 %v4240
    %v4547 = vunpack.c.h.b16 %v4240
    %v4548 = vunpack.c.l.b16 %v4241
    %v4549 = vunpack.c.h.b16 %v4241
    %v4550 = vunpack.c.l.b16 %v4242
    %v4551 = vunpack.c.h.b16 %v4242
    %v4552 = vunpack.c.l.b16 %v4243
    %v4553 = vunpack.c.h.b16 %v4243
    %v4554 = vunpack.c.l.b16 %v4244
    %v4555 = vunpack.c.h.b16 %v4244
    %v4556 = vunpack.c.l.b16 %v4245
    %v4557 = vunpack.c.h.b16 %v4245
    %v4558 = vunpack.c.l.b16 %v4246
    %v4559 = vunpack.c.h.b16 %v4246
    %v4560 = vunpack.c.l.b16 %v4247
    %v4561 = vunpack.c.h.b16 %v4247
    %v4562 = vunpack.c.l.b16 %v4248
    %v4563 = vunpack.c.h.b16 %v4248
    %v4564 = vunpack.c.l.b16 %v4249
    %v4565 = vunpack.c.h.b16 %v4249
    %v4566 = vunpack.c.l.b16 %v4250
    %v4567 = vunpack.c.h.b16 %v4250
    %v4568 = vunpack.c.l.b16 %v4251
    %v4569 = vunpack.c.h.b16 %v4251
    %v4570 = vunpack.c.l.b16 %v4252
    %v4571 = vunpack.c.h.b16 %v4252
    %v4572 = vunpack.c.l.b16 %v4253
    %v4573 = vunpack.c.h.b16 %v4253
    %v4574 = vunpack.c.l.b16 %v4254
    %v4575 = vunpack.c.h.b16 %v4254
    %v4576 = vunpack.c.l.b16 %v4255
    %v4577 = vunpack.c.h.b16 %v4255
    %v4578 = vunpack.c.l.b16 %v4256
    %v4579 = vunpack.c.h.b16 %v4256
    %v4580 = vunpack.c.l.b16 %v4257
    %v4581 = vunpack.c.h.b16 %v4257
    %v4582 = vunpack.c.l.b16 %v4258
    %v4583 = vunpack.c.h.b16 %v4258
    %v4584 = vunpack.c.l.b16 %v4259
    %v4585 = vunpack.c.h.b16 %v4259
    %v4586 = vunpack.c.l.b16 %v4260
    %v4587 = vunpack.c.h.b16 %v4260
    %v4588 = vunpack.c.l.b16 %v4261
    %v4589 = vunpack.c.h.b16 %v4261
    %v4590 = vunpack.c.l.b16 %v4262
    %v4591 = vunpack.c.h.b16 %v4262
    %v4592 = vunpack.c.l.b16 %v4263
    %v4593 = vunpack.c.h.b16 %v4263
    %v4594 = vunpack.c.l.b16 %v4264
    %v4595 = vunpack.c.h.b16 %v4264
    %v4596 = vunpack.c.l.b16 %v4265
    %v4597 = vunpack.c.h.b16 %v4265
    %v4598 = vunpack.c.l.b16 %v4266
    %v4599 = vunpack.c.h.b16 %v4266
    %v4600 = vunpack.c.l.b16 %v4267
    %v4601 = vunpack.c.h.b16 %v4267
    %v4602 = vunpack.c.l.b16 %v4268
    %v4603 = vunpack.c.h.b16 %v4268
    %v4604 = vunpack.c.l.b16 %v4269
    %v4605 = vunpack.c.h.b16 %v4269
    %v4606 = vunpack.c.l.b16 %v4270
    %v4607 = vunpack.c.h.b16 %v4270
    %v4608 = vunpack.c.l.b16 %v4271
    %v4609 = vunpack.c.h.b16 %v4271
    %v4610 = vunpack.c.l.b16 %v4272
    %v4611 = vunpack.c.h.b16 %v4272
    %v4612 = vunpack.c.l.b16 %v4273
    %v4613 = vunpack.c.h.b16 %v4273
    %v4614 = vunpack.c.l.b16 %v4274
    %v4615 = vunpack.c.h.b16 %v4274
    %v4616 = vunpack.c.l.b16 %v4275
    %v4617 = vunpack.c.h.b16 %v4275
    %v4618 = vunpack.c.l.b16 %v4276
    %v4619 = vunpack.c.h.b16 %v4276
    %v4620 = vunpack.c.l.b16 %v4277
    %v4621 = vunpack.c.h.b16 %v4277
    %v4622 = vunpack.c.l.b16 %v4278
    %v4623 = vunpack.c.h.b16 %v4278
    %v4624 = vunpack.c.l.b16 %v4279
    %v4625 = vunpack.c.h.b16 %v4279
    %v4626 = vunpack.c.l.b16 %v4280
    %v4627 = vunpack.c.h.b16 %v4280
    %v4628 = vunpack.c.l.b16 %v4281
    %v4629 = vunpack.c.h.b16 %v4281
    %v4630 = vunpack.c.l.b16 %v4282
    %v4631 = vunpack.c.h.b16 %v4282
    %v4632 = vunpack.c.l.b16 %v4283
    %v4633 = vunpack.c.h.b16 %v4283
    %v4634 = vunpack.c.l.b16 %v4284
    %v4635 = vunpack.c.h.b16 %v4284
    %v4636 = vunpack.c.l.b16 %v4285
    %v4637 = vunpack.c.h.b16 %v4285
    %v4638 = vunpack.c.l.b16 %v4286
    %v4639 = vunpack.c.h.b16 %v4286
    %v4640 = vunpack.c.l.b16 %v4287
    %v4641 = vunpack.c.h.b16 %v4287
    %v4642 = vunpack.c.l.b16 %v4288
    %v4643 = vunpack.c.h.b16 %v4288
    %v4644 = vunpack.c.l.b16 %v4289
    %v4645 = vunpack.c.h.b16 %v4289
    %v4646 = vunpack.c.l.b16 %v4290
    %v4647 = vunpack.c.h.b16 %v4290
    %v4648 = vunpack.c.l.b16 %v4291
    %v4649 = vunpack.c.h.b16 %v4291
    %v4650 = vunpack.c.l.b16 %v4292
    %v4651 = vunpack.c.h.b16 %v4292
    %v4652 = vunpack.c.l.b16 %v4293
    %v4653 = vunpack.c.h.b16 %v4293
    %v4654 = vunpack.c.l.b16 %v4294
    %v4655 = vunpack.c.h.b16 %v4294
    %v4656 = vunpack.c.l.b16 %v4295
    %v4657 = vunpack.c.h.b16 %v4295
    %v4658 = vunpack.c.l.b16 %v4296
    %v4659 = vunpack.c.h.b16 %v4296
    %v4660 = vunpack.c.l.b16 %v4297
    %v4661 = vunpack.c.h.b16 %v4297
    %v4662 = vunpack.c.l.b16 %v4298
    %v4663 = vunpack.c.h.b16 %v4298
    %v4664 = vunpack.c.l.b16 %v4299
    %v4665 = vunpack.c.h.b16 %v4299
    %v4666 = vunpack.c.l.b16 %v4300
    %v4667 = vunpack.c.h.b16 %v4300
    %v4668 = vunpack.c.l.b16 %v4301
    %v4669 = vunpack.c.h.b16 %v4301
    %v4670 = vunpack.c.l.b16 %v4302
    %v4671 = vunpack.c.h.b16 %v4302
    %v4672 = vunpack.c.l.b16 %v4303
    %v4673 = vunpack.c.h.b16 %v4303
    %v4674 = vunpack.c.l.b16 %v4304
    %v4675 = vunpack.c.h.b16 %v4304
    %v4676 = vunpack.c.l.b16 %v4305
    %v4677 = vunpack.c.h.b16 %v4305
    %v4678 = vunpack.c.l.b16 %v4306
    %v4679 = vunpack.c.h.b16 %v4306
    %v4680 = vunpack.c.l.b16 %v4307
    %v4681 = vunpack.c.h.b16 %v4307
    %v4682 = vunpack.c.l.b16 %v4308
    %v4683 = vunpack.c.h.b16 %v4308
    %v4684 = vunpack.c.l.b16 %v4309
    %v4685 = vunpack.c.h.b16 %v4309
    %v4686 = vunpack.c.l.b16 %v4310
    %v4687 = vunpack.c.h.b16 %v4310
    %v4688 = vunpack.c.l.b16 %v4311
    %v4689 = vunpack.c.h.b16 %v4311
    %v4690 = vunpack.c.l.b16 %v4312
    %v4691 = vunpack.c.h.b16 %v4312
    %v4692 = vunpack.c.l.b16 %v4313
    %v4693 = vunpack.c.h.b16 %v4313
    %v4694 = vunpack.c.l.b16 %v4314
    %v4695 = vunpack.c.h.b16 %v4314
    %v4696 = vunpack.c.l.b16 %v4315
    %v4697 = vunpack.c.h.b16 %v4315
    %v4698 = vunpack.c.l.b16 %v4316
    %v4699 = vunpack.c.h.b16 %v4316
    %v4700 = vunpack.c.l.b16 %v4317
    %v4701 = vunpack.c.h.b16 %v4317
    %v4702 = vunpack.c.l.b16 %v4318
    %v4703 = vunpack.c.h.b16 %v4318
    %v4704 = vunpack.c.l.b16 %v4319
    %v4705 = vunpack.c.h.b16 %v4319
    %v4706 = vunpack.c.l.b16 %v4320
    %v4707 = vunpack.c.h.b16 %v4320
    %v4708 = vunpack.c.l.b16 %v4321
    %v4709 = vunpack.c.h.b16 %v4321
    %v4710 = vunpack.c.l.b16 %v4322
    %v4711 = vunpack.c.h.b16 %v4322
    %v4712 = vunpack.c.l.b16 %v4323
    %v4713 = vunpack.c.h.b16 %v4323
    %v4714 = vunpack.c.l.b16 %v4324
    %v4715 = vunpack.c.h.b16 %v4324
    %v4716 = vpack.c.b16 %v4468, %v4460
    %v4717 = vpack.c.b16 %v4469, %v4461
    %v4718 = vpack.c.b16 %v4470, %v4462
    %v4719 = vpack.c.b16 %v4471, %v4463
    %v4720 = vpack.c.b16 %v4472, %v4464
    %v4721 = vpack.c.b16 %v4473, %v4465
    %v4722 = vpack.c.b16 %v4474, %v4466
    %v4723 = vpack.c.b16 %v4475, %v4467
    %v4724 = vpack.c.b16 %v4484, %v4476
    %v4725 = vpack.c.b16 %v4485, %v4477
    %v4726 = vpack.c.b16 %v4486, %v4478
    %v4727 = vpack.c.b16 %v4487, %v4479
    %v4728 = vpack.c.b16 %v4488, %v4480
    %v4729 = vpack.c.b16 %v4489, %v4481
    %v4730 = vpack.c.b16 %v4490, %v4482
    %v4731 = vpack.c.b16 %v4491, %v4483
    %v4732 = vpack.c.b16 %v4500, %v4492
    %v4733 = vpack.c.b16 %v4501, %v4493
    %v4734 = vpack.c.b16 %v4502, %v4494
    %v4735 = vpack.c.b16 %v4503, %v4495
    %v4736 = vpack.c.b16 %v4504, %v4496
    %v4737 = vpack.c.b16 %v4505, %v4497
    %v4738 = vpack.c.b16 %v4506, %v4498
    %v4739 = vpack.c.b16 %v4507, %v4499
    %v4740 = vpack.c.b16 %v4516, %v4508
    %v4741 = vpack.c.b16 %v4517, %v4509
    %v4742 = vpack.c.b16 %v4518, %v4510
    %v4743 = vpack.c.b16 %v4519, %v4511
    %v4744 = vpack.c.b16 %v4520, %v4512
    %v4745 = vpack.c.b16 %v4521, %v4513
    %v4746 = vpack.c.b16 %v4522, %v4514
    %v4747 = vpack.c.b16 %v4523, %v4515
    %v4748 = vpack.c.b16 %v4532, %v4524
    %v4749 = vpack.c.b16 %v4533, %v4525
    %v4750 = vpack.c.b16 %v4534, %v4526
    %v4751 = vpack.c.b16 %v4535, %v4527
    %v4752 = vpack.c.b16 %v4536, %v4528
    %v4753 = vpack.c.b16 %v4537, %v4529
    %v4754 = vpack.c.b16 %v4538, %v4530
    %v4755 = vpack.c.b16 %v4539, %v4531
    %v4756 = vpack.c.b16 %v4548, %v4540
    %v4757 = vpack.c.b16 %v4549, %v4541
    %v4758 = vpack.c.b16 %v4550, %v4542
    %v4759 = vpack.c.b16 %v4551, %v4543
    %v4760 = vpack.c.b16 %v4552, %v4544
    %v4761 = vpack.c.b16 %v4553, %v4545
    %v4762 = vpack.c.b16 %v4554, %v4546
    %v4763 = vpack.c.b16 %v4555, %v4547
    %v4764 = vpack.c.b16 %v4564, %v4556
    %v4765 = vpack.c.b16 %v4565, %v4557
    %v4766 = vpack.c.b16 %v4566, %v4558
    %v4767 = vpack.c.b16 %v4567, %v4559
    %v4768 = vpack.c.b16 %v4568, %v4560
    %v4769 = vpack.c.b16 %v4569, %v4561
    %v4770 = vpack.c.b16 %v4570, %v4562
    %v4771 = vpack.c.b16 %v4571, %v4563
    %v4772 = vpack.c.b16 %v4580, %v4572
    %v4773 = vpack.c.b16 %v4581, %v4573
    %v4774 = vpack.c.b16 %v4582, %v4574
    %v4775 = vpack.c.b16 %v4583, %v4575
    %v4776 = vpack.c.b16 %v4584, %v4576
    %v4777 = vpack.c.b16 %v4585, %v4577
    %v4778 = vpack.c.b16 %v4586, %v4578
    %v4779 = vpack.c.b16 %v4587, %v4579
    %v4780 = vpack.c.b16 %v4596, %v4588
    %v4781 = vpack.c.b16 %v4597, %v4589
    %v4782 = vpack.c.b16 %v4598, %v4590
    %v4783 = vpack.c.b16 %v4599, %v4591
    %v4784 = vpack.c.b16 %v4600, %v4592
    %v4785 = vpack.c.b16 %v4601, %v4593
    %v4786 = vpack.c.b16 %v4602, %v4594
    %v4787 = vpack.c.b16 %v4603, %v4595
    %v4788 = vpack.c.b16 %v4612, %v4604
    %v4789 = vpack.c.b16 %v4613, %v4605
    %v4790 = vpack.c.b16 %v4614, %v4606
    %v4791 = vpack.c.b16 %v4615, %v4607
    %v4792 = vpack.c.b16 %v4616, %v4608
    %v4793 = vpack.c.b16 %v4617, %v4609
    %v4794 = vpack.c.b16 %v4618, %v4610
    %v4795 = vpack.c.b16 %v4619, %v4611
    %v4796 = vpack.c.b16 %v4628, %v4620
    %v4797 = vpack.c.b16 %v4629, %v4621
    %v4798 = vpack.c.b16 %v4630, %v4622
    %v4799 = vpack.c.b16 %v4631, %v4623
    %v4800 = vpack.c.b16 %v4632, %v4624
    %v4801 = vpack.c.b16 %v4633, %v4625
    %v4802 = vpack.c.b16 %v4634, %v4626
    %v4803 = vpack.c.b16 %v4635, %v4627
    %v4804 = vpack.c.b16 %v4644, %v4636
    %v4805 = vpack.c.b16 %v4645, %v4637
    %v4806 = vpack.c.b16 %v4646, %v4638
    %v4807 = vpack.c.b16 %v4647, %v4639
    %v4808 = vpack.c.b16 %v4648, %v4640
    %v4809 = vpack.c.b16 %v4649, %v4641
    %v4810 = vpack.c.b16 %v4650, %v4642
    %v4811 = vpack.c.b16 %v4651, %v4643
    %v4812 = vpack.c.b16 %v4660, %v4652
    %v4813 = vpack.c.b16 %v4661, %v4653
    %v4814 = vpack.c.b16 %v4662, %v4654
    %v4815 = vpack.c.b16 %v4663, %v4655
    %v4816 = vpack.c.b16 %v4664, %v4656
    %v4817 = vpack.c.b16 %v4665, %v4657
    %v4818 = vpack.c.b16 %v4666, %v4658
    %v4819 = vpack.c.b16 %v4667, %v4659
    %v4820 = vpack.c.b16 %v4676, %v4668
    %v4821 = vpack.c.b16 %v4677, %v4669
    %v4822 = vpack.c.b16 %v4678, %v4670
    %v4823 = vpack.c.b16 %v4679, %v4671
    %v4824 = vpack.c.b16 %v4680, %v4672
    %v4825 = vpack.c.b16 %v4681, %v4673
    %v4826 = vpack.c.b16 %v4682, %v4674
    %v4827 = vpack.c.b16 %v4683, %v4675
    %v4828 = vpack.c.b16 %v4692, %v4684
    %v4829 = vpack.c.b16 %v4693, %v4685
    %v4830 = vpack.c.b16 %v4694, %v4686
    %v4831 = vpack.c.b16 %v4695, %v4687
    %v4832 = vpack.c.b16 %v4696, %v4688
    %v4833 = vpack.c.b16 %v4697, %v4689
    %v4834 = vpack.c.b16 %v4698, %v4690
    %v4835 = vpack.c.b16 %v4699, %v4691
    %v4836 = vpack.c.b16 %v4708, %v4700
    %v4837 = vpack.c.b16 %v4709, %v4701
    %v4838 = vpack.c.b16 %v4710, %v4702
    %v4839 = vpack.c.b16 %v4711, %v4703
    %v4840 = vpack.c.b16 %v4712, %v4704
    %v4841 = vpack.c.b16 %v4713, %v4705
    %v4842 = vpack.c.b16 %v4714, %v4706
    %v4843 = vpack.c.b16 %v4715, %v4707
    %4972 = vmatpush.bf16.msra.mxu0 %v4772
    %4973 = vmatpush.bf16.msra.mxu0 %v4764
    %4974 = vmatpush.bf16.msra.mxu0 %v4756
    %4975 = vmatpush.bf16.msra.mxu0 %v4748
    %4976 = vmatpush.bf16.msra.mxu0 %v4740
    %4977 = vmatpush.bf16.msra.mxu0 %v4732
    %4978 = vmatpush.bf16.msra.mxu0 %v4724
    %4979 = vmatpush.bf16.msra.mxu0 %v4716
    %4980 = vmatmul.bf16.gmra.mxu0 %v4328
    %v4981 = vpop.f32.mrf.mxu0
    %v4982 = vadd.f32 0.0, %v4981
    %v4983 = vpop.f32.mrf.mxu0
    %4984 = vdwg.mxu0
    %4985 = vmatpush.bf16.msra.mxu0 %v4836
    %4986 = vmatpush.bf16.msra.mxu0 %v4828
    %4987 = vmatpush.bf16.msra.mxu0 %v4820
    %4988 = vmatpush.bf16.msra.mxu0 %v4812
    %4989 = vmatpush.bf16.msra.mxu0 %v4804
    %4990 = vmatpush.bf16.msra.mxu0 %v4796
    %4991 = vmatpush.bf16.msra.mxu0 %v4788
    %4992 = vmatpush.bf16.msra.mxu0 %v4780
    %4993 = vmatmul.bf16.gmra.mxu0 %v4329
    %v4994 = vpop.f32.mrf.mxu0
    %v4995 = vadd.f32 %v4982, %v4994
    %v4996 = vpop.f32.mrf.mxu0
    %4997 = vdwg.mxu0
    %4998 = vmatpush.bf16.msra.mxu0 %v4773
    %4999 = vmatpush.bf16.msra.mxu0 %v4765
    %5000 = vmatpush.bf16.msra.mxu0 %v4757
    %5001 = vmatpush.bf16.msra.mxu0 %v4749
    %5002 = vmatpush.bf16.msra.mxu0 %v4741
    %5003 = vmatpush.bf16.msra.mxu0 %v4733
    %5004 = vmatpush.bf16.msra.mxu0 %v4725
    %5005 = vmatpush.bf16.msra.mxu0 %v4717
    %5006 = vmatmul.bf16.gmra.mxu0 %v4328
    %v5007 = vpop.f32.mrf.mxu0
    %v5008 = vadd.f32 0.0, %v5007
    %v5009 = vpop.f32.mrf.mxu0
    %5010 = vdwg.mxu0
    %5011 = vmatpush.bf16.msra.mxu0 %v4837
    %5012 = vmatpush.bf16.msra.mxu0 %v4829
    %5013 = vmatpush.bf16.msra.mxu0 %v4821
    %5014 = vmatpush.bf16.msra.mxu0 %v4813
    %5015 = vmatpush.bf16.msra.mxu0 %v4805
    %5016 = vmatpush.bf16.msra.mxu0 %v4797
    %5017 = vmatpush.bf16.msra.mxu0 %v4789
    %5018 = vmatpush.bf16.msra.mxu0 %v4781
    %5019 = vmatmul.bf16.gmra.mxu0 %v4329
    %v5020 = vpop.f32.mrf.mxu0
    %v5021 = vadd.f32 %v5008, %v5020
    %v5022 = vpop.f32.mrf.mxu0
    %5023 = vdwg.mxu0
    %5024 = vmatpush.bf16.msra.mxu0 %v4774
    %5025 = vmatpush.bf16.msra.mxu0 %v4766
    %5026 = vmatpush.bf16.msra.mxu0 %v4758
    %5027 = vmatpush.bf16.msra.mxu0 %v4750
    %5028 = vmatpush.bf16.msra.mxu0 %v4742
    %5029 = vmatpush.bf16.msra.mxu0 %v4734
    %5030 = vmatpush.bf16.msra.mxu0 %v4726
    %5031 = vmatpush.bf16.msra.mxu0 %v4718
    %5032 = vmatmul.bf16.gmra.mxu0 %v4328
    %v5033 = vpop.f32.mrf.mxu0
    %v5034 = vadd.f32 0.0, %v5033
    %v5035 = vpop.f32.mrf.mxu0
    %5036 = vdwg.mxu0
    %5037 = vmatpush.bf16.msra.mxu0 %v4838
    %5038 = vmatpush.bf16.msra.mxu0 %v4830
    %5039 = vmatpush.bf16.msra.mxu0 %v4822
    %5040 = vmatpush.bf16.msra.mxu0 %v4814
    %5041 = vmatpush.bf16.msra.mxu0 %v4806
    %5042 = vmatpush.bf16.msra.mxu0 %v4798
    %5043 = vmatpush.bf16.msra.mxu0 %v4790
    %5044 = vmatpush.bf16.msra.mxu0 %v4782
    %5045 = vmatmul.bf16.gmra.mxu0 %v4329
    %v5046 = vpop.f32.mrf.mxu0
    %v5047 = vadd.f32 %v5034, %v5046
    %v5048 = vpop.f32.mrf.mxu0
    %5049 = vdwg.mxu0
    %5050 = vmatpush.bf16.msra.mxu0 %v4775
    %5051 = vmatpush.bf16.msra.mxu0 %v4767
    %5052 = vmatpush.bf16.msra.mxu0 %v4759
    %5053 = vmatpush.bf16.msra.mxu0 %v4751
    %5054 = vmatpush.bf16.msra.mxu0 %v4743
    %5055 = vmatpush.bf16.msra.mxu0 %v4735
    %5056 = vmatpush.bf16.msra.mxu0 %v4727
    %5057 = vmatpush.bf16.msra.mxu0 %v4719
    %5058 = vmatmul.bf16.gmra.mxu0 %v4328
    %v5059 = vpop.f32.mrf.mxu0
    %v5060 = vadd.f32 0.0, %v5059
    %v5061 = vpop.f32.mrf.mxu0
    %5062 = vdwg.mxu0
    %5063 = vmatpush.bf16.msra.mxu0 %v4839
    %5064 = vmatpush.bf16.msra.mxu0 %v4831
    %5065 = vmatpush.bf16.msra.mxu0 %v4823
    %5066 = vmatpush.bf16.msra.mxu0 %v4815
    %5067 = vmatpush.bf16.msra.mxu0 %v4807
    %5068 = vmatpush.bf16.msra.mxu0 %v4799
    %5069 = vmatpush.bf16.msra.mxu0 %v4791
    %5070 = vmatpush.bf16.msra.mxu0 %v4783
    %5071 = vmatmul.bf16.gmra.mxu0 %v4329
    %v5072 = vpop.f32.mrf.mxu0
    %v5073 = vadd.f32 %v5060, %v5072
    %v5074 = vpop.f32.mrf.mxu0
    %5075 = vdwg.mxu0
    %5076 = vmatpush.bf16.msra.mxu0 %v4776
    %5077 = vmatpush.bf16.msra.mxu0 %v4768
    %5078 = vmatpush.bf16.msra.mxu0 %v4760
    %5079 = vmatpush.bf16.msra.mxu0 %v4752
    %5080 = vmatpush.bf16.msra.mxu0 %v4744
    %5081 = vmatpush.bf16.msra.mxu0 %v4736
    %5082 = vmatpush.bf16.msra.mxu0 %v4728
    %5083 = vmatpush.bf16.msra.mxu0 %v4720
    %5084 = vmatmul.bf16.gmra.mxu0 %v4328
    %v5085 = vpop.f32.mrf.mxu0
    %v5086 = vadd.f32 0.0, %v5085
    %v5087 = vpop.f32.mrf.mxu0
    %5088 = vdwg.mxu0
    %5089 = vmatpush.bf16.msra.mxu0 %v4840
    %5090 = vmatpush.bf16.msra.mxu0 %v4832
    %5091 = vmatpush.bf16.msra.mxu0 %v4824
    %5092 = vmatpush.bf16.msra.mxu0 %v4816
    %5093 = vmatpush.bf16.msra.mxu0 %v4808
    %5094 = vmatpush.bf16.msra.mxu0 %v4800
    %5095 = vmatpush.bf16.msra.mxu0 %v4792
    %5096 = vmatpush.bf16.msra.mxu0 %v4784
    %5097 = vmatmul.bf16.gmra.mxu0 %v4329
    %v5098 = vpop.f32.mrf.mxu0
    %v5099 = vadd.f32 %v5086, %v5098
    %v5100 = vpop.f32.mrf.mxu0
    %5101 = vdwg.mxu0
    %5102 = vmatpush.bf16.msra.mxu0 %v4777
    %5103 = vmatpush.bf16.msra.mxu0 %v4769
    %5104 = vmatpush.bf16.msra.mxu0 %v4761
    %5105 = vmatpush.bf16.msra.mxu0 %v4753
    %5106 = vmatpush.bf16.msra.mxu0 %v4745
    %5107 = vmatpush.bf16.msra.mxu0 %v4737
    %5108 = vmatpush.bf16.msra.mxu0 %v4729
    %5109 = vmatpush.bf16.msra.mxu0 %v4721
    %5110 = vmatmul.bf16.gmra.mxu0 %v4328
    %v5111 = vpop.f32.mrf.mxu0
    %v5112 = vadd.f32 0.0, %v5111
    %v5113 = vpop.f32.mrf.mxu0
    %5114 = vdwg.mxu0
    %5115 = vmatpush.bf16.msra.mxu0 %v4841
    %5116 = vmatpush.bf16.msra.mxu0 %v4833
    %5117 = vmatpush.bf16.msra.mxu0 %v4825
    %5118 = vmatpush.bf16.msra.mxu0 %v4817
    %5119 = vmatpush.bf16.msra.mxu0 %v4809
    %5120 = vmatpush.bf16.msra.mxu0 %v4801
    %5121 = vmatpush.bf16.msra.mxu0 %v4793
    %5122 = vmatpush.bf16.msra.mxu0 %v4785
    %5123 = vmatmul.bf16.gmra.mxu0 %v4329
    %v5124 = vpop.f32.mrf.mxu0
    %v5125 = vadd.f32 %v5112, %v5124
    %v5126 = vpop.f32.mrf.mxu0
    %5127 = vdwg.mxu0
    %5128 = vmatpush.bf16.msra.mxu0 %v4778
    %5129 = vmatpush.bf16.msra.mxu0 %v4770
    %5130 = vmatpush.bf16.msra.mxu0 %v4762
    %5131 = vmatpush.bf16.msra.mxu0 %v4754
    %5132 = vmatpush.bf16.msra.mxu0 %v4746
    %5133 = vmatpush.bf16.msra.mxu0 %v4738
    %5134 = vmatpush.bf16.msra.mxu0 %v4730
    %5135 = vmatpush.bf16.msra.mxu0 %v4722
    %5136 = vmatmul.bf16.gmra.mxu0 %v4328
    %v5137 = vpop.f32.mrf.mxu0
    %v5138 = vadd.f32 0.0, %v5137
    %v5139 = vpop.f32.mrf.mxu0
    %5140 = vdwg.mxu0
    %5141 = vmatpush.bf16.msra.mxu0 %v4842
    %5142 = vmatpush.bf16.msra.mxu0 %v4834
    %5143 = vmatpush.bf16.msra.mxu0 %v4826
    %5144 = vmatpush.bf16.msra.mxu0 %v4818
    %5145 = vmatpush.bf16.msra.mxu0 %v4810
    %5146 = vmatpush.bf16.msra.mxu0 %v4802
    %5147 = vmatpush.bf16.msra.mxu0 %v4794
    %5148 = vmatpush.bf16.msra.mxu0 %v4786
    %5149 = vmatmul.bf16.gmra.mxu0 %v4329
    %v5150 = vpop.f32.mrf.mxu0
    %v5151 = vadd.f32 %v5138, %v5150
    %v5152 = vpop.f32.mrf.mxu0
    %5153 = vdwg.mxu0
    %5154 = vmatpush.bf16.msra.mxu0 %v4779
    %5155 = vmatpush.bf16.msra.mxu0 %v4771
    %5156 = vmatpush.bf16.msra.mxu0 %v4763
    %5157 = vmatpush.bf16.msra.mxu0 %v4755
    %5158 = vmatpush.bf16.msra.mxu0 %v4747
    %5159 = vmatpush.bf16.msra.mxu0 %v4739
    %5160 = vmatpush.bf16.msra.mxu0 %v4731
    %5161 = vmatpush.bf16.msra.mxu0 %v4723
    %5162 = vmatmul.bf16.gmra.mxu0 %v4328
    %v5163 = vpop.f32.mrf.mxu0
    %v5164 = vadd.f32 0.0, %v5163
    %v5165 = vpop.f32.mrf.mxu0
    %5166 = vdwg.mxu0
    %5167 = vmatpush.bf16.msra.mxu0 %v4843
    %5168 = vmatpush.bf16.msra.mxu0 %v4835
    %5169 = vmatpush.bf16.msra.mxu0 %v4827
    %5170 = vmatpush.bf16.msra.mxu0 %v4819
    %5171 = vmatpush.bf16.msra.mxu0 %v4811
    %5172 = vmatpush.bf16.msra.mxu0 %v4803
    %5173 = vmatpush.bf16.msra.mxu0 %v4795
    %5174 = vmatpush.bf16.msra.mxu0 %v4787
    %5175 = vmatmul.bf16.gmra.mxu0 %v4329
    %v5176 = vpop.f32.mrf.mxu0
    %v5177 = vadd.f32 %v5164, %v5176
    %v5178 = vpop.f32.mrf.mxu0
    %5179 = vdwg.mxu0
    %v5180 = vadd.f32 %v4189, %v4995
    %v5181 = vadd.f32 %v4190, %v5021
    %v5182 = vadd.f32 %v4191, %v5047
    %v5183 = vadd.f32 %v4192, %v5073
    %v5184 = vadd.f32 %v4193, %v5099
    %v5185 = vadd.f32 %v4194, %v5125
    %v5186 = vadd.f32 %v4195, %v5151
    %v5187 = vadd.f32 %v4196, %v5177
    %v5188 = vxor.u32 %v5180, 2147483648
    %v5189 = vxor.u32 %v5181, 2147483648
    %v5190 = vmul.f32 %v5188, 1.442695
    %v5191 = vpow.pop %v5190
    %v5192 = vmul.f32 %v5189, 1.442695
    %v5193 = vpow.pop %v5192
    %v5194 = vadd.f32 %v5191, 1.0
    %v5195 = vadd.f32 %v5193, 1.0
    %v5196 = vrcp.pop %v5194
    %v5197 = vmul.f32 %v5194, %v5196
    %v5198 = vsub.f32 1.0, %v5197
    %v5199 = vmul.f32 %v5196, %v5198
    %v5200 = vadd.f32 %v5196, %v5199
    %vm5201 = vweird.f32 %v5194
    %vm5202 = vweird.f32 %v5196
    %vm5203 = vmor %vm5201, %vm5202
    %v5204 = vsel %vm5203, %v5196, %v5200
    %v5205 = vand.u32 2147483647, %v5194
    %vm5206 = vcmp.eq.f32.partialorder %v5205, 8.507059e+37
    %v5207 = vand.u32 %v5194, 2147483648
    %v5208 = vor.u32 1.1754944e-38, %v5207
    %v5209 = vsel %vm5206, %v5208, %v5204
    %v5210 = vmul.f32 1.0, %v5209
    %v5211 = vrcp.pop %v5195
    %v5212 = vmul.f32 %v5195, %v5211
    %v5213 = vsub.f32 1.0, %v5212
    %v5214 = vmul.f32 %v5211, %v5213
    %v5215 = vadd.f32 %v5211, %v5214
    %vm5216 = vweird.f32 %v5195
    %vm5217 = vweird.f32 %v5211
    %vm5218 = vmor %vm5216, %vm5217
    %v5219 = vsel %vm5218, %v5211, %v5215
    %v5220 = vand.u32 2147483647, %v5195
    %vm5221 = vcmp.eq.f32.partialorder %v5220, 8.507059e+37
    %v5222 = vand.u32 %v5195, 2147483648
    %v5223 = vor.u32 1.1754944e-38, %v5222
    %v5224 = vsel %vm5221, %v5223, %v5219
    %v5225 = vmul.f32 1.0, %v5224
    %v5226 = vxor.u32 %v5182, 2147483648
    %v5227 = vxor.u32 %v5183, 2147483648
    %v5228 = vmul.f32 %v5226, 1.442695
    %v5229 = vpow.pop %v5228
    %v5230 = vmul.f32 %v5227, 1.442695
    %v5231 = vpow.pop %v5230
    %v5232 = vadd.f32 %v5229, 1.0
    %v5233 = vadd.f32 %v5231, 1.0
    %v5234 = vrcp.pop %v5232
    %v5235 = vmul.f32 %v5232, %v5234
    %v5236 = vsub.f32 1.0, %v5235
    %v5237 = vmul.f32 %v5234, %v5236
    %v5238 = vadd.f32 %v5234, %v5237
    %vm5239 = vweird.f32 %v5232
    %vm5240 = vweird.f32 %v5234
    %vm5241 = vmor %vm5239, %vm5240
    %v5242 = vsel %vm5241, %v5234, %v5238
    %v5243 = vand.u32 2147483647, %v5232
    %vm5244 = vcmp.eq.f32.partialorder %v5243, 8.507059e+37
    %v5245 = vand.u32 %v5232, 2147483648
    %v5246 = vor.u32 1.1754944e-38, %v5245
    %v5247 = vsel %vm5244, %v5246, %v5242
    %v5248 = vmul.f32 1.0, %v5247
    %v5249 = vrcp.pop %v5233
    %v5250 = vmul.f32 %v5233, %v5249
    %v5251 = vsub.f32 1.0, %v5250
    %v5252 = vmul.f32 %v5249, %v5251
    %v5253 = vadd.f32 %v5249, %v5252
    %vm5254 = vweird.f32 %v5233
    %vm5255 = vweird.f32 %v5249
    %vm5256 = vmor %vm5254, %vm5255
    %v5257 = vsel %vm5256, %v5249, %v5253
    %v5258 = vand.u32 2147483647, %v5233
    %vm5259 = vcmp.eq.f32.partialorder %v5258, 8.507059e+37
    %v5260 = vand.u32 %v5233, 2147483648
    %v5261 = vor.u32 1.1754944e-38, %v5260
    %v5262 = vsel %vm5259, %v5261, %v5257
    %v5263 = vmul.f32 1.0, %v5262
    %v5264 = vtanh.pop %v5184
    %v5265 = vtanh.pop %v5185
    %v5266 = vxor.u32 %v5186, 2147483648
    %v5267 = vxor.u32 %v5187, 2147483648
    %v5268 = vmul.f32 %v5266, 1.442695
    %v5269 = vpow.pop %v5268
    %v5270 = vmul.f32 %v5267, 1.442695
    %v5271 = vpow.pop %v5270
    %v5272 = vadd.f32 %v5269, 1.0
    %v5273 = vadd.f32 %v5271, 1.0
    %v5274 = vrcp.pop %v5272
    %v5275 = vmul.f32 %v5272, %v5274
    %v5276 = vsub.f32 1.0, %v5275
    %v5277 = vmul.f32 %v5274, %v5276
    %v5278 = vadd.f32 %v5274, %v5277
    %vm5279 = vweird.f32 %v5272
    %vm5280 = vweird.f32 %v5274
    %vm5281 = vmor %vm5279, %vm5280
    %v5282 = vsel %vm5281, %v5274, %v5278
    %v5283 = vand.u32 2147483647, %v5272
    %vm5284 = vcmp.eq.f32.partialorder %v5283, 8.507059e+37
    %v5285 = vand.u32 %v5272, 2147483648
    %v5286 = vor.u32 1.1754944e-38, %v5285
    %v5287 = vsel %vm5284, %v5286, %v5282
    %v5288 = vmul.f32 1.0, %v5287
    %v5289 = vrcp.pop %v5273
    %v5290 = vmul.f32 %v5273, %v5289
    %v5291 = vsub.f32 1.0, %v5290
    %v5292 = vmul.f32 %v5289, %v5291
    %v5293 = vadd.f32 %v5289, %v5292
    %vm5294 = vweird.f32 %v5273
    %vm5295 = vweird.f32 %v5289
    %vm5296 = vmor %vm5294, %vm5295
    %v5297 = vsel %vm5296, %v5289, %v5293
    %v5298 = vand.u32 2147483647, %v5273
    %vm5299 = vcmp.eq.f32.partialorder %v5298, 8.507059e+37
    %v5300 = vand.u32 %v5273, 2147483648
    %v5301 = vor.u32 1.1754944e-38, %v5300
    %v5302 = vsel %vm5299, %v5301, %v5297
    %v5303 = vmul.f32 1.0, %v5302
    %v5304 = vmul.f32 %v5248, %v4179
    %v5305 = vmul.f32 %v5263, %v4180
    %v5306 = vmul.f32 %v5210, %v5264
    %v5307 = vmul.f32 %v5225, %v5265
    %v5308 = vadd.f32 %v5304, %v5306
    %v5309 = vadd.f32 %v5305, %v5307
    %v5310 = vtanh.pop %v5308
    %v5311 = vtanh.pop %v5309
    %v5312 = vmul.f32 %v5288, %v5310
    %v5313 = vmul.f32 %v5303, %v5311
    %v5314 = vpack.c.bf16 %v5313, %v5312
    %s5315 = scalar_lea.vmem [#allocation3], 24
    %5316 = vst [vmem:[%s5315] sm:$0xff] %v5314
    %s5317 = scalar_lea.vmem [#allocation2], 256
    %v5318 = vld [vmem:[%s5317] sm:$0xff]
    %v5319 = vld [vmem:[%s5317 + $0x8] sm:$0xff]
    %v5320 = vld [vmem:[%s5317 + $0x10] sm:$0xff]
    %v5321 = vld [vmem:[%s5317 + $0x18] sm:$0xff]
    %v5322 = vld [vmem:[%s5317 + $0x20] sm:$0xff]
    %v5323 = vld [vmem:[%s5317 + $0x28] sm:$0xff]
    %v5324 = vld [vmem:[%s5317 + $0x30] sm:$0xff]
    %v5325 = vld [vmem:[%s5317 + $0x38] sm:$0xff]
    %v5326 = vld [vmem:[#allocation6] sm:$0xff]
    %v5327 = vld [vmem:[#allocation6 + $0x8] sm:$0xff]
    %v5328 = vld [vmem:[#allocation6 + $0x10] sm:$0xff]
    %v5329 = vld [vmem:[#allocation6 + $0x18] sm:$0xff]
    %v5330 = vld [vmem:[#allocation6 + $0x20] sm:$0xff]
    %v5331 = vld [vmem:[#allocation6 + $0x28] sm:$0xff]
    %v5332 = vld [vmem:[#allocation6 + $0x30] sm:$0xff]
    %v5333 = vld [vmem:[#allocation6 + $0x38] sm:$0xff]
    %v5334 = vld [vmem:[#allocation6 + $0x40] sm:$0xff]
    %v5335 = vld [vmem:[#allocation6 + $0x48] sm:$0xff]
    %v5336 = vld [vmem:[#allocation6 + $0x50] sm:$0xff]
    %v5337 = vld [vmem:[#allocation6 + $0x58] sm:$0xff]
    %v5338 = vld [vmem:[#allocation6 + $0x60] sm:$0xff]
    %v5339 = vld [vmem:[#allocation6 + $0x68] sm:$0xff]
    %v5340 = vld [vmem:[#allocation6 + $0x70] sm:$0xff]
    %v5341 = vld [vmem:[#allocation6 + $0x78] sm:$0xff]
    %v5342 = vld [vmem:[#allocation6 + $0x80] sm:$0xff]
    %v5343 = vld [vmem:[#allocation6 + $0x88] sm:$0xff]
    %v5344 = vld [vmem:[#allocation6 + $0x90] sm:$0xff]
    %v5345 = vld [vmem:[#allocation6 + $0x98] sm:$0xff]
    %v5346 = vld [vmem:[#allocation6 + $0xa0] sm:$0xff]
    %v5347 = vld [vmem:[#allocation6 + $0xa8] sm:$0xff]
    %v5348 = vld [vmem:[#allocation6 + $0xb0] sm:$0xff]
    %v5349 = vld [vmem:[#allocation6 + $0xb8] sm:$0xff]
    %v5350 = vld [vmem:[#allocation6 + $0xc0] sm:$0xff]
    %v5351 = vld [vmem:[#allocation6 + $0xc8] sm:$0xff]
    %v5352 = vld [vmem:[#allocation6 + $0xd0] sm:$0xff]
    %v5353 = vld [vmem:[#allocation6 + $0xd8] sm:$0xff]
    %v5354 = vld [vmem:[#allocation6 + $0xe0] sm:$0xff]
    %v5355 = vld [vmem:[#allocation6 + $0xe8] sm:$0xff]
    %v5356 = vld [vmem:[#allocation6 + $0xf0] sm:$0xff]
    %v5357 = vld [vmem:[#allocation6 + $0xf8] sm:$0xff]
    %v5358 = vld [vmem:[#allocation6 + $0x100] sm:$0xff]
    %v5359 = vld [vmem:[#allocation6 + $0x108] sm:$0xff]
    %v5360 = vld [vmem:[#allocation6 + $0x110] sm:$0xff]
    %v5361 = vld [vmem:[#allocation6 + $0x118] sm:$0xff]
    %v5362 = vld [vmem:[#allocation6 + $0x120] sm:$0xff]
    %v5363 = vld [vmem:[#allocation6 + $0x128] sm:$0xff]
    %v5364 = vld [vmem:[#allocation6 + $0x130] sm:$0xff]
    %v5365 = vld [vmem:[#allocation6 + $0x138] sm:$0xff]
    %v5366 = vld [vmem:[#allocation6 + $0x140] sm:$0xff]
    %v5367 = vld [vmem:[#allocation6 + $0x148] sm:$0xff]
    %v5368 = vld [vmem:[#allocation6 + $0x150] sm:$0xff]
    %v5369 = vld [vmem:[#allocation6 + $0x158] sm:$0xff]
    %v5370 = vld [vmem:[#allocation6 + $0x160] sm:$0xff]
    %v5371 = vld [vmem:[#allocation6 + $0x168] sm:$0xff]
    %v5372 = vld [vmem:[#allocation6 + $0x170] sm:$0xff]
    %v5373 = vld [vmem:[#allocation6 + $0x178] sm:$0xff]
    %v5374 = vld [vmem:[#allocation6 + $0x180] sm:$0xff]
    %v5375 = vld [vmem:[#allocation6 + $0x188] sm:$0xff]
    %v5376 = vld [vmem:[#allocation6 + $0x190] sm:$0xff]
    %v5377 = vld [vmem:[#allocation6 + $0x198] sm:$0xff]
    %v5378 = vld [vmem:[#allocation6 + $0x1a0] sm:$0xff]
    %v5379 = vld [vmem:[#allocation6 + $0x1a8] sm:$0xff]
    %v5380 = vld [vmem:[#allocation6 + $0x1b0] sm:$0xff]
    %v5381 = vld [vmem:[#allocation6 + $0x1b8] sm:$0xff]
    %v5382 = vld [vmem:[#allocation6 + $0x1c0] sm:$0xff]
    %v5383 = vld [vmem:[#allocation6 + $0x1c8] sm:$0xff]
    %v5384 = vld [vmem:[#allocation6 + $0x1d0] sm:$0xff]
    %v5385 = vld [vmem:[#allocation6 + $0x1d8] sm:$0xff]
    %v5386 = vld [vmem:[#allocation6 + $0x1e0] sm:$0xff]
    %v5387 = vld [vmem:[#allocation6 + $0x1e8] sm:$0xff]
    %v5388 = vld [vmem:[#allocation6 + $0x1f0] sm:$0xff]
    %v5389 = vld [vmem:[#allocation6 + $0x1f8] sm:$0xff]
    %v5390 = vld [vmem:[#allocation6 + $0x200] sm:$0xff]
    %v5391 = vld [vmem:[#allocation6 + $0x208] sm:$0xff]
    %v5392 = vld [vmem:[#allocation6 + $0x210] sm:$0xff]
    %v5393 = vld [vmem:[#allocation6 + $0x218] sm:$0xff]
    %v5394 = vld [vmem:[#allocation6 + $0x220] sm:$0xff]
    %v5395 = vld [vmem:[#allocation6 + $0x228] sm:$0xff]
    %v5396 = vld [vmem:[#allocation6 + $0x230] sm:$0xff]
    %v5397 = vld [vmem:[#allocation6 + $0x238] sm:$0xff]
    %v5398 = vld [vmem:[#allocation6 + $0x240] sm:$0xff]
    %v5399 = vld [vmem:[#allocation6 + $0x248] sm:$0xff]
    %v5400 = vld [vmem:[#allocation6 + $0x250] sm:$0xff]
    %v5401 = vld [vmem:[#allocation6 + $0x258] sm:$0xff]
    %v5402 = vld [vmem:[#allocation6 + $0x260] sm:$0xff]
    %v5403 = vld [vmem:[#allocation6 + $0x268] sm:$0xff]
    %v5404 = vld [vmem:[#allocation6 + $0x270] sm:$0xff]
    %v5405 = vld [vmem:[#allocation6 + $0x278] sm:$0xff]
    %v5406 = vld [vmem:[#allocation6 + $0x280] sm:$0xff]
    %v5407 = vld [vmem:[#allocation6 + $0x288] sm:$0xff]
    %v5408 = vld [vmem:[#allocation6 + $0x290] sm:$0xff]
    %v5409 = vld [vmem:[#allocation6 + $0x298] sm:$0xff]
    %v5410 = vld [vmem:[#allocation6 + $0x2a0] sm:$0xff]
    %v5411 = vld [vmem:[#allocation6 + $0x2a8] sm:$0xff]
    %v5412 = vld [vmem:[#allocation6 + $0x2b0] sm:$0xff]
    %v5413 = vld [vmem:[#allocation6 + $0x2b8] sm:$0xff]
    %v5414 = vld [vmem:[#allocation6 + $0x2c0] sm:$0xff]
    %v5415 = vld [vmem:[#allocation6 + $0x2c8] sm:$0xff]
    %v5416 = vld [vmem:[#allocation6 + $0x2d0] sm:$0xff]
    %v5417 = vld [vmem:[#allocation6 + $0x2d8] sm:$0xff]
    %v5418 = vld [vmem:[#allocation6 + $0x2e0] sm:$0xff]
    %v5419 = vld [vmem:[#allocation6 + $0x2e8] sm:$0xff]
    %v5420 = vld [vmem:[#allocation6 + $0x2f0] sm:$0xff]
    %v5421 = vld [vmem:[#allocation6 + $0x2f8] sm:$0xff]
    %v5422 = vld [vmem:[#allocation6 + $0x300] sm:$0xff]
    %v5423 = vld [vmem:[#allocation6 + $0x308] sm:$0xff]
    %v5424 = vld [vmem:[#allocation6 + $0x310] sm:$0xff]
    %v5425 = vld [vmem:[#allocation6 + $0x318] sm:$0xff]
    %v5426 = vld [vmem:[#allocation6 + $0x320] sm:$0xff]
    %v5427 = vld [vmem:[#allocation6 + $0x328] sm:$0xff]
    %v5428 = vld [vmem:[#allocation6 + $0x330] sm:$0xff]
    %v5429 = vld [vmem:[#allocation6 + $0x338] sm:$0xff]
    %v5430 = vld [vmem:[#allocation6 + $0x340] sm:$0xff]
    %v5431 = vld [vmem:[#allocation6 + $0x348] sm:$0xff]
    %v5432 = vld [vmem:[#allocation6 + $0x350] sm:$0xff]
    %v5433 = vld [vmem:[#allocation6 + $0x358] sm:$0xff]
    %v5434 = vld [vmem:[#allocation6 + $0x360] sm:$0xff]
    %v5435 = vld [vmem:[#allocation6 + $0x368] sm:$0xff]
    %v5436 = vld [vmem:[#allocation6 + $0x370] sm:$0xff]
    %v5437 = vld [vmem:[#allocation6 + $0x378] sm:$0xff]
    %v5438 = vld [vmem:[#allocation6 + $0x380] sm:$0xff]
    %v5439 = vld [vmem:[#allocation6 + $0x388] sm:$0xff]
    %v5440 = vld [vmem:[#allocation6 + $0x390] sm:$0xff]
    %v5441 = vld [vmem:[#allocation6 + $0x398] sm:$0xff]
    %v5442 = vld [vmem:[#allocation6 + $0x3a0] sm:$0xff]
    %v5443 = vld [vmem:[#allocation6 + $0x3a8] sm:$0xff]
    %v5444 = vld [vmem:[#allocation6 + $0x3b0] sm:$0xff]
    %v5445 = vld [vmem:[#allocation6 + $0x3b8] sm:$0xff]
    %v5446 = vld [vmem:[#allocation6 + $0x3c0] sm:$0xff]
    %v5447 = vld [vmem:[#allocation6 + $0x3c8] sm:$0xff]
    %v5448 = vld [vmem:[#allocation6 + $0x3d0] sm:$0xff]
    %v5449 = vld [vmem:[#allocation6 + $0x3d8] sm:$0xff]
    %v5450 = vld [vmem:[#allocation6 + $0x3e0] sm:$0xff]
    %v5451 = vld [vmem:[#allocation6 + $0x3e8] sm:$0xff]
    %v5452 = vld [vmem:[#allocation6 + $0x3f0] sm:$0xff]
    %v5453 = vld [vmem:[#allocation6 + $0x3f8] sm:$0xff]
    %v5455 = vunpack.c.l.b16 %v5314
    %v5456 = vunpack.c.h.b16 %v5314
    %v5457 = vpack.c.b16 %v5455, %v5455
    %v5458 = vpack.c.b16 %v5456, %v5456
    %v5589 = vunpack.c.l.b16 %v5326
    %v5590 = vunpack.c.h.b16 %v5326
    %v5591 = vunpack.c.l.b16 %v5327
    %v5592 = vunpack.c.h.b16 %v5327
    %v5593 = vunpack.c.l.b16 %v5328
    %v5594 = vunpack.c.h.b16 %v5328
    %v5595 = vunpack.c.l.b16 %v5329
    %v5596 = vunpack.c.h.b16 %v5329
    %v5597 = vunpack.c.l.b16 %v5330
    %v5598 = vunpack.c.h.b16 %v5330
    %v5599 = vunpack.c.l.b16 %v5331
    %v5600 = vunpack.c.h.b16 %v5331
    %v5601 = vunpack.c.l.b16 %v5332
    %v5602 = vunpack.c.h.b16 %v5332
    %v5603 = vunpack.c.l.b16 %v5333
    %v5604 = vunpack.c.h.b16 %v5333
    %v5605 = vunpack.c.l.b16 %v5334
    %v5606 = vunpack.c.h.b16 %v5334
    %v5607 = vunpack.c.l.b16 %v5335
    %v5608 = vunpack.c.h.b16 %v5335
    %v5609 = vunpack.c.l.b16 %v5336
    %v5610 = vunpack.c.h.b16 %v5336
    %v5611 = vunpack.c.l.b16 %v5337
    %v5612 = vunpack.c.h.b16 %v5337
    %v5613 = vunpack.c.l.b16 %v5338
    %v5614 = vunpack.c.h.b16 %v5338
    %v5615 = vunpack.c.l.b16 %v5339
    %v5616 = vunpack.c.h.b16 %v5339
    %v5617 = vunpack.c.l.b16 %v5340
    %v5618 = vunpack.c.h.b16 %v5340
    %v5619 = vunpack.c.l.b16 %v5341
    %v5620 = vunpack.c.h.b16 %v5341
    %v5621 = vunpack.c.l.b16 %v5342
    %v5622 = vunpack.c.h.b16 %v5342
    %v5623 = vunpack.c.l.b16 %v5343
    %v5624 = vunpack.c.h.b16 %v5343
    %v5625 = vunpack.c.l.b16 %v5344
    %v5626 = vunpack.c.h.b16 %v5344
    %v5627 = vunpack.c.l.b16 %v5345
    %v5628 = vunpack.c.h.b16 %v5345
    %v5629 = vunpack.c.l.b16 %v5346
    %v5630 = vunpack.c.h.b16 %v5346
    %v5631 = vunpack.c.l.b16 %v5347
    %v5632 = vunpack.c.h.b16 %v5347
    %v5633 = vunpack.c.l.b16 %v5348
    %v5634 = vunpack.c.h.b16 %v5348
    %v5635 = vunpack.c.l.b16 %v5349
    %v5636 = vunpack.c.h.b16 %v5349
    %v5637 = vunpack.c.l.b16 %v5350
    %v5638 = vunpack.c.h.b16 %v5350
    %v5639 = vunpack.c.l.b16 %v5351
    %v5640 = vunpack.c.h.b16 %v5351
    %v5641 = vunpack.c.l.b16 %v5352
    %v5642 = vunpack.c.h.b16 %v5352
    %v5643 = vunpack.c.l.b16 %v5353
    %v5644 = vunpack.c.h.b16 %v5353
    %v5645 = vunpack.c.l.b16 %v5354
    %v5646 = vunpack.c.h.b16 %v5354
    %v5647 = vunpack.c.l.b16 %v5355
    %v5648 = vunpack.c.h.b16 %v5355
    %v5649 = vunpack.c.l.b16 %v5356
    %v5650 = vunpack.c.h.b16 %v5356
    %v5651 = vunpack.c.l.b16 %v5357
    %v5652 = vunpack.c.h.b16 %v5357
    %v5653 = vunpack.c.l.b16 %v5358
    %v5654 = vunpack.c.h.b16 %v5358
    %v5655 = vunpack.c.l.b16 %v5359
    %v5656 = vunpack.c.h.b16 %v5359
    %v5657 = vunpack.c.l.b16 %v5360
    %v5658 = vunpack.c.h.b16 %v5360
    %v5659 = vunpack.c.l.b16 %v5361
    %v5660 = vunpack.c.h.b16 %v5361
    %v5661 = vunpack.c.l.b16 %v5362
    %v5662 = vunpack.c.h.b16 %v5362
    %v5663 = vunpack.c.l.b16 %v5363
    %v5664 = vunpack.c.h.b16 %v5363
    %v5665 = vunpack.c.l.b16 %v5364
    %v5666 = vunpack.c.h.b16 %v5364
    %v5667 = vunpack.c.l.b16 %v5365
    %v5668 = vunpack.c.h.b16 %v5365
    %v5669 = vunpack.c.l.b16 %v5366
    %v5670 = vunpack.c.h.b16 %v5366
    %v5671 = vunpack.c.l.b16 %v5367
    %v5672 = vunpack.c.h.b16 %v5367
    %v5673 = vunpack.c.l.b16 %v5368
    %v5674 = vunpack.c.h.b16 %v5368
    %v5675 = vunpack.c.l.b16 %v5369
    %v5676 = vunpack.c.h.b16 %v5369
    %v5677 = vunpack.c.l.b16 %v5370
    %v5678 = vunpack.c.h.b16 %v5370
    %v5679 = vunpack.c.l.b16 %v5371
    %v5680 = vunpack.c.h.b16 %v5371
    %v5681 = vunpack.c.l.b16 %v5372
    %v5682 = vunpack.c.h.b16 %v5372
    %v5683 = vunpack.c.l.b16 %v5373
    %v5684 = vunpack.c.h.b16 %v5373
    %v5685 = vunpack.c.l.b16 %v5374
    %v5686 = vunpack.c.h.b16 %v5374
    %v5687 = vunpack.c.l.b16 %v5375
    %v5688 = vunpack.c.h.b16 %v5375
    %v5689 = vunpack.c.l.b16 %v5376
    %v5690 = vunpack.c.h.b16 %v5376
    %v5691 = vunpack.c.l.b16 %v5377
    %v5692 = vunpack.c.h.b16 %v5377
    %v5693 = vunpack.c.l.b16 %v5378
    %v5694 = vunpack.c.h.b16 %v5378
    %v5695 = vunpack.c.l.b16 %v5379
    %v5696 = vunpack.c.h.b16 %v5379
    %v5697 = vunpack.c.l.b16 %v5380
    %v5698 = vunpack.c.h.b16 %v5380
    %v5699 = vunpack.c.l.b16 %v5381
    %v5700 = vunpack.c.h.b16 %v5381
    %v5701 = vunpack.c.l.b16 %v5382
    %v5702 = vunpack.c.h.b16 %v5382
    %v5703 = vunpack.c.l.b16 %v5383
    %v5704 = vunpack.c.h.b16 %v5383
    %v5705 = vunpack.c.l.b16 %v5384
    %v5706 = vunpack.c.h.b16 %v5384
    %v5707 = vunpack.c.l.b16 %v5385
    %v5708 = vunpack.c.h.b16 %v5385
    %v5709 = vunpack.c.l.b16 %v5386
    %v5710 = vunpack.c.h.b16 %v5386
    %v5711 = vunpack.c.l.b16 %v5387
    %v5712 = vunpack.c.h.b16 %v5387
    %v5713 = vunpack.c.l.b16 %v5388
    %v5714 = vunpack.c.h.b16 %v5388
    %v5715 = vunpack.c.l.b16 %v5389
    %v5716 = vunpack.c.h.b16 %v5389
    %v5717 = vunpack.c.l.b16 %v5390
    %v5718 = vunpack.c.h.b16 %v5390
    %v5719 = vunpack.c.l.b16 %v5391
    %v5720 = vunpack.c.h.b16 %v5391
    %v5721 = vunpack.c.l.b16 %v5392
    %v5722 = vunpack.c.h.b16 %v5392
    %v5723 = vunpack.c.l.b16 %v5393
    %v5724 = vunpack.c.h.b16 %v5393
    %v5725 = vunpack.c.l.b16 %v5394
    %v5726 = vunpack.c.h.b16 %v5394
    %v5727 = vunpack.c.l.b16 %v5395
    %v5728 = vunpack.c.h.b16 %v5395
    %v5729 = vunpack.c.l.b16 %v5396
    %v5730 = vunpack.c.h.b16 %v5396
    %v5731 = vunpack.c.l.b16 %v5397
    %v5732 = vunpack.c.h.b16 %v5397
    %v5733 = vunpack.c.l.b16 %v5398
    %v5734 = vunpack.c.h.b16 %v5398
    %v5735 = vunpack.c.l.b16 %v5399
    %v5736 = vunpack.c.h.b16 %v5399
    %v5737 = vunpack.c.l.b16 %v5400
    %v5738 = vunpack.c.h.b16 %v5400
    %v5739 = vunpack.c.l.b16 %v5401
    %v5740 = vunpack.c.h.b16 %v5401
    %v5741 = vunpack.c.l.b16 %v5402
    %v5742 = vunpack.c.h.b16 %v5402
    %v5743 = vunpack.c.l.b16 %v5403
    %v5744 = vunpack.c.h.b16 %v5403
    %v5745 = vunpack.c.l.b16 %v5404
    %v5746 = vunpack.c.h.b16 %v5404
    %v5747 = vunpack.c.l.b16 %v5405
    %v5748 = vunpack.c.h.b16 %v5405
    %v5749 = vunpack.c.l.b16 %v5406
    %v5750 = vunpack.c.h.b16 %v5406
    %v5751 = vunpack.c.l.b16 %v5407
    %v5752 = vunpack.c.h.b16 %v5407
    %v5753 = vunpack.c.l.b16 %v5408
    %v5754 = vunpack.c.h.b16 %v5408
    %v5755 = vunpack.c.l.b16 %v5409
    %v5756 = vunpack.c.h.b16 %v5409
    %v5757 = vunpack.c.l.b16 %v5410
    %v5758 = vunpack.c.h.b16 %v5410
    %v5759 = vunpack.c.l.b16 %v5411
    %v5760 = vunpack.c.h.b16 %v5411
    %v5761 = vunpack.c.l.b16 %v5412
    %v5762 = vunpack.c.h.b16 %v5412
    %v5763 = vunpack.c.l.b16 %v5413
    %v5764 = vunpack.c.h.b16 %v5413
    %v5765 = vunpack.c.l.b16 %v5414
    %v5766 = vunpack.c.h.b16 %v5414
    %v5767 = vunpack.c.l.b16 %v5415
    %v5768 = vunpack.c.h.b16 %v5415
    %v5769 = vunpack.c.l.b16 %v5416
    %v5770 = vunpack.c.h.b16 %v5416
    %v5771 = vunpack.c.l.b16 %v5417
    %v5772 = vunpack.c.h.b16 %v5417
    %v5773 = vunpack.c.l.b16 %v5418
    %v5774 = vunpack.c.h.b16 %v5418
    %v5775 = vunpack.c.l.b16 %v5419
    %v5776 = vunpack.c.h.b16 %v5419
    %v5777 = vunpack.c.l.b16 %v5420
    %v5778 = vunpack.c.h.b16 %v5420
    %v5779 = vunpack.c.l.b16 %v5421
    %v5780 = vunpack.c.h.b16 %v5421
    %v5781 = vunpack.c.l.b16 %v5422
    %v5782 = vunpack.c.h.b16 %v5422
    %v5783 = vunpack.c.l.b16 %v5423
    %v5784 = vunpack.c.h.b16 %v5423
    %v5785 = vunpack.c.l.b16 %v5424
    %v5786 = vunpack.c.h.b16 %v5424
    %v5787 = vunpack.c.l.b16 %v5425
    %v5788 = vunpack.c.h.b16 %v5425
    %v5789 = vunpack.c.l.b16 %v5426
    %v5790 = vunpack.c.h.b16 %v5426
    %v5791 = vunpack.c.l.b16 %v5427
    %v5792 = vunpack.c.h.b16 %v5427
    %v5793 = vunpack.c.l.b16 %v5428
    %v5794 = vunpack.c.h.b16 %v5428
    %v5795 = vunpack.c.l.b16 %v5429
    %v5796 = vunpack.c.h.b16 %v5429
    %v5797 = vunpack.c.l.b16 %v5430
    %v5798 = vunpack.c.h.b16 %v5430
    %v5799 = vunpack.c.l.b16 %v5431
    %v5800 = vunpack.c.h.b16 %v5431
    %v5801 = vunpack.c.l.b16 %v5432
    %v5802 = vunpack.c.h.b16 %v5432
    %v5803 = vunpack.c.l.b16 %v5433
    %v5804 = vunpack.c.h.b16 %v5433
    %v5805 = vunpack.c.l.b16 %v5434
    %v5806 = vunpack.c.h.b16 %v5434
    %v5807 = vunpack.c.l.b16 %v5435
    %v5808 = vunpack.c.h.b16 %v5435
    %v5809 = vunpack.c.l.b16 %v5436
    %v5810 = vunpack.c.h.b16 %v5436
    %v5811 = vunpack.c.l.b16 %v5437
    %v5812 = vunpack.c.h.b16 %v5437
    %v5813 = vunpack.c.l.b16 %v5438
    %v5814 = vunpack.c.h.b16 %v5438
    %v5815 = vunpack.c.l.b16 %v5439
    %v5816 = vunpack.c.h.b16 %v5439
    %v5817 = vunpack.c.l.b16 %v5440
    %v5818 = vunpack.c.h.b16 %v5440
    %v5819 = vunpack.c.l.b16 %v5441
    %v5820 = vunpack.c.h.b16 %v5441
    %v5821 = vunpack.c.l.b16 %v5442
    %v5822 = vunpack.c.h.b16 %v5442
    %v5823 = vunpack.c.l.b16 %v5443
    %v5824 = vunpack.c.h.b16 %v5443
    %v5825 = vunpack.c.l.b16 %v5444
    %v5826 = vunpack.c.h.b16 %v5444
    %v5827 = vunpack.c.l.b16 %v5445
    %v5828 = vunpack.c.h.b16 %v5445
    %v5829 = vunpack.c.l.b16 %v5446
    %v5830 = vunpack.c.h.b16 %v5446
    %v5831 = vunpack.c.l.b16 %v5447
    %v5832 = vunpack.c.h.b16 %v5447
    %v5833 = vunpack.c.l.b16 %v5448
    %v5834 = vunpack.c.h.b16 %v5448
    %v5835 = vunpack.c.l.b16 %v5449
    %v5836 = vunpack.c.h.b16 %v5449
    %v5837 = vunpack.c.l.b16 %v5450
    %v5838 = vunpack.c.h.b16 %v5450
    %v5839 = vunpack.c.l.b16 %v5451
    %v5840 = vunpack.c.h.b16 %v5451
    %v5841 = vunpack.c.l.b16 %v5452
    %v5842 = vunpack.c.h.b16 %v5452
    %v5843 = vunpack.c.l.b16 %v5453
    %v5844 = vunpack.c.h.b16 %v5453
    %v5845 = vpack.c.b16 %v5597, %v5589
    %v5846 = vpack.c.b16 %v5598, %v5590
    %v5847 = vpack.c.b16 %v5599, %v5591
    %v5848 = vpack.c.b16 %v5600, %v5592
    %v5849 = vpack.c.b16 %v5601, %v5593
    %v5850 = vpack.c.b16 %v5602, %v5594
    %v5851 = vpack.c.b16 %v5603, %v5595
    %v5852 = vpack.c.b16 %v5604, %v5596
    %v5853 = vpack.c.b16 %v5613, %v5605
    %v5854 = vpack.c.b16 %v5614, %v5606
    %v5855 = vpack.c.b16 %v5615, %v5607
    %v5856 = vpack.c.b16 %v5616, %v5608
    %v5857 = vpack.c.b16 %v5617, %v5609
    %v5858 = vpack.c.b16 %v5618, %v5610
    %v5859 = vpack.c.b16 %v5619, %v5611
    %v5860 = vpack.c.b16 %v5620, %v5612
    %v5861 = vpack.c.b16 %v5629, %v5621
    %v5862 = vpack.c.b16 %v5630, %v5622
    %v5863 = vpack.c.b16 %v5631, %v5623
    %v5864 = vpack.c.b16 %v5632, %v5624
    %v5865 = vpack.c.b16 %v5633, %v5625
    %v5866 = vpack.c.b16 %v5634, %v5626
    %v5867 = vpack.c.b16 %v5635, %v5627
    %v5868 = vpack.c.b16 %v5636, %v5628
    %v5869 = vpack.c.b16 %v5645, %v5637
    %v5870 = vpack.c.b16 %v5646, %v5638
    %v5871 = vpack.c.b16 %v5647, %v5639
    %v5872 = vpack.c.b16 %v5648, %v5640
    %v5873 = vpack.c.b16 %v5649, %v5641
    %v5874 = vpack.c.b16 %v5650, %v5642
    %v5875 = vpack.c.b16 %v5651, %v5643
    %v5876 = vpack.c.b16 %v5652, %v5644
    %v5877 = vpack.c.b16 %v5661, %v5653
    %v5878 = vpack.c.b16 %v5662, %v5654
    %v5879 = vpack.c.b16 %v5663, %v5655
    %v5880 = vpack.c.b16 %v5664, %v5656
    %v5881 = vpack.c.b16 %v5665, %v5657
    %v5882 = vpack.c.b16 %v5666, %v5658
    %v5883 = vpack.c.b16 %v5667, %v5659
    %v5884 = vpack.c.b16 %v5668, %v5660
    %v5885 = vpack.c.b16 %v5677, %v5669
    %v5886 = vpack.c.b16 %v5678, %v5670
    %v5887 = vpack.c.b16 %v5679, %v5671
    %v5888 = vpack.c.b16 %v5680, %v5672
    %v5889 = vpack.c.b16 %v5681, %v5673
    %v5890 = vpack.c.b16 %v5682, %v5674
    %v5891 = vpack.c.b16 %v5683, %v5675
    %v5892 = vpack.c.b16 %v5684, %v5676
    %v5893 = vpack.c.b16 %v5693, %v5685
    %v5894 = vpack.c.b16 %v5694, %v5686
    %v5895 = vpack.c.b16 %v5695, %v5687
    %v5896 = vpack.c.b16 %v5696, %v5688
    %v5897 = vpack.c.b16 %v5697, %v5689
    %v5898 = vpack.c.b16 %v5698, %v5690
    %v5899 = vpack.c.b16 %v5699, %v5691
    %v5900 = vpack.c.b16 %v5700, %v5692
    %v5901 = vpack.c.b16 %v5709, %v5701
    %v5902 = vpack.c.b16 %v5710, %v5702
    %v5903 = vpack.c.b16 %v5711, %v5703
    %v5904 = vpack.c.b16 %v5712, %v5704
    %v5905 = vpack.c.b16 %v5713, %v5705
    %v5906 = vpack.c.b16 %v5714, %v5706
    %v5907 = vpack.c.b16 %v5715, %v5707
    %v5908 = vpack.c.b16 %v5716, %v5708
    %v5909 = vpack.c.b16 %v5725, %v5717
    %v5910 = vpack.c.b16 %v5726, %v5718
    %v5911 = vpack.c.b16 %v5727, %v5719
    %v5912 = vpack.c.b16 %v5728, %v5720
    %v5913 = vpack.c.b16 %v5729, %v5721
    %v5914 = vpack.c.b16 %v5730, %v5722
    %v5915 = vpack.c.b16 %v5731, %v5723
    %v5916 = vpack.c.b16 %v5732, %v5724
    %v5917 = vpack.c.b16 %v5741, %v5733
    %v5918 = vpack.c.b16 %v5742, %v5734
    %v5919 = vpack.c.b16 %v5743, %v5735
    %v5920 = vpack.c.b16 %v5744, %v5736
    %v5921 = vpack.c.b16 %v5745, %v5737
    %v5922 = vpack.c.b16 %v5746, %v5738
    %v5923 = vpack.c.b16 %v5747, %v5739
    %v5924 = vpack.c.b16 %v5748, %v5740
    %v5925 = vpack.c.b16 %v5757, %v5749
    %v5926 = vpack.c.b16 %v5758, %v5750
    %v5927 = vpack.c.b16 %v5759, %v5751
    %v5928 = vpack.c.b16 %v5760, %v5752
    %v5929 = vpack.c.b16 %v5761, %v5753
    %v5930 = vpack.c.b16 %v5762, %v5754
    %v5931 = vpack.c.b16 %v5763, %v5755
    %v5932 = vpack.c.b16 %v5764, %v5756
    %v5933 = vpack.c.b16 %v5773, %v5765
    %v5934 = vpack.c.b16 %v5774, %v5766
    %v5935 = vpack.c.b16 %v5775, %v5767
    %v5936 = vpack.c.b16 %v5776, %v5768
    %v5937 = vpack.c.b16 %v5777, %v5769
    %v5938 = vpack.c.b16 %v5778, %v5770
    %v5939 = vpack.c.b16 %v5779, %v5771
    %v5940 = vpack.c.b16 %v5780, %v5772
    %v5941 = vpack.c.b16 %v5789, %v5781
    %v5942 = vpack.c.b16 %v5790, %v5782
    %v5943 = vpack.c.b16 %v5791, %v5783
    %v5944 = vpack.c.b16 %v5792, %v5784
    %v5945 = vpack.c.b16 %v5793, %v5785
    %v5946 = vpack.c.b16 %v5794, %v5786
    %v5947 = vpack.c.b16 %v5795, %v5787
    %v5948 = vpack.c.b16 %v5796, %v5788
    %v5949 = vpack.c.b16 %v5805, %v5797
    %v5950 = vpack.c.b16 %v5806, %v5798
    %v5951 = vpack.c.b16 %v5807, %v5799
    %v5952 = vpack.c.b16 %v5808, %v5800
    %v5953 = vpack.c.b16 %v5809, %v5801
    %v5954 = vpack.c.b16 %v5810, %v5802
    %v5955 = vpack.c.b16 %v5811, %v5803
    %v5956 = vpack.c.b16 %v5812, %v5804
    %v5957 = vpack.c.b16 %v5821, %v5813
    %v5958 = vpack.c.b16 %v5822, %v5814
    %v5959 = vpack.c.b16 %v5823, %v5815
    %v5960 = vpack.c.b16 %v5824, %v5816
    %v5961 = vpack.c.b16 %v5825, %v5817
    %v5962 = vpack.c.b16 %v5826, %v5818
    %v5963 = vpack.c.b16 %v5827, %v5819
    %v5964 = vpack.c.b16 %v5828, %v5820
    %v5965 = vpack.c.b16 %v5837, %v5829
    %v5966 = vpack.c.b16 %v5838, %v5830
    %v5967 = vpack.c.b16 %v5839, %v5831
    %v5968 = vpack.c.b16 %v5840, %v5832
    %v5969 = vpack.c.b16 %v5841, %v5833
    %v5970 = vpack.c.b16 %v5842, %v5834
    %v5971 = vpack.c.b16 %v5843, %v5835
    %v5972 = vpack.c.b16 %v5844, %v5836
    %6101 = vmatpush.bf16.msra.mxu0 %v5901
    %6102 = vmatpush.bf16.msra.mxu0 %v5893
    %6103 = vmatpush.bf16.msra.mxu0 %v5885
    %6104 = vmatpush.bf16.msra.mxu0 %v5877
    %6105 = vmatpush.bf16.msra.mxu0 %v5869
    %6106 = vmatpush.bf16.msra.mxu0 %v5861
    %6107 = vmatpush.bf16.msra.mxu0 %v5853
    %6108 = vmatpush.bf16.msra.mxu0 %v5845
    %6109 = vmatmul.bf16.gmra.mxu0 %v5457
    %v6110 = vpop.f32.mrf.mxu0
    %v6111 = vadd.f32 0.0, %v6110
    %v6112 = vpop.f32.mrf.mxu0
    %6113 = vdwg.mxu0
    %6114 = vmatpush.bf16.msra.mxu0 %v5965
    %6115 = vmatpush.bf16.msra.mxu0 %v5957
    %6116 = vmatpush.bf16.msra.mxu0 %v5949
    %6117 = vmatpush.bf16.msra.mxu0 %v5941
    %6118 = vmatpush.bf16.msra.mxu0 %v5933
    %6119 = vmatpush.bf16.msra.mxu0 %v5925
    %6120 = vmatpush.bf16.msra.mxu0 %v5917
    %6121 = vmatpush.bf16.msra.mxu0 %v5909
    %6122 = vmatmul.bf16.gmra.mxu0 %v5458
    %v6123 = vpop.f32.mrf.mxu0
    %v6124 = vadd.f32 %v6111, %v6123
    %v6125 = vpop.f32.mrf.mxu0
    %6126 = vdwg.mxu0
    %6127 = vmatpush.bf16.msra.mxu0 %v5902
    %6128 = vmatpush.bf16.msra.mxu0 %v5894
    %6129 = vmatpush.bf16.msra.mxu0 %v5886
    %6130 = vmatpush.bf16.msra.mxu0 %v5878
    %6131 = vmatpush.bf16.msra.mxu0 %v5870
    %6132 = vmatpush.bf16.msra.mxu0 %v5862
    %6133 = vmatpush.bf16.msra.mxu0 %v5854
    %6134 = vmatpush.bf16.msra.mxu0 %v5846
    %6135 = vmatmul.bf16.gmra.mxu0 %v5457
    %v6136 = vpop.f32.mrf.mxu0
    %v6137 = vadd.f32 0.0, %v6136
    %v6138 = vpop.f32.mrf.mxu0
    %6139 = vdwg.mxu0
    %6140 = vmatpush.bf16.msra.mxu0 %v5966
    %6141 = vmatpush.bf16.msra.mxu0 %v5958
    %6142 = vmatpush.bf16.msra.mxu0 %v5950
    %6143 = vmatpush.bf16.msra.mxu0 %v5942
    %6144 = vmatpush.bf16.msra.mxu0 %v5934
    %6145 = vmatpush.bf16.msra.mxu0 %v5926
    %6146 = vmatpush.bf16.msra.mxu0 %v5918
    %6147 = vmatpush.bf16.msra.mxu0 %v5910
    %6148 = vmatmul.bf16.gmra.mxu0 %v5458
    %v6149 = vpop.f32.mrf.mxu0
    %v6150 = vadd.f32 %v6137, %v6149
    %v6151 = vpop.f32.mrf.mxu0
    %6152 = vdwg.mxu0
    %6153 = vmatpush.bf16.msra.mxu0 %v5903
    %6154 = vmatpush.bf16.msra.mxu0 %v5895
    %6155 = vmatpush.bf16.msra.mxu0 %v5887
    %6156 = vmatpush.bf16.msra.mxu0 %v5879
    %6157 = vmatpush.bf16.msra.mxu0 %v5871
    %6158 = vmatpush.bf16.msra.mxu0 %v5863
    %6159 = vmatpush.bf16.msra.mxu0 %v5855
    %6160 = vmatpush.bf16.msra.mxu0 %v5847
    %6161 = vmatmul.bf16.gmra.mxu0 %v5457
    %v6162 = vpop.f32.mrf.mxu0
    %v6163 = vadd.f32 0.0, %v6162
    %v6164 = vpop.f32.mrf.mxu0
    %6165 = vdwg.mxu0
    %6166 = vmatpush.bf16.msra.mxu0 %v5967
    %6167 = vmatpush.bf16.msra.mxu0 %v5959
    %6168 = vmatpush.bf16.msra.mxu0 %v5951
    %6169 = vmatpush.bf16.msra.mxu0 %v5943
    %6170 = vmatpush.bf16.msra.mxu0 %v5935
    %6171 = vmatpush.bf16.msra.mxu0 %v5927
    %6172 = vmatpush.bf16.msra.mxu0 %v5919
    %6173 = vmatpush.bf16.msra.mxu0 %v5911
    %6174 = vmatmul.bf16.gmra.mxu0 %v5458
    %v6175 = vpop.f32.mrf.mxu0
    %v6176 = vadd.f32 %v6163, %v6175
    %v6177 = vpop.f32.mrf.mxu0
    %6178 = vdwg.mxu0
    %6179 = vmatpush.bf16.msra.mxu0 %v5904
    %6180 = vmatpush.bf16.msra.mxu0 %v5896
    %6181 = vmatpush.bf16.msra.mxu0 %v5888
    %6182 = vmatpush.bf16.msra.mxu0 %v5880
    %6183 = vmatpush.bf16.msra.mxu0 %v5872
    %6184 = vmatpush.bf16.msra.mxu0 %v5864
    %6185 = vmatpush.bf16.msra.mxu0 %v5856
    %6186 = vmatpush.bf16.msra.mxu0 %v5848
    %6187 = vmatmul.bf16.gmra.mxu0 %v5457
    %v6188 = vpop.f32.mrf.mxu0
    %v6189 = vadd.f32 0.0, %v6188
    %v6190 = vpop.f32.mrf.mxu0
    %6191 = vdwg.mxu0
    %6192 = vmatpush.bf16.msra.mxu0 %v5968
    %6193 = vmatpush.bf16.msra.mxu0 %v5960
    %6194 = vmatpush.bf16.msra.mxu0 %v5952
    %6195 = vmatpush.bf16.msra.mxu0 %v5944
    %6196 = vmatpush.bf16.msra.mxu0 %v5936
    %6197 = vmatpush.bf16.msra.mxu0 %v5928
    %6198 = vmatpush.bf16.msra.mxu0 %v5920
    %6199 = vmatpush.bf16.msra.mxu0 %v5912
    %6200 = vmatmul.bf16.gmra.mxu0 %v5458
    %v6201 = vpop.f32.mrf.mxu0
    %v6202 = vadd.f32 %v6189, %v6201
    %v6203 = vpop.f32.mrf.mxu0
    %6204 = vdwg.mxu0
    %6205 = vmatpush.bf16.msra.mxu0 %v5905
    %6206 = vmatpush.bf16.msra.mxu0 %v5897
    %6207 = vmatpush.bf16.msra.mxu0 %v5889
    %6208 = vmatpush.bf16.msra.mxu0 %v5881
    %6209 = vmatpush.bf16.msra.mxu0 %v5873
    %6210 = vmatpush.bf16.msra.mxu0 %v5865
    %6211 = vmatpush.bf16.msra.mxu0 %v5857
    %6212 = vmatpush.bf16.msra.mxu0 %v5849
    %6213 = vmatmul.bf16.gmra.mxu0 %v5457
    %v6214 = vpop.f32.mrf.mxu0
    %v6215 = vadd.f32 0.0, %v6214
    %v6216 = vpop.f32.mrf.mxu0
    %6217 = vdwg.mxu0
    %6218 = vmatpush.bf16.msra.mxu0 %v5969
    %6219 = vmatpush.bf16.msra.mxu0 %v5961
    %6220 = vmatpush.bf16.msra.mxu0 %v5953
    %6221 = vmatpush.bf16.msra.mxu0 %v5945
    %6222 = vmatpush.bf16.msra.mxu0 %v5937
    %6223 = vmatpush.bf16.msra.mxu0 %v5929
    %6224 = vmatpush.bf16.msra.mxu0 %v5921
    %6225 = vmatpush.bf16.msra.mxu0 %v5913
    %6226 = vmatmul.bf16.gmra.mxu0 %v5458
    %v6227 = vpop.f32.mrf.mxu0
    %v6228 = vadd.f32 %v6215, %v6227
    %v6229 = vpop.f32.mrf.mxu0
    %6230 = vdwg.mxu0
    %6231 = vmatpush.bf16.msra.mxu0 %v5906
    %6232 = vmatpush.bf16.msra.mxu0 %v5898
    %6233 = vmatpush.bf16.msra.mxu0 %v5890
    %6234 = vmatpush.bf16.msra.mxu0 %v5882
    %6235 = vmatpush.bf16.msra.mxu0 %v5874
    %6236 = vmatpush.bf16.msra.mxu0 %v5866
    %6237 = vmatpush.bf16.msra.mxu0 %v5858
    %6238 = vmatpush.bf16.msra.mxu0 %v5850
    %6239 = vmatmul.bf16.gmra.mxu0 %v5457
    %v6240 = vpop.f32.mrf.mxu0
    %v6241 = vadd.f32 0.0, %v6240
    %v6242 = vpop.f32.mrf.mxu0
    %6243 = vdwg.mxu0
    %6244 = vmatpush.bf16.msra.mxu0 %v5970
    %6245 = vmatpush.bf16.msra.mxu0 %v5962
    %6246 = vmatpush.bf16.msra.mxu0 %v5954
    %6247 = vmatpush.bf16.msra.mxu0 %v5946
    %6248 = vmatpush.bf16.msra.mxu0 %v5938
    %6249 = vmatpush.bf16.msra.mxu0 %v5930
    %6250 = vmatpush.bf16.msra.mxu0 %v5922
    %6251 = vmatpush.bf16.msra.mxu0 %v5914
    %6252 = vmatmul.bf16.gmra.mxu0 %v5458
    %v6253 = vpop.f32.mrf.mxu0
    %v6254 = vadd.f32 %v6241, %v6253
    %v6255 = vpop.f32.mrf.mxu0
    %6256 = vdwg.mxu0
    %6257 = vmatpush.bf16.msra.mxu0 %v5907
    %6258 = vmatpush.bf16.msra.mxu0 %v5899
    %6259 = vmatpush.bf16.msra.mxu0 %v5891
    %6260 = vmatpush.bf16.msra.mxu0 %v5883
    %6261 = vmatpush.bf16.msra.mxu0 %v5875
    %6262 = vmatpush.bf16.msra.mxu0 %v5867
    %6263 = vmatpush.bf16.msra.mxu0 %v5859
    %6264 = vmatpush.bf16.msra.mxu0 %v5851
    %6265 = vmatmul.bf16.gmra.mxu0 %v5457
    %v6266 = vpop.f32.mrf.mxu0
    %v6267 = vadd.f32 0.0, %v6266
    %v6268 = vpop.f32.mrf.mxu0
    %6269 = vdwg.mxu0
    %6270 = vmatpush.bf16.msra.mxu0 %v5971
    %6271 = vmatpush.bf16.msra.mxu0 %v5963
    %6272 = vmatpush.bf16.msra.mxu0 %v5955
    %6273 = vmatpush.bf16.msra.mxu0 %v5947
    %6274 = vmatpush.bf16.msra.mxu0 %v5939
    %6275 = vmatpush.bf16.msra.mxu0 %v5931
    %6276 = vmatpush.bf16.msra.mxu0 %v5923
    %6277 = vmatpush.bf16.msra.mxu0 %v5915
    %6278 = vmatmul.bf16.gmra.mxu0 %v5458
    %v6279 = vpop.f32.mrf.mxu0
    %v6280 = vadd.f32 %v6267, %v6279
    %v6281 = vpop.f32.mrf.mxu0
    %6282 = vdwg.mxu0
    %6283 = vmatpush.bf16.msra.mxu0 %v5908
    %6284 = vmatpush.bf16.msra.mxu0 %v5900
    %6285 = vmatpush.bf16.msra.mxu0 %v5892
    %6286 = vmatpush.bf16.msra.mxu0 %v5884
    %6287 = vmatpush.bf16.msra.mxu0 %v5876
    %6288 = vmatpush.bf16.msra.mxu0 %v5868
    %6289 = vmatpush.bf16.msra.mxu0 %v5860
    %6290 = vmatpush.bf16.msra.mxu0 %v5852
    %6291 = vmatmul.bf16.gmra.mxu0 %v5457
    %v6292 = vpop.f32.mrf.mxu0
    %v6293 = vadd.f32 0.0, %v6292
    %v6294 = vpop.f32.mrf.mxu0
    %6295 = vdwg.mxu0
    %6296 = vmatpush.bf16.msra.mxu0 %v5972
    %6297 = vmatpush.bf16.msra.mxu0 %v5964
    %6298 = vmatpush.bf16.msra.mxu0 %v5956
    %6299 = vmatpush.bf16.msra.mxu0 %v5948
    %6300 = vmatpush.bf16.msra.mxu0 %v5940
    %6301 = vmatpush.bf16.msra.mxu0 %v5932
    %6302 = vmatpush.bf16.msra.mxu0 %v5924
    %6303 = vmatpush.bf16.msra.mxu0 %v5916
    %6304 = vmatmul.bf16.gmra.mxu0 %v5458
    %v6305 = vpop.f32.mrf.mxu0
    %v6306 = vadd.f32 %v6293, %v6305
    %v6307 = vpop.f32.mrf.mxu0
    %6308 = vdwg.mxu0
    %v6309 = vadd.f32 %v5318, %v6124
    %v6310 = vadd.f32 %v5319, %v6150
    %v6311 = vadd.f32 %v5320, %v6176
    %v6312 = vadd.f32 %v5321, %v6202
    %v6313 = vadd.f32 %v5322, %v6228
    %v6314 = vadd.f32 %v5323, %v6254
    %v6315 = vadd.f32 %v5324, %v6280
    %v6316 = vadd.f32 %v5325, %v6306
    %v6317 = vxor.u32 %v6309, 2147483648
    %v6318 = vxor.u32 %v6310, 2147483648
    %v6319 = vmul.f32 %v6317, 1.442695
    %v6320 = vpow.pop %v6319
    %v6321 = vmul.f32 %v6318, 1.442695
    %v6322 = vpow.pop %v6321
    %v6323 = vadd.f32 %v6320, 1.0
    %v6324 = vadd.f32 %v6322, 1.0
    %v6325 = vrcp.pop %v6323
    %v6326 = vmul.f32 %v6323, %v6325
    %v6327 = vsub.f32 1.0, %v6326
    %v6328 = vmul.f32 %v6325, %v6327
    %v6329 = vadd.f32 %v6325, %v6328
    %vm6330 = vweird.f32 %v6323
    %vm6331 = vweird.f32 %v6325
    %vm6332 = vmor %vm6330, %vm6331
    %v6333 = vsel %vm6332, %v6325, %v6329
    %v6334 = vand.u32 2147483647, %v6323
    %vm6335 = vcmp.eq.f32.partialorder %v6334, 8.507059e+37
    %v6336 = vand.u32 %v6323, 2147483648
    %v6337 = vor.u32 1.1754944e-38, %v6336
    %v6338 = vsel %vm6335, %v6337, %v6333
    %v6339 = vmul.f32 1.0, %v6338
    %v6340 = vrcp.pop %v6324
    %v6341 = vmul.f32 %v6324, %v6340
    %v6342 = vsub.f32 1.0, %v6341
    %v6343 = vmul.f32 %v6340, %v6342
    %v6344 = vadd.f32 %v6340, %v6343
    %vm6345 = vweird.f32 %v6324
    %vm6346 = vweird.f32 %v6340
    %vm6347 = vmor %vm6345, %vm6346
    %v6348 = vsel %vm6347, %v6340, %v6344
    %v6349 = vand.u32 2147483647, %v6324
    %vm6350 = vcmp.eq.f32.partialorder %v6349, 8.507059e+37
    %v6351 = vand.u32 %v6324, 2147483648
    %v6352 = vor.u32 1.1754944e-38, %v6351
    %v6353 = vsel %vm6350, %v6352, %v6348
    %v6354 = vmul.f32 1.0, %v6353
    %v6355 = vxor.u32 %v6311, 2147483648
    %v6356 = vxor.u32 %v6312, 2147483648
    %v6357 = vmul.f32 %v6355, 1.442695
    %v6358 = vpow.pop %v6357
    %v6359 = vmul.f32 %v6356, 1.442695
    %v6360 = vpow.pop %v6359
    %v6361 = vadd.f32 %v6358, 1.0
    %v6362 = vadd.f32 %v6360, 1.0
    %v6363 = vrcp.pop %v6361
    %v6364 = vmul.f32 %v6361, %v6363
    %v6365 = vsub.f32 1.0, %v6364
    %v6366 = vmul.f32 %v6363, %v6365
    %v6367 = vadd.f32 %v6363, %v6366
    %vm6368 = vweird.f32 %v6361
    %vm6369 = vweird.f32 %v6363
    %vm6370 = vmor %vm6368, %vm6369
    %v6371 = vsel %vm6370, %v6363, %v6367
    %v6372 = vand.u32 2147483647, %v6361
    %vm6373 = vcmp.eq.f32.partialorder %v6372, 8.507059e+37
    %v6374 = vand.u32 %v6361, 2147483648
    %v6375 = vor.u32 1.1754944e-38, %v6374
    %v6376 = vsel %vm6373, %v6375, %v6371
    %v6377 = vmul.f32 1.0, %v6376
    %v6378 = vrcp.pop %v6362
    %v6379 = vmul.f32 %v6362, %v6378
    %v6380 = vsub.f32 1.0, %v6379
    %v6381 = vmul.f32 %v6378, %v6380
    %v6382 = vadd.f32 %v6378, %v6381
    %vm6383 = vweird.f32 %v6362
    %vm6384 = vweird.f32 %v6378
    %vm6385 = vmor %vm6383, %vm6384
    %v6386 = vsel %vm6385, %v6378, %v6382
    %v6387 = vand.u32 2147483647, %v6362
    %vm6388 = vcmp.eq.f32.partialorder %v6387, 8.507059e+37
    %v6389 = vand.u32 %v6362, 2147483648
    %v6390 = vor.u32 1.1754944e-38, %v6389
    %v6391 = vsel %vm6388, %v6390, %v6386
    %v6392 = vmul.f32 1.0, %v6391
    %v6393 = vtanh.pop %v6313
    %v6394 = vtanh.pop %v6314
    %v6395 = vxor.u32 %v6315, 2147483648
    %v6396 = vxor.u32 %v6316, 2147483648
    %v6397 = vmul.f32 %v6395, 1.442695
    %v6398 = vpow.pop %v6397
    %v6399 = vmul.f32 %v6396, 1.442695
    %v6400 = vpow.pop %v6399
    %v6401 = vadd.f32 %v6398, 1.0
    %v6402 = vadd.f32 %v6400, 1.0
    %v6403 = vrcp.pop %v6401
    %v6404 = vmul.f32 %v6401, %v6403
    %v6405 = vsub.f32 1.0, %v6404
    %v6406 = vmul.f32 %v6403, %v6405
    %v6407 = vadd.f32 %v6403, %v6406
    %vm6408 = vweird.f32 %v6401
    %vm6409 = vweird.f32 %v6403
    %vm6410 = vmor %vm6408, %vm6409
    %v6411 = vsel %vm6410, %v6403, %v6407
    %v6412 = vand.u32 2147483647, %v6401
    %vm6413 = vcmp.eq.f32.partialorder %v6412, 8.507059e+37
    %v6414 = vand.u32 %v6401, 2147483648
    %v6415 = vor.u32 1.1754944e-38, %v6414
    %v6416 = vsel %vm6413, %v6415, %v6411
    %v6417 = vmul.f32 1.0, %v6416
    %v6418 = vrcp.pop %v6402
    %v6419 = vmul.f32 %v6402, %v6418
    %v6420 = vsub.f32 1.0, %v6419
    %v6421 = vmul.f32 %v6418, %v6420
    %v6422 = vadd.f32 %v6418, %v6421
    %vm6423 = vweird.f32 %v6402
    %vm6424 = vweird.f32 %v6418
    %vm6425 = vmor %vm6423, %vm6424
    %v6426 = vsel %vm6425, %v6418, %v6422
    %v6427 = vand.u32 2147483647, %v6402
    %vm6428 = vcmp.eq.f32.partialorder %v6427, 8.507059e+37
    %v6429 = vand.u32 %v6402, 2147483648
    %v6430 = vor.u32 1.1754944e-38, %v6429
    %v6431 = vsel %vm6428, %v6430, %v6426
    %v6432 = vmul.f32 1.0, %v6431
    %v6433 = vmul.f32 %v6377, %v5308
    %v6434 = vmul.f32 %v6392, %v5309
    %v6435 = vmul.f32 %v6339, %v6393
    %v6436 = vmul.f32 %v6354, %v6394
    %v6437 = vadd.f32 %v6433, %v6435
    %v6438 = vadd.f32 %v6434, %v6436
    %v6439 = vtanh.pop %v6437
    %v6440 = vtanh.pop %v6438
    %v6441 = vmul.f32 %v6417, %v6439
    %v6442 = vmul.f32 %v6432, %v6440
    %v6443 = vpack.c.bf16 %v6442, %v6441
    %s6444 = scalar_lea.vmem [#allocation3], 32
    %6445 = vst [vmem:[%s6444] sm:$0xff] %v6443
    %s6446 = scalar_lea.vmem [#allocation2], 320
    %v6447 = vld [vmem:[%s6446] sm:$0xff]
    %v6448 = vld [vmem:[%s6446 + $0x8] sm:$0xff]
    %v6449 = vld [vmem:[%s6446 + $0x10] sm:$0xff]
    %v6450 = vld [vmem:[%s6446 + $0x18] sm:$0xff]
    %v6451 = vld [vmem:[%s6446 + $0x20] sm:$0xff]
    %v6452 = vld [vmem:[%s6446 + $0x28] sm:$0xff]
    %v6453 = vld [vmem:[%s6446 + $0x30] sm:$0xff]
    %v6454 = vld [vmem:[%s6446 + $0x38] sm:$0xff]
    %v6455 = vld [vmem:[#allocation6] sm:$0xff]
    %v6456 = vld [vmem:[#allocation6 + $0x8] sm:$0xff]
    %v6457 = vld [vmem:[#allocation6 + $0x10] sm:$0xff]
    %v6458 = vld [vmem:[#allocation6 + $0x18] sm:$0xff]
    %v6459 = vld [vmem:[#allocation6 + $0x20] sm:$0xff]
    %v6460 = vld [vmem:[#allocation6 + $0x28] sm:$0xff]
    %v6461 = vld [vmem:[#allocation6 + $0x30] sm:$0xff]
    %v6462 = vld [vmem:[#allocation6 + $0x38] sm:$0xff]
    %v6463 = vld [vmem:[#allocation6 + $0x40] sm:$0xff]
    %v6464 = vld [vmem:[#allocation6 + $0x48] sm:$0xff]
    %v6465 = vld [vmem:[#allocation6 + $0x50] sm:$0xff]
    %v6466 = vld [vmem:[#allocation6 + $0x58] sm:$0xff]
    %v6467 = vld [vmem:[#allocation6 + $0x60] sm:$0xff]
    %v6468 = vld [vmem:[#allocation6 + $0x68] sm:$0xff]
    %v6469 = vld [vmem:[#allocation6 + $0x70] sm:$0xff]
    %v6470 = vld [vmem:[#allocation6 + $0x78] sm:$0xff]
    %v6471 = vld [vmem:[#allocation6 + $0x80] sm:$0xff]
    %v6472 = vld [vmem:[#allocation6 + $0x88] sm:$0xff]
    %v6473 = vld [vmem:[#allocation6 + $0x90] sm:$0xff]
    %v6474 = vld [vmem:[#allocation6 + $0x98] sm:$0xff]
    %v6475 = vld [vmem:[#allocation6 + $0xa0] sm:$0xff]
    %v6476 = vld [vmem:[#allocation6 + $0xa8] sm:$0xff]
    %v6477 = vld [vmem:[#allocation6 + $0xb0] sm:$0xff]
    %v6478 = vld [vmem:[#allocation6 + $0xb8] sm:$0xff]
    %v6479 = vld [vmem:[#allocation6 + $0xc0] sm:$0xff]
    %v6480 = vld [vmem:[#allocation6 + $0xc8] sm:$0xff]
    %v6481 = vld [vmem:[#allocation6 + $0xd0] sm:$0xff]
    %v6482 = vld [vmem:[#allocation6 + $0xd8] sm:$0xff]
    %v6483 = vld [vmem:[#allocation6 + $0xe0] sm:$0xff]
    %v6484 = vld [vmem:[#allocation6 + $0xe8] sm:$0xff]
    %v6485 = vld [vmem:[#allocation6 + $0xf0] sm:$0xff]
    %v6486 = vld [vmem:[#allocation6 + $0xf8] sm:$0xff]
    %v6487 = vld [vmem:[#allocation6 + $0x100] sm:$0xff]
    %v6488 = vld [vmem:[#allocation6 + $0x108] sm:$0xff]
    %v6489 = vld [vmem:[#allocation6 + $0x110] sm:$0xff]
    %v6490 = vld [vmem:[#allocation6 + $0x118] sm:$0xff]
    %v6491 = vld [vmem:[#allocation6 + $0x120] sm:$0xff]
    %v6492 = vld [vmem:[#allocation6 + $0x128] sm:$0xff]
    %v6493 = vld [vmem:[#allocation6 + $0x130] sm:$0xff]
    %v6494 = vld [vmem:[#allocation6 + $0x138] sm:$0xff]
    %v6495 = vld [vmem:[#allocation6 + $0x140] sm:$0xff]
    %v6496 = vld [vmem:[#allocation6 + $0x148] sm:$0xff]
    %v6497 = vld [vmem:[#allocation6 + $0x150] sm:$0xff]
    %v6498 = vld [vmem:[#allocation6 + $0x158] sm:$0xff]
    %v6499 = vld [vmem:[#allocation6 + $0x160] sm:$0xff]
    %v6500 = vld [vmem:[#allocation6 + $0x168] sm:$0xff]
    %v6501 = vld [vmem:[#allocation6 + $0x170] sm:$0xff]
    %v6502 = vld [vmem:[#allocation6 + $0x178] sm:$0xff]
    %v6503 = vld [vmem:[#allocation6 + $0x180] sm:$0xff]
    %v6504 = vld [vmem:[#allocation6 + $0x188] sm:$0xff]
    %v6505 = vld [vmem:[#allocation6 + $0x190] sm:$0xff]
    %v6506 = vld [vmem:[#allocation6 + $0x198] sm:$0xff]
    %v6507 = vld [vmem:[#allocation6 + $0x1a0] sm:$0xff]
    %v6508 = vld [vmem:[#allocation6 + $0x1a8] sm:$0xff]
    %v6509 = vld [vmem:[#allocation6 + $0x1b0] sm:$0xff]
    %v6510 = vld [vmem:[#allocation6 + $0x1b8] sm:$0xff]
    %v6511 = vld [vmem:[#allocation6 + $0x1c0] sm:$0xff]
    %v6512 = vld [vmem:[#allocation6 + $0x1c8] sm:$0xff]
    %v6513 = vld [vmem:[#allocation6 + $0x1d0] sm:$0xff]
    %v6514 = vld [vmem:[#allocation6 + $0x1d8] sm:$0xff]
    %v6515 = vld [vmem:[#allocation6 + $0x1e0] sm:$0xff]
    %v6516 = vld [vmem:[#allocation6 + $0x1e8] sm:$0xff]
    %v6517 = vld [vmem:[#allocation6 + $0x1f0] sm:$0xff]
    %v6518 = vld [vmem:[#allocation6 + $0x1f8] sm:$0xff]
    %v6519 = vld [vmem:[#allocation6 + $0x200] sm:$0xff]
    %v6520 = vld [vmem:[#allocation6 + $0x208] sm:$0xff]
    %v6521 = vld [vmem:[#allocation6 + $0x210] sm:$0xff]
    %v6522 = vld [vmem:[#allocation6 + $0x218] sm:$0xff]
    %v6523 = vld [vmem:[#allocation6 + $0x220] sm:$0xff]
    %v6524 = vld [vmem:[#allocation6 + $0x228] sm:$0xff]
    %v6525 = vld [vmem:[#allocation6 + $0x230] sm:$0xff]
    %v6526 = vld [vmem:[#allocation6 + $0x238] sm:$0xff]
    %v6527 = vld [vmem:[#allocation6 + $0x240] sm:$0xff]
    %v6528 = vld [vmem:[#allocation6 + $0x248] sm:$0xff]
    %v6529 = vld [vmem:[#allocation6 + $0x250] sm:$0xff]
    %v6530 = vld [vmem:[#allocation6 + $0x258] sm:$0xff]
    %v6531 = vld [vmem:[#allocation6 + $0x260] sm:$0xff]
    %v6532 = vld [vmem:[#allocation6 + $0x268] sm:$0xff]
    %v6533 = vld [vmem:[#allocation6 + $0x270] sm:$0xff]
    %v6534 = vld [vmem:[#allocation6 + $0x278] sm:$0xff]
    %v6535 = vld [vmem:[#allocation6 + $0x280] sm:$0xff]
    %v6536 = vld [vmem:[#allocation6 + $0x288] sm:$0xff]
    %v6537 = vld [vmem:[#allocation6 + $0x290] sm:$0xff]
    %v6538 = vld [vmem:[#allocation6 + $0x298] sm:$0xff]
    %v6539 = vld [vmem:[#allocation6 + $0x2a0] sm:$0xff]
    %v6540 = vld [vmem:[#allocation6 + $0x2a8] sm:$0xff]
    %v6541 = vld [vmem:[#allocation6 + $0x2b0] sm:$0xff]
    %v6542 = vld [vmem:[#allocation6 + $0x2b8] sm:$0xff]
    %v6543 = vld [vmem:[#allocation6 + $0x2c0] sm:$0xff]
    %v6544 = vld [vmem:[#allocation6 + $0x2c8] sm:$0xff]
    %v6545 = vld [vmem:[#allocation6 + $0x2d0] sm:$0xff]
    %v6546 = vld [vmem:[#allocation6 + $0x2d8] sm:$0xff]
    %v6547 = vld [vmem:[#allocation6 + $0x2e0] sm:$0xff]
    %v6548 = vld [vmem:[#allocation6 + $0x2e8] sm:$0xff]
    %v6549 = vld [vmem:[#allocation6 + $0x2f0] sm:$0xff]
    %v6550 = vld [vmem:[#allocation6 + $0x2f8] sm:$0xff]
    %v6551 = vld [vmem:[#allocation6 + $0x300] sm:$0xff]
    %v6552 = vld [vmem:[#allocation6 + $0x308] sm:$0xff]
    %v6553 = vld [vmem:[#allocation6 + $0x310] sm:$0xff]
    %v6554 = vld [vmem:[#allocation6 + $0x318] sm:$0xff]
    %v6555 = vld [vmem:[#allocation6 + $0x320] sm:$0xff]
    %v6556 = vld [vmem:[#allocation6 + $0x328] sm:$0xff]
    %v6557 = vld [vmem:[#allocation6 + $0x330] sm:$0xff]
    %v6558 = vld [vmem:[#allocation6 + $0x338] sm:$0xff]
    %v6559 = vld [vmem:[#allocation6 + $0x340] sm:$0xff]
    %v6560 = vld [vmem:[#allocation6 + $0x348] sm:$0xff]
    %v6561 = vld [vmem:[#allocation6 + $0x350] sm:$0xff]
    %v6562 = vld [vmem:[#allocation6 + $0x358] sm:$0xff]
    %v6563 = vld [vmem:[#allocation6 + $0x360] sm:$0xff]
    %v6564 = vld [vmem:[#allocation6 + $0x368] sm:$0xff]
    %v6565 = vld [vmem:[#allocation6 + $0x370] sm:$0xff]
    %v6566 = vld [vmem:[#allocation6 + $0x378] sm:$0xff]
    %v6567 = vld [vmem:[#allocation6 + $0x380] sm:$0xff]
    %v6568 = vld [vmem:[#allocation6 + $0x388] sm:$0xff]
    %v6569 = vld [vmem:[#allocation6 + $0x390] sm:$0xff]
    %v6570 = vld [vmem:[#allocation6 + $0x398] sm:$0xff]
    %v6571 = vld [vmem:[#allocation6 + $0x3a0] sm:$0xff]
    %v6572 = vld [vmem:[#allocation6 + $0x3a8] sm:$0xff]
    %v6573 = vld [vmem:[#allocation6 + $0x3b0] sm:$0xff]
    %v6574 = vld [vmem:[#allocation6 + $0x3b8] sm:$0xff]
    %v6575 = vld [vmem:[#allocation6 + $0x3c0] sm:$0xff]
    %v6576 = vld [vmem:[#allocation6 + $0x3c8] sm:$0xff]
    %v6577 = vld [vmem:[#allocation6 + $0x3d0] sm:$0xff]
    %v6578 = vld [vmem:[#allocation6 + $0x3d8] sm:$0xff]
    %v6579 = vld [vmem:[#allocation6 + $0x3e0] sm:$0xff]
    %v6580 = vld [vmem:[#allocation6 + $0x3e8] sm:$0xff]
    %v6581 = vld [vmem:[#allocation6 + $0x3f0] sm:$0xff]
    %v6582 = vld [vmem:[#allocation6 + $0x3f8] sm:$0xff]
    %v6584 = vunpack.c.l.b16 %v6443
    %v6585 = vunpack.c.h.b16 %v6443
    %v6586 = vpack.c.b16 %v6584, %v6584
    %v6587 = vpack.c.b16 %v6585, %v6585
    %v6718 = vunpack.c.l.b16 %v6455
    %v6719 = vunpack.c.h.b16 %v6455
    %v6720 = vunpack.c.l.b16 %v6456
    %v6721 = vunpack.c.h.b16 %v6456
    %v6722 = vunpack.c.l.b16 %v6457
    %v6723 = vunpack.c.h.b16 %v6457
    %v6724 = vunpack.c.l.b16 %v6458
    %v6725 = vunpack.c.h.b16 %v6458
    %v6726 = vunpack.c.l.b16 %v6459
    %v6727 = vunpack.c.h.b16 %v6459
    %v6728 = vunpack.c.l.b16 %v6460
    %v6729 = vunpack.c.h.b16 %v6460
    %v6730 = vunpack.c.l.b16 %v6461
    %v6731 = vunpack.c.h.b16 %v6461
    %v6732 = vunpack.c.l.b16 %v6462
    %v6733 = vunpack.c.h.b16 %v6462
    %v6734 = vunpack.c.l.b16 %v6463
    %v6735 = vunpack.c.h.b16 %v6463
    %v6736 = vunpack.c.l.b16 %v6464
    %v6737 = vunpack.c.h.b16 %v6464
    %v6738 = vunpack.c.l.b16 %v6465
    %v6739 = vunpack.c.h.b16 %v6465
    %v6740 = vunpack.c.l.b16 %v6466
    %v6741 = vunpack.c.h.b16 %v6466
    %v6742 = vunpack.c.l.b16 %v6467
    %v6743 = vunpack.c.h.b16 %v6467
    %v6744 = vunpack.c.l.b16 %v6468
    %v6745 = vunpack.c.h.b16 %v6468
    %v6746 = vunpack.c.l.b16 %v6469
    %v6747 = vunpack.c.h.b16 %v6469
    %v6748 = vunpack.c.l.b16 %v6470
    %v6749 = vunpack.c.h.b16 %v6470
    %v6750 = vunpack.c.l.b16 %v6471
    %v6751 = vunpack.c.h.b16 %v6471
    %v6752 = vunpack.c.l.b16 %v6472
    %v6753 = vunpack.c.h.b16 %v6472
    %v6754 = vunpack.c.l.b16 %v6473
    %v6755 = vunpack.c.h.b16 %v6473
    %v6756 = vunpack.c.l.b16 %v6474
    %v6757 = vunpack.c.h.b16 %v6474
    %v6758 = vunpack.c.l.b16 %v6475
    %v6759 = vunpack.c.h.b16 %v6475
    %v6760 = vunpack.c.l.b16 %v6476
    %v6761 = vunpack.c.h.b16 %v6476
    %v6762 = vunpack.c.l.b16 %v6477
    %v6763 = vunpack.c.h.b16 %v6477
    %v6764 = vunpack.c.l.b16 %v6478
    %v6765 = vunpack.c.h.b16 %v6478
    %v6766 = vunpack.c.l.b16 %v6479
    %v6767 = vunpack.c.h.b16 %v6479
    %v6768 = vunpack.c.l.b16 %v6480
    %v6769 = vunpack.c.h.b16 %v6480
    %v6770 = vunpack.c.l.b16 %v6481
    %v6771 = vunpack.c.h.b16 %v6481
    %v6772 = vunpack.c.l.b16 %v6482
    %v6773 = vunpack.c.h.b16 %v6482
    %v6774 = vunpack.c.l.b16 %v6483
    %v6775 = vunpack.c.h.b16 %v6483
    %v6776 = vunpack.c.l.b16 %v6484
    %v6777 = vunpack.c.h.b16 %v6484
    %v6778 = vunpack.c.l.b16 %v6485
    %v6779 = vunpack.c.h.b16 %v6485
    %v6780 = vunpack.c.l.b16 %v6486
    %v6781 = vunpack.c.h.b16 %v6486
    %v6782 = vunpack.c.l.b16 %v6487
    %v6783 = vunpack.c.h.b16 %v6487
    %v6784 = vunpack.c.l.b16 %v6488
    %v6785 = vunpack.c.h.b16 %v6488
    %v6786 = vunpack.c.l.b16 %v6489
    %v6787 = vunpack.c.h.b16 %v6489
    %v6788 = vunpack.c.l.b16 %v6490
    %v6789 = vunpack.c.h.b16 %v6490
    %v6790 = vunpack.c.l.b16 %v6491
    %v6791 = vunpack.c.h.b16 %v6491
    %v6792 = vunpack.c.l.b16 %v6492
    %v6793 = vunpack.c.h.b16 %v6492
    %v6794 = vunpack.c.l.b16 %v6493
    %v6795 = vunpack.c.h.b16 %v6493
    %v6796 = vunpack.c.l.b16 %v6494
    %v6797 = vunpack.c.h.b16 %v6494
    %v6798 = vunpack.c.l.b16 %v6495
    %v6799 = vunpack.c.h.b16 %v6495
    %v6800 = vunpack.c.l.b16 %v6496
    %v6801 = vunpack.c.h.b16 %v6496
    %v6802 = vunpack.c.l.b16 %v6497
    %v6803 = vunpack.c.h.b16 %v6497
    %v6804 = vunpack.c.l.b16 %v6498
    %v6805 = vunpack.c.h.b16 %v6498
    %v6806 = vunpack.c.l.b16 %v6499
    %v6807 = vunpack.c.h.b16 %v6499
    %v6808 = vunpack.c.l.b16 %v6500
    %v6809 = vunpack.c.h.b16 %v6500
    %v6810 = vunpack.c.l.b16 %v6501
    %v6811 = vunpack.c.h.b16 %v6501
    %v6812 = vunpack.c.l.b16 %v6502
    %v6813 = vunpack.c.h.b16 %v6502
    %v6814 = vunpack.c.l.b16 %v6503
    %v6815 = vunpack.c.h.b16 %v6503
    %v6816 = vunpack.c.l.b16 %v6504
    %v6817 = vunpack.c.h.b16 %v6504
    %v6818 = vunpack.c.l.b16 %v6505
    %v6819 = vunpack.c.h.b16 %v6505
    %v6820 = vunpack.c.l.b16 %v6506
    %v6821 = vunpack.c.h.b16 %v6506
    %v6822 = vunpack.c.l.b16 %v6507
    %v6823 = vunpack.c.h.b16 %v6507
    %v6824 = vunpack.c.l.b16 %v6508
    %v6825 = vunpack.c.h.b16 %v6508
    %v6826 = vunpack.c.l.b16 %v6509
    %v6827 = vunpack.c.h.b16 %v6509
    %v6828 = vunpack.c.l.b16 %v6510
    %v6829 = vunpack.c.h.b16 %v6510
    %v6830 = vunpack.c.l.b16 %v6511
    %v6831 = vunpack.c.h.b16 %v6511
    %v6832 = vunpack.c.l.b16 %v6512
    %v6833 = vunpack.c.h.b16 %v6512
    %v6834 = vunpack.c.l.b16 %v6513
    %v6835 = vunpack.c.h.b16 %v6513
    %v6836 = vunpack.c.l.b16 %v6514
    %v6837 = vunpack.c.h.b16 %v6514
    %v6838 = vunpack.c.l.b16 %v6515
    %v6839 = vunpack.c.h.b16 %v6515
    %v6840 = vunpack.c.l.b16 %v6516
    %v6841 = vunpack.c.h.b16 %v6516
    %v6842 = vunpack.c.l.b16 %v6517
    %v6843 = vunpack.c.h.b16 %v6517
    %v6844 = vunpack.c.l.b16 %v6518
    %v6845 = vunpack.c.h.b16 %v6518
    %v6846 = vunpack.c.l.b16 %v6519
    %v6847 = vunpack.c.h.b16 %v6519
    %v6848 = vunpack.c.l.b16 %v6520
    %v6849 = vunpack.c.h.b16 %v6520
    %v6850 = vunpack.c.l.b16 %v6521
    %v6851 = vunpack.c.h.b16 %v6521
    %v6852 = vunpack.c.l.b16 %v6522
    %v6853 = vunpack.c.h.b16 %v6522
    %v6854 = vunpack.c.l.b16 %v6523
    %v6855 = vunpack.c.h.b16 %v6523
    %v6856 = vunpack.c.l.b16 %v6524
    %v6857 = vunpack.c.h.b16 %v6524
    %v6858 = vunpack.c.l.b16 %v6525
    %v6859 = vunpack.c.h.b16 %v6525
    %v6860 = vunpack.c.l.b16 %v6526
    %v6861 = vunpack.c.h.b16 %v6526
    %v6862 = vunpack.c.l.b16 %v6527
    %v6863 = vunpack.c.h.b16 %v6527
    %v6864 = vunpack.c.l.b16 %v6528
    %v6865 = vunpack.c.h.b16 %v6528
    %v6866 = vunpack.c.l.b16 %v6529
    %v6867 = vunpack.c.h.b16 %v6529
    %v6868 = vunpack.c.l.b16 %v6530
    %v6869 = vunpack.c.h.b16 %v6530
    %v6870 = vunpack.c.l.b16 %v6531
    %v6871 = vunpack.c.h.b16 %v6531
    %v6872 = vunpack.c.l.b16 %v6532
    %v6873 = vunpack.c.h.b16 %v6532
    %v6874 = vunpack.c.l.b16 %v6533
    %v6875 = vunpack.c.h.b16 %v6533
    %v6876 = vunpack.c.l.b16 %v6534
    %v6877 = vunpack.c.h.b16 %v6534
    %v6878 = vunpack.c.l.b16 %v6535
    %v6879 = vunpack.c.h.b16 %v6535
    %v6880 = vunpack.c.l.b16 %v6536
    %v6881 = vunpack.c.h.b16 %v6536
    %v6882 = vunpack.c.l.b16 %v6537
    %v6883 = vunpack.c.h.b16 %v6537
    %v6884 = vunpack.c.l.b16 %v6538
    %v6885 = vunpack.c.h.b16 %v6538
    %v6886 = vunpack.c.l.b16 %v6539
    %v6887 = vunpack.c.h.b16 %v6539
    %v6888 = vunpack.c.l.b16 %v6540
    %v6889 = vunpack.c.h.b16 %v6540
    %v6890 = vunpack.c.l.b16 %v6541
    %v6891 = vunpack.c.h.b16 %v6541
    %v6892 = vunpack.c.l.b16 %v6542
    %v6893 = vunpack.c.h.b16 %v6542
    %v6894 = vunpack.c.l.b16 %v6543
    %v6895 = vunpack.c.h.b16 %v6543
    %v6896 = vunpack.c.l.b16 %v6544
    %v6897 = vunpack.c.h.b16 %v6544
    %v6898 = vunpack.c.l.b16 %v6545
    %v6899 = vunpack.c.h.b16 %v6545
    %v6900 = vunpack.c.l.b16 %v6546
    %v6901 = vunpack.c.h.b16 %v6546
    %v6902 = vunpack.c.l.b16 %v6547
    %v6903 = vunpack.c.h.b16 %v6547
    %v6904 = vunpack.c.l.b16 %v6548
    %v6905 = vunpack.c.h.b16 %v6548
    %v6906 = vunpack.c.l.b16 %v6549
    %v6907 = vunpack.c.h.b16 %v6549
    %v6908 = vunpack.c.l.b16 %v6550
    %v6909 = vunpack.c.h.b16 %v6550
    %v6910 = vunpack.c.l.b16 %v6551
    %v6911 = vunpack.c.h.b16 %v6551
    %v6912 = vunpack.c.l.b16 %v6552
    %v6913 = vunpack.c.h.b16 %v6552
    %v6914 = vunpack.c.l.b16 %v6553
    %v6915 = vunpack.c.h.b16 %v6553
    %v6916 = vunpack.c.l.b16 %v6554
    %v6917 = vunpack.c.h.b16 %v6554
    %v6918 = vunpack.c.l.b16 %v6555
    %v6919 = vunpack.c.h.b16 %v6555
    %v6920 = vunpack.c.l.b16 %v6556
    %v6921 = vunpack.c.h.b16 %v6556
    %v6922 = vunpack.c.l.b16 %v6557
    %v6923 = vunpack.c.h.b16 %v6557
    %v6924 = vunpack.c.l.b16 %v6558
    %v6925 = vunpack.c.h.b16 %v6558
    %v6926 = vunpack.c.l.b16 %v6559
    %v6927 = vunpack.c.h.b16 %v6559
    %v6928 = vunpack.c.l.b16 %v6560
    %v6929 = vunpack.c.h.b16 %v6560
    %v6930 = vunpack.c.l.b16 %v6561
    %v6931 = vunpack.c.h.b16 %v6561
    %v6932 = vunpack.c.l.b16 %v6562
    %v6933 = vunpack.c.h.b16 %v6562
    %v6934 = vunpack.c.l.b16 %v6563
    %v6935 = vunpack.c.h.b16 %v6563
    %v6936 = vunpack.c.l.b16 %v6564
    %v6937 = vunpack.c.h.b16 %v6564
    %v6938 = vunpack.c.l.b16 %v6565
    %v6939 = vunpack.c.h.b16 %v6565
    %v6940 = vunpack.c.l.b16 %v6566
    %v6941 = vunpack.c.h.b16 %v6566
    %v6942 = vunpack.c.l.b16 %v6567
    %v6943 = vunpack.c.h.b16 %v6567
    %v6944 = vunpack.c.l.b16 %v6568
    %v6945 = vunpack.c.h.b16 %v6568
    %v6946 = vunpack.c.l.b16 %v6569
    %v6947 = vunpack.c.h.b16 %v6569
    %v6948 = vunpack.c.l.b16 %v6570
    %v6949 = vunpack.c.h.b16 %v6570
    %v6950 = vunpack.c.l.b16 %v6571
    %v6951 = vunpack.c.h.b16 %v6571
    %v6952 = vunpack.c.l.b16 %v6572
    %v6953 = vunpack.c.h.b16 %v6572
    %v6954 = vunpack.c.l.b16 %v6573
    %v6955 = vunpack.c.h.b16 %v6573
    %v6956 = vunpack.c.l.b16 %v6574
    %v6957 = vunpack.c.h.b16 %v6574
    %v6958 = vunpack.c.l.b16 %v6575
    %v6959 = vunpack.c.h.b16 %v6575
    %v6960 = vunpack.c.l.b16 %v6576
    %v6961 = vunpack.c.h.b16 %v6576
    %v6962 = vunpack.c.l.b16 %v6577
    %v6963 = vunpack.c.h.b16 %v6577
    %v6964 = vunpack.c.l.b16 %v6578
    %v6965 = vunpack.c.h.b16 %v6578
    %v6966 = vunpack.c.l.b16 %v6579
    %v6967 = vunpack.c.h.b16 %v6579
    %v6968 = vunpack.c.l.b16 %v6580
    %v6969 = vunpack.c.h.b16 %v6580
    %v6970 = vunpack.c.l.b16 %v6581
    %v6971 = vunpack.c.h.b16 %v6581
    %v6972 = vunpack.c.l.b16 %v6582
    %v6973 = vunpack.c.h.b16 %v6582
    %v6974 = vpack.c.b16 %v6726, %v6718
    %v6975 = vpack.c.b16 %v6727, %v6719
    %v6976 = vpack.c.b16 %v6728, %v6720
    %v6977 = vpack.c.b16 %v6729, %v6721
    %v6978 = vpack.c.b16 %v6730, %v6722
    %v6979 = vpack.c.b16 %v6731, %v6723
    %v6980 = vpack.c.b16 %v6732, %v6724
    %v6981 = vpack.c.b16 %v6733, %v6725
    %v6982 = vpack.c.b16 %v6742, %v6734
    %v6983 = vpack.c.b16 %v6743, %v6735
    %v6984 = vpack.c.b16 %v6744, %v6736
    %v6985 = vpack.c.b16 %v6745, %v6737
    %v6986 = vpack.c.b16 %v6746, %v6738
    %v6987 = vpack.c.b16 %v6747, %v6739
    %v6988 = vpack.c.b16 %v6748, %v6740
    %v6989 = vpack.c.b16 %v6749, %v6741
    %v6990 = vpack.c.b16 %v6758, %v6750
    %v6991 = vpack.c.b16 %v6759, %v6751
    %v6992 = vpack.c.b16 %v6760, %v6752
    %v6993 = vpack.c.b16 %v6761, %v6753
    %v6994 = vpack.c.b16 %v6762, %v6754
    %v6995 = vpack.c.b16 %v6763, %v6755
    %v6996 = vpack.c.b16 %v6764, %v6756
    %v6997 = vpack.c.b16 %v6765, %v6757
    %v6998 = vpack.c.b16 %v6774, %v6766
    %v6999 = vpack.c.b16 %v6775, %v6767
    %v7000 = vpack.c.b16 %v6776, %v6768
    %v7001 = vpack.c.b16 %v6777, %v6769
    %v7002 = vpack.c.b16 %v6778, %v6770
    %v7003 = vpack.c.b16 %v6779, %v6771
    %v7004 = vpack.c.b16 %v6780, %v6772
    %v7005 = vpack.c.b16 %v6781, %v6773
    %v7006 = vpack.c.b16 %v6790, %v6782
    %v7007 = vpack.c.b16 %v6791, %v6783
    %v7008 = vpack.c.b16 %v6792, %v6784
    %v7009 = vpack.c.b16 %v6793, %v6785
    %v7010 = vpack.c.b16 %v6794, %v6786
    %v7011 = vpack.c.b16 %v6795, %v6787
    %v7012 = vpack.c.b16 %v6796, %v6788
    %v7013 = vpack.c.b16 %v6797, %v6789
    %v7014 = vpack.c.b16 %v6806, %v6798
    %v7015 = vpack.c.b16 %v6807, %v6799
    %v7016 = vpack.c.b16 %v6808, %v6800
    %v7017 = vpack.c.b16 %v6809, %v6801
    %v7018 = vpack.c.b16 %v6810, %v6802
    %v7019 = vpack.c.b16 %v6811, %v6803
    %v7020 = vpack.c.b16 %v6812, %v6804
    %v7021 = vpack.c.b16 %v6813, %v6805
    %v7022 = vpack.c.b16 %v6822, %v6814
    %v7023 = vpack.c.b16 %v6823, %v6815
    %v7024 = vpack.c.b16 %v6824, %v6816
    %v7025 = vpack.c.b16 %v6825, %v6817
    %v7026 = vpack.c.b16 %v6826, %v6818
    %v7027 = vpack.c.b16 %v6827, %v6819
    %v7028 = vpack.c.b16 %v6828, %v6820
    %v7029 = vpack.c.b16 %v6829, %v6821
    %v7030 = vpack.c.b16 %v6838, %v6830
    %v7031 = vpack.c.b16 %v6839, %v6831
    %v7032 = vpack.c.b16 %v6840, %v6832
    %v7033 = vpack.c.b16 %v6841, %v6833
    %v7034 = vpack.c.b16 %v6842, %v6834
    %v7035 = vpack.c.b16 %v6843, %v6835
    %v7036 = vpack.c.b16 %v6844, %v6836
    %v7037 = vpack.c.b16 %v6845, %v6837
    %v7038 = vpack.c.b16 %v6854, %v6846
    %v7039 = vpack.c.b16 %v6855, %v6847
    %v7040 = vpack.c.b16 %v6856, %v6848
    %v7041 = vpack.c.b16 %v6857, %v6849
    %v7042 = vpack.c.b16 %v6858, %v6850
    %v7043 = vpack.c.b16 %v6859, %v6851
    %v7044 = vpack.c.b16 %v6860, %v6852
    %v7045 = vpack.c.b16 %v6861, %v6853
    %v7046 = vpack.c.b16 %v6870, %v6862
    %v7047 = vpack.c.b16 %v6871, %v6863
    %v7048 = vpack.c.b16 %v6872, %v6864
    %v7049 = vpack.c.b16 %v6873, %v6865
    %v7050 = vpack.c.b16 %v6874, %v6866
    %v7051 = vpack.c.b16 %v6875, %v6867
    %v7052 = vpack.c.b16 %v6876, %v6868
    %v7053 = vpack.c.b16 %v6877, %v6869
    %v7054 = vpack.c.b16 %v6886, %v6878
    %v7055 = vpack.c.b16 %v6887, %v6879
    %v7056 = vpack.c.b16 %v6888, %v6880
    %v7057 = vpack.c.b16 %v6889, %v6881
    %v7058 = vpack.c.b16 %v6890, %v6882
    %v7059 = vpack.c.b16 %v6891, %v6883
    %v7060 = vpack.c.b16 %v6892, %v6884
    %v7061 = vpack.c.b16 %v6893, %v6885
    %v7062 = vpack.c.b16 %v6902, %v6894
    %v7063 = vpack.c.b16 %v6903, %v6895
    %v7064 = vpack.c.b16 %v6904, %v6896
    %v7065 = vpack.c.b16 %v6905, %v6897
    %v7066 = vpack.c.b16 %v6906, %v6898
    %v7067 = vpack.c.b16 %v6907, %v6899
    %v7068 = vpack.c.b16 %v6908, %v6900
    %v7069 = vpack.c.b16 %v6909, %v6901
    %v7070 = vpack.c.b16 %v6918, %v6910
    %v7071 = vpack.c.b16 %v6919, %v6911
    %v7072 = vpack.c.b16 %v6920, %v6912
    %v7073 = vpack.c.b16 %v6921, %v6913
    %v7074 = vpack.c.b16 %v6922, %v6914
    %v7075 = vpack.c.b16 %v6923, %v6915
    %v7076 = vpack.c.b16 %v6924, %v6916
    %v7077 = vpack.c.b16 %v6925, %v6917
    %v7078 = vpack.c.b16 %v6934, %v6926
    %v7079 = vpack.c.b16 %v6935, %v6927
    %v7080 = vpack.c.b16 %v6936, %v6928
    %v7081 = vpack.c.b16 %v6937, %v6929
    %v7082 = vpack.c.b16 %v6938, %v6930
    %v7083 = vpack.c.b16 %v6939, %v6931
    %v7084 = vpack.c.b16 %v6940, %v6932
    %v7085 = vpack.c.b16 %v6941, %v6933
    %v7086 = vpack.c.b16 %v6950, %v6942
    %v7087 = vpack.c.b16 %v6951, %v6943
    %v7088 = vpack.c.b16 %v6952, %v6944
    %v7089 = vpack.c.b16 %v6953, %v6945
    %v7090 = vpack.c.b16 %v6954, %v6946
    %v7091 = vpack.c.b16 %v6955, %v6947
    %v7092 = vpack.c.b16 %v6956, %v6948
    %v7093 = vpack.c.b16 %v6957, %v6949
    %v7094 = vpack.c.b16 %v6966, %v6958
    %v7095 = vpack.c.b16 %v6967, %v6959
    %v7096 = vpack.c.b16 %v6968, %v6960
    %v7097 = vpack.c.b16 %v6969, %v6961
    %v7098 = vpack.c.b16 %v6970, %v6962
    %v7099 = vpack.c.b16 %v6971, %v6963
    %v7100 = vpack.c.b16 %v6972, %v6964
    %v7101 = vpack.c.b16 %v6973, %v6965
    %7230 = vmatpush.bf16.msra.mxu0 %v7030
    %7231 = vmatpush.bf16.msra.mxu0 %v7022
    %7232 = vmatpush.bf16.msra.mxu0 %v7014
    %7233 = vmatpush.bf16.msra.mxu0 %v7006
    %7234 = vmatpush.bf16.msra.mxu0 %v6998
    %7235 = vmatpush.bf16.msra.mxu0 %v6990
    %7236 = vmatpush.bf16.msra.mxu0 %v6982
    %7237 = vmatpush.bf16.msra.mxu0 %v6974
    %7238 = vmatmul.bf16.gmra.mxu0 %v6586
    %v7239 = vpop.f32.mrf.mxu0
    %v7240 = vadd.f32 0.0, %v7239
    %v7241 = vpop.f32.mrf.mxu0
    %7242 = vdwg.mxu0
    %7243 = vmatpush.bf16.msra.mxu0 %v7094
    %7244 = vmatpush.bf16.msra.mxu0 %v7086
    %7245 = vmatpush.bf16.msra.mxu0 %v7078
    %7246 = vmatpush.bf16.msra.mxu0 %v7070
    %7247 = vmatpush.bf16.msra.mxu0 %v7062
    %7248 = vmatpush.bf16.msra.mxu0 %v7054
    %7249 = vmatpush.bf16.msra.mxu0 %v7046
    %7250 = vmatpush.bf16.msra.mxu0 %v7038
    %7251 = vmatmul.bf16.gmra.mxu0 %v6587
    %v7252 = vpop.f32.mrf.mxu0
    %v7253 = vadd.f32 %v7240, %v7252
    %v7254 = vpop.f32.mrf.mxu0
    %7255 = vdwg.mxu0
    %7256 = vmatpush.bf16.msra.mxu0 %v7031
    %7257 = vmatpush.bf16.msra.mxu0 %v7023
    %7258 = vmatpush.bf16.msra.mxu0 %v7015
    %7259 = vmatpush.bf16.msra.mxu0 %v7007
    %7260 = vmatpush.bf16.msra.mxu0 %v6999
    %7261 = vmatpush.bf16.msra.mxu0 %v6991
    %7262 = vmatpush.bf16.msra.mxu0 %v6983
    %7263 = vmatpush.bf16.msra.mxu0 %v6975
    %7264 = vmatmul.bf16.gmra.mxu0 %v6586
    %v7265 = vpop.f32.mrf.mxu0
    %v7266 = vadd.f32 0.0, %v7265
    %v7267 = vpop.f32.mrf.mxu0
    %7268 = vdwg.mxu0
    %7269 = vmatpush.bf16.msra.mxu0 %v7095
    %7270 = vmatpush.bf16.msra.mxu0 %v7087
    %7271 = vmatpush.bf16.msra.mxu0 %v7079
    %7272 = vmatpush.bf16.msra.mxu0 %v7071
    %7273 = vmatpush.bf16.msra.mxu0 %v7063
    %7274 = vmatpush.bf16.msra.mxu0 %v7055
    %7275 = vmatpush.bf16.msra.mxu0 %v7047
    %7276 = vmatpush.bf16.msra.mxu0 %v7039
    %7277 = vmatmul.bf16.gmra.mxu0 %v6587
    %v7278 = vpop.f32.mrf.mxu0
    %v7279 = vadd.f32 %v7266, %v7278
    %v7280 = vpop.f32.mrf.mxu0
    %7281 = vdwg.mxu0
    %7282 = vmatpush.bf16.msra.mxu0 %v7032
    %7283 = vmatpush.bf16.msra.mxu0 %v7024
    %7284 = vmatpush.bf16.msra.mxu0 %v7016
    %7285 = vmatpush.bf16.msra.mxu0 %v7008
    %7286 = vmatpush.bf16.msra.mxu0 %v7000
    %7287 = vmatpush.bf16.msra.mxu0 %v6992
    %7288 = vmatpush.bf16.msra.mxu0 %v6984
    %7289 = vmatpush.bf16.msra.mxu0 %v6976
    %7290 = vmatmul.bf16.gmra.mxu0 %v6586
    %v7291 = vpop.f32.mrf.mxu0
    %v7292 = vadd.f32 0.0, %v7291
    %v7293 = vpop.f32.mrf.mxu0
    %7294 = vdwg.mxu0
    %7295 = vmatpush.bf16.msra.mxu0 %v7096
    %7296 = vmatpush.bf16.msra.mxu0 %v7088
    %7297 = vmatpush.bf16.msra.mxu0 %v7080
    %7298 = vmatpush.bf16.msra.mxu0 %v7072
    %7299 = vmatpush.bf16.msra.mxu0 %v7064
    %7300 = vmatpush.bf16.msra.mxu0 %v7056
    %7301 = vmatpush.bf16.msra.mxu0 %v7048
    %7302 = vmatpush.bf16.msra.mxu0 %v7040
    %7303 = vmatmul.bf16.gmra.mxu0 %v6587
    %v7304 = vpop.f32.mrf.mxu0
    %v7305 = vadd.f32 %v7292, %v7304
    %v7306 = vpop.f32.mrf.mxu0
    %7307 = vdwg.mxu0
    %7308 = vmatpush.bf16.msra.mxu0 %v7033
    %7309 = vmatpush.bf16.msra.mxu0 %v7025
    %7310 = vmatpush.bf16.msra.mxu0 %v7017
    %7311 = vmatpush.bf16.msra.mxu0 %v7009
    %7312 = vmatpush.bf16.msra.mxu0 %v7001
    %7313 = vmatpush.bf16.msra.mxu0 %v6993
    %7314 = vmatpush.bf16.msra.mxu0 %v6985
    %7315 = vmatpush.bf16.msra.mxu0 %v6977
    %7316 = vmatmul.bf16.gmra.mxu0 %v6586
    %v7317 = vpop.f32.mrf.mxu0
    %v7318 = vadd.f32 0.0, %v7317
    %v7319 = vpop.f32.mrf.mxu0
    %7320 = vdwg.mxu0
    %7321 = vmatpush.bf16.msra.mxu0 %v7097
    %7322 = vmatpush.bf16.msra.mxu0 %v7089
    %7323 = vmatpush.bf16.msra.mxu0 %v7081
    %7324 = vmatpush.bf16.msra.mxu0 %v7073
    %7325 = vmatpush.bf16.msra.mxu0 %v7065
    %7326 = vmatpush.bf16.msra.mxu0 %v7057
    %7327 = vmatpush.bf16.msra.mxu0 %v7049
    %7328 = vmatpush.bf16.msra.mxu0 %v7041
    %7329 = vmatmul.bf16.gmra.mxu0 %v6587
    %v7330 = vpop.f32.mrf.mxu0
    %v7331 = vadd.f32 %v7318, %v7330
    %v7332 = vpop.f32.mrf.mxu0
    %7333 = vdwg.mxu0
    %7334 = vmatpush.bf16.msra.mxu0 %v7034
    %7335 = vmatpush.bf16.msra.mxu0 %v7026
    %7336 = vmatpush.bf16.msra.mxu0 %v7018
    %7337 = vmatpush.bf16.msra.mxu0 %v7010
    %7338 = vmatpush.bf16.msra.mxu0 %v7002
    %7339 = vmatpush.bf16.msra.mxu0 %v6994
    %7340 = vmatpush.bf16.msra.mxu0 %v6986
    %7341 = vmatpush.bf16.msra.mxu0 %v6978
    %7342 = vmatmul.bf16.gmra.mxu0 %v6586
    %v7343 = vpop.f32.mrf.mxu0
    %v7344 = vadd.f32 0.0, %v7343
    %v7345 = vpop.f32.mrf.mxu0
    %7346 = vdwg.mxu0
    %7347 = vmatpush.bf16.msra.mxu0 %v7098
    %7348 = vmatpush.bf16.msra.mxu0 %v7090
    %7349 = vmatpush.bf16.msra.mxu0 %v7082
    %7350 = vmatpush.bf16.msra.mxu0 %v7074
    %7351 = vmatpush.bf16.msra.mxu0 %v7066
    %7352 = vmatpush.bf16.msra.mxu0 %v7058
    %7353 = vmatpush.bf16.msra.mxu0 %v7050
    %7354 = vmatpush.bf16.msra.mxu0 %v7042
    %7355 = vmatmul.bf16.gmra.mxu0 %v6587
    %v7356 = vpop.f32.mrf.mxu0
    %v7357 = vadd.f32 %v7344, %v7356
    %v7358 = vpop.f32.mrf.mxu0
    %7359 = vdwg.mxu0
    %7360 = vmatpush.bf16.msra.mxu0 %v7035
    %7361 = vmatpush.bf16.msra.mxu0 %v7027
    %7362 = vmatpush.bf16.msra.mxu0 %v7019
    %7363 = vmatpush.bf16.msra.mxu0 %v7011
    %7364 = vmatpush.bf16.msra.mxu0 %v7003
    %7365 = vmatpush.bf16.msra.mxu0 %v6995
    %7366 = vmatpush.bf16.msra.mxu0 %v6987
    %7367 = vmatpush.bf16.msra.mxu0 %v6979
    %7368 = vmatmul.bf16.gmra.mxu0 %v6586
    %v7369 = vpop.f32.mrf.mxu0
    %v7370 = vadd.f32 0.0, %v7369
    %v7371 = vpop.f32.mrf.mxu0
    %7372 = vdwg.mxu0
    %7373 = vmatpush.bf16.msra.mxu0 %v7099
    %7374 = vmatpush.bf16.msra.mxu0 %v7091
    %7375 = vmatpush.bf16.msra.mxu0 %v7083
    %7376 = vmatpush.bf16.msra.mxu0 %v7075
    %7377 = vmatpush.bf16.msra.mxu0 %v7067
    %7378 = vmatpush.bf16.msra.mxu0 %v7059
    %7379 = vmatpush.bf16.msra.mxu0 %v7051
    %7380 = vmatpush.bf16.msra.mxu0 %v7043
    %7381 = vmatmul.bf16.gmra.mxu0 %v6587
    %v7382 = vpop.f32.mrf.mxu0
    %v7383 = vadd.f32 %v7370, %v7382
    %v7384 = vpop.f32.mrf.mxu0
    %7385 = vdwg.mxu0
    %7386 = vmatpush.bf16.msra.mxu0 %v7036
    %7387 = vmatpush.bf16.msra.mxu0 %v7028
    %7388 = vmatpush.bf16.msra.mxu0 %v7020
    %7389 = vmatpush.bf16.msra.mxu0 %v7012
    %7390 = vmatpush.bf16.msra.mxu0 %v7004
    %7391 = vmatpush.bf16.msra.mxu0 %v6996
    %7392 = vmatpush.bf16.msra.mxu0 %v6988
    %7393 = vmatpush.bf16.msra.mxu0 %v6980
    %7394 = vmatmul.bf16.gmra.mxu0 %v6586
    %v7395 = vpop.f32.mrf.mxu0
    %v7396 = vadd.f32 0.0, %v7395
    %v7397 = vpop.f32.mrf.mxu0
    %7398 = vdwg.mxu0
    %7399 = vmatpush.bf16.msra.mxu0 %v7100
    %7400 = vmatpush.bf16.msra.mxu0 %v7092
    %7401 = vmatpush.bf16.msra.mxu0 %v7084
    %7402 = vmatpush.bf16.msra.mxu0 %v7076
    %7403 = vmatpush.bf16.msra.mxu0 %v7068
    %7404 = vmatpush.bf16.msra.mxu0 %v7060
    %7405 = vmatpush.bf16.msra.mxu0 %v7052
    %7406 = vmatpush.bf16.msra.mxu0 %v7044
    %7407 = vmatmul.bf16.gmra.mxu0 %v6587
    %v7408 = vpop.f32.mrf.mxu0
    %v7409 = vadd.f32 %v7396, %v7408
    %v7410 = vpop.f32.mrf.mxu0
    %7411 = vdwg.mxu0
    %7412 = vmatpush.bf16.msra.mxu0 %v7037
    %7413 = vmatpush.bf16.msra.mxu0 %v7029
    %7414 = vmatpush.bf16.msra.mxu0 %v7021
    %7415 = vmatpush.bf16.msra.mxu0 %v7013
    %7416 = vmatpush.bf16.msra.mxu0 %v7005
    %7417 = vmatpush.bf16.msra.mxu0 %v6997
    %7418 = vmatpush.bf16.msra.mxu0 %v6989
    %7419 = vmatpush.bf16.msra.mxu0 %v6981
    %7420 = vmatmul.bf16.gmra.mxu0 %v6586
    %v7421 = vpop.f32.mrf.mxu0
    %v7422 = vadd.f32 0.0, %v7421
    %v7423 = vpop.f32.mrf.mxu0
    %7424 = vdwg.mxu0
    %7425 = vmatpush.bf16.msra.mxu0 %v7101
    %7426 = vmatpush.bf16.msra.mxu0 %v7093
    %7427 = vmatpush.bf16.msra.mxu0 %v7085
    %7428 = vmatpush.bf16.msra.mxu0 %v7077
    %7429 = vmatpush.bf16.msra.mxu0 %v7069
    %7430 = vmatpush.bf16.msra.mxu0 %v7061
    %7431 = vmatpush.bf16.msra.mxu0 %v7053
    %7432 = vmatpush.bf16.msra.mxu0 %v7045
    %7433 = vmatmul.bf16.gmra.mxu0 %v6587
    %v7434 = vpop.f32.mrf.mxu0
    %v7435 = vadd.f32 %v7422, %v7434
    %v7436 = vpop.f32.mrf.mxu0
    %7437 = vdwg.mxu0
    %v7438 = vadd.f32 %v6447, %v7253
    %v7439 = vadd.f32 %v6448, %v7279
    %v7440 = vadd.f32 %v6449, %v7305
    %v7441 = vadd.f32 %v6450, %v7331
    %v7442 = vadd.f32 %v6451, %v7357
    %v7443 = vadd.f32 %v6452, %v7383
    %v7444 = vadd.f32 %v6453, %v7409
    %v7445 = vadd.f32 %v6454, %v7435
    %v7446 = vxor.u32 %v7438, 2147483648
    %v7447 = vxor.u32 %v7439, 2147483648
    %v7448 = vmul.f32 %v7446, 1.442695
    %v7449 = vpow.pop %v7448
    %v7450 = vmul.f32 %v7447, 1.442695
    %v7451 = vpow.pop %v7450
    %v7452 = vadd.f32 %v7449, 1.0
    %v7453 = vadd.f32 %v7451, 1.0
    %v7454 = vrcp.pop %v7452
    %v7455 = vmul.f32 %v7452, %v7454
    %v7456 = vsub.f32 1.0, %v7455
    %v7457 = vmul.f32 %v7454, %v7456
    %v7458 = vadd.f32 %v7454, %v7457
    %vm7459 = vweird.f32 %v7452
    %vm7460 = vweird.f32 %v7454
    %vm7461 = vmor %vm7459, %vm7460
    %v7462 = vsel %vm7461, %v7454, %v7458
    %v7463 = vand.u32 2147483647, %v7452
    %vm7464 = vcmp.eq.f32.partialorder %v7463, 8.507059e+37
    %v7465 = vand.u32 %v7452, 2147483648
    %v7466 = vor.u32 1.1754944e-38, %v7465
    %v7467 = vsel %vm7464, %v7466, %v7462
    %v7468 = vmul.f32 1.0, %v7467
    %v7469 = vrcp.pop %v7453
    %v7470 = vmul.f32 %v7453, %v7469
    %v7471 = vsub.f32 1.0, %v7470
    %v7472 = vmul.f32 %v7469, %v7471
    %v7473 = vadd.f32 %v7469, %v7472
    %vm7474 = vweird.f32 %v7453
    %vm7475 = vweird.f32 %v7469
    %vm7476 = vmor %vm7474, %vm7475
    %v7477 = vsel %vm7476, %v7469, %v7473
    %v7478 = vand.u32 2147483647, %v7453
    %vm7479 = vcmp.eq.f32.partialorder %v7478, 8.507059e+37
    %v7480 = vand.u32 %v7453, 2147483648
    %v7481 = vor.u32 1.1754944e-38, %v7480
    %v7482 = vsel %vm7479, %v7481, %v7477
    %v7483 = vmul.f32 1.0, %v7482
    %v7484 = vxor.u32 %v7440, 2147483648
    %v7485 = vxor.u32 %v7441, 2147483648
    %v7486 = vmul.f32 %v7484, 1.442695
    %v7487 = vpow.pop %v7486
    %v7488 = vmul.f32 %v7485, 1.442695
    %v7489 = vpow.pop %v7488
    %v7490 = vadd.f32 %v7487, 1.0
    %v7491 = vadd.f32 %v7489, 1.0
    %v7492 = vrcp.pop %v7490
    %v7493 = vmul.f32 %v7490, %v7492
    %v7494 = vsub.f32 1.0, %v7493
    %v7495 = vmul.f32 %v7492, %v7494
    %v7496 = vadd.f32 %v7492, %v7495
    %vm7497 = vweird.f32 %v7490
    %vm7498 = vweird.f32 %v7492
    %vm7499 = vmor %vm7497, %vm7498
    %v7500 = vsel %vm7499, %v7492, %v7496
    %v7501 = vand.u32 2147483647, %v7490
    %vm7502 = vcmp.eq.f32.partialorder %v7501, 8.507059e+37
    %v7503 = vand.u32 %v7490, 2147483648
    %v7504 = vor.u32 1.1754944e-38, %v7503
    %v7505 = vsel %vm7502, %v7504, %v7500
    %v7506 = vmul.f32 1.0, %v7505
    %v7507 = vrcp.pop %v7491
    %v7508 = vmul.f32 %v7491, %v7507
    %v7509 = vsub.f32 1.0, %v7508
    %v7510 = vmul.f32 %v7507, %v7509
    %v7511 = vadd.f32 %v7507, %v7510
    %vm7512 = vweird.f32 %v7491
    %vm7513 = vweird.f32 %v7507
    %vm7514 = vmor %vm7512, %vm7513
    %v7515 = vsel %vm7514, %v7507, %v7511
    %v7516 = vand.u32 2147483647, %v7491
    %vm7517 = vcmp.eq.f32.partialorder %v7516, 8.507059e+37
    %v7518 = vand.u32 %v7491, 2147483648
    %v7519 = vor.u32 1.1754944e-38, %v7518
    %v7520 = vsel %vm7517, %v7519, %v7515
    %v7521 = vmul.f32 1.0, %v7520
    %v7522 = vtanh.pop %v7442
    %v7523 = vtanh.pop %v7443
    %v7524 = vxor.u32 %v7444, 2147483648
    %v7525 = vxor.u32 %v7445, 2147483648
    %v7526 = vmul.f32 %v7524, 1.442695
    %v7527 = vpow.pop %v7526
    %v7528 = vmul.f32 %v7525, 1.442695
    %v7529 = vpow.pop %v7528
    %v7530 = vadd.f32 %v7527, 1.0
    %v7531 = vadd.f32 %v7529, 1.0
    %v7532 = vrcp.pop %v7530
    %v7533 = vmul.f32 %v7530, %v7532
    %v7534 = vsub.f32 1.0, %v7533
    %v7535 = vmul.f32 %v7532, %v7534
    %v7536 = vadd.f32 %v7532, %v7535
    %vm7537 = vweird.f32 %v7530
    %vm7538 = vweird.f32 %v7532
    %vm7539 = vmor %vm7537, %vm7538
    %v7540 = vsel %vm7539, %v7532, %v7536
    %v7541 = vand.u32 2147483647, %v7530
    %vm7542 = vcmp.eq.f32.partialorder %v7541, 8.507059e+37
    %v7543 = vand.u32 %v7530, 2147483648
    %v7544 = vor.u32 1.1754944e-38, %v7543
    %v7545 = vsel %vm7542, %v7544, %v7540
    %v7546 = vmul.f32 1.0, %v7545
    %v7547 = vrcp.pop %v7531
    %v7548 = vmul.f32 %v7531, %v7547
    %v7549 = vsub.f32 1.0, %v7548
    %v7550 = vmul.f32 %v7547, %v7549
    %v7551 = vadd.f32 %v7547, %v7550
    %vm7552 = vweird.f32 %v7531
    %vm7553 = vweird.f32 %v7547
    %vm7554 = vmor %vm7552, %vm7553
    %v7555 = vsel %vm7554, %v7547, %v7551
    %v7556 = vand.u32 2147483647, %v7531
    %vm7557 = vcmp.eq.f32.partialorder %v7556, 8.507059e+37
    %v7558 = vand.u32 %v7531, 2147483648
    %v7559 = vor.u32 1.1754944e-38, %v7558
    %v7560 = vsel %vm7557, %v7559, %v7555
    %v7561 = vmul.f32 1.0, %v7560
    %v7562 = vmul.f32 %v7506, %v6437
    %v7563 = vmul.f32 %v7521, %v6438
    %v7564 = vmul.f32 %v7468, %v7522
    %v7565 = vmul.f32 %v7483, %v7523
    %v7566 = vadd.f32 %v7562, %v7564
    %v7567 = vadd.f32 %v7563, %v7565
    %v7568 = vtanh.pop %v7566
    %v7569 = vtanh.pop %v7567
    %v7570 = vmul.f32 %v7546, %v7568
    %v7571 = vmul.f32 %v7561, %v7569
    %v7572 = vpack.c.bf16 %v7571, %v7570
    %s7573 = scalar_lea.vmem [#allocation3], 40
    %7574 = vst [vmem:[%s7573] sm:$0xff] %v7572
    %s7575 = scalar_lea.vmem [#allocation2], 384
    %v7576 = vld [vmem:[%s7575] sm:$0xff]
    %v7577 = vld [vmem:[%s7575 + $0x8] sm:$0xff]
    %v7578 = vld [vmem:[%s7575 + $0x10] sm:$0xff]
    %v7579 = vld [vmem:[%s7575 + $0x18] sm:$0xff]
    %v7580 = vld [vmem:[%s7575 + $0x20] sm:$0xff]
    %v7581 = vld [vmem:[%s7575 + $0x28] sm:$0xff]
    %v7582 = vld [vmem:[%s7575 + $0x30] sm:$0xff]
    %v7583 = vld [vmem:[%s7575 + $0x38] sm:$0xff]
    %v7584 = vld [vmem:[#allocation6] sm:$0xff]
    %v7585 = vld [vmem:[#allocation6 + $0x8] sm:$0xff]
    %v7586 = vld [vmem:[#allocation6 + $0x10] sm:$0xff]
    %v7587 = vld [vmem:[#allocation6 + $0x18] sm:$0xff]
    %v7588 = vld [vmem:[#allocation6 + $0x20] sm:$0xff]
    %v7589 = vld [vmem:[#allocation6 + $0x28] sm:$0xff]
    %v7590 = vld [vmem:[#allocation6 + $0x30] sm:$0xff]
    %v7591 = vld [vmem:[#allocation6 + $0x38] sm:$0xff]
    %v7592 = vld [vmem:[#allocation6 + $0x40] sm:$0xff]
    %v7593 = vld [vmem:[#allocation6 + $0x48] sm:$0xff]
    %v7594 = vld [vmem:[#allocation6 + $0x50] sm:$0xff]
    %v7595 = vld [vmem:[#allocation6 + $0x58] sm:$0xff]
    %v7596 = vld [vmem:[#allocation6 + $0x60] sm:$0xff]
    %v7597 = vld [vmem:[#allocation6 + $0x68] sm:$0xff]
    %v7598 = vld [vmem:[#allocation6 + $0x70] sm:$0xff]
    %v7599 = vld [vmem:[#allocation6 + $0x78] sm:$0xff]
    %v7600 = vld [vmem:[#allocation6 + $0x80] sm:$0xff]
    %v7601 = vld [vmem:[#allocation6 + $0x88] sm:$0xff]
    %v7602 = vld [vmem:[#allocation6 + $0x90] sm:$0xff]
    %v7603 = vld [vmem:[#allocation6 + $0x98] sm:$0xff]
    %v7604 = vld [vmem:[#allocation6 + $0xa0] sm:$0xff]
    %v7605 = vld [vmem:[#allocation6 + $0xa8] sm:$0xff]
    %v7606 = vld [vmem:[#allocation6 + $0xb0] sm:$0xff]
    %v7607 = vld [vmem:[#allocation6 + $0xb8] sm:$0xff]
    %v7608 = vld [vmem:[#allocation6 + $0xc0] sm:$0xff]
    %v7609 = vld [vmem:[#allocation6 + $0xc8] sm:$0xff]
    %v7610 = vld [vmem:[#allocation6 + $0xd0] sm:$0xff]
    %v7611 = vld [vmem:[#allocation6 + $0xd8] sm:$0xff]
    %v7612 = vld [vmem:[#allocation6 + $0xe0] sm:$0xff]
    %v7613 = vld [vmem:[#allocation6 + $0xe8] sm:$0xff]
    %v7614 = vld [vmem:[#allocation6 + $0xf0] sm:$0xff]
    %v7615 = vld [vmem:[#allocation6 + $0xf8] sm:$0xff]
    %v7616 = vld [vmem:[#allocation6 + $0x100] sm:$0xff]
    %v7617 = vld [vmem:[#allocation6 + $0x108] sm:$0xff]
    %v7618 = vld [vmem:[#allocation6 + $0x110] sm:$0xff]
    %v7619 = vld [vmem:[#allocation6 + $0x118] sm:$0xff]
    %v7620 = vld [vmem:[#allocation6 + $0x120] sm:$0xff]
    %v7621 = vld [vmem:[#allocation6 + $0x128] sm:$0xff]
    %v7622 = vld [vmem:[#allocation6 + $0x130] sm:$0xff]
    %v7623 = vld [vmem:[#allocation6 + $0x138] sm:$0xff]
    %v7624 = vld [vmem:[#allocation6 + $0x140] sm:$0xff]
    %v7625 = vld [vmem:[#allocation6 + $0x148] sm:$0xff]
    %v7626 = vld [vmem:[#allocation6 + $0x150] sm:$0xff]
    %v7627 = vld [vmem:[#allocation6 + $0x158] sm:$0xff]
    %v7628 = vld [vmem:[#allocation6 + $0x160] sm:$0xff]
    %v7629 = vld [vmem:[#allocation6 + $0x168] sm:$0xff]
    %v7630 = vld [vmem:[#allocation6 + $0x170] sm:$0xff]
    %v7631 = vld [vmem:[#allocation6 + $0x178] sm:$0xff]
    %v7632 = vld [vmem:[#allocation6 + $0x180] sm:$0xff]
    %v7633 = vld [vmem:[#allocation6 + $0x188] sm:$0xff]
    %v7634 = vld [vmem:[#allocation6 + $0x190] sm:$0xff]
    %v7635 = vld [vmem:[#allocation6 + $0x198] sm:$0xff]
    %v7636 = vld [vmem:[#allocation6 + $0x1a0] sm:$0xff]
    %v7637 = vld [vmem:[#allocation6 + $0x1a8] sm:$0xff]
    %v7638 = vld [vmem:[#allocation6 + $0x1b0] sm:$0xff]
    %v7639 = vld [vmem:[#allocation6 + $0x1b8] sm:$0xff]
    %v7640 = vld [vmem:[#allocation6 + $0x1c0] sm:$0xff]
    %v7641 = vld [vmem:[#allocation6 + $0x1c8] sm:$0xff]
    %v7642 = vld [vmem:[#allocation6 + $0x1d0] sm:$0xff]
    %v7643 = vld [vmem:[#allocation6 + $0x1d8] sm:$0xff]
    %v7644 = vld [vmem:[#allocation6 + $0x1e0] sm:$0xff]
    %v7645 = vld [vmem:[#allocation6 + $0x1e8] sm:$0xff]
    %v7646 = vld [vmem:[#allocation6 + $0x1f0] sm:$0xff]
    %v7647 = vld [vmem:[#allocation6 + $0x1f8] sm:$0xff]
    %v7648 = vld [vmem:[#allocation6 + $0x200] sm:$0xff]
    %v7649 = vld [vmem:[#allocation6 + $0x208] sm:$0xff]
    %v7650 = vld [vmem:[#allocation6 + $0x210] sm:$0xff]
    %v7651 = vld [vmem:[#allocation6 + $0x218] sm:$0xff]
    %v7652 = vld [vmem:[#allocation6 + $0x220] sm:$0xff]
    %v7653 = vld [vmem:[#allocation6 + $0x228] sm:$0xff]
    %v7654 = vld [vmem:[#allocation6 + $0x230] sm:$0xff]
    %v7655 = vld [vmem:[#allocation6 + $0x238] sm:$0xff]
    %v7656 = vld [vmem:[#allocation6 + $0x240] sm:$0xff]
    %v7657 = vld [vmem:[#allocation6 + $0x248] sm:$0xff]
    %v7658 = vld [vmem:[#allocation6 + $0x250] sm:$0xff]
    %v7659 = vld [vmem:[#allocation6 + $0x258] sm:$0xff]
    %v7660 = vld [vmem:[#allocation6 + $0x260] sm:$0xff]
    %v7661 = vld [vmem:[#allocation6 + $0x268] sm:$0xff]
    %v7662 = vld [vmem:[#allocation6 + $0x270] sm:$0xff]
    %v7663 = vld [vmem:[#allocation6 + $0x278] sm:$0xff]
    %v7664 = vld [vmem:[#allocation6 + $0x280] sm:$0xff]
    %v7665 = vld [vmem:[#allocation6 + $0x288] sm:$0xff]
    %v7666 = vld [vmem:[#allocation6 + $0x290] sm:$0xff]
    %v7667 = vld [vmem:[#allocation6 + $0x298] sm:$0xff]
    %v7668 = vld [vmem:[#allocation6 + $0x2a0] sm:$0xff]
    %v7669 = vld [vmem:[#allocation6 + $0x2a8] sm:$0xff]
    %v7670 = vld [vmem:[#allocation6 + $0x2b0] sm:$0xff]
    %v7671 = vld [vmem:[#allocation6 + $0x2b8] sm:$0xff]
    %v7672 = vld [vmem:[#allocation6 + $0x2c0] sm:$0xff]
    %v7673 = vld [vmem:[#allocation6 + $0x2c8] sm:$0xff]
    %v7674 = vld [vmem:[#allocation6 + $0x2d0] sm:$0xff]
    %v7675 = vld [vmem:[#allocation6 + $0x2d8] sm:$0xff]
    %v7676 = vld [vmem:[#allocation6 + $0x2e0] sm:$0xff]
    %v7677 = vld [vmem:[#allocation6 + $0x2e8] sm:$0xff]
    %v7678 = vld [vmem:[#allocation6 + $0x2f0] sm:$0xff]
    %v7679 = vld [vmem:[#allocation6 + $0x2f8] sm:$0xff]
    %v7680 = vld [vmem:[#allocation6 + $0x300] sm:$0xff]
    %v7681 = vld [vmem:[#allocation6 + $0x308] sm:$0xff]
    %v7682 = vld [vmem:[#allocation6 + $0x310] sm:$0xff]
    %v7683 = vld [vmem:[#allocation6 + $0x318] sm:$0xff]
    %v7684 = vld [vmem:[#allocation6 + $0x320] sm:$0xff]
    %v7685 = vld [vmem:[#allocation6 + $0x328] sm:$0xff]
    %v7686 = vld [vmem:[#allocation6 + $0x330] sm:$0xff]
    %v7687 = vld [vmem:[#allocation6 + $0x338] sm:$0xff]
    %v7688 = vld [vmem:[#allocation6 + $0x340] sm:$0xff]
    %v7689 = vld [vmem:[#allocation6 + $0x348] sm:$0xff]
    %v7690 = vld [vmem:[#allocation6 + $0x350] sm:$0xff]
    %v7691 = vld [vmem:[#allocation6 + $0x358] sm:$0xff]
    %v7692 = vld [vmem:[#allocation6 + $0x360] sm:$0xff]
    %v7693 = vld [vmem:[#allocation6 + $0x368] sm:$0xff]
    %v7694 = vld [vmem:[#allocation6 + $0x370] sm:$0xff]
    %v7695 = vld [vmem:[#allocation6 + $0x378] sm:$0xff]
    %v7696 = vld [vmem:[#allocation6 + $0x380] sm:$0xff]
    %v7697 = vld [vmem:[#allocation6 + $0x388] sm:$0xff]
    %v7698 = vld [vmem:[#allocation6 + $0x390] sm:$0xff]
    %v7699 = vld [vmem:[#allocation6 + $0x398] sm:$0xff]
    %v7700 = vld [vmem:[#allocation6 + $0x3a0] sm:$0xff]
    %v7701 = vld [vmem:[#allocation6 + $0x3a8] sm:$0xff]
    %v7702 = vld [vmem:[#allocation6 + $0x3b0] sm:$0xff]
    %v7703 = vld [vmem:[#allocation6 + $0x3b8] sm:$0xff]
    %v7704 = vld [vmem:[#allocation6 + $0x3c0] sm:$0xff]
    %v7705 = vld [vmem:[#allocation6 + $0x3c8] sm:$0xff]
    %v7706 = vld [vmem:[#allocation6 + $0x3d0] sm:$0xff]
    %v7707 = vld [vmem:[#allocation6 + $0x3d8] sm:$0xff]
    %v7708 = vld [vmem:[#allocation6 + $0x3e0] sm:$0xff]
    %v7709 = vld [vmem:[#allocation6 + $0x3e8] sm:$0xff]
    %v7710 = vld [vmem:[#allocation6 + $0x3f0] sm:$0xff]
    %v7711 = vld [vmem:[#allocation6 + $0x3f8] sm:$0xff]
    %v7713 = vunpack.c.l.b16 %v7572
    %v7714 = vunpack.c.h.b16 %v7572
    %v7715 = vpack.c.b16 %v7713, %v7713
    %v7716 = vpack.c.b16 %v7714, %v7714
    %v7847 = vunpack.c.l.b16 %v7584
    %v7848 = vunpack.c.h.b16 %v7584
    %v7849 = vunpack.c.l.b16 %v7585
    %v7850 = vunpack.c.h.b16 %v7585
    %v7851 = vunpack.c.l.b16 %v7586
    %v7852 = vunpack.c.h.b16 %v7586
    %v7853 = vunpack.c.l.b16 %v7587
    %v7854 = vunpack.c.h.b16 %v7587
    %v7855 = vunpack.c.l.b16 %v7588
    %v7856 = vunpack.c.h.b16 %v7588
    %v7857 = vunpack.c.l.b16 %v7589
    %v7858 = vunpack.c.h.b16 %v7589
    %v7859 = vunpack.c.l.b16 %v7590
    %v7860 = vunpack.c.h.b16 %v7590
    %v7861 = vunpack.c.l.b16 %v7591
    %v7862 = vunpack.c.h.b16 %v7591
    %v7863 = vunpack.c.l.b16 %v7592
    %v7864 = vunpack.c.h.b16 %v7592
    %v7865 = vunpack.c.l.b16 %v7593
    %v7866 = vunpack.c.h.b16 %v7593
    %v7867 = vunpack.c.l.b16 %v7594
    %v7868 = vunpack.c.h.b16 %v7594
    %v7869 = vunpack.c.l.b16 %v7595
    %v7870 = vunpack.c.h.b16 %v7595
    %v7871 = vunpack.c.l.b16 %v7596
    %v7872 = vunpack.c.h.b16 %v7596
    %v7873 = vunpack.c.l.b16 %v7597
    %v7874 = vunpack.c.h.b16 %v7597
    %v7875 = vunpack.c.l.b16 %v7598
    %v7876 = vunpack.c.h.b16 %v7598
    %v7877 = vunpack.c.l.b16 %v7599
    %v7878 = vunpack.c.h.b16 %v7599
    %v7879 = vunpack.c.l.b16 %v7600
    %v7880 = vunpack.c.h.b16 %v7600
    %v7881 = vunpack.c.l.b16 %v7601
    %v7882 = vunpack.c.h.b16 %v7601
    %v7883 = vunpack.c.l.b16 %v7602
    %v7884 = vunpack.c.h.b16 %v7602
    %v7885 = vunpack.c.l.b16 %v7603
    %v7886 = vunpack.c.h.b16 %v7603
    %v7887 = vunpack.c.l.b16 %v7604
    %v7888 = vunpack.c.h.b16 %v7604
    %v7889 = vunpack.c.l.b16 %v7605
    %v7890 = vunpack.c.h.b16 %v7605
    %v7891 = vunpack.c.l.b16 %v7606
    %v7892 = vunpack.c.h.b16 %v7606
    %v7893 = vunpack.c.l.b16 %v7607
    %v7894 = vunpack.c.h.b16 %v7607
    %v7895 = vunpack.c.l.b16 %v7608
    %v7896 = vunpack.c.h.b16 %v7608
    %v7897 = vunpack.c.l.b16 %v7609
    %v7898 = vunpack.c.h.b16 %v7609
    %v7899 = vunpack.c.l.b16 %v7610
    %v7900 = vunpack.c.h.b16 %v7610
    %v7901 = vunpack.c.l.b16 %v7611
    %v7902 = vunpack.c.h.b16 %v7611
    %v7903 = vunpack.c.l.b16 %v7612
    %v7904 = vunpack.c.h.b16 %v7612
    %v7905 = vunpack.c.l.b16 %v7613
    %v7906 = vunpack.c.h.b16 %v7613
    %v7907 = vunpack.c.l.b16 %v7614
    %v7908 = vunpack.c.h.b16 %v7614
    %v7909 = vunpack.c.l.b16 %v7615
    %v7910 = vunpack.c.h.b16 %v7615
    %v7911 = vunpack.c.l.b16 %v7616
    %v7912 = vunpack.c.h.b16 %v7616
    %v7913 = vunpack.c.l.b16 %v7617
    %v7914 = vunpack.c.h.b16 %v7617
    %v7915 = vunpack.c.l.b16 %v7618
    %v7916 = vunpack.c.h.b16 %v7618
    %v7917 = vunpack.c.l.b16 %v7619
    %v7918 = vunpack.c.h.b16 %v7619
    %v7919 = vunpack.c.l.b16 %v7620
    %v7920 = vunpack.c.h.b16 %v7620
    %v7921 = vunpack.c.l.b16 %v7621
    %v7922 = vunpack.c.h.b16 %v7621
    %v7923 = vunpack.c.l.b16 %v7622
    %v7924 = vunpack.c.h.b16 %v7622
    %v7925 = vunpack.c.l.b16 %v7623
    %v7926 = vunpack.c.h.b16 %v7623
    %v7927 = vunpack.c.l.b16 %v7624
    %v7928 = vunpack.c.h.b16 %v7624
    %v7929 = vunpack.c.l.b16 %v7625
    %v7930 = vunpack.c.h.b16 %v7625
    %v7931 = vunpack.c.l.b16 %v7626
    %v7932 = vunpack.c.h.b16 %v7626
    %v7933 = vunpack.c.l.b16 %v7627
    %v7934 = vunpack.c.h.b16 %v7627
    %v7935 = vunpack.c.l.b16 %v7628
    %v7936 = vunpack.c.h.b16 %v7628
    %v7937 = vunpack.c.l.b16 %v7629
    %v7938 = vunpack.c.h.b16 %v7629
    %v7939 = vunpack.c.l.b16 %v7630
    %v7940 = vunpack.c.h.b16 %v7630
    %v7941 = vunpack.c.l.b16 %v7631
    %v7942 = vunpack.c.h.b16 %v7631
    %v7943 = vunpack.c.l.b16 %v7632
    %v7944 = vunpack.c.h.b16 %v7632
    %v7945 = vunpack.c.l.b16 %v7633
    %v7946 = vunpack.c.h.b16 %v7633
    %v7947 = vunpack.c.l.b16 %v7634
    %v7948 = vunpack.c.h.b16 %v7634
    %v7949 = vunpack.c.l.b16 %v7635
    %v7950 = vunpack.c.h.b16 %v7635
    %v7951 = vunpack.c.l.b16 %v7636
    %v7952 = vunpack.c.h.b16 %v7636
    %v7953 = vunpack.c.l.b16 %v7637
    %v7954 = vunpack.c.h.b16 %v7637
    %v7955 = vunpack.c.l.b16 %v7638
    %v7956 = vunpack.c.h.b16 %v7638
    %v7957 = vunpack.c.l.b16 %v7639
    %v7958 = vunpack.c.h.b16 %v7639
    %v7959 = vunpack.c.l.b16 %v7640
    %v7960 = vunpack.c.h.b16 %v7640
    %v7961 = vunpack.c.l.b16 %v7641
    %v7962 = vunpack.c.h.b16 %v7641
    %v7963 = vunpack.c.l.b16 %v7642
    %v7964 = vunpack.c.h.b16 %v7642
    %v7965 = vunpack.c.l.b16 %v7643
    %v7966 = vunpack.c.h.b16 %v7643
    %v7967 = vunpack.c.l.b16 %v7644
    %v7968 = vunpack.c.h.b16 %v7644
    %v7969 = vunpack.c.l.b16 %v7645
    %v7970 = vunpack.c.h.b16 %v7645
    %v7971 = vunpack.c.l.b16 %v7646
    %v7972 = vunpack.c.h.b16 %v7646
    %v7973 = vunpack.c.l.b16 %v7647
    %v7974 = vunpack.c.h.b16 %v7647
    %v7975 = vunpack.c.l.b16 %v7648
    %v7976 = vunpack.c.h.b16 %v7648
    %v7977 = vunpack.c.l.b16 %v7649
    %v7978 = vunpack.c.h.b16 %v7649
    %v7979 = vunpack.c.l.b16 %v7650
    %v7980 = vunpack.c.h.b16 %v7650
    %v7981 = vunpack.c.l.b16 %v7651
    %v7982 = vunpack.c.h.b16 %v7651
    %v7983 = vunpack.c.l.b16 %v7652
    %v7984 = vunpack.c.h.b16 %v7652
    %v7985 = vunpack.c.l.b16 %v7653
    %v7986 = vunpack.c.h.b16 %v7653
    %v7987 = vunpack.c.l.b16 %v7654
    %v7988 = vunpack.c.h.b16 %v7654
    %v7989 = vunpack.c.l.b16 %v7655
    %v7990 = vunpack.c.h.b16 %v7655
    %v7991 = vunpack.c.l.b16 %v7656
    %v7992 = vunpack.c.h.b16 %v7656
    %v7993 = vunpack.c.l.b16 %v7657
    %v7994 = vunpack.c.h.b16 %v7657
    %v7995 = vunpack.c.l.b16 %v7658
    %v7996 = vunpack.c.h.b16 %v7658
    %v7997 = vunpack.c.l.b16 %v7659
    %v7998 = vunpack.c.h.b16 %v7659
    %v7999 = vunpack.c.l.b16 %v7660
    %v8000 = vunpack.c.h.b16 %v7660
    %v8001 = vunpack.c.l.b16 %v7661
    %v8002 = vunpack.c.h.b16 %v7661
    %v8003 = vunpack.c.l.b16 %v7662
    %v8004 = vunpack.c.h.b16 %v7662
    %v8005 = vunpack.c.l.b16 %v7663
    %v8006 = vunpack.c.h.b16 %v7663
    %v8007 = vunpack.c.l.b16 %v7664
    %v8008 = vunpack.c.h.b16 %v7664
    %v8009 = vunpack.c.l.b16 %v7665
    %v8010 = vunpack.c.h.b16 %v7665
    %v8011 = vunpack.c.l.b16 %v7666
    %v8012 = vunpack.c.h.b16 %v7666
    %v8013 = vunpack.c.l.b16 %v7667
    %v8014 = vunpack.c.h.b16 %v7667
    %v8015 = vunpack.c.l.b16 %v7668
    %v8016 = vunpack.c.h.b16 %v7668
    %v8017 = vunpack.c.l.b16 %v7669
    %v8018 = vunpack.c.h.b16 %v7669
    %v8019 = vunpack.c.l.b16 %v7670
    %v8020 = vunpack.c.h.b16 %v7670
    %v8021 = vunpack.c.l.b16 %v7671
    %v8022 = vunpack.c.h.b16 %v7671
    %v8023 = vunpack.c.l.b16 %v7672
    %v8024 = vunpack.c.h.b16 %v7672
    %v8025 = vunpack.c.l.b16 %v7673
    %v8026 = vunpack.c.h.b16 %v7673
    %v8027 = vunpack.c.l.b16 %v7674
    %v8028 = vunpack.c.h.b16 %v7674
    %v8029 = vunpack.c.l.b16 %v7675
    %v8030 = vunpack.c.h.b16 %v7675
    %v8031 = vunpack.c.l.b16 %v7676
    %v8032 = vunpack.c.h.b16 %v7676
    %v8033 = vunpack.c.l.b16 %v7677
    %v8034 = vunpack.c.h.b16 %v7677
    %v8035 = vunpack.c.l.b16 %v7678
    %v8036 = vunpack.c.h.b16 %v7678
    %v8037 = vunpack.c.l.b16 %v7679
    %v8038 = vunpack.c.h.b16 %v7679
    %v8039 = vunpack.c.l.b16 %v7680
    %v8040 = vunpack.c.h.b16 %v7680
    %v8041 = vunpack.c.l.b16 %v7681
    %v8042 = vunpack.c.h.b16 %v7681
    %v8043 = vunpack.c.l.b16 %v7682
    %v8044 = vunpack.c.h.b16 %v7682
    %v8045 = vunpack.c.l.b16 %v7683
    %v8046 = vunpack.c.h.b16 %v7683
    %v8047 = vunpack.c.l.b16 %v7684
    %v8048 = vunpack.c.h.b16 %v7684
    %v8049 = vunpack.c.l.b16 %v7685
    %v8050 = vunpack.c.h.b16 %v7685
    %v8051 = vunpack.c.l.b16 %v7686
    %v8052 = vunpack.c.h.b16 %v7686
    %v8053 = vunpack.c.l.b16 %v7687
    %v8054 = vunpack.c.h.b16 %v7687
    %v8055 = vunpack.c.l.b16 %v7688
    %v8056 = vunpack.c.h.b16 %v7688
    %v8057 = vunpack.c.l.b16 %v7689
    %v8058 = vunpack.c.h.b16 %v7689
    %v8059 = vunpack.c.l.b16 %v7690
    %v8060 = vunpack.c.h.b16 %v7690
    %v8061 = vunpack.c.l.b16 %v7691
    %v8062 = vunpack.c.h.b16 %v7691
    %v8063 = vunpack.c.l.b16 %v7692
    %v8064 = vunpack.c.h.b16 %v7692
    %v8065 = vunpack.c.l.b16 %v7693
    %v8066 = vunpack.c.h.b16 %v7693
    %v8067 = vunpack.c.l.b16 %v7694
    %v8068 = vunpack.c.h.b16 %v7694
    %v8069 = vunpack.c.l.b16 %v7695
    %v8070 = vunpack.c.h.b16 %v7695
    %v8071 = vunpack.c.l.b16 %v7696
    %v8072 = vunpack.c.h.b16 %v7696
    %v8073 = vunpack.c.l.b16 %v7697
    %v8074 = vunpack.c.h.b16 %v7697
    %v8075 = vunpack.c.l.b16 %v7698
    %v8076 = vunpack.c.h.b16 %v7698
    %v8077 = vunpack.c.l.b16 %v7699
    %v8078 = vunpack.c.h.b16 %v7699
    %v8079 = vunpack.c.l.b16 %v7700
    %v8080 = vunpack.c.h.b16 %v7700
    %v8081 = vunpack.c.l.b16 %v7701
    %v8082 = vunpack.c.h.b16 %v7701
    %v8083 = vunpack.c.l.b16 %v7702
    %v8084 = vunpack.c.h.b16 %v7702
    %v8085 = vunpack.c.l.b16 %v7703
    %v8086 = vunpack.c.h.b16 %v7703
    %v8087 = vunpack.c.l.b16 %v7704
    %v8088 = vunpack.c.h.b16 %v7704
    %v8089 = vunpack.c.l.b16 %v7705
    %v8090 = vunpack.c.h.b16 %v7705
    %v8091 = vunpack.c.l.b16 %v7706
    %v8092 = vunpack.c.h.b16 %v7706
    %v8093 = vunpack.c.l.b16 %v7707
    %v8094 = vunpack.c.h.b16 %v7707
    %v8095 = vunpack.c.l.b16 %v7708
    %v8096 = vunpack.c.h.b16 %v7708
    %v8097 = vunpack.c.l.b16 %v7709
    %v8098 = vunpack.c.h.b16 %v7709
    %v8099 = vunpack.c.l.b16 %v7710
    %v8100 = vunpack.c.h.b16 %v7710
    %v8101 = vunpack.c.l.b16 %v7711
    %v8102 = vunpack.c.h.b16 %v7711
    %v8103 = vpack.c.b16 %v7855, %v7847
    %v8104 = vpack.c.b16 %v7856, %v7848
    %v8105 = vpack.c.b16 %v7857, %v7849
    %v8106 = vpack.c.b16 %v7858, %v7850
    %v8107 = vpack.c.b16 %v7859, %v7851
    %v8108 = vpack.c.b16 %v7860, %v7852
    %v8109 = vpack.c.b16 %v7861, %v7853
    %v8110 = vpack.c.b16 %v7862, %v7854
    %v8111 = vpack.c.b16 %v7871, %v7863
    %v8112 = vpack.c.b16 %v7872, %v7864
    %v8113 = vpack.c.b16 %v7873, %v7865
    %v8114 = vpack.c.b16 %v7874, %v7866
    %v8115 = vpack.c.b16 %v7875, %v7867
    %v8116 = vpack.c.b16 %v7876, %v7868
    %v8117 = vpack.c.b16 %v7877, %v7869
    %v8118 = vpack.c.b16 %v7878, %v7870
    %v8119 = vpack.c.b16 %v7887, %v7879
    %v8120 = vpack.c.b16 %v7888, %v7880
    %v8121 = vpack.c.b16 %v7889, %v7881
    %v8122 = vpack.c.b16 %v7890, %v7882
    %v8123 = vpack.c.b16 %v7891, %v7883
    %v8124 = vpack.c.b16 %v7892, %v7884
    %v8125 = vpack.c.b16 %v7893, %v7885
    %v8126 = vpack.c.b16 %v7894, %v7886
    %v8127 = vpack.c.b16 %v7903, %v7895
    %v8128 = vpack.c.b16 %v7904, %v7896
    %v8129 = vpack.c.b16 %v7905, %v7897
    %v8130 = vpack.c.b16 %v7906, %v7898
    %v8131 = vpack.c.b16 %v7907, %v7899
    %v8132 = vpack.c.b16 %v7908, %v7900
    %v8133 = vpack.c.b16 %v7909, %v7901
    %v8134 = vpack.c.b16 %v7910, %v7902
    %v8135 = vpack.c.b16 %v7919, %v7911
    %v8136 = vpack.c.b16 %v7920, %v7912
    %v8137 = vpack.c.b16 %v7921, %v7913
    %v8138 = vpack.c.b16 %v7922, %v7914
    %v8139 = vpack.c.b16 %v7923, %v7915
    %v8140 = vpack.c.b16 %v7924, %v7916
    %v8141 = vpack.c.b16 %v7925, %v7917
    %v8142 = vpack.c.b16 %v7926, %v7918
    %v8143 = vpack.c.b16 %v7935, %v7927
    %v8144 = vpack.c.b16 %v7936, %v7928
    %v8145 = vpack.c.b16 %v7937, %v7929
    %v8146 = vpack.c.b16 %v7938, %v7930
    %v8147 = vpack.c.b16 %v7939, %v7931
    %v8148 = vpack.c.b16 %v7940, %v7932
    %v8149 = vpack.c.b16 %v7941, %v7933
    %v8150 = vpack.c.b16 %v7942, %v7934
    %v8151 = vpack.c.b16 %v7951, %v7943
    %v8152 = vpack.c.b16 %v7952, %v7944
    %v8153 = vpack.c.b16 %v7953, %v7945
    %v8154 = vpack.c.b16 %v7954, %v7946
    %v8155 = vpack.c.b16 %v7955, %v7947
    %v8156 = vpack.c.b16 %v7956, %v7948
    %v8157 = vpack.c.b16 %v7957, %v7949
    %v8158 = vpack.c.b16 %v7958, %v7950
    %v8159 = vpack.c.b16 %v7967, %v7959
    %v8160 = vpack.c.b16 %v7968, %v7960
    %v8161 = vpack.c.b16 %v7969, %v7961
    %v8162 = vpack.c.b16 %v7970, %v7962
    %v8163 = vpack.c.b16 %v7971, %v7963
    %v8164 = vpack.c.b16 %v7972, %v7964
    %v8165 = vpack.c.b16 %v7973, %v7965
    %v8166 = vpack.c.b16 %v7974, %v7966
    %v8167 = vpack.c.b16 %v7983, %v7975
    %v8168 = vpack.c.b16 %v7984, %v7976
    %v8169 = vpack.c.b16 %v7985, %v7977
    %v8170 = vpack.c.b16 %v7986, %v7978
    %v8171 = vpack.c.b16 %v7987, %v7979
    %v8172 = vpack.c.b16 %v7988, %v7980
    %v8173 = vpack.c.b16 %v7989, %v7981
    %v8174 = vpack.c.b16 %v7990, %v7982
    %v8175 = vpack.c.b16 %v7999, %v7991
    %v8176 = vpack.c.b16 %v8000, %v7992
    %v8177 = vpack.c.b16 %v8001, %v7993
    %v8178 = vpack.c.b16 %v8002, %v7994
    %v8179 = vpack.c.b16 %v8003, %v7995
    %v8180 = vpack.c.b16 %v8004, %v7996
    %v8181 = vpack.c.b16 %v8005, %v7997
    %v8182 = vpack.c.b16 %v8006, %v7998
    %v8183 = vpack.c.b16 %v8015, %v8007
    %v8184 = vpack.c.b16 %v8016, %v8008
    %v8185 = vpack.c.b16 %v8017, %v8009
    %v8186 = vpack.c.b16 %v8018, %v8010
    %v8187 = vpack.c.b16 %v8019, %v8011
    %v8188 = vpack.c.b16 %v8020, %v8012
    %v8189 = vpack.c.b16 %v8021, %v8013
    %v8190 = vpack.c.b16 %v8022, %v8014
    %v8191 = vpack.c.b16 %v8031, %v8023
    %v8192 = vpack.c.b16 %v8032, %v8024
    %v8193 = vpack.c.b16 %v8033, %v8025
    %v8194 = vpack.c.b16 %v8034, %v8026
    %v8195 = vpack.c.b16 %v8035, %v8027
    %v8196 = vpack.c.b16 %v8036, %v8028
    %v8197 = vpack.c.b16 %v8037, %v8029
    %v8198 = vpack.c.b16 %v8038, %v8030
    %v8199 = vpack.c.b16 %v8047, %v8039
    %v8200 = vpack.c.b16 %v8048, %v8040
    %v8201 = vpack.c.b16 %v8049, %v8041
    %v8202 = vpack.c.b16 %v8050, %v8042
    %v8203 = vpack.c.b16 %v8051, %v8043
    %v8204 = vpack.c.b16 %v8052, %v8044
    %v8205 = vpack.c.b16 %v8053, %v8045
    %v8206 = vpack.c.b16 %v8054, %v8046
    %v8207 = vpack.c.b16 %v8063, %v8055
    %v8208 = vpack.c.b16 %v8064, %v8056
    %v8209 = vpack.c.b16 %v8065, %v8057
    %v8210 = vpack.c.b16 %v8066, %v8058
    %v8211 = vpack.c.b16 %v8067, %v8059
    %v8212 = vpack.c.b16 %v8068, %v8060
    %v8213 = vpack.c.b16 %v8069, %v8061
    %v8214 = vpack.c.b16 %v8070, %v8062
    %v8215 = vpack.c.b16 %v8079, %v8071
    %v8216 = vpack.c.b16 %v8080, %v8072
    %v8217 = vpack.c.b16 %v8081, %v8073
    %v8218 = vpack.c.b16 %v8082, %v8074
    %v8219 = vpack.c.b16 %v8083, %v8075
    %v8220 = vpack.c.b16 %v8084, %v8076
    %v8221 = vpack.c.b16 %v8085, %v8077
    %v8222 = vpack.c.b16 %v8086, %v8078
    %v8223 = vpack.c.b16 %v8095, %v8087
    %v8224 = vpack.c.b16 %v8096, %v8088
    %v8225 = vpack.c.b16 %v8097, %v8089
    %v8226 = vpack.c.b16 %v8098, %v8090
    %v8227 = vpack.c.b16 %v8099, %v8091
    %v8228 = vpack.c.b16 %v8100, %v8092
    %v8229 = vpack.c.b16 %v8101, %v8093
    %v8230 = vpack.c.b16 %v8102, %v8094
    %8359 = vmatpush.bf16.msra.mxu0 %v8159
    %8360 = vmatpush.bf16.msra.mxu0 %v8151
    %8361 = vmatpush.bf16.msra.mxu0 %v8143
    %8362 = vmatpush.bf16.msra.mxu0 %v8135
    %8363 = vmatpush.bf16.msra.mxu0 %v8127
    %8364 = vmatpush.bf16.msra.mxu0 %v8119
    %8365 = vmatpush.bf16.msra.mxu0 %v8111
    %8366 = vmatpush.bf16.msra.mxu0 %v8103
    %8367 = vmatmul.bf16.gmra.mxu0 %v7715
    %v8368 = vpop.f32.mrf.mxu0
    %v8369 = vadd.f32 0.0, %v8368
    %v8370 = vpop.f32.mrf.mxu0
    %8371 = vdwg.mxu0
    %8372 = vmatpush.bf16.msra.mxu0 %v8223
    %8373 = vmatpush.bf16.msra.mxu0 %v8215
    %8374 = vmatpush.bf16.msra.mxu0 %v8207
    %8375 = vmatpush.bf16.msra.mxu0 %v8199
    %8376 = vmatpush.bf16.msra.mxu0 %v8191
    %8377 = vmatpush.bf16.msra.mxu0 %v8183
    %8378 = vmatpush.bf16.msra.mxu0 %v8175
    %8379 = vmatpush.bf16.msra.mxu0 %v8167
    %8380 = vmatmul.bf16.gmra.mxu0 %v7716
    %v8381 = vpop.f32.mrf.mxu0
    %v8382 = vadd.f32 %v8369, %v8381
    %v8383 = vpop.f32.mrf.mxu0
    %8384 = vdwg.mxu0
    %8385 = vmatpush.bf16.msra.mxu0 %v8160
    %8386 = vmatpush.bf16.msra.mxu0 %v8152
    %8387 = vmatpush.bf16.msra.mxu0 %v8144
    %8388 = vmatpush.bf16.msra.mxu0 %v8136
    %8389 = vmatpush.bf16.msra.mxu0 %v8128
    %8390 = vmatpush.bf16.msra.mxu0 %v8120
    %8391 = vmatpush.bf16.msra.mxu0 %v8112
    %8392 = vmatpush.bf16.msra.mxu0 %v8104
    %8393 = vmatmul.bf16.gmra.mxu0 %v7715
    %v8394 = vpop.f32.mrf.mxu0
    %v8395 = vadd.f32 0.0, %v8394
    %v8396 = vpop.f32.mrf.mxu0
    %8397 = vdwg.mxu0
    %8398 = vmatpush.bf16.msra.mxu0 %v8224
    %8399 = vmatpush.bf16.msra.mxu0 %v8216
    %8400 = vmatpush.bf16.msra.mxu0 %v8208
    %8401 = vmatpush.bf16.msra.mxu0 %v8200
    %8402 = vmatpush.bf16.msra.mxu0 %v8192
    %8403 = vmatpush.bf16.msra.mxu0 %v8184
    %8404 = vmatpush.bf16.msra.mxu0 %v8176
    %8405 = vmatpush.bf16.msra.mxu0 %v8168
    %8406 = vmatmul.bf16.gmra.mxu0 %v7716
    %v8407 = vpop.f32.mrf.mxu0
    %v8408 = vadd.f32 %v8395, %v8407
    %v8409 = vpop.f32.mrf.mxu0
    %8410 = vdwg.mxu0
    %8411 = vmatpush.bf16.msra.mxu0 %v8161
    %8412 = vmatpush.bf16.msra.mxu0 %v8153
    %8413 = vmatpush.bf16.msra.mxu0 %v8145
    %8414 = vmatpush.bf16.msra.mxu0 %v8137
    %8415 = vmatpush.bf16.msra.mxu0 %v8129
    %8416 = vmatpush.bf16.msra.mxu0 %v8121
    %8417 = vmatpush.bf16.msra.mxu0 %v8113
    %8418 = vmatpush.bf16.msra.mxu0 %v8105
    %8419 = vmatmul.bf16.gmra.mxu0 %v7715
    %v8420 = vpop.f32.mrf.mxu0
    %v8421 = vadd.f32 0.0, %v8420
    %v8422 = vpop.f32.mrf.mxu0
    %8423 = vdwg.mxu0
    %8424 = vmatpush.bf16.msra.mxu0 %v8225
    %8425 = vmatpush.bf16.msra.mxu0 %v8217
    %8426 = vmatpush.bf16.msra.mxu0 %v8209
    %8427 = vmatpush.bf16.msra.mxu0 %v8201
    %8428 = vmatpush.bf16.msra.mxu0 %v8193
    %8429 = vmatpush.bf16.msra.mxu0 %v8185
    %8430 = vmatpush.bf16.msra.mxu0 %v8177
    %8431 = vmatpush.bf16.msra.mxu0 %v8169
    %8432 = vmatmul.bf16.gmra.mxu0 %v7716
    %v8433 = vpop.f32.mrf.mxu0
    %v8434 = vadd.f32 %v8421, %v8433
    %v8435 = vpop.f32.mrf.mxu0
    %8436 = vdwg.mxu0
    %8437 = vmatpush.bf16.msra.mxu0 %v8162
    %8438 = vmatpush.bf16.msra.mxu0 %v8154
    %8439 = vmatpush.bf16.msra.mxu0 %v8146
    %8440 = vmatpush.bf16.msra.mxu0 %v8138
    %8441 = vmatpush.bf16.msra.mxu0 %v8130
    %8442 = vmatpush.bf16.msra.mxu0 %v8122
    %8443 = vmatpush.bf16.msra.mxu0 %v8114
    %8444 = vmatpush.bf16.msra.mxu0 %v8106
    %8445 = vmatmul.bf16.gmra.mxu0 %v7715
    %v8446 = vpop.f32.mrf.mxu0
    %v8447 = vadd.f32 0.0, %v8446
    %v8448 = vpop.f32.mrf.mxu0
    %8449 = vdwg.mxu0
    %8450 = vmatpush.bf16.msra.mxu0 %v8226
    %8451 = vmatpush.bf16.msra.mxu0 %v8218
    %8452 = vmatpush.bf16.msra.mxu0 %v8210
    %8453 = vmatpush.bf16.msra.mxu0 %v8202
    %8454 = vmatpush.bf16.msra.mxu0 %v8194
    %8455 = vmatpush.bf16.msra.mxu0 %v8186
    %8456 = vmatpush.bf16.msra.mxu0 %v8178
    %8457 = vmatpush.bf16.msra.mxu0 %v8170
    %8458 = vmatmul.bf16.gmra.mxu0 %v7716
    %v8459 = vpop.f32.mrf.mxu0
    %v8460 = vadd.f32 %v8447, %v8459
    %v8461 = vpop.f32.mrf.mxu0
    %8462 = vdwg.mxu0
    %8463 = vmatpush.bf16.msra.mxu0 %v8163
    %8464 = vmatpush.bf16.msra.mxu0 %v8155
    %8465 = vmatpush.bf16.msra.mxu0 %v8147
    %8466 = vmatpush.bf16.msra.mxu0 %v8139
    %8467 = vmatpush.bf16.msra.mxu0 %v8131
    %8468 = vmatpush.bf16.msra.mxu0 %v8123
    %8469 = vmatpush.bf16.msra.mxu0 %v8115
    %8470 = vmatpush.bf16.msra.mxu0 %v8107
    %8471 = vmatmul.bf16.gmra.mxu0 %v7715
    %v8472 = vpop.f32.mrf.mxu0
    %v8473 = vadd.f32 0.0, %v8472
    %v8474 = vpop.f32.mrf.mxu0
    %8475 = vdwg.mxu0
    %8476 = vmatpush.bf16.msra.mxu0 %v8227
    %8477 = vmatpush.bf16.msra.mxu0 %v8219
    %8478 = vmatpush.bf16.msra.mxu0 %v8211
    %8479 = vmatpush.bf16.msra.mxu0 %v8203
    %8480 = vmatpush.bf16.msra.mxu0 %v8195
    %8481 = vmatpush.bf16.msra.mxu0 %v8187
    %8482 = vmatpush.bf16.msra.mxu0 %v8179
    %8483 = vmatpush.bf16.msra.mxu0 %v8171
    %8484 = vmatmul.bf16.gmra.mxu0 %v7716
    %v8485 = vpop.f32.mrf.mxu0
    %v8486 = vadd.f32 %v8473, %v8485
    %v8487 = vpop.f32.mrf.mxu0
    %8488 = vdwg.mxu0
    %8489 = vmatpush.bf16.msra.mxu0 %v8164
    %8490 = vmatpush.bf16.msra.mxu0 %v8156
    %8491 = vmatpush.bf16.msra.mxu0 %v8148
    %8492 = vmatpush.bf16.msra.mxu0 %v8140
    %8493 = vmatpush.bf16.msra.mxu0 %v8132
    %8494 = vmatpush.bf16.msra.mxu0 %v8124
    %8495 = vmatpush.bf16.msra.mxu0 %v8116
    %8496 = vmatpush.bf16.msra.mxu0 %v8108
    %8497 = vmatmul.bf16.gmra.mxu0 %v7715
    %v8498 = vpop.f32.mrf.mxu0
    %v8499 = vadd.f32 0.0, %v8498
    %v8500 = vpop.f32.mrf.mxu0
    %8501 = vdwg.mxu0
    %8502 = vmatpush.bf16.msra.mxu0 %v8228
    %8503 = vmatpush.bf16.msra.mxu0 %v8220
    %8504 = vmatpush.bf16.msra.mxu0 %v8212
    %8505 = vmatpush.bf16.msra.mxu0 %v8204
    %8506 = vmatpush.bf16.msra.mxu0 %v8196
    %8507 = vmatpush.bf16.msra.mxu0 %v8188
    %8508 = vmatpush.bf16.msra.mxu0 %v8180
    %8509 = vmatpush.bf16.msra.mxu0 %v8172
    %8510 = vmatmul.bf16.gmra.mxu0 %v7716
    %v8511 = vpop.f32.mrf.mxu0
    %v8512 = vadd.f32 %v8499, %v8511
    %v8513 = vpop.f32.mrf.mxu0
    %8514 = vdwg.mxu0
    %8515 = vmatpush.bf16.msra.mxu0 %v8165
    %8516 = vmatpush.bf16.msra.mxu0 %v8157
    %8517 = vmatpush.bf16.msra.mxu0 %v8149
    %8518 = vmatpush.bf16.msra.mxu0 %v8141
    %8519 = vmatpush.bf16.msra.mxu0 %v8133
    %8520 = vmatpush.bf16.msra.mxu0 %v8125
    %8521 = vmatpush.bf16.msra.mxu0 %v8117
    %8522 = vmatpush.bf16.msra.mxu0 %v8109
    %8523 = vmatmul.bf16.gmra.mxu0 %v7715
    %v8524 = vpop.f32.mrf.mxu0
    %v8525 = vadd.f32 0.0, %v8524
    %v8526 = vpop.f32.mrf.mxu0
    %8527 = vdwg.mxu0
    %8528 = vmatpush.bf16.msra.mxu0 %v8229
    %8529 = vmatpush.bf16.msra.mxu0 %v8221
    %8530 = vmatpush.bf16.msra.mxu0 %v8213
    %8531 = vmatpush.bf16.msra.mxu0 %v8205
    %8532 = vmatpush.bf16.msra.mxu0 %v8197
    %8533 = vmatpush.bf16.msra.mxu0 %v8189
    %8534 = vmatpush.bf16.msra.mxu0 %v8181
    %8535 = vmatpush.bf16.msra.mxu0 %v8173
    %8536 = vmatmul.bf16.gmra.mxu0 %v7716
    %v8537 = vpop.f32.mrf.mxu0
    %v8538 = vadd.f32 %v8525, %v8537
    %v8539 = vpop.f32.mrf.mxu0
    %8540 = vdwg.mxu0
    %8541 = vmatpush.bf16.msra.mxu0 %v8166
    %8542 = vmatpush.bf16.msra.mxu0 %v8158
    %8543 = vmatpush.bf16.msra.mxu0 %v8150
    %8544 = vmatpush.bf16.msra.mxu0 %v8142
    %8545 = vmatpush.bf16.msra.mxu0 %v8134
    %8546 = vmatpush.bf16.msra.mxu0 %v8126
    %8547 = vmatpush.bf16.msra.mxu0 %v8118
    %8548 = vmatpush.bf16.msra.mxu0 %v8110
    %8549 = vmatmul.bf16.gmra.mxu0 %v7715
    %v8550 = vpop.f32.mrf.mxu0
    %v8551 = vadd.f32 0.0, %v8550
    %v8552 = vpop.f32.mrf.mxu0
    %8553 = vdwg.mxu0
    %8554 = vmatpush.bf16.msra.mxu0 %v8230
    %8555 = vmatpush.bf16.msra.mxu0 %v8222
    %8556 = vmatpush.bf16.msra.mxu0 %v8214
    %8557 = vmatpush.bf16.msra.mxu0 %v8206
    %8558 = vmatpush.bf16.msra.mxu0 %v8198
    %8559 = vmatpush.bf16.msra.mxu0 %v8190
    %8560 = vmatpush.bf16.msra.mxu0 %v8182
    %8561 = vmatpush.bf16.msra.mxu0 %v8174
    %8562 = vmatmul.bf16.gmra.mxu0 %v7716
    %v8563 = vpop.f32.mrf.mxu0
    %v8564 = vadd.f32 %v8551, %v8563
    %v8565 = vpop.f32.mrf.mxu0
    %8566 = vdwg.mxu0
    %v8567 = vadd.f32 %v7576, %v8382
    %v8568 = vadd.f32 %v7577, %v8408
    %v8569 = vadd.f32 %v7578, %v8434
    %v8570 = vadd.f32 %v7579, %v8460
    %v8571 = vadd.f32 %v7580, %v8486
    %v8572 = vadd.f32 %v7581, %v8512
    %v8573 = vadd.f32 %v7582, %v8538
    %v8574 = vadd.f32 %v7583, %v8564
    %v8575 = vxor.u32 %v8567, 2147483648
    %v8576 = vxor.u32 %v8568, 2147483648
    %v8577 = vmul.f32 %v8575, 1.442695
    %v8578 = vpow.pop %v8577
    %v8579 = vmul.f32 %v8576, 1.442695
    %v8580 = vpow.pop %v8579
    %v8581 = vadd.f32 %v8578, 1.0
    %v8582 = vadd.f32 %v8580, 1.0
    %v8583 = vrcp.pop %v8581
    %v8584 = vmul.f32 %v8581, %v8583
    %v8585 = vsub.f32 1.0, %v8584
    %v8586 = vmul.f32 %v8583, %v8585
    %v8587 = vadd.f32 %v8583, %v8586
    %vm8588 = vweird.f32 %v8581
    %vm8589 = vweird.f32 %v8583
    %vm8590 = vmor %vm8588, %vm8589
    %v8591 = vsel %vm8590, %v8583, %v8587
    %v8592 = vand.u32 2147483647, %v8581
    %vm8593 = vcmp.eq.f32.partialorder %v8592, 8.507059e+37
    %v8594 = vand.u32 %v8581, 2147483648
    %v8595 = vor.u32 1.1754944e-38, %v8594
    %v8596 = vsel %vm8593, %v8595, %v8591
    %v8597 = vmul.f32 1.0, %v8596
    %v8598 = vrcp.pop %v8582
    %v8599 = vmul.f32 %v8582, %v8598
    %v8600 = vsub.f32 1.0, %v8599
    %v8601 = vmul.f32 %v8598, %v8600
    %v8602 = vadd.f32 %v8598, %v8601
    %vm8603 = vweird.f32 %v8582
    %vm8604 = vweird.f32 %v8598
    %vm8605 = vmor %vm8603, %vm8604
    %v8606 = vsel %vm8605, %v8598, %v8602
    %v8607 = vand.u32 2147483647, %v8582
    %vm8608 = vcmp.eq.f32.partialorder %v8607, 8.507059e+37
    %v8609 = vand.u32 %v8582, 2147483648
    %v8610 = vor.u32 1.1754944e-38, %v8609
    %v8611 = vsel %vm8608, %v8610, %v8606
    %v8612 = vmul.f32 1.0, %v8611
    %v8613 = vxor.u32 %v8569, 2147483648
    %v8614 = vxor.u32 %v8570, 2147483648
    %v8615 = vmul.f32 %v8613, 1.442695
    %v8616 = vpow.pop %v8615
    %v8617 = vmul.f32 %v8614, 1.442695
    %v8618 = vpow.pop %v8617
    %v8619 = vadd.f32 %v8616, 1.0
    %v8620 = vadd.f32 %v8618, 1.0
    %v8621 = vrcp.pop %v8619
    %v8622 = vmul.f32 %v8619, %v8621
    %v8623 = vsub.f32 1.0, %v8622
    %v8624 = vmul.f32 %v8621, %v8623
    %v8625 = vadd.f32 %v8621, %v8624
    %vm8626 = vweird.f32 %v8619
    %vm8627 = vweird.f32 %v8621
    %vm8628 = vmor %vm8626, %vm8627
    %v8629 = vsel %vm8628, %v8621, %v8625
    %v8630 = vand.u32 2147483647, %v8619
    %vm8631 = vcmp.eq.f32.partialorder %v8630, 8.507059e+37
    %v8632 = vand.u32 %v8619, 2147483648
    %v8633 = vor.u32 1.1754944e-38, %v8632
    %v8634 = vsel %vm8631, %v8633, %v8629
    %v8635 = vmul.f32 1.0, %v8634
    %v8636 = vrcp.pop %v8620
    %v8637 = vmul.f32 %v8620, %v8636
    %v8638 = vsub.f32 1.0, %v8637
    %v8639 = vmul.f32 %v8636, %v8638
    %v8640 = vadd.f32 %v8636, %v8639
    %vm8641 = vweird.f32 %v8620
    %vm8642 = vweird.f32 %v8636
    %vm8643 = vmor %vm8641, %vm8642
    %v8644 = vsel %vm8643, %v8636, %v8640
    %v8645 = vand.u32 2147483647, %v8620
    %vm8646 = vcmp.eq.f32.partialorder %v8645, 8.507059e+37
    %v8647 = vand.u32 %v8620, 2147483648
    %v8648 = vor.u32 1.1754944e-38, %v8647
    %v8649 = vsel %vm8646, %v8648, %v8644
    %v8650 = vmul.f32 1.0, %v8649
    %v8651 = vtanh.pop %v8571
    %v8652 = vtanh.pop %v8572
    %v8653 = vxor.u32 %v8573, 2147483648
    %v8654 = vxor.u32 %v8574, 2147483648
    %v8655 = vmul.f32 %v8653, 1.442695
    %v8656 = vpow.pop %v8655
    %v8657 = vmul.f32 %v8654, 1.442695
    %v8658 = vpow.pop %v8657
    %v8659 = vadd.f32 %v8656, 1.0
    %v8660 = vadd.f32 %v8658, 1.0
    %v8661 = vrcp.pop %v8659
    %v8662 = vmul.f32 %v8659, %v8661
    %v8663 = vsub.f32 1.0, %v8662
    %v8664 = vmul.f32 %v8661, %v8663
    %v8665 = vadd.f32 %v8661, %v8664
    %vm8666 = vweird.f32 %v8659
    %vm8667 = vweird.f32 %v8661
    %vm8668 = vmor %vm8666, %vm8667
    %v8669 = vsel %vm8668, %v8661, %v8665
    %v8670 = vand.u32 2147483647, %v8659
    %vm8671 = vcmp.eq.f32.partialorder %v8670, 8.507059e+37
    %v8672 = vand.u32 %v8659, 2147483648
    %v8673 = vor.u32 1.1754944e-38, %v8672
    %v8674 = vsel %vm8671, %v8673, %v8669
    %v8675 = vmul.f32 1.0, %v8674
    %v8676 = vrcp.pop %v8660
    %v8677 = vmul.f32 %v8660, %v8676
    %v8678 = vsub.f32 1.0, %v8677
    %v8679 = vmul.f32 %v8676, %v8678
    %v8680 = vadd.f32 %v8676, %v8679
    %vm8681 = vweird.f32 %v8660
    %vm8682 = vweird.f32 %v8676
    %vm8683 = vmor %vm8681, %vm8682
    %v8684 = vsel %vm8683, %v8676, %v8680
    %v8685 = vand.u32 2147483647, %v8660
    %vm8686 = vcmp.eq.f32.partialorder %v8685, 8.507059e+37
    %v8687 = vand.u32 %v8660, 2147483648
    %v8688 = vor.u32 1.1754944e-38, %v8687
    %v8689 = vsel %vm8686, %v8688, %v8684
    %v8690 = vmul.f32 1.0, %v8689
    %v8691 = vmul.f32 %v8635, %v7566
    %v8692 = vmul.f32 %v8650, %v7567
    %v8693 = vmul.f32 %v8597, %v8651
    %v8694 = vmul.f32 %v8612, %v8652
    %v8695 = vadd.f32 %v8691, %v8693
    %v8696 = vadd.f32 %v8692, %v8694
    %v8697 = vtanh.pop %v8695
    %v8698 = vtanh.pop %v8696
    %v8699 = vmul.f32 %v8675, %v8697
    %v8700 = vmul.f32 %v8690, %v8698
    %v8701 = vpack.c.bf16 %v8700, %v8699
    %s8702 = scalar_lea.vmem [#allocation3], 48
    %8703 = vst [vmem:[%s8702] sm:$0xff] %v8701
    %s8704 = scalar_lea.vmem [#allocation2], 448
    %v8705 = vld [vmem:[%s8704] sm:$0xff]
    %v8706 = vld [vmem:[%s8704 + $0x8] sm:$0xff]
    %v8707 = vld [vmem:[%s8704 + $0x10] sm:$0xff]
    %v8708 = vld [vmem:[%s8704 + $0x18] sm:$0xff]
    %v8709 = vld [vmem:[%s8704 + $0x20] sm:$0xff]
    %v8710 = vld [vmem:[%s8704 + $0x28] sm:$0xff]
    %v8711 = vld [vmem:[%s8704 + $0x30] sm:$0xff]
    %v8712 = vld [vmem:[%s8704 + $0x38] sm:$0xff]
    %v8713 = vld [vmem:[#allocation6] sm:$0xff]
    %v8714 = vld [vmem:[#allocation6 + $0x8] sm:$0xff]
    %v8715 = vld [vmem:[#allocation6 + $0x10] sm:$0xff]
    %v8716 = vld [vmem:[#allocation6 + $0x18] sm:$0xff]
    %v8717 = vld [vmem:[#allocation6 + $0x20] sm:$0xff]
    %v8718 = vld [vmem:[#allocation6 + $0x28] sm:$0xff]
    %v8719 = vld [vmem:[#allocation6 + $0x30] sm:$0xff]
    %v8720 = vld [vmem:[#allocation6 + $0x38] sm:$0xff]
    %v8721 = vld [vmem:[#allocation6 + $0x40] sm:$0xff]
    %v8722 = vld [vmem:[#allocation6 + $0x48] sm:$0xff]
    %v8723 = vld [vmem:[#allocation6 + $0x50] sm:$0xff]
    %v8724 = vld [vmem:[#allocation6 + $0x58] sm:$0xff]
    %v8725 = vld [vmem:[#allocation6 + $0x60] sm:$0xff]
    %v8726 = vld [vmem:[#allocation6 + $0x68] sm:$0xff]
    %v8727 = vld [vmem:[#allocation6 + $0x70] sm:$0xff]
    %v8728 = vld [vmem:[#allocation6 + $0x78] sm:$0xff]
    %v8729 = vld [vmem:[#allocation6 + $0x80] sm:$0xff]
    %v8730 = vld [vmem:[#allocation6 + $0x88] sm:$0xff]
    %v8731 = vld [vmem:[#allocation6 + $0x90] sm:$0xff]
    %v8732 = vld [vmem:[#allocation6 + $0x98] sm:$0xff]
    %v8733 = vld [vmem:[#allocation6 + $0xa0] sm:$0xff]
    %v8734 = vld [vmem:[#allocation6 + $0xa8] sm:$0xff]
    %v8735 = vld [vmem:[#allocation6 + $0xb0] sm:$0xff]
    %v8736 = vld [vmem:[#allocation6 + $0xb8] sm:$0xff]
    %v8737 = vld [vmem:[#allocation6 + $0xc0] sm:$0xff]
    %v8738 = vld [vmem:[#allocation6 + $0xc8] sm:$0xff]
    %v8739 = vld [vmem:[#allocation6 + $0xd0] sm:$0xff]
    %v8740 = vld [vmem:[#allocation6 + $0xd8] sm:$0xff]
    %v8741 = vld [vmem:[#allocation6 + $0xe0] sm:$0xff]
    %v8742 = vld [vmem:[#allocation6 + $0xe8] sm:$0xff]
    %v8743 = vld [vmem:[#allocation6 + $0xf0] sm:$0xff]
    %v8744 = vld [vmem:[#allocation6 + $0xf8] sm:$0xff]
    %v8745 = vld [vmem:[#allocation6 + $0x100] sm:$0xff]
    %v8746 = vld [vmem:[#allocation6 + $0x108] sm:$0xff]
    %v8747 = vld [vmem:[#allocation6 + $0x110] sm:$0xff]
    %v8748 = vld [vmem:[#allocation6 + $0x118] sm:$0xff]
    %v8749 = vld [vmem:[#allocation6 + $0x120] sm:$0xff]
    %v8750 = vld [vmem:[#allocation6 + $0x128] sm:$0xff]
    %v8751 = vld [vmem:[#allocation6 + $0x130] sm:$0xff]
    %v8752 = vld [vmem:[#allocation6 + $0x138] sm:$0xff]
    %v8753 = vld [vmem:[#allocation6 + $0x140] sm:$0xff]
    %v8754 = vld [vmem:[#allocation6 + $0x148] sm:$0xff]
    %v8755 = vld [vmem:[#allocation6 + $0x150] sm:$0xff]
    %v8756 = vld [vmem:[#allocation6 + $0x158] sm:$0xff]
    %v8757 = vld [vmem:[#allocation6 + $0x160] sm:$0xff]
    %v8758 = vld [vmem:[#allocation6 + $0x168] sm:$0xff]
    %v8759 = vld [vmem:[#allocation6 + $0x170] sm:$0xff]
    %v8760 = vld [vmem:[#allocation6 + $0x178] sm:$0xff]
    %v8761 = vld [vmem:[#allocation6 + $0x180] sm:$0xff]
    %v8762 = vld [vmem:[#allocation6 + $0x188] sm:$0xff]
    %v8763 = vld [vmem:[#allocation6 + $0x190] sm:$0xff]
    %v8764 = vld [vmem:[#allocation6 + $0x198] sm:$0xff]
    %v8765 = vld [vmem:[#allocation6 + $0x1a0] sm:$0xff]
    %v8766 = vld [vmem:[#allocation6 + $0x1a8] sm:$0xff]
    %v8767 = vld [vmem:[#allocation6 + $0x1b0] sm:$0xff]
    %v8768 = vld [vmem:[#allocation6 + $0x1b8] sm:$0xff]
    %v8769 = vld [vmem:[#allocation6 + $0x1c0] sm:$0xff]
    %v8770 = vld [vmem:[#allocation6 + $0x1c8] sm:$0xff]
    %v8771 = vld [vmem:[#allocation6 + $0x1d0] sm:$0xff]
    %v8772 = vld [vmem:[#allocation6 + $0x1d8] sm:$0xff]
    %v8773 = vld [vmem:[#allocation6 + $0x1e0] sm:$0xff]
    %v8774 = vld [vmem:[#allocation6 + $0x1e8] sm:$0xff]
    %v8775 = vld [vmem:[#allocation6 + $0x1f0] sm:$0xff]
    %v8776 = vld [vmem:[#allocation6 + $0x1f8] sm:$0xff]
    %v8777 = vld [vmem:[#allocation6 + $0x200] sm:$0xff]
    %v8778 = vld [vmem:[#allocation6 + $0x208] sm:$0xff]
    %v8779 = vld [vmem:[#allocation6 + $0x210] sm:$0xff]
    %v8780 = vld [vmem:[#allocation6 + $0x218] sm:$0xff]
    %v8781 = vld [vmem:[#allocation6 + $0x220] sm:$0xff]
    %v8782 = vld [vmem:[#allocation6 + $0x228] sm:$0xff]
    %v8783 = vld [vmem:[#allocation6 + $0x230] sm:$0xff]
    %v8784 = vld [vmem:[#allocation6 + $0x238] sm:$0xff]
    %v8785 = vld [vmem:[#allocation6 + $0x240] sm:$0xff]
    %v8786 = vld [vmem:[#allocation6 + $0x248] sm:$0xff]
    %v8787 = vld [vmem:[#allocation6 + $0x250] sm:$0xff]
    %v8788 = vld [vmem:[#allocation6 + $0x258] sm:$0xff]
    %v8789 = vld [vmem:[#allocation6 + $0x260] sm:$0xff]
    %v8790 = vld [vmem:[#allocation6 + $0x268] sm:$0xff]
    %v8791 = vld [vmem:[#allocation6 + $0x270] sm:$0xff]
    %v8792 = vld [vmem:[#allocation6 + $0x278] sm:$0xff]
    %v8793 = vld [vmem:[#allocation6 + $0x280] sm:$0xff]
    %v8794 = vld [vmem:[#allocation6 + $0x288] sm:$0xff]
    %v8795 = vld [vmem:[#allocation6 + $0x290] sm:$0xff]
    %v8796 = vld [vmem:[#allocation6 + $0x298] sm:$0xff]
    %v8797 = vld [vmem:[#allocation6 + $0x2a0] sm:$0xff]
    %v8798 = vld [vmem:[#allocation6 + $0x2a8] sm:$0xff]
    %v8799 = vld [vmem:[#allocation6 + $0x2b0] sm:$0xff]
    %v8800 = vld [vmem:[#allocation6 + $0x2b8] sm:$0xff]
    %v8801 = vld [vmem:[#allocation6 + $0x2c0] sm:$0xff]
    %v8802 = vld [vmem:[#allocation6 + $0x2c8] sm:$0xff]
    %v8803 = vld [vmem:[#allocation6 + $0x2d0] sm:$0xff]
    %v8804 = vld [vmem:[#allocation6 + $0x2d8] sm:$0xff]
    %v8805 = vld [vmem:[#allocation6 + $0x2e0] sm:$0xff]
    %v8806 = vld [vmem:[#allocation6 + $0x2e8] sm:$0xff]
    %v8807 = vld [vmem:[#allocation6 + $0x2f0] sm:$0xff]
    %v8808 = vld [vmem:[#allocation6 + $0x2f8] sm:$0xff]
    %v8809 = vld [vmem:[#allocation6 + $0x300] sm:$0xff]
    %v8810 = vld [vmem:[#allocation6 + $0x308] sm:$0xff]
    %v8811 = vld [vmem:[#allocation6 + $0x310] sm:$0xff]
    %v8812 = vld [vmem:[#allocation6 + $0x318] sm:$0xff]
    %v8813 = vld [vmem:[#allocation6 + $0x320] sm:$0xff]
    %v8814 = vld [vmem:[#allocation6 + $0x328] sm:$0xff]
    %v8815 = vld [vmem:[#allocation6 + $0x330] sm:$0xff]
    %v8816 = vld [vmem:[#allocation6 + $0x338] sm:$0xff]
    %v8817 = vld [vmem:[#allocation6 + $0x340] sm:$0xff]
    %v8818 = vld [vmem:[#allocation6 + $0x348] sm:$0xff]
    %v8819 = vld [vmem:[#allocation6 + $0x350] sm:$0xff]
    %v8820 = vld [vmem:[#allocation6 + $0x358] sm:$0xff]
    %v8821 = vld [vmem:[#allocation6 + $0x360] sm:$0xff]
    %v8822 = vld [vmem:[#allocation6 + $0x368] sm:$0xff]
    %v8823 = vld [vmem:[#allocation6 + $0x370] sm:$0xff]
    %v8824 = vld [vmem:[#allocation6 + $0x378] sm:$0xff]
    %v8825 = vld [vmem:[#allocation6 + $0x380] sm:$0xff]
    %v8826 = vld [vmem:[#allocation6 + $0x388] sm:$0xff]
    %v8827 = vld [vmem:[#allocation6 + $0x390] sm:$0xff]
    %v8828 = vld [vmem:[#allocation6 + $0x398] sm:$0xff]
    %v8829 = vld [vmem:[#allocation6 + $0x3a0] sm:$0xff]
    %v8830 = vld [vmem:[#allocation6 + $0x3a8] sm:$0xff]
    %v8831 = vld [vmem:[#allocation6 + $0x3b0] sm:$0xff]
    %v8832 = vld [vmem:[#allocation6 + $0x3b8] sm:$0xff]
    %v8833 = vld [vmem:[#allocation6 + $0x3c0] sm:$0xff]
    %v8834 = vld [vmem:[#allocation6 + $0x3c8] sm:$0xff]
    %v8835 = vld [vmem:[#allocation6 + $0x3d0] sm:$0xff]
    %v8836 = vld [vmem:[#allocation6 + $0x3d8] sm:$0xff]
    %v8837 = vld [vmem:[#allocation6 + $0x3e0] sm:$0xff]
    %v8838 = vld [vmem:[#allocation6 + $0x3e8] sm:$0xff]
    %v8839 = vld [vmem:[#allocation6 + $0x3f0] sm:$0xff]
    %v8840 = vld [vmem:[#allocation6 + $0x3f8] sm:$0xff]
    %v8842 = vunpack.c.l.b16 %v8701
    %v8843 = vunpack.c.h.b16 %v8701
    %v8844 = vpack.c.b16 %v8842, %v8842
    %v8845 = vpack.c.b16 %v8843, %v8843
    %v8976 = vunpack.c.l.b16 %v8713
    %v8977 = vunpack.c.h.b16 %v8713
    %v8978 = vunpack.c.l.b16 %v8714
    %v8979 = vunpack.c.h.b16 %v8714
    %v8980 = vunpack.c.l.b16 %v8715
    %v8981 = vunpack.c.h.b16 %v8715
    %v8982 = vunpack.c.l.b16 %v8716
    %v8983 = vunpack.c.h.b16 %v8716
    %v8984 = vunpack.c.l.b16 %v8717
    %v8985 = vunpack.c.h.b16 %v8717
    %v8986 = vunpack.c.l.b16 %v8718
    %v8987 = vunpack.c.h.b16 %v8718
    %v8988 = vunpack.c.l.b16 %v8719
    %v8989 = vunpack.c.h.b16 %v8719
    %v8990 = vunpack.c.l.b16 %v8720
    %v8991 = vunpack.c.h.b16 %v8720
    %v8992 = vunpack.c.l.b16 %v8721
    %v8993 = vunpack.c.h.b16 %v8721
    %v8994 = vunpack.c.l.b16 %v8722
    %v8995 = vunpack.c.h.b16 %v8722
    %v8996 = vunpack.c.l.b16 %v8723
    %v8997 = vunpack.c.h.b16 %v8723
    %v8998 = vunpack.c.l.b16 %v8724
    %v8999 = vunpack.c.h.b16 %v8724
    %v9000 = vunpack.c.l.b16 %v8725
    %v9001 = vunpack.c.h.b16 %v8725
    %v9002 = vunpack.c.l.b16 %v8726
    %v9003 = vunpack.c.h.b16 %v8726
    %v9004 = vunpack.c.l.b16 %v8727
    %v9005 = vunpack.c.h.b16 %v8727
    %v9006 = vunpack.c.l.b16 %v8728
    %v9007 = vunpack.c.h.b16 %v8728
    %v9008 = vunpack.c.l.b16 %v8729
    %v9009 = vunpack.c.h.b16 %v8729
    %v9010 = vunpack.c.l.b16 %v8730
    %v9011 = vunpack.c.h.b16 %v8730
    %v9012 = vunpack.c.l.b16 %v8731
    %v9013 = vunpack.c.h.b16 %v8731
    %v9014 = vunpack.c.l.b16 %v8732
    %v9015 = vunpack.c.h.b16 %v8732
    %v9016 = vunpack.c.l.b16 %v8733
    %v9017 = vunpack.c.h.b16 %v8733
    %v9018 = vunpack.c.l.b16 %v8734
    %v9019 = vunpack.c.h.b16 %v8734
    %v9020 = vunpack.c.l.b16 %v8735
    %v9021 = vunpack.c.h.b16 %v8735
    %v9022 = vunpack.c.l.b16 %v8736
    %v9023 = vunpack.c.h.b16 %v8736
    %v9024 = vunpack.c.l.b16 %v8737
    %v9025 = vunpack.c.h.b16 %v8737
    %v9026 = vunpack.c.l.b16 %v8738
    %v9027 = vunpack.c.h.b16 %v8738
    %v9028 = vunpack.c.l.b16 %v8739
    %v9029 = vunpack.c.h.b16 %v8739
    %v9030 = vunpack.c.l.b16 %v8740
    %v9031 = vunpack.c.h.b16 %v8740
    %v9032 = vunpack.c.l.b16 %v8741
    %v9033 = vunpack.c.h.b16 %v8741
    %v9034 = vunpack.c.l.b16 %v8742
    %v9035 = vunpack.c.h.b16 %v8742
    %v9036 = vunpack.c.l.b16 %v8743
    %v9037 = vunpack.c.h.b16 %v8743
    %v9038 = vunpack.c.l.b16 %v8744
    %v9039 = vunpack.c.h.b16 %v8744
    %v9040 = vunpack.c.l.b16 %v8745
    %v9041 = vunpack.c.h.b16 %v8745
    %v9042 = vunpack.c.l.b16 %v8746
    %v9043 = vunpack.c.h.b16 %v8746
    %v9044 = vunpack.c.l.b16 %v8747
    %v9045 = vunpack.c.h.b16 %v8747
    %v9046 = vunpack.c.l.b16 %v8748
    %v9047 = vunpack.c.h.b16 %v8748
    %v9048 = vunpack.c.l.b16 %v8749
    %v9049 = vunpack.c.h.b16 %v8749
    %v9050 = vunpack.c.l.b16 %v8750
    %v9051 = vunpack.c.h.b16 %v8750
    %v9052 = vunpack.c.l.b16 %v8751
    %v9053 = vunpack.c.h.b16 %v8751
    %v9054 = vunpack.c.l.b16 %v8752
    %v9055 = vunpack.c.h.b16 %v8752
    %v9056 = vunpack.c.l.b16 %v8753
    %v9057 = vunpack.c.h.b16 %v8753
    %v9058 = vunpack.c.l.b16 %v8754
    %v9059 = vunpack.c.h.b16 %v8754
    %v9060 = vunpack.c.l.b16 %v8755
    %v9061 = vunpack.c.h.b16 %v8755
    %v9062 = vunpack.c.l.b16 %v8756
    %v9063 = vunpack.c.h.b16 %v8756
    %v9064 = vunpack.c.l.b16 %v8757
    %v9065 = vunpack.c.h.b16 %v8757
    %v9066 = vunpack.c.l.b16 %v8758
    %v9067 = vunpack.c.h.b16 %v8758
    %v9068 = vunpack.c.l.b16 %v8759
    %v9069 = vunpack.c.h.b16 %v8759
    %v9070 = vunpack.c.l.b16 %v8760
    %v9071 = vunpack.c.h.b16 %v8760
    %v9072 = vunpack.c.l.b16 %v8761
    %v9073 = vunpack.c.h.b16 %v8761
    %v9074 = vunpack.c.l.b16 %v8762
    %v9075 = vunpack.c.h.b16 %v8762
    %v9076 = vunpack.c.l.b16 %v8763
    %v9077 = vunpack.c.h.b16 %v8763
    %v9078 = vunpack.c.l.b16 %v8764
    %v9079 = vunpack.c.h.b16 %v8764
    %v9080 = vunpack.c.l.b16 %v8765
    %v9081 = vunpack.c.h.b16 %v8765
    %v9082 = vunpack.c.l.b16 %v8766
    %v9083 = vunpack.c.h.b16 %v8766
    %v9084 = vunpack.c.l.b16 %v8767
    %v9085 = vunpack.c.h.b16 %v8767
    %v9086 = vunpack.c.l.b16 %v8768
    %v9087 = vunpack.c.h.b16 %v8768
    %v9088 = vunpack.c.l.b16 %v8769
    %v9089 = vunpack.c.h.b16 %v8769
    %v9090 = vunpack.c.l.b16 %v8770
    %v9091 = vunpack.c.h.b16 %v8770
    %v9092 = vunpack.c.l.b16 %v8771
    %v9093 = vunpack.c.h.b16 %v8771
    %v9094 = vunpack.c.l.b16 %v8772
    %v9095 = vunpack.c.h.b16 %v8772
    %v9096 = vunpack.c.l.b16 %v8773
    %v9097 = vunpack.c.h.b16 %v8773
    %v9098 = vunpack.c.l.b16 %v8774
    %v9099 = vunpack.c.h.b16 %v8774
    %v9100 = vunpack.c.l.b16 %v8775
    %v9101 = vunpack.c.h.b16 %v8775
    %v9102 = vunpack.c.l.b16 %v8776
    %v9103 = vunpack.c.h.b16 %v8776
    %v9104 = vunpack.c.l.b16 %v8777
    %v9105 = vunpack.c.h.b16 %v8777
    %v9106 = vunpack.c.l.b16 %v8778
    %v9107 = vunpack.c.h.b16 %v8778
    %v9108 = vunpack.c.l.b16 %v8779
    %v9109 = vunpack.c.h.b16 %v8779
    %v9110 = vunpack.c.l.b16 %v8780
    %v9111 = vunpack.c.h.b16 %v8780
    %v9112 = vunpack.c.l.b16 %v8781
    %v9113 = vunpack.c.h.b16 %v8781
    %v9114 = vunpack.c.l.b16 %v8782
    %v9115 = vunpack.c.h.b16 %v8782
    %v9116 = vunpack.c.l.b16 %v8783
    %v9117 = vunpack.c.h.b16 %v8783
    %v9118 = vunpack.c.l.b16 %v8784
    %v9119 = vunpack.c.h.b16 %v8784
    %v9120 = vunpack.c.l.b16 %v8785
    %v9121 = vunpack.c.h.b16 %v8785
    %v9122 = vunpack.c.l.b16 %v8786
    %v9123 = vunpack.c.h.b16 %v8786
    %v9124 = vunpack.c.l.b16 %v8787
    %v9125 = vunpack.c.h.b16 %v8787
    %v9126 = vunpack.c.l.b16 %v8788
    %v9127 = vunpack.c.h.b16 %v8788
    %v9128 = vunpack.c.l.b16 %v8789
    %v9129 = vunpack.c.h.b16 %v8789
    %v9130 = vunpack.c.l.b16 %v8790
    %v9131 = vunpack.c.h.b16 %v8790
    %v9132 = vunpack.c.l.b16 %v8791
    %v9133 = vunpack.c.h.b16 %v8791
    %v9134 = vunpack.c.l.b16 %v8792
    %v9135 = vunpack.c.h.b16 %v8792
    %v9136 = vunpack.c.l.b16 %v8793
    %v9137 = vunpack.c.h.b16 %v8793
    %v9138 = vunpack.c.l.b16 %v8794
    %v9139 = vunpack.c.h.b16 %v8794
    %v9140 = vunpack.c.l.b16 %v8795
    %v9141 = vunpack.c.h.b16 %v8795
    %v9142 = vunpack.c.l.b16 %v8796
    %v9143 = vunpack.c.h.b16 %v8796
    %v9144 = vunpack.c.l.b16 %v8797
    %v9145 = vunpack.c.h.b16 %v8797
    %v9146 = vunpack.c.l.b16 %v8798
    %v9147 = vunpack.c.h.b16 %v8798
    %v9148 = vunpack.c.l.b16 %v8799
    %v9149 = vunpack.c.h.b16 %v8799
    %v9150 = vunpack.c.l.b16 %v8800
    %v9151 = vunpack.c.h.b16 %v8800
    %v9152 = vunpack.c.l.b16 %v8801
    %v9153 = vunpack.c.h.b16 %v8801
    %v9154 = vunpack.c.l.b16 %v8802
    %v9155 = vunpack.c.h.b16 %v8802
    %v9156 = vunpack.c.l.b16 %v8803
    %v9157 = vunpack.c.h.b16 %v8803
    %v9158 = vunpack.c.l.b16 %v8804
    %v9159 = vunpack.c.h.b16 %v8804
    %v9160 = vunpack.c.l.b16 %v8805
    %v9161 = vunpack.c.h.b16 %v8805
    %v9162 = vunpack.c.l.b16 %v8806
    %v9163 = vunpack.c.h.b16 %v8806
    %v9164 = vunpack.c.l.b16 %v8807
    %v9165 = vunpack.c.h.b16 %v8807
    %v9166 = vunpack.c.l.b16 %v8808
    %v9167 = vunpack.c.h.b16 %v8808
    %v9168 = vunpack.c.l.b16 %v8809
    %v9169 = vunpack.c.h.b16 %v8809
    %v9170 = vunpack.c.l.b16 %v8810
    %v9171 = vunpack.c.h.b16 %v8810
    %v9172 = vunpack.c.l.b16 %v8811
    %v9173 = vunpack.c.h.b16 %v8811
    %v9174 = vunpack.c.l.b16 %v8812
    %v9175 = vunpack.c.h.b16 %v8812
    %v9176 = vunpack.c.l.b16 %v8813
    %v9177 = vunpack.c.h.b16 %v8813
    %v9178 = vunpack.c.l.b16 %v8814
    %v9179 = vunpack.c.h.b16 %v8814
    %v9180 = vunpack.c.l.b16 %v8815
    %v9181 = vunpack.c.h.b16 %v8815
    %v9182 = vunpack.c.l.b16 %v8816
    %v9183 = vunpack.c.h.b16 %v8816
    %v9184 = vunpack.c.l.b16 %v8817
    %v9185 = vunpack.c.h.b16 %v8817
    %v9186 = vunpack.c.l.b16 %v8818
    %v9187 = vunpack.c.h.b16 %v8818
    %v9188 = vunpack.c.l.b16 %v8819
    %v9189 = vunpack.c.h.b16 %v8819
    %v9190 = vunpack.c.l.b16 %v8820
    %v9191 = vunpack.c.h.b16 %v8820
    %v9192 = vunpack.c.l.b16 %v8821
    %v9193 = vunpack.c.h.b16 %v8821
    %v9194 = vunpack.c.l.b16 %v8822
    %v9195 = vunpack.c.h.b16 %v8822
    %v9196 = vunpack.c.l.b16 %v8823
    %v9197 = vunpack.c.h.b16 %v8823
    %v9198 = vunpack.c.l.b16 %v8824
    %v9199 = vunpack.c.h.b16 %v8824
    %v9200 = vunpack.c.l.b16 %v8825
    %v9201 = vunpack.c.h.b16 %v8825
    %v9202 = vunpack.c.l.b16 %v8826
    %v9203 = vunpack.c.h.b16 %v8826
    %v9204 = vunpack.c.l.b16 %v8827
    %v9205 = vunpack.c.h.b16 %v8827
    %v9206 = vunpack.c.l.b16 %v8828
    %v9207 = vunpack.c.h.b16 %v8828
    %v9208 = vunpack.c.l.b16 %v8829
    %v9209 = vunpack.c.h.b16 %v8829
    %v9210 = vunpack.c.l.b16 %v8830
    %v9211 = vunpack.c.h.b16 %v8830
    %v9212 = vunpack.c.l.b16 %v8831
    %v9213 = vunpack.c.h.b16 %v8831
    %v9214 = vunpack.c.l.b16 %v8832
    %v9215 = vunpack.c.h.b16 %v8832
    %v9216 = vunpack.c.l.b16 %v8833
    %v9217 = vunpack.c.h.b16 %v8833
    %v9218 = vunpack.c.l.b16 %v8834
    %v9219 = vunpack.c.h.b16 %v8834
    %v9220 = vunpack.c.l.b16 %v8835
    %v9221 = vunpack.c.h.b16 %v8835
    %v9222 = vunpack.c.l.b16 %v8836
    %v9223 = vunpack.c.h.b16 %v8836
    %v9224 = vunpack.c.l.b16 %v8837
    %v9225 = vunpack.c.h.b16 %v8837
    %v9226 = vunpack.c.l.b16 %v8838
    %v9227 = vunpack.c.h.b16 %v8838
    %v9228 = vunpack.c.l.b16 %v8839
    %v9229 = vunpack.c.h.b16 %v8839
    %v9230 = vunpack.c.l.b16 %v8840
    %v9231 = vunpack.c.h.b16 %v8840
    %v9232 = vpack.c.b16 %v8984, %v8976
    %v9233 = vpack.c.b16 %v8985, %v8977
    %v9234 = vpack.c.b16 %v8986, %v8978
    %v9235 = vpack.c.b16 %v8987, %v8979
    %v9236 = vpack.c.b16 %v8988, %v8980
    %v9237 = vpack.c.b16 %v8989, %v8981
    %v9238 = vpack.c.b16 %v8990, %v8982
    %v9239 = vpack.c.b16 %v8991, %v8983
    %v9240 = vpack.c.b16 %v9000, %v8992
    %v9241 = vpack.c.b16 %v9001, %v8993
    %v9242 = vpack.c.b16 %v9002, %v8994
    %v9243 = vpack.c.b16 %v9003, %v8995
    %v9244 = vpack.c.b16 %v9004, %v8996
    %v9245 = vpack.c.b16 %v9005, %v8997
    %v9246 = vpack.c.b16 %v9006, %v8998
    %v9247 = vpack.c.b16 %v9007, %v8999
    %v9248 = vpack.c.b16 %v9016, %v9008
    %v9249 = vpack.c.b16 %v9017, %v9009
    %v9250 = vpack.c.b16 %v9018, %v9010
    %v9251 = vpack.c.b16 %v9019, %v9011
    %v9252 = vpack.c.b16 %v9020, %v9012
    %v9253 = vpack.c.b16 %v9021, %v9013
    %v9254 = vpack.c.b16 %v9022, %v9014
    %v9255 = vpack.c.b16 %v9023, %v9015
    %v9256 = vpack.c.b16 %v9032, %v9024
    %v9257 = vpack.c.b16 %v9033, %v9025
    %v9258 = vpack.c.b16 %v9034, %v9026
    %v9259 = vpack.c.b16 %v9035, %v9027
    %v9260 = vpack.c.b16 %v9036, %v9028
    %v9261 = vpack.c.b16 %v9037, %v9029
    %v9262 = vpack.c.b16 %v9038, %v9030
    %v9263 = vpack.c.b16 %v9039, %v9031
    %v9264 = vpack.c.b16 %v9048, %v9040
    %v9265 = vpack.c.b16 %v9049, %v9041
    %v9266 = vpack.c.b16 %v9050, %v9042
    %v9267 = vpack.c.b16 %v9051, %v9043
    %v9268 = vpack.c.b16 %v9052, %v9044
    %v9269 = vpack.c.b16 %v9053, %v9045
    %v9270 = vpack.c.b16 %v9054, %v9046
    %v9271 = vpack.c.b16 %v9055, %v9047
    %v9272 = vpack.c.b16 %v9064, %v9056
    %v9273 = vpack.c.b16 %v9065, %v9057
    %v9274 = vpack.c.b16 %v9066, %v9058
    %v9275 = vpack.c.b16 %v9067, %v9059
    %v9276 = vpack.c.b16 %v9068, %v9060
    %v9277 = vpack.c.b16 %v9069, %v9061
    %v9278 = vpack.c.b16 %v9070, %v9062
    %v9279 = vpack.c.b16 %v9071, %v9063
    %v9280 = vpack.c.b16 %v9080, %v9072
    %v9281 = vpack.c.b16 %v9081, %v9073
    %v9282 = vpack.c.b16 %v9082, %v9074
    %v9283 = vpack.c.b16 %v9083, %v9075
    %v9284 = vpack.c.b16 %v9084, %v9076
    %v9285 = vpack.c.b16 %v9085, %v9077
    %v9286 = vpack.c.b16 %v9086, %v9078
    %v9287 = vpack.c.b16 %v9087, %v9079
    %v9288 = vpack.c.b16 %v9096, %v9088
    %v9289 = vpack.c.b16 %v9097, %v9089
    %v9290 = vpack.c.b16 %v9098, %v9090
    %v9291 = vpack.c.b16 %v9099, %v9091
    %v9292 = vpack.c.b16 %v9100, %v9092
    %v9293 = vpack.c.b16 %v9101, %v9093
    %v9294 = vpack.c.b16 %v9102, %v9094
    %v9295 = vpack.c.b16 %v9103, %v9095
    %v9296 = vpack.c.b16 %v9112, %v9104
    %v9297 = vpack.c.b16 %v9113, %v9105
    %v9298 = vpack.c.b16 %v9114, %v9106
    %v9299 = vpack.c.b16 %v9115, %v9107
    %v9300 = vpack.c.b16 %v9116, %v9108
    %v9301 = vpack.c.b16 %v9117, %v9109
    %v9302 = vpack.c.b16 %v9118, %v9110
    %v9303 = vpack.c.b16 %v9119, %v9111
    %v9304 = vpack.c.b16 %v9128, %v9120
    %v9305 = vpack.c.b16 %v9129, %v9121
    %v9306 = vpack.c.b16 %v9130, %v9122
    %v9307 = vpack.c.b16 %v9131, %v9123
    %v9308 = vpack.c.b16 %v9132, %v9124
    %v9309 = vpack.c.b16 %v9133, %v9125
    %v9310 = vpack.c.b16 %v9134, %v9126
    %v9311 = vpack.c.b16 %v9135, %v9127
    %v9312 = vpack.c.b16 %v9144, %v9136
    %v9313 = vpack.c.b16 %v9145, %v9137
    %v9314 = vpack.c.b16 %v9146, %v9138
    %v9315 = vpack.c.b16 %v9147, %v9139
    %v9316 = vpack.c.b16 %v9148, %v9140
    %v9317 = vpack.c.b16 %v9149, %v9141
    %v9318 = vpack.c.b16 %v9150, %v9142
    %v9319 = vpack.c.b16 %v9151, %v9143
    %v9320 = vpack.c.b16 %v9160, %v9152
    %v9321 = vpack.c.b16 %v9161, %v9153
    %v9322 = vpack.c.b16 %v9162, %v9154
    %v9323 = vpack.c.b16 %v9163, %v9155
    %v9324 = vpack.c.b16 %v9164, %v9156
    %v9325 = vpack.c.b16 %v9165, %v9157
    %v9326 = vpack.c.b16 %v9166, %v9158
    %v9327 = vpack.c.b16 %v9167, %v9159
    %v9328 = vpack.c.b16 %v9176, %v9168
    %v9329 = vpack.c.b16 %v9177, %v9169
    %v9330 = vpack.c.b16 %v9178, %v9170
    %v9331 = vpack.c.b16 %v9179, %v9171
    %v9332 = vpack.c.b16 %v9180, %v9172
    %v9333 = vpack.c.b16 %v9181, %v9173
    %v9334 = vpack.c.b16 %v9182, %v9174
    %v9335 = vpack.c.b16 %v9183, %v9175
    %v9336 = vpack.c.b16 %v9192, %v9184
    %v9337 = vpack.c.b16 %v9193, %v9185
    %v9338 = vpack.c.b16 %v9194, %v9186
    %v9339 = vpack.c.b16 %v9195, %v9187
    %v9340 = vpack.c.b16 %v9196, %v9188
    %v9341 = vpack.c.b16 %v9197, %v9189
    %v9342 = vpack.c.b16 %v9198, %v9190
    %v9343 = vpack.c.b16 %v9199, %v9191
    %v9344 = vpack.c.b16 %v9208, %v9200
    %v9345 = vpack.c.b16 %v9209, %v9201
    %v9346 = vpack.c.b16 %v9210, %v9202
    %v9347 = vpack.c.b16 %v9211, %v9203
    %v9348 = vpack.c.b16 %v9212, %v9204
    %v9349 = vpack.c.b16 %v9213, %v9205
    %v9350 = vpack.c.b16 %v9214, %v9206
    %v9351 = vpack.c.b16 %v9215, %v9207
    %v9352 = vpack.c.b16 %v9224, %v9216
    %v9353 = vpack.c.b16 %v9225, %v9217
    %v9354 = vpack.c.b16 %v9226, %v9218
    %v9355 = vpack.c.b16 %v9227, %v9219
    %v9356 = vpack.c.b16 %v9228, %v9220
    %v9357 = vpack.c.b16 %v9229, %v9221
    %v9358 = vpack.c.b16 %v9230, %v9222
    %v9359 = vpack.c.b16 %v9231, %v9223
    %9488 = vmatpush.bf16.msra.mxu0 %v9288
    %9489 = vmatpush.bf16.msra.mxu0 %v9280
    %9490 = vmatpush.bf16.msra.mxu0 %v9272
    %9491 = vmatpush.bf16.msra.mxu0 %v9264
    %9492 = vmatpush.bf16.msra.mxu0 %v9256
    %9493 = vmatpush.bf16.msra.mxu0 %v9248
    %9494 = vmatpush.bf16.msra.mxu0 %v9240
    %9495 = vmatpush.bf16.msra.mxu0 %v9232
    %9496 = vmatmul.bf16.gmra.mxu0 %v8844
    %v9497 = vpop.f32.mrf.mxu0
    %v9498 = vadd.f32 0.0, %v9497
    %v9499 = vpop.f32.mrf.mxu0
    %9500 = vdwg.mxu0
    %9501 = vmatpush.bf16.msra.mxu0 %v9352
    %9502 = vmatpush.bf16.msra.mxu0 %v9344
    %9503 = vmatpush.bf16.msra.mxu0 %v9336
    %9504 = vmatpush.bf16.msra.mxu0 %v9328
    %9505 = vmatpush.bf16.msra.mxu0 %v9320
    %9506 = vmatpush.bf16.msra.mxu0 %v9312
    %9507 = vmatpush.bf16.msra.mxu0 %v9304
    %9508 = vmatpush.bf16.msra.mxu0 %v9296
    %9509 = vmatmul.bf16.gmra.mxu0 %v8845
    %v9510 = vpop.f32.mrf.mxu0
    %v9511 = vadd.f32 %v9498, %v9510
    %v9512 = vpop.f32.mrf.mxu0
    %9513 = vdwg.mxu0
    %9514 = vmatpush.bf16.msra.mxu0 %v9289
    %9515 = vmatpush.bf16.msra.mxu0 %v9281
    %9516 = vmatpush.bf16.msra.mxu0 %v9273
    %9517 = vmatpush.bf16.msra.mxu0 %v9265
    %9518 = vmatpush.bf16.msra.mxu0 %v9257
    %9519 = vmatpush.bf16.msra.mxu0 %v9249
    %9520 = vmatpush.bf16.msra.mxu0 %v9241
    %9521 = vmatpush.bf16.msra.mxu0 %v9233
    %9522 = vmatmul.bf16.gmra.mxu0 %v8844
    %v9523 = vpop.f32.mrf.mxu0
    %v9524 = vadd.f32 0.0, %v9523
    %v9525 = vpop.f32.mrf.mxu0
    %9526 = vdwg.mxu0
    %9527 = vmatpush.bf16.msra.mxu0 %v9353
    %9528 = vmatpush.bf16.msra.mxu0 %v9345
    %9529 = vmatpush.bf16.msra.mxu0 %v9337
    %9530 = vmatpush.bf16.msra.mxu0 %v9329
    %9531 = vmatpush.bf16.msra.mxu0 %v9321
    %9532 = vmatpush.bf16.msra.mxu0 %v9313
    %9533 = vmatpush.bf16.msra.mxu0 %v9305
    %9534 = vmatpush.bf16.msra.mxu0 %v9297
    %9535 = vmatmul.bf16.gmra.mxu0 %v8845
    %v9536 = vpop.f32.mrf.mxu0
    %v9537 = vadd.f32 %v9524, %v9536
    %v9538 = vpop.f32.mrf.mxu0
    %9539 = vdwg.mxu0
    %9540 = vmatpush.bf16.msra.mxu0 %v9290
    %9541 = vmatpush.bf16.msra.mxu0 %v9282
    %9542 = vmatpush.bf16.msra.mxu0 %v9274
    %9543 = vmatpush.bf16.msra.mxu0 %v9266
    %9544 = vmatpush.bf16.msra.mxu0 %v9258
    %9545 = vmatpush.bf16.msra.mxu0 %v9250
    %9546 = vmatpush.bf16.msra.mxu0 %v9242
    %9547 = vmatpush.bf16.msra.mxu0 %v9234
    %9548 = vmatmul.bf16.gmra.mxu0 %v8844
    %v9549 = vpop.f32.mrf.mxu0
    %v9550 = vadd.f32 0.0, %v9549
    %v9551 = vpop.f32.mrf.mxu0
    %9552 = vdwg.mxu0
    %9553 = vmatpush.bf16.msra.mxu0 %v9354
    %9554 = vmatpush.bf16.msra.mxu0 %v9346
    %9555 = vmatpush.bf16.msra.mxu0 %v9338
    %9556 = vmatpush.bf16.msra.mxu0 %v9330
    %9557 = vmatpush.bf16.msra.mxu0 %v9322
    %9558 = vmatpush.bf16.msra.mxu0 %v9314
    %9559 = vmatpush.bf16.msra.mxu0 %v9306
    %9560 = vmatpush.bf16.msra.mxu0 %v9298
    %9561 = vmatmul.bf16.gmra.mxu0 %v8845
    %v9562 = vpop.f32.mrf.mxu0
    %v9563 = vadd.f32 %v9550, %v9562
    %v9564 = vpop.f32.mrf.mxu0
    %9565 = vdwg.mxu0
    %9566 = vmatpush.bf16.msra.mxu0 %v9291
    %9567 = vmatpush.bf16.msra.mxu0 %v9283
    %9568 = vmatpush.bf16.msra.mxu0 %v9275
    %9569 = vmatpush.bf16.msra.mxu0 %v9267
    %9570 = vmatpush.bf16.msra.mxu0 %v9259
    %9571 = vmatpush.bf16.msra.mxu0 %v9251
    %9572 = vmatpush.bf16.msra.mxu0 %v9243
    %9573 = vmatpush.bf16.msra.mxu0 %v9235
    %9574 = vmatmul.bf16.gmra.mxu0 %v8844
    %v9575 = vpop.f32.mrf.mxu0
    %v9576 = vadd.f32 0.0, %v9575
    %v9577 = vpop.f32.mrf.mxu0
    %9578 = vdwg.mxu0
    %9579 = vmatpush.bf16.msra.mxu0 %v9355
    %9580 = vmatpush.bf16.msra.mxu0 %v9347
    %9581 = vmatpush.bf16.msra.mxu0 %v9339
    %9582 = vmatpush.bf16.msra.mxu0 %v9331
    %9583 = vmatpush.bf16.msra.mxu0 %v9323
    %9584 = vmatpush.bf16.msra.mxu0 %v9315
    %9585 = vmatpush.bf16.msra.mxu0 %v9307
    %9586 = vmatpush.bf16.msra.mxu0 %v9299
    %9587 = vmatmul.bf16.gmra.mxu0 %v8845
    %v9588 = vpop.f32.mrf.mxu0
    %v9589 = vadd.f32 %v9576, %v9588
    %v9590 = vpop.f32.mrf.mxu0
    %9591 = vdwg.mxu0
    %9592 = vmatpush.bf16.msra.mxu0 %v9292
    %9593 = vmatpush.bf16.msra.mxu0 %v9284
    %9594 = vmatpush.bf16.msra.mxu0 %v9276
    %9595 = vmatpush.bf16.msra.mxu0 %v9268
    %9596 = vmatpush.bf16.msra.mxu0 %v9260
    %9597 = vmatpush.bf16.msra.mxu0 %v9252
    %9598 = vmatpush.bf16.msra.mxu0 %v9244
    %9599 = vmatpush.bf16.msra.mxu0 %v9236
    %9600 = vmatmul.bf16.gmra.mxu0 %v8844
    %v9601 = vpop.f32.mrf.mxu0
    %v9602 = vadd.f32 0.0, %v9601
    %v9603 = vpop.f32.mrf.mxu0
    %9604 = vdwg.mxu0
    %9605 = vmatpush.bf16.msra.mxu0 %v9356
    %9606 = vmatpush.bf16.msra.mxu0 %v9348
    %9607 = vmatpush.bf16.msra.mxu0 %v9340
    %9608 = vmatpush.bf16.msra.mxu0 %v9332
    %9609 = vmatpush.bf16.msra.mxu0 %v9324
    %9610 = vmatpush.bf16.msra.mxu0 %v9316
    %9611 = vmatpush.bf16.msra.mxu0 %v9308
    %9612 = vmatpush.bf16.msra.mxu0 %v9300
    %9613 = vmatmul.bf16.gmra.mxu0 %v8845
    %v9614 = vpop.f32.mrf.mxu0
    %v9615 = vadd.f32 %v9602, %v9614
    %v9616 = vpop.f32.mrf.mxu0
    %9617 = vdwg.mxu0
    %9618 = vmatpush.bf16.msra.mxu0 %v9293
    %9619 = vmatpush.bf16.msra.mxu0 %v9285
    %9620 = vmatpush.bf16.msra.mxu0 %v9277
    %9621 = vmatpush.bf16.msra.mxu0 %v9269
    %9622 = vmatpush.bf16.msra.mxu0 %v9261
    %9623 = vmatpush.bf16.msra.mxu0 %v9253
    %9624 = vmatpush.bf16.msra.mxu0 %v9245
    %9625 = vmatpush.bf16.msra.mxu0 %v9237
    %9626 = vmatmul.bf16.gmra.mxu0 %v8844
    %v9627 = vpop.f32.mrf.mxu0
    %v9628 = vadd.f32 0.0, %v9627
    %v9629 = vpop.f32.mrf.mxu0
    %9630 = vdwg.mxu0
    %9631 = vmatpush.bf16.msra.mxu0 %v9357
    %9632 = vmatpush.bf16.msra.mxu0 %v9349
    %9633 = vmatpush.bf16.msra.mxu0 %v9341
    %9634 = vmatpush.bf16.msra.mxu0 %v9333
    %9635 = vmatpush.bf16.msra.mxu0 %v9325
    %9636 = vmatpush.bf16.msra.mxu0 %v9317
    %9637 = vmatpush.bf16.msra.mxu0 %v9309
    %9638 = vmatpush.bf16.msra.mxu0 %v9301
    %9639 = vmatmul.bf16.gmra.mxu0 %v8845
    %v9640 = vpop.f32.mrf.mxu0
    %v9641 = vadd.f32 %v9628, %v9640
    %v9642 = vpop.f32.mrf.mxu0
    %9643 = vdwg.mxu0
    %9644 = vmatpush.bf16.msra.mxu0 %v9294
    %9645 = vmatpush.bf16.msra.mxu0 %v9286
    %9646 = vmatpush.bf16.msra.mxu0 %v9278
    %9647 = vmatpush.bf16.msra.mxu0 %v9270
    %9648 = vmatpush.bf16.msra.mxu0 %v9262
    %9649 = vmatpush.bf16.msra.mxu0 %v9254
    %9650 = vmatpush.bf16.msra.mxu0 %v9246
    %9651 = vmatpush.bf16.msra.mxu0 %v9238
    %9652 = vmatmul.bf16.gmra.mxu0 %v8844
    %v9653 = vpop.f32.mrf.mxu0
    %v9654 = vadd.f32 0.0, %v9653
    %v9655 = vpop.f32.mrf.mxu0
    %9656 = vdwg.mxu0
    %9657 = vmatpush.bf16.msra.mxu0 %v9358
    %9658 = vmatpush.bf16.msra.mxu0 %v9350
    %9659 = vmatpush.bf16.msra.mxu0 %v9342
    %9660 = vmatpush.bf16.msra.mxu0 %v9334
    %9661 = vmatpush.bf16.msra.mxu0 %v9326
    %9662 = vmatpush.bf16.msra.mxu0 %v9318
    %9663 = vmatpush.bf16.msra.mxu0 %v9310
    %9664 = vmatpush.bf16.msra.mxu0 %v9302
    %9665 = vmatmul.bf16.gmra.mxu0 %v8845
    %v9666 = vpop.f32.mrf.mxu0
    %v9667 = vadd.f32 %v9654, %v9666
    %v9668 = vpop.f32.mrf.mxu0
    %9669 = vdwg.mxu0
    %9670 = vmatpush.bf16.msra.mxu0 %v9295
    %9671 = vmatpush.bf16.msra.mxu0 %v9287
    %9672 = vmatpush.bf16.msra.mxu0 %v9279
    %9673 = vmatpush.bf16.msra.mxu0 %v9271
    %9674 = vmatpush.bf16.msra.mxu0 %v9263
    %9675 = vmatpush.bf16.msra.mxu0 %v9255
    %9676 = vmatpush.bf16.msra.mxu0 %v9247
    %9677 = vmatpush.bf16.msra.mxu0 %v9239
    %9678 = vmatmul.bf16.gmra.mxu0 %v8844
    %v9679 = vpop.f32.mrf.mxu0
    %v9680 = vadd.f32 0.0, %v9679
    %v9681 = vpop.f32.mrf.mxu0
    %9682 = vdwg.mxu0
    %9683 = vmatpush.bf16.msra.mxu0 %v9359
    %9684 = vmatpush.bf16.msra.mxu0 %v9351
    %9685 = vmatpush.bf16.msra.mxu0 %v9343
    %9686 = vmatpush.bf16.msra.mxu0 %v9335
    %9687 = vmatpush.bf16.msra.mxu0 %v9327
    %9688 = vmatpush.bf16.msra.mxu0 %v9319
    %9689 = vmatpush.bf16.msra.mxu0 %v9311
    %9690 = vmatpush.bf16.msra.mxu0 %v9303
    %9691 = vmatmul.bf16.gmra.mxu0 %v8845
    %v9692 = vpop.f32.mrf.mxu0
    %v9693 = vadd.f32 %v9680, %v9692
    %v9694 = vpop.f32.mrf.mxu0
    %9695 = vdwg.mxu0
    %v9696 = vadd.f32 %v8705, %v9511
    %v9697 = vadd.f32 %v8706, %v9537
    %v9698 = vadd.f32 %v8707, %v9563
    %v9699 = vadd.f32 %v8708, %v9589
    %v9700 = vadd.f32 %v8709, %v9615
    %v9701 = vadd.f32 %v8710, %v9641
    %v9702 = vadd.f32 %v8711, %v9667
    %v9703 = vadd.f32 %v8712, %v9693
    %v9704 = vxor.u32 %v9696, 2147483648
    %v9705 = vxor.u32 %v9697, 2147483648
    %v9706 = vmul.f32 %v9704, 1.442695
    %v9707 = vpow.pop %v9706
    %v9708 = vmul.f32 %v9705, 1.442695
    %v9709 = vpow.pop %v9708
    %v9710 = vadd.f32 %v9707, 1.0
    %v9711 = vadd.f32 %v9709, 1.0
    %v9712 = vrcp.pop %v9710
    %v9713 = vmul.f32 %v9710, %v9712
    %v9714 = vsub.f32 1.0, %v9713
    %v9715 = vmul.f32 %v9712, %v9714
    %v9716 = vadd.f32 %v9712, %v9715
    %vm9717 = vweird.f32 %v9710
    %vm9718 = vweird.f32 %v9712
    %vm9719 = vmor %vm9717, %vm9718
    %v9720 = vsel %vm9719, %v9712, %v9716
    %v9721 = vand.u32 2147483647, %v9710
    %vm9722 = vcmp.eq.f32.partialorder %v9721, 8.507059e+37
    %v9723 = vand.u32 %v9710, 2147483648
    %v9724 = vor.u32 1.1754944e-38, %v9723
    %v9725 = vsel %vm9722, %v9724, %v9720
    %v9726 = vmul.f32 1.0, %v9725
    %v9727 = vrcp.pop %v9711
    %v9728 = vmul.f32 %v9711, %v9727
    %v9729 = vsub.f32 1.0, %v9728
    %v9730 = vmul.f32 %v9727, %v9729
    %v9731 = vadd.f32 %v9727, %v9730
    %vm9732 = vweird.f32 %v9711
    %vm9733 = vweird.f32 %v9727
    %vm9734 = vmor %vm9732, %vm9733
    %v9735 = vsel %vm9734, %v9727, %v9731
    %v9736 = vand.u32 2147483647, %v9711
    %vm9737 = vcmp.eq.f32.partialorder %v9736, 8.507059e+37
    %v9738 = vand.u32 %v9711, 2147483648
    %v9739 = vor.u32 1.1754944e-38, %v9738
    %v9740 = vsel %vm9737, %v9739, %v9735
    %v9741 = vmul.f32 1.0, %v9740
    %v9742 = vxor.u32 %v9698, 2147483648
    %v9743 = vxor.u32 %v9699, 2147483648
    %v9744 = vmul.f32 %v9742, 1.442695
    %v9745 = vpow.pop %v9744
    %v9746 = vmul.f32 %v9743, 1.442695
    %v9747 = vpow.pop %v9746
    %v9748 = vadd.f32 %v9745, 1.0
    %v9749 = vadd.f32 %v9747, 1.0
    %v9750 = vrcp.pop %v9748
    %v9751 = vmul.f32 %v9748, %v9750
    %v9752 = vsub.f32 1.0, %v9751
    %v9753 = vmul.f32 %v9750, %v9752
    %v9754 = vadd.f32 %v9750, %v9753
    %vm9755 = vweird.f32 %v9748
    %vm9756 = vweird.f32 %v9750
    %vm9757 = vmor %vm9755, %vm9756
    %v9758 = vsel %vm9757, %v9750, %v9754
    %v9759 = vand.u32 2147483647, %v9748
    %vm9760 = vcmp.eq.f32.partialorder %v9759, 8.507059e+37
    %v9761 = vand.u32 %v9748, 2147483648
    %v9762 = vor.u32 1.1754944e-38, %v9761
    %v9763 = vsel %vm9760, %v9762, %v9758
    %v9764 = vmul.f32 1.0, %v9763
    %v9765 = vrcp.pop %v9749
    %v9766 = vmul.f32 %v9749, %v9765
    %v9767 = vsub.f32 1.0, %v9766
    %v9768 = vmul.f32 %v9765, %v9767
    %v9769 = vadd.f32 %v9765, %v9768
    %vm9770 = vweird.f32 %v9749
    %vm9771 = vweird.f32 %v9765
    %vm9772 = vmor %vm9770, %vm9771
    %v9773 = vsel %vm9772, %v9765, %v9769
    %v9774 = vand.u32 2147483647, %v9749
    %vm9775 = vcmp.eq.f32.partialorder %v9774, 8.507059e+37
    %v9776 = vand.u32 %v9749, 2147483648
    %v9777 = vor.u32 1.1754944e-38, %v9776
    %v9778 = vsel %vm9775, %v9777, %v9773
    %v9779 = vmul.f32 1.0, %v9778
    %v9780 = vtanh.pop %v9700
    %v9781 = vtanh.pop %v9701
    %v9782 = vxor.u32 %v9702, 2147483648
    %v9783 = vxor.u32 %v9703, 2147483648
    %v9784 = vmul.f32 %v9782, 1.442695
    %v9785 = vpow.pop %v9784
    %v9786 = vmul.f32 %v9783, 1.442695
    %v9787 = vpow.pop %v9786
    %v9788 = vadd.f32 %v9785, 1.0
    %v9789 = vadd.f32 %v9787, 1.0
    %v9790 = vrcp.pop %v9788
    %v9791 = vmul.f32 %v9788, %v9790
    %v9792 = vsub.f32 1.0, %v9791
    %v9793 = vmul.f32 %v9790, %v9792
    %v9794 = vadd.f32 %v9790, %v9793
    %vm9795 = vweird.f32 %v9788
    %vm9796 = vweird.f32 %v9790
    %vm9797 = vmor %vm9795, %vm9796
    %v9798 = vsel %vm9797, %v9790, %v9794
    %v9799 = vand.u32 2147483647, %v9788
    %vm9800 = vcmp.eq.f32.partialorder %v9799, 8.507059e+37
    %v9801 = vand.u32 %v9788, 2147483648
    %v9802 = vor.u32 1.1754944e-38, %v9801
    %v9803 = vsel %vm9800, %v9802, %v9798
    %v9804 = vmul.f32 1.0, %v9803
    %v9805 = vrcp.pop %v9789
    %v9806 = vmul.f32 %v9789, %v9805
    %v9807 = vsub.f32 1.0, %v9806
    %v9808 = vmul.f32 %v9805, %v9807
    %v9809 = vadd.f32 %v9805, %v9808
    %vm9810 = vweird.f32 %v9789
    %vm9811 = vweird.f32 %v9805
    %vm9812 = vmor %vm9810, %vm9811
    %v9813 = vsel %vm9812, %v9805, %v9809
    %v9814 = vand.u32 2147483647, %v9789
    %vm9815 = vcmp.eq.f32.partialorder %v9814, 8.507059e+37
    %v9816 = vand.u32 %v9789, 2147483648
    %v9817 = vor.u32 1.1754944e-38, %v9816
    %v9818 = vsel %vm9815, %v9817, %v9813
    %v9819 = vmul.f32 1.0, %v9818
    %v9820 = vmul.f32 %v9764, %v8695
    %v9821 = vmul.f32 %v9779, %v8696
    %v9822 = vmul.f32 %v9726, %v9780
    %v9823 = vmul.f32 %v9741, %v9781
    %v9824 = vadd.f32 %v9820, %v9822
    %v9825 = vadd.f32 %v9821, %v9823
    %v9826 = vtanh.pop %v9824
    %v9827 = vtanh.pop %v9825
    %v9828 = vmul.f32 %v9804, %v9826
    %v9829 = vmul.f32 %v9819, %v9827
    %v9830 = vpack.c.bf16 %v9829, %v9828
    %s9831 = scalar_lea.vmem [#allocation3], 56
    %9832 = vst [vmem:[%s9831] sm:$0xff] %v9830
    %v9833 = vld [vmem:[#allocation3] sm:$0xff]
    %v9834 = vld [vmem:[#allocation3 + $0x8] sm:$0xff]
    %v9835 = vld [vmem:[#allocation3 + $0x10] sm:$0xff]
    %v9836 = vld [vmem:[#allocation3 + $0x18] sm:$0xff]
    %v9837 = vld [vmem:[#allocation3 + $0x20] sm:$0xff]
    %v9838 = vld [vmem:[#allocation3 + $0x28] sm:$0xff]
    %v9839 = vld [vmem:[#allocation3 + $0x30] sm:$0xff]
    %v9840 = vld [vmem:[#allocation3 + $0x38] sm:$0xff]
    %v9841 = vld [vmem:[%s4] sm:$0xf]
    %v9842 = vld [vmem:[%s4 + $0x4] sm:$0xf]
    %v9843 = vld [vmem:[%s4 + $0x8] sm:$0xf]
    %v9844 = vld [vmem:[%s4 + $0xc] sm:$0xf]
    %v9845 = vld [vmem:[%s4 + $0x10] sm:$0xf]
    %v9846 = vld [vmem:[%s4 + $0x14] sm:$0xf]
    %v9847 = vld [vmem:[%s4 + $0x18] sm:$0xf]
    %v9848 = vld [vmem:[%s4 + $0x1c] sm:$0xf]
    %v9849 = vld [vmem:[%s4 + $0x20] sm:$0xf]
    %v9850 = vld [vmem:[%s4 + $0x24] sm:$0xf]
    %v9851 = vld [vmem:[%s4 + $0x28] sm:$0xf]
    %v9852 = vld [vmem:[%s4 + $0x2c] sm:$0xf]
    %v9853 = vld [vmem:[%s4 + $0x30] sm:$0xf]
    %v9854 = vld [vmem:[%s4 + $0x34] sm:$0xf]
    %v9855 = vld [vmem:[%s4 + $0x38] sm:$0xf]
    %v9856 = vld [vmem:[%s4 + $0x3c] sm:$0xf]
    %v9857 = vld [vmem:[%s4 + $0x40] sm:$0xf]
    %v9858 = vld [vmem:[%s4 + $0x44] sm:$0xf]
    %v9859 = vld [vmem:[%s4 + $0x48] sm:$0xf]
    %v9860 = vld [vmem:[%s4 + $0x4c] sm:$0xf]
    %v9861 = vld [vmem:[%s4 + $0x50] sm:$0xf]
    %v9862 = vld [vmem:[%s4 + $0x54] sm:$0xf]
    %v9863 = vld [vmem:[%s4 + $0x58] sm:$0xf]
    %v9864 = vld [vmem:[%s4 + $0x5c] sm:$0xf]
    %v9865 = vld [vmem:[%s4 + $0x60] sm:$0xf]
    %v9866 = vld [vmem:[%s4 + $0x64] sm:$0xf]
    %v9867 = vld [vmem:[%s4 + $0x68] sm:$0xf]
    %v9868 = vld [vmem:[%s4 + $0x6c] sm:$0xf]
    %v9869 = vld [vmem:[%s4 + $0x70] sm:$0xf]
    %v9870 = vld [vmem:[%s4 + $0x74] sm:$0xf]
    %v9871 = vld [vmem:[%s4 + $0x78] sm:$0xf]
    %v9872 = vld [vmem:[%s4 + $0x7c] sm:$0xf]
    %v9873 = vld [vmem:[%s5] sm:$0x1]
    %v9875 = vperm.slane %v9873, 0
    %v9885 = vunpack.c.l.b16 %v9833
    %v9886 = vunpack.c.h.b16 %v9833
    %v9887 = vunpack.c.l.b16 %v9834
    %v9888 = vunpack.c.h.b16 %v9834
    %v9889 = vunpack.c.l.b16 %v9835
    %v9890 = vunpack.c.h.b16 %v9835
    %v9891 = vunpack.c.l.b16 %v9836
    %v9892 = vunpack.c.h.b16 %v9836
    %v9893 = vunpack.c.l.b16 %v9837
    %v9894 = vunpack.c.h.b16 %v9837
    %v9895 = vunpack.c.l.b16 %v9838
    %v9896 = vunpack.c.h.b16 %v9838
    %v9897 = vunpack.c.l.b16 %v9839
    %v9898 = vunpack.c.h.b16 %v9839
    %v9899 = vunpack.c.l.b16 %v9840
    %v9900 = vunpack.c.h.b16 %v9840
    %v9901 = vpack.c.b16 %v9887, %v9885
    %v9902 = vpack.c.b16 %v9888, %v9886
    %v9903 = vpack.c.b16 %v9891, %v9889
    %v9904 = vpack.c.b16 %v9892, %v9890
    %v9905 = vpack.c.b16 %v9895, %v9893
    %v9906 = vpack.c.b16 %v9896, %v9894
    %v9907 = vpack.c.b16 %v9899, %v9897
    %v9908 = vpack.c.b16 %v9900, %v9898
    %v9949 = vunpack.c.l.b16 %v9841
    %v9950 = vunpack.c.l.b16 %v9842
    %v9951 = vunpack.c.l.b16 %v9843
    %v9952 = vunpack.c.l.b16 %v9844
    %v9953 = vunpack.c.l.b16 %v9845
    %v9954 = vunpack.c.l.b16 %v9846
    %v9955 = vunpack.c.l.b16 %v9847
    %v9956 = vunpack.c.l.b16 %v9848
    %v9957 = vunpack.c.l.b16 %v9849
    %v9958 = vunpack.c.l.b16 %v9850
    %v9959 = vunpack.c.l.b16 %v9851
    %v9960 = vunpack.c.l.b16 %v9852
    %v9961 = vunpack.c.l.b16 %v9853
    %v9962 = vunpack.c.l.b16 %v9854
    %v9963 = vunpack.c.l.b16 %v9855
    %v9964 = vunpack.c.l.b16 %v9856
    %v9965 = vunpack.c.l.b16 %v9857
    %v9966 = vunpack.c.l.b16 %v9858
    %v9967 = vunpack.c.l.b16 %v9859
    %v9968 = vunpack.c.l.b16 %v9860
    %v9969 = vunpack.c.l.b16 %v9861
    %v9970 = vunpack.c.l.b16 %v9862
    %v9971 = vunpack.c.l.b16 %v9863
    %v9972 = vunpack.c.l.b16 %v9864
    %v9973 = vunpack.c.l.b16 %v9865
    %v9974 = vunpack.c.l.b16 %v9866
    %v9975 = vunpack.c.l.b16 %v9867
    %v9976 = vunpack.c.l.b16 %v9868
    %v9977 = vunpack.c.l.b16 %v9869
    %v9978 = vunpack.c.l.b16 %v9870
    %v9979 = vunpack.c.l.b16 %v9871
    %v9980 = vunpack.c.l.b16 %v9872
    %v9981 = vpack.c.b16 %v9950, %v9949
    %v9982 = vpack.c.b16 %v9952, %v9951
    %v9983 = vpack.c.b16 %v9954, %v9953
    %v9984 = vpack.c.b16 %v9956, %v9955
    %v9985 = vpack.c.b16 %v9958, %v9957
    %v9986 = vpack.c.b16 %v9960, %v9959
    %v9987 = vpack.c.b16 %v9962, %v9961
    %v9988 = vpack.c.b16 %v9964, %v9963
    %v9989 = vpack.c.b16 %v9966, %v9965
    %v9990 = vpack.c.b16 %v9968, %v9967
    %v9991 = vpack.c.b16 %v9970, %v9969
    %v9992 = vpack.c.b16 %v9972, %v9971
    %v9993 = vpack.c.b16 %v9974, %v9973
    %v9994 = vpack.c.b16 %v9976, %v9975
    %v9995 = vpack.c.b16 %v9978, %v9977
    %v9996 = vpack.c.b16 %v9980, %v9979
    %10013 = vmatpush.bf16.msra.mxu0 %v9988
    %10014 = vmatpush.bf16.msra.mxu0 %v9987
    %10015 = vmatpush.bf16.msra.mxu0 %v9986
    %10016 = vmatpush.bf16.msra.mxu0 %v9985
    %10017 = vmatpush.bf16.msra.mxu0 %v9984
    %10018 = vmatpush.bf16.msra.mxu0 %v9983
    %10019 = vmatpush.bf16.msra.mxu0 %v9982
    %10020 = vmatpush.bf16.msra.mxu0 %v9981
    %10021 = vmatmul.bf16.gmra.mxu0 %v9901
    %v10022 = vpop.f32.mrf.mxu0
    %v10023 = vadd.f32 %v9875, %v10022
    %v10024 = vpop.f32.mrf.mxu0
    %v10025 = vadd.f32 %v9875, %v10024
    %10026 = vmatmul.bf16.gmra.mxu0 %v9903
    %v10027 = vpop.f32.mrf.mxu0
    %v10028 = vadd.f32 %v9875, %v10027
    %v10029 = vpop.f32.mrf.mxu0
    %v10030 = vadd.f32 %v9875, %v10029
    %10031 = vmatmul.bf16.gmra.mxu0 %v9905
    %v10032 = vpop.f32.mrf.mxu0
    %v10033 = vadd.f32 %v9875, %v10032
    %v10034 = vpop.f32.mrf.mxu0
    %v10035 = vadd.f32 %v9875, %v10034
    %10036 = vmatmul.bf16.gmra.mxu0 %v9907
    %v10037 = vpop.f32.mrf.mxu0
    %v10038 = vadd.f32 %v9875, %v10037
    %v10039 = vpop.f32.mrf.mxu0
    %v10040 = vadd.f32 %v9875, %v10039
    %10041 = vdwg.mxu0
    %10042 = vmatpush.bf16.msra.mxu0 %v9996
    %10043 = vmatpush.bf16.msra.mxu0 %v9995
    %10044 = vmatpush.bf16.msra.mxu0 %v9994
    %10045 = vmatpush.bf16.msra.mxu0 %v9993
    %10046 = vmatpush.bf16.msra.mxu0 %v9992
    %10047 = vmatpush.bf16.msra.mxu0 %v9991
    %10048 = vmatpush.bf16.msra.mxu0 %v9990
    %10049 = vmatpush.bf16.msra.mxu0 %v9989
    %10050 = vmatmul.bf16.gmra.mxu0 %v9902
    %v10051 = vpop.f32.mrf.mxu0
    %v10052 = vadd.f32 %v10023, %v10051
    %v10053 = vpop.f32.mrf.mxu0
    %v10054 = vadd.f32 %v10025, %v10053
    %10055 = vmatmul.bf16.gmra.mxu0 %v9904
    %v10056 = vpop.f32.mrf.mxu0
    %v10057 = vadd.f32 %v10028, %v10056
    %v10058 = vpop.f32.mrf.mxu0
    %v10059 = vadd.f32 %v10030, %v10058
    %10060 = vmatmul.bf16.gmra.mxu0 %v9906
    %v10061 = vpop.f32.mrf.mxu0
    %v10062 = vadd.f32 %v10033, %v10061
    %v10063 = vpop.f32.mrf.mxu0
    %v10064 = vadd.f32 %v10035, %v10063
    %10065 = vmatmul.bf16.gmra.mxu0 %v9908
    %v10066 = vpop.f32.mrf.mxu0
    %v10067 = vadd.f32 %v10038, %v10066
    %v10068 = vpop.f32.mrf.mxu0
    %v10069 = vadd.f32 %v10040, %v10068
    %10070 = vdwg.mxu0
    %10071 = vst [vmem:[%s6] sm:$0xff] %v10052
    %10072 = vst [vmem:[%s6 + $0x8] sm:$0xff] %v10054
    %10073 = vst [vmem:[%s6 + $0x10] sm:$0xff] %v10057
    %10074 = vst [vmem:[%s6 + $0x18] sm:$0xff] %v10059
    %10075 = vst [vmem:[%s6 + $0x20] sm:$0xff] %v10062
    %10076 = vst [vmem:[%s6 + $0x28] sm:$0xff] %v10064
    %10077 = vst [vmem:[%s6 + $0x30] sm:$0xff] %v10067
    %10078 = vst [vmem:[%s6 + $0x38] sm:$0xff] %v10069
    // Predicated region
    $region34: #{lstm_forward.1} parent=1 // pred_check
      _
    $region35: #{lstm_forward.1} parent=1 // pred_check_branch
      %10080 = sbr.rel (0) target = $region37
    $region36: #{lstm_forward.1} parent=1 // pred_region
      _
    $region37: #{lstm_forward.1} parent=1 // pred_fallthru
      _
    // Predicated region
    $region38: #{lstm_forward.1} parent=1 // pred_check
      _
    $region39: #{lstm_forward.1} parent=1 // pred_check_branch
      %10082 = sbr.rel (0) target = $region41
    $region40: #{lstm_forward.1} parent=1 // pred_region
      _
    $region41: #{lstm_forward.1} parent=1 // pred_fallthru
      _
    %10083 = vsyncpa [#allocation5], 1
    %10084 = vsyncpa [#allocation7], 1

</llo_original>
